<compile_context>
chip_gen: v5e
topology: v5e:2x2
jax: 0.10.0
libtpu: 0.0.40
codegen_flags: <defaults>
</compile_context>

<pallas_src>
import functools

import jax
import jax.numpy as jnp
from jax.experimental import pallas as pl
from jax.experimental.pallas import tpu as pltpu


VMEM_LIMIT = 32 * 1024 * 1024  # raise v5e's 16 MiB default; matches v6e/v7x default.


# ----------------------------------------------------------------------------
# helpers
# ----------------------------------------------------------------------------
def _pick_tile(dim, candidates):
    for c in candidates:
        if dim % c == 0:
            return c
    return dim  # full extent is always a legal block size


def _cparams(dims):
    return pltpu.CompilerParams(dimension_semantics=dims,
                                vmem_limit_bytes=VMEM_LIMIT)


# ----------------------------------------------------------------------------
# Pallas kernels
# ----------------------------------------------------------------------------
def _conv3x3_relu_kernel(x_ref, w_ref, b_ref, o_ref):
    # x_ref: (1, H+2, W+2, Cin) bf16 (zero-padded by 1 on H/W)
    # w_ref: (3, 3*Cin, Cout) bf16, K index ordered (kw, cin)
    # b_ref: (1, Cout) f32
    # o_ref: (1, H*W, Cout) bf16   (rows ordered (h, w))
    _, Hp, Wp, Cin = x_ref.shape
    H, W = Hp - 2, Wp - 2
    Cout = o_ref.shape[-1]

    # Fold the 3 kw taps into the contraction dim: one lane-concat of the three
    # W-shifted slices, reused by all three kh dots.
    xcat = jnp.concatenate(
        [x_ref[0, :, 0:W, :],
         x_ref[0, :, 1:W + 1, :],
         x_ref[0, :, 2:W + 2, :]], axis=-1)               # (H+2, W, 3*Cin)

    acc = jnp.zeros((H * W, Cout), jnp.float32)
    for kh in range(3):
        xs = xcat[kh:kh + H].reshape(H * W, 3 * Cin)      # (H*W, 3*Cin)
        acc = acc + jnp.dot(xs, w_ref[kh],
                            preferred_element_type=jnp.float32)
    o_ref[0] = jnp.maximum(acc + b_ref[...], 0.0).astype(o_ref.dtype)


def _matmul_bias_act_kernel(x_ref, w_ref, b_ref, o_ref, *, relu):
    # x: (tm, K) bf16; w: (K, tn) bf16; b: (1, tn) f32; o: (tm, tn)
    acc = jnp.dot(x_ref[...], w_ref[...],
                  preferred_element_type=jnp.float32) + b_ref[...]
    if relu:
        acc = jnp.maximum(acc, 0.0)
    o_ref[...] = acc.astype(o_ref.dtype)


def _fc_bidir_kernel(hf_ref, hb_ref, w1_ref, w2_ref, b_ref, o_ref):
    # fused fc(concat([h_fwd, h_bwd])) without materializing the concat.
    acc = jnp.dot(hf_ref[...], w1_ref[...], preferred_element_type=jnp.float32)
    acc = acc + jnp.dot(hb_ref[...], w2_ref[...],
                        preferred_element_type=jnp.float32)
    o_ref[...] = (acc + b_ref[...]).astype(o_ref.dtype)


def _bilstm_kernel(gx_ref, whh_ref, o_ref, h_ref, c_ref):
    # One direction per grid point.  Grid = (direction, time-block).
    # gx_ref : (TB, N, 4H) bf16  precomputed x@Wih + b for this direction/block
    # whh_ref: (H, 4H) bf16      recurrent weights for this direction
    # o_ref  : (TB, N, H) bf16   hidden-state outputs for this direction/block
    # h_ref/c_ref: (N, H) f32 carries (per-core scratch).
    TB = gx_ref.shape[0]
    Hh = h_ref.shape[-1]
    d = pl.program_id(0)

    @pl.when(pl.program_id(1) == 0)
    def _():
        h_ref[...] = jnp.zeros_like(h_ref)
        c_ref[...] = jnp.zeros_like(c_ref)

    def sigmoid(z):
        # single EUP op per gate (vs exp + reciprocal).
        return 0.5 * jnp.tanh(0.5 * z) + 0.5

    # TB is small and static: plain Python unroll.  The forward direction (d=0)
    # walks the block 0..TB-1; the backward direction (d=1) walks TB-1..0, and its
    # blocks arrive in reversed order via the index_map.
    for i in range(TB):
        t = (1 - d) * i + d * (TB - 1 - i)
        gates = gx_ref[t].astype(jnp.float32) + jnp.dot(
            h_ref[...].astype(jnp.bfloat16), whh_ref[...],
            preferred_element_type=jnp.float32)
        ig = sigmoid(gates[:, 0 * Hh:1 * Hh])
        fg = sigmoid(gates[:, 1 * Hh:2 * Hh])
        gg = jnp.tanh(gates[:, 2 * Hh:3 * Hh])
        og = sigmoid(gates[:, 3 * Hh:4 * Hh])
        c_new = fg * c_ref[...] + ig * gg
        h_new = og * jnp.tanh(c_new)
        h_ref[...] = h_new
        c_ref[...] = c_new
        o_ref[t] = h_new.astype(o_ref.dtype)


# ----------------------------------------------------------------------------
# Wrappers around pallas_call
# ----------------------------------------------------------------------------
def conv3x3_relu(x, wk, b):
    # x: (N, H, W, Cin) bf16; wk: (3, 3*Cin, Cout) bf16; b: (1, Cout) f32
    N, H, W, Cin = x.shape
    Cout = wk.shape[-1]
    xp = jnp.pad(x, ((0, 0), (1, 1), (1, 1), (0, 0)))
    out = pl.pallas_call(
        _conv3x3_relu_kernel,
        out_shape=jax.ShapeDtypeStruct((N, H * W, Cout), jnp.bfloat16),
        grid_spec=pltpu.PrefetchScalarGridSpec(
            num_scalar_prefetch=0,
            grid=(N,),
            in_specs=[
                pl.BlockSpec((1, H + 2, W + 2, Cin), lambda n: (n, 0, 0, 0)),
                pl.BlockSpec((3, 3 * Cin, Cout), lambda n: (0, 0, 0)),
                pl.BlockSpec((1, Cout), lambda n: (0, 0)),
            ],
            out_specs=pl.BlockSpec((1, H * W, Cout), lambda n: (n, 0, 0)),
        ),
        compiler_params=_cparams(("parallel",)),
    )(xp, wk, b)
    return out.reshape(N, H, W, Cout)


def maxpool2x2(x):
    # TODO(synk): fuse into the preceding conv epilogue to save an HBM round-trip.
    N, H, W, C = x.shape
    return x.reshape(N, H // 2, 2, W // 2, 2, C).max(axis=(2, 4))


def matmul_bias_act(x, w, b, *, relu, out_dtype):
    # x: (M, K) bf16; w: (K, Nout) bf16; b: (1, Nout) f32 -> (M, Nout) out_dtype
    M, K = x.shape
    Nout = w.shape[1]
    tm = _pick_tile(M, (512, 256, 128, 64, 32, 16, 8))
    tn = _pick_tile(Nout, (512, 256, 128))       # capped at 512 for v5e VMEM
    kernel = functools.partial(_matmul_bias_act_kernel, relu=relu)
    return pl.pallas_call(
        kernel,
        out_shape=jax.ShapeDtypeStruct((M, Nout), out_dtype),
        grid_spec=pltpu.PrefetchScalarGridSpec(
            num_scalar_prefetch=0,
            grid=(M // tm, Nout // tn),
            in_specs=[
                pl.BlockSpec((tm, K), lambda i, j: (i, 0)),
                pl.BlockSpec((K, tn), lambda i, j: (0, j)),
                pl.BlockSpec((1, tn), lambda i, j: (0, j)),
            ],
            out_specs=pl.BlockSpec((tm, tn), lambda i, j: (i, j)),
        ),
        compiler_params=_cparams(("parallel", "parallel")),
    )(x, w, b)


def bilstm(gx, whh_stack, Hh):
    # gx: (T, N, 8H) bf16, cols [0,4H)=fwd, [4H,8H)=bwd.
    # whh_stack: (2, H, 4H) bf16.  Returns (2, T, N, H) bf16 (dir 0 = fwd).
    T, N, _ = gx.shape
    TB = _pick_tile(T, (8, 4, 2, 1))
    nb = T // TB
    return pl.pallas_call(
        _bilstm_kernel,
        out_shape=jax.ShapeDtypeStruct((2, T, N, Hh), jnp.bfloat16),
        grid_spec=pltpu.PrefetchScalarGridSpec(
            num_scalar_prefetch=0,
            grid=(2, nb),
            in_specs=[
                # forward direction reads time blocks in order, backward reversed.
                pl.BlockSpec((TB, N, 4 * Hh),
                             lambda d, s: (d * (nb - 1 - s) + (1 - d) * s, 0, d)),
                pl.BlockSpec((None, Hh, 4 * Hh), lambda d, s: (d, 0, 0)),
            ],
            out_specs=pl.BlockSpec(
                (None, TB, N, Hh),
                lambda d, s: (d, d * (nb - 1 - s) + (1 - d) * s, 0, 0)),
            scratch_shapes=[
                pltpu.VMEM((N, Hh), jnp.float32),   # h carry
                pltpu.VMEM((N, Hh), jnp.float32),   # c carry
            ],
        ),
        # direction axis "parallel": on v7x each TensorCore runs one direction;
        # time axis "arbitrary": sequential carries.
        compiler_params=_cparams(("parallel", "arbitrary")),
    )(gx, whh_stack)


def fc_bidir(h_all, w1, w2, b):
    # h_all: (2, M, H) bf16 (dir 0 = fwd); w1/w2: (H, Cpad) bf16; b: (1, Cpad) f32
    _, M, Hh = h_all.shape
    Cpad = w1.shape[1]
    tm = _pick_tile(M, (512, 256, 128, 64, 32, 16, 8))
    return pl.pallas_call(
        _fc_bidir_kernel,
        out_shape=jax.ShapeDtypeStruct((M, Cpad), jnp.float32),
        grid_spec=pltpu.PrefetchScalarGridSpec(
            num_scalar_prefetch=0,
            grid=(M // tm,),
            in_specs=[
                pl.BlockSpec((None, tm, Hh), lambda i: (0, i, 0)),
                pl.BlockSpec((None, tm, Hh), lambda i: (1, i, 0)),
                pl.BlockSpec((Hh, Cpad), lambda i: (0, 0)),
                pl.BlockSpec((Hh, Cpad), lambda i: (0, 0)),
                pl.BlockSpec((1, Cpad), lambda i: (0, 0)),
            ],
            out_specs=pl.BlockSpec((tm, Cpad), lambda i: (i, 0)),
        ),
        compiler_params=_cparams(("parallel",)),
    )(h_all, h_all, w1, w2, b)


# ----------------------------------------------------------------------------
# Full forward pass (mirrors Net.forward)
# ----------------------------------------------------------------------------
def crnn_forward(x_nchw, params, classes_num):
    # layout: x_nchw is (N, 3, H, W) as in PyTorch; compute uses NHWC bf16.
    x = jnp.transpose(x_nchw, (0, 2, 3, 1)).astype(jnp.bfloat16)
    N, H, W, _ = x.shape

    # conv1 (Cin=3): im2col to K=27 in the wrapper (tiny), fused matmul+bias+ReLU.
    xp = jnp.pad(x, ((0, 0), (1, 1), (1, 1), (0, 0)))
    cols = jnp.concatenate([xp[:, kh:kh + H, kw:kw + W, :]
                            for kh in range(3) for kw in range(3)], axis=-1)
    c1_out = params["c1_w"].shape[-1]
    x = matmul_bias_act(cols.reshape(N * H * W, cols.shape[-1]),
                        params["c1_w"], params["c1_b"],
                        relu=True, out_dtype=jnp.bfloat16)
    x = x.reshape(N, H, W, c1_out)

    x = conv3x3_relu(x, params["c2_w"], params["c2_b"])
    x = maxpool2x2(x)
    x = conv3x3_relu(x, params["c3_w"], params["c3_b"])
    x = conv3x3_relu(x, params["c4_w"], params["c4_b"])
    x = maxpool2x2(x)                                        # (N, H/4, W/4, 128)

    # torch: (N, C, H4, W4).permute(3,0,1,2).view(W4, N, C*H4).
    # We keep channels minor (cheap, minor-dim-preserving copy) and fold the
    # (c*H4+h) -> (h*C+c) feature reordering into Wih at init.
    N2, H4, W4, C = x.shape
    seq = jnp.transpose(x, (2, 0, 1, 3)).reshape(W4, N2, H4 * C)  # (T, N, I) bf16
    T, _, I = seq.shape
    Hh = I

    # hoisted LSTM input projection for BOTH directions: one tiled MXU matmul;
    # gx stored bf16 (halves the HBM intermediate feeding the serial LSTM).
    gx = matmul_bias_act(seq.reshape(T * N2, I), params["wih_cat"],
                         params["b_cat"], relu=False, out_dtype=jnp.bfloat16)
    gx = gx.reshape(T, N2, 8 * Hh)

    h_all = bilstm(gx, params["whh_stack"], Hh)              # (2, T, N, H) bf16

    logits = fc_bidir(h_all.reshape(2, T * N2, Hh),
                      params["fc_w1"], params["fc_w2"], params["fc_b"])
    return logits[:, :classes_num].reshape(T, N2, classes_num)   # (T, N, classes)


# ----------------------------------------------------------------------------
# Deterministic synthetic parameters (torch layouts -> kernel layouts)
# ----------------------------------------------------------------------------
def _uniform(key, shape, fan_in):
    k = 1.0 / jnp.sqrt(jnp.float32(fan_in))
    return jax.random.uniform(key, shape, jnp.float32, -k, k)


def init_params(key, image_shape, classes_num):
    Himg = image_shape[0]
    I = Himg // 2 // 2 * 128          # lstm_input_size
    Hh = I                            # hidden_size == lstm_input_size
    H4 = Himg // 4
    ks = jax.random.split(key, 18)
    bf16, f32 = jnp.bfloat16, jnp.float32
    p = {}

    def conv(kw, kb, cout, cin, flat):
        w = _uniform(kw, (cout, cin, 3, 3), cin * 9)               # torch layout
        b = _uniform(kb, (cout,), cin * 9)
        wt = jnp.transpose(w, (2, 3, 1, 0))                        # (kh, kw, Cin, Cout)
        wk = wt.reshape(9 * cin, cout) if flat else wt.reshape(3, 3 * cin, cout)
        return wk.astype(bf16), b.reshape(1, cout).astype(f32)

    p["c1_w"], p["c1_b"] = conv(ks[0], ks[1], 64, 3, True)    # (27, 64) im2col weight
    p["c2_w"], p["c2_b"] = conv(ks[2], ks[3], 64, 64, False)
    p["c3_w"], p["c3_b"] = conv(ks[4], ks[5], 128, 64, False)
    p["c4_w"], p["c4_b"] = conv(ks[6], ks[7], 128, 128, False)

    # torch LSTM input feature index is (c*H4 + h); our seq features are (h*128 + c).
    perm = (jnp.arange(H4)[:, None] + jnp.arange(128)[None, :] * H4).reshape(-1)

    def lstm_dir(k0, k1, k2, k3):
        wih = _uniform(k0, (4 * Hh, I), Hh)      # torch layout (4H, in)
        whh = _uniform(k1, (4 * Hh, Hh), Hh)     # torch layout (4H, H)
        bih = _uniform(k2, (4 * Hh,), Hh)
        bhh = _uniform(k3, (4 * Hh,), Hh)
        return wih.T[perm], whh.T, bih + bhh

    wih_f, whh_f, b_f = lstm_dir(ks[8], ks[9], ks[10], ks[11])
    wih_b, whh_b, b_b = lstm_dir(ks[12], ks[13], ks[14], ks[15])
    p["wih_cat"] = jnp.concatenate([wih_f, wih_b], axis=1).astype(bf16)   # (I, 8H)
    p["b_cat"] = jnp.concatenate([b_f, b_b]).reshape(1, 8 * Hh).astype(f32)
    p["whh_stack"] = jnp.stack([whh_f, whh_b], axis=0).astype(bf16)       # (2, H, 4H)

    fc_w = _uniform(ks[16], (classes_num, 2 * Hh), 2 * Hh)       # torch layout
    fc_b = _uniform(ks[17], (classes_num,), 2 * Hh)
    cpad = ((classes_num + 127) // 128) * 128                    # lane-dense output
    w1 = jnp.zeros((Hh, cpad), f32).at[:, :classes_num].set(fc_w[:, :Hh].T)
    w2 = jnp.zeros((Hh, cpad), f32).at[:, :classes_num].set(fc_w[:, Hh:].T)
    p["fc_w1"], p["fc_w2"] = w1.astype(bf16), w2.astype(bf16)
    p["fc_b"] = jnp.zeros((1, cpad), f32).at[0, :classes_num].set(fc_b)
    return p


# ----------------------------------------------------------------------------
if __name__ == "__main__":
    image_shape = (8, 16)       # (H, W)  -> lstm_input_size = 8//4*128 = 256
    classes_num = 10
    batch = 2

    x = jax.random.normal(jax.random.PRNGKey(0),
                          (batch, 3, image_shape[0], image_shape[1]),
                          jnp.float32)
    params = init_params(jax.random.PRNGKey(1), image_shape, classes_num)

    fwd = jax.jit(functools.partial(crnn_forward, classes_num=classes_num))
    out = jax.block_until_ready(fwd(x, params))

    T_expected = image_shape[1] // 4
    assert out.shape == (T_expected, batch, classes_num), out.shape
    assert jnp.all(jnp.isfinite(out)), "non-finite output"
    print("KERNEL_OK")
</pallas_src>

<mosaic_0001>
module attributes {stable_mosaic.version = 11 : i64} {
  func.func @_matmul_bias_act_kernel(%arg0: i32, %arg1: i32, %arg2: memref<256x27xbf16, #tpu.memory_space<vmem>>, %arg3: memref<27x64xbf16, #tpu.memory_space<vmem>>, %arg4: memref<1x64xf32, #tpu.memory_space<vmem>>, %arg5: memref<256x64xbf16, #tpu.memory_space<vmem>>) attributes {dimension_semantics = [#tpu.dimension_semantics<parallel>, #tpu.dimension_semantics<parallel>], iteration_bounds = array<i64: 1, 1>, scalar_prefetch = 0 : i64, scratch_operands = 0 : i64, tpu.core_type = #tpu.core_type<tc>, window_params = [{transform_indices = @transform_0, window_bounds = array<i64: 256, 27>}, {transform_indices = @transform_1, window_bounds = array<i64: 27, 64>}, {transform_indices = @transform_2, window_bounds = array<i64: 1, 64>}, {transform_indices = @transform_3, window_bounds = array<i64: 256, 64>}]} {
    %c0 = arith.constant 0 : index
    %c0_0 = arith.constant 0 : index
    %0 = vector.load %arg2[%c0, %c0_0] : memref<256x27xbf16, #tpu.memory_space<vmem>>, vector<256x27xbf16>
    %c0_1 = arith.constant 0 : index
    %c0_2 = arith.constant 0 : index
    %1 = vector.load %arg3[%c0_1, %c0_2] : memref<27x64xbf16, #tpu.memory_space<vmem>>, vector<27x64xbf16>
    %cst = arith.constant dense<0.000000e+00> : vector<256x64xf32>
    %2 = tpu.matmul %0, %1, %cst {dimension_numbers = #tpu.dot_dimension_numbers<[1], [0], [0], [1], [0, 0, 1, 1], [], []>} : vector<256x27xbf16>, vector<27x64xbf16>, vector<256x64xf32> -> vector<256x64xf32>
    %c0_3 = arith.constant 0 : index
    %c0_4 = arith.constant 0 : index
    %3 = vector.load %arg4[%c0_3, %c0_4] : memref<1x64xf32, #tpu.memory_space<vmem>>, vector<1x64xf32>
    %4 = vector.broadcast %3 : vector<1x64xf32> to vector<256x64xf32>
    %5 = arith.addf %2, %4 : vector<256x64xf32>
    %cst_5 = arith.constant 0.000000e+00 : f32
    %6 = vector.broadcast %cst_5 : f32 to vector<256x64xf32>
    %7 = arith.maximumf %5, %6 : vector<256x64xf32>
    %8 = arith.truncf %7 : vector<256x64xf32> to vector<256x64xbf16>
    %c0_6 = arith.constant 0 : index
    %c0_7 = arith.constant 0 : index
    %9 = vector.load %arg5[%c0_6, %c0_7] : memref<256x64xbf16, #tpu.memory_space<vmem>>, vector<256x64xbf16>
    tpu.vector_store %arg5[%c0_6, %c0_7], %8 {strides = array<i32>} : memref<256x64xbf16, #tpu.memory_space<vmem>>, vector<256x64xbf16>,
    return
  }
  func.func @transform_0(%arg0: i32, %arg1: i32) -> (i32, i32) {
    %c0_i32 = arith.constant 0 : i32
    %c0_i32_0 = arith.constant 0 : i32
    return %arg0, %c0_i32 : i32, i32
  }
  func.func @transform_1(%arg0: i32, %arg1: i32) -> (i32, i32) {
    %c0_i32 = arith.constant 0 : i32
    %c0_i32_0 = arith.constant 0 : i32
    return %c0_i32, %arg1 : i32, i32
  }
  func.func @transform_2(%arg0: i32, %arg1: i32) -> (i32, i32) {
    %c0_i32 = arith.constant 0 : i32
    %c0_i32_0 = arith.constant 0 : i32
    return %c0_i32, %arg1 : i32, i32
  }
  func.func @transform_3(%arg0: i32, %arg1: i32) -> (i32, i32) {
    %c0_i32 = arith.constant 0 : i32
    return %arg0, %arg1 : i32, i32
  }
}

module attributes {stable_mosaic.version = 11 : i64} {
  func.func @_conv3x3_relu_kernel(%arg0: i32, %arg1: memref<1x6x10x64xbf16, #tpu.memory_space<vmem>>, %arg2: memref<3x192x128xbf16, #tpu.memory_space<vmem>>, %arg3: memref<1x128xf32, #tpu.memory_space<vmem>>, %arg4: memref<1x32x128xbf16, #tpu.memory_space<vmem>>) attributes {dimension_semantics = [#tpu.dimension_semantics<parallel>], iteration_bounds = array<i64: 2>, scalar_prefetch = 0 : i64, scratch_operands = 0 : i64, tpu.core_type = #tpu.core_type<tc>, window_params = [{transform_indices = @transform_0, window_bounds = array<i64: 1, 6, 10, 64>}, {pipeline_mode = #tpu.pipeline_mode<synchronous>, transform_indices = @transform_1, window_bounds = array<i64: 3, 192, 128>}, {pipeline_mode = #tpu.pipeline_mode<synchronous>, transform_indices = @transform_2, window_bounds = array<i64: 1, 128>}, {transform_indices = @transform_3, window_bounds = array<i64: 1, 32, 128>}]} {
    %c0 = arith.constant 0 : index
    %c0_0 = arith.constant 0 : index
    %c0_1 = arith.constant 0 : index
    %c0_2 = arith.constant 0 : index
    %0 = vector.load %arg1[%c0, %c0_0, %c0_1, %c0_2] : memref<1x6x10x64xbf16, #tpu.memory_space<vmem>>, vector<1x6x8x64xbf16>
    %1 = vector.shape_cast %0 : vector<1x6x8x64xbf16> to vector<6x8x64xbf16>
    %c0_3 = arith.constant 0 : index
    %c0_4 = arith.constant 0 : index
    %c1 = arith.constant 1 : index
    %c0_5 = arith.constant 0 : index
    %2 = vector.load %arg1[%c0_3, %c0_4, %c1, %c0_5] : memref<1x6x10x64xbf16, #tpu.memory_space<vmem>>, vector<1x6x8x64xbf16>
    %3 = vector.shape_cast %2 : vector<1x6x8x64xbf16> to vector<6x8x64xbf16>
    %c0_6 = arith.constant 0 : index
    %c0_7 = arith.constant 0 : index
    %c2 = arith.constant 2 : index
    %c0_8 = arith.constant 0 : index
    %4 = vector.load %arg1[%c0_6, %c0_7, %c2, %c0_8] : memref<1x6x10x64xbf16, #tpu.memory_space<vmem>>, vector<1x6x8x64xbf16>
    %5 = vector.shape_cast %4 : vector<1x6x8x64xbf16> to vector<6x8x64xbf16>
    %6 = tpu.concatenate %1, %3, %5 in 2 : vector<6x8x64xbf16>, vector<6x8x64xbf16>, vector<6x8x64xbf16> -> vector<6x8x192xbf16>
    %cst = arith.constant 0.000000e+00 : f32
    %7 = vector.broadcast %cst : f32 to vector<32x128xf32>
    %8 = vector.extract_strided_slice %6 {offsets = [0, 0, 0], sizes = [4, 8, 192], strides = [1, 1, 1]} : vector<6x8x192xbf16> to vector<4x8x192xbf16>
    %9 = vector.shape_cast %8 : vector<4x8x192xbf16> to vector<32x192xbf16>
    %c0_9 = arith.constant 0 : index
    %c0_10 = arith.constant 0 : index
    %c0_11 = arith.constant 0 : index
    %10 = vector.load %arg2[%c0_9, %c0_10, %c0_11] : memref<3x192x128xbf16, #tpu.memory_space<vmem>>, vector<1x192x128xbf16>
    %11 = vector.shape_cast %10 : vector<1x192x128xbf16> to vector<192x128xbf16>
    %cst_12 = arith.constant dense<0.000000e+00> : vector<32x128xf32>
    %12 = tpu.matmul %9, %11, %cst_12 {dimension_numbers = #tpu.dot_dimension_numbers<[1], [0], [0], [1], [0, 0, 1, 1], [], []>} : vector<32x192xbf16>, vector<192x128xbf16>, vector<32x128xf32> -> vector<32x128xf32>
    %13 = arith.addf %7, %12 : vector<32x128xf32>
    %14 = vector.extract_strided_slice %6 {offsets = [1, 0, 0], sizes = [4, 8, 192], strides = [1, 1, 1]} : vector<6x8x192xbf16> to vector<4x8x192xbf16>
    %15 = vector.shape_cast %14 : vector<4x8x192xbf16> to vector<32x192xbf16>
    %c1_13 = arith.constant 1 : index
    %c0_14 = arith.constant 0 : index
    %c0_15 = arith.constant 0 : index
    %16 = vector.load %arg2[%c1_13, %c0_14, %c0_15] : memref<3x192x128xbf16, #tpu.memory_space<vmem>>, vector<1x192x128xbf16>
    %17 = vector.shape_cast %16 : vector<1x192x128xbf16> to vector<192x128xbf16>
    %cst_16 = arith.constant dense<0.000000e+00> : vector<32x128xf32>
    %18 = tpu.matmul %15, %17, %cst_16 {dimension_numbers = #tpu.dot_dimension_numbers<[1], [0], [0], [1], [0, 0, 1, 1], [], []>} : vector<32x192xbf16>, vector<192x128xbf16>, vector<32x128xf32> -> vector<32x128xf32>
    %19 = arith.addf %13, %18 : vector<32x128xf32>
    %20 = vector.extract_strided_slice %6 {offsets = [2, 0, 0], sizes = [4, 8, 192], strides = [1, 1, 1]} : vector<6x8x192xbf16> to vector<4x8x192xbf16>
    %21 = vector.shape_cast %20 : vector<4x8x192xbf16> to vector<32x192xbf16>
    %c2_17 = arith.constant 2 : index
    %c0_18 = arith.constant 0 : index
    %c0_19 = arith.constant 0 : index
    %22 = vector.load %arg2[%c2_17, %c0_18, %c0_19] : memref<3x192x128xbf16, #tpu.memory_space<vmem>>, vector<1x192x128xbf16>
    %23 = vector.shape_cast %22 : vector<1x192x128xbf16> to vector<192x128xbf16>
    %cst_20 = arith.constant dense<0.000000e+00> : vector<32x128xf32>
    %24 = tpu.matmul %21, %23, %cst_20 {dimension_numbers = #tpu.dot_dimension_numbers<[1], [0], [0], [1], [0, 0, 1, 1], [], []>} : vector<32x192xbf16>, vector<192x128xbf16>, vector<32x128xf32> -> vector<32x128xf32>
    %25 = arith.addf %19, %24 : vector<32x128xf32>
    %c0_21 = arith.constant 0 : index
    %c0_22 = arith.constant 0 : index
    %26 = vector.load %arg3[%c0_21, %c0_22] : memref<1x128xf32, #tpu.memory_space<vmem>>, vector<1x128xf32>
    %27 = vector.broadcast %26 : vector<1x128xf32> to vector<32x128xf32>
    %28 = arith.addf %25, %27 : vector<32x128xf32>
    %cst_23 = arith.constant 0.000000e+00 : f32
    %29 = vector.broadcast %cst_23 : f32 to vector<32x128xf32>
    %30 = arith.maximumf %28, %29 : vector<32x128xf32>
    %31 = arith.truncf %30 : vector<32x128xf32> to vector<32x128xbf16>
    %c0_24 = arith.constant 0 : index
    %c0_25 = arith.constant 0 : index
    %c0_26 = arith.constant 0 : index
    %32 = vector.load %arg4[%c0_24, %c0_25, %c0_26] : memref<1x32x128xbf16, #tpu.memory_space<vmem>>, vector<1x32x128xbf16>
    %33 = vector.shape_cast %32 : vector<1x32x128xbf16> to vector<32x128xbf16>
    %34 = vector.shape_cast %31 : vector<32x128xbf16> to vector<1x32x128xbf16>
    tpu.vector_store %arg4[%c0_24, %c0_25, %c0_26], %34 {strides = array<i32>} : memref<1x32x128xbf16, #tpu.memory_space<vmem>>, vector<1x32x128xbf16>,
    return
  }
  func.func @transform_0(%arg0: i32) -> (i32, i32, i32, i32) {
    %c0_i32 = arith.constant 0 : i32
    %c0_i32_0 = arith.constant 0 : i32
    %c0_i32_1 = arith.constant 0 : i32
    %c0_i32_2 = arith.constant 0 : i32
    return %arg0, %c0_i32, %c0_i32_0, %c0_i32_1 : i32, i32, i32, i32
  }
  func.func @transform_1(%arg0: i32) -> (i32, i32, i32) {
    %c0_i32 = arith.constant 0 : i32
    %c0_i32_0 = arith.constant 0 : i32
    %c0_i32_1 = arith.constant 0 : i32
    %c0_i32_2 = arith.constant 0 : i32
    return %c0_i32, %c0_i32_0, %c0_i32_1 : i32, i32, i32
  }
  func.func @transform_2(%arg0: i32) -> (i32, i32) {
    %c0_i32 = arith.constant 0 : i32
    %c0_i32_0 = arith.constant 0 : i32
    %c0_i32_1 = arith.constant 0 : i32
    return %c0_i32, %c0_i32_0 : i32, i32
  }
  func.func @transform_3(%arg0: i32) -> (i32, i32, i32) {
    %c0_i32 = arith.constant 0 : i32
    %c0_i32_0 = arith.constant 0 : i32
    %c0_i32_1 = arith.constant 0 : i32
    return %arg0, %c0_i32, %c0_i32_0 : i32, i32, i32
  }
}

module attributes {stable_mosaic.version = 11 : i64} {
  func.func @_conv3x3_relu_kernel(%arg0: i32, %arg1: memref<1x10x18x64xbf16, #tpu.memory_space<vmem>>, %arg2: memref<3x192x64xbf16, #tpu.memory_space<vmem>>, %arg3: memref<1x64xf32, #tpu.memory_space<vmem>>, %arg4: memref<1x128x64xbf16, #tpu.memory_space<vmem>>) attributes {dimension_semantics = [#tpu.dimension_semantics<parallel>], iteration_bounds = array<i64: 2>, scalar_prefetch = 0 : i64, scratch_operands = 0 : i64, tpu.core_type = #tpu.core_type<tc>, window_params = [{transform_indices = @transform_0, window_bounds = array<i64: 1, 10, 18, 64>}, {pipeline_mode = #tpu.pipeline_mode<synchronous>, transform_indices = @transform_1, window_bounds = array<i64: 3, 192, 64>}, {pipeline_mode = #tpu.pipeline_mode<synchronous>, transform_indices = @transform_2, window_bounds = array<i64: 1, 64>}, {transform_indices = @transform_3, window_bounds = array<i64: 1, 128, 64>}]} {
    %c0 = arith.constant 0 : index
    %c0_0 = arith.constant 0 : index
    %c0_1 = arith.constant 0 : index
    %c0_2 = arith.constant 0 : index
    %0 = vector.load %arg1[%c0, %c0_0, %c0_1, %c0_2] : memref<1x10x18x64xbf16, #tpu.memory_space<vmem>>, vector<1x10x16x64xbf16>
    %1 = vector.shape_cast %0 : vector<1x10x16x64xbf16> to vector<10x16x64xbf16>
    %c0_3 = arith.constant 0 : index
    %c0_4 = arith.constant 0 : index
    %c1 = arith.constant 1 : index
    %c0_5 = arith.constant 0 : index
    %2 = vector.load %arg1[%c0_3, %c0_4, %c1, %c0_5] : memref<1x10x18x64xbf16, #tpu.memory_space<vmem>>, vector<1x10x16x64xbf16>
    %3 = vector.shape_cast %2 : vector<1x10x16x64xbf16> to vector<10x16x64xbf16>
    %c0_6 = arith.constant 0 : index
    %c0_7 = arith.constant 0 : index
    %c2 = arith.constant 2 : index
    %c0_8 = arith.constant 0 : index
    %4 = vector.load %arg1[%c0_6, %c0_7, %c2, %c0_8] : memref<1x10x18x64xbf16, #tpu.memory_space<vmem>>, vector<1x10x16x64xbf16>
    %5 = vector.shape_cast %4 : vector<1x10x16x64xbf16> to vector<10x16x64xbf16>
    %6 = tpu.concatenate %1, %3, %5 in 2 : vector<10x16x64xbf16>, vector<10x16x64xbf16>, vector<10x16x64xbf16> -> vector<10x16x192xbf16>
    %cst = arith.constant 0.000000e+00 : f32
    %7 = vector.broadcast %cst : f32 to vector<128x64xf32>
    %8 = vector.extract_strided_slice %6 {offsets = [0, 0, 0], sizes = [8, 16, 192], strides = [1, 1, 1]} : vector<10x16x192xbf16> to vector<8x16x192xbf16>
    %9 = vector.shape_cast %8 : vector<8x16x192xbf16> to vector<128x192xbf16>
    %c0_9 = arith.constant 0 : index
    %c0_10 = arith.constant 0 : index
    %c0_11 = arith.constant 0 : index
    %10 = vector.load %arg2[%c0_9, %c0_10, %c0_11] : memref<3x192x64xbf16, #tpu.memory_space<vmem>>, vector<1x192x64xbf16>
    %11 = vector.shape_cast %10 : vector<1x192x64xbf16> to vector<192x64xbf16>
    %cst_12 = arith.constant dense<0.000000e+00> : vector<128x64xf32>
    %12 = tpu.matmul %9, %11, %cst_12 {dimension_numbers = #tpu.dot_dimension_numbers<[1], [0], [0], [1], [0, 0, 1, 1], [], []>} : vector<128x192xbf16>, vector<192x64xbf16>, vector<128x64xf32> -> vector<128x64xf32>
    %13 = arith.addf %7, %12 : vector<128x64xf32>
    %14 = vector.extract_strided_slice %6 {offsets = [1, 0, 0], sizes = [8, 16, 192], strides = [1, 1, 1]} : vector<10x16x192xbf16> to vector<8x16x192xbf16>
    %15 = vector.shape_cast %14 : vector<8x16x192xbf16> to vector<128x192xbf16>
    %c1_13 = arith.constant 1 : index
    %c0_14 = arith.constant 0 : index
    %c0_15 = arith.constant 0 : index
    %16 = vector.load %arg2[%c1_13, %c0_14, %c0_15] : memref<3x192x64xbf16, #tpu.memory_space<vmem>>, vector<1x192x64xbf16>
    %17 = vector.shape_cast %16 : vector<1x192x64xbf16> to vector<192x64xbf16>
    %cst_16 = arith.constant dense<0.000000e+00> : vector<128x64xf32>
    %18 = tpu.matmul %15, %17, %cst_16 {dimension_numbers = #tpu.dot_dimension_numbers<[1], [0], [0], [1], [0, 0, 1, 1], [], []>} : vector<128x192xbf16>, vector<192x64xbf16>, vector<128x64xf32> -> vector<128x64xf32>
    %19 = arith.addf %13, %18 : vector<128x64xf32>
    %20 = vector.extract_strided_slice %6 {offsets = [2, 0, 0], sizes = [8, 16, 192], strides = [1, 1, 1]} : vector<10x16x192xbf16> to vector<8x16x192xbf16>
    %21 = vector.shape_cast %20 : vector<8x16x192xbf16> to vector<128x192xbf16>
    %c2_17 = arith.constant 2 : index
    %c0_18 = arith.constant 0 : index
    %c0_19 = arith.constant 0 : index
    %22 = vector.load %arg2[%c2_17, %c0_18, %c0_19] : memref<3x192x64xbf16, #tpu.memory_space<vmem>>, vector<1x192x64xbf16>
    %23 = vector.shape_cast %22 : vector<1x192x64xbf16> to vector<192x64xbf16>
    %cst_20 = arith.constant dense<0.000000e+00> : vector<128x64xf32>
    %24 = tpu.matmul %21, %23, %cst_20 {dimension_numbers = #tpu.dot_dimension_numbers<[1], [0], [0], [1], [0, 0, 1, 1], [], []>} : vector<128x192xbf16>, vector<192x64xbf16>, vector<128x64xf32> -> vector<128x64xf32>
    %25 = arith.addf %19, %24 : vector<128x64xf32>
    %c0_21 = arith.constant 0 : index
    %c0_22 = arith.constant 0 : index
    %26 = vector.load %arg3[%c0_21, %c0_22] : memref<1x64xf32, #tpu.memory_space<vmem>>, vector<1x64xf32>
    %27 = vector.broadcast %26 : vector<1x64xf32> to vector<128x64xf32>
    %28 = arith.addf %25, %27 : vector<128x64xf32>
    %cst_23 = arith.constant 0.000000e+00 : f32
    %29 = vector.broadcast %cst_23 : f32 to vector<128x64xf32>
    %30 = arith.maximumf %28, %29 : vector<128x64xf32>
    %31 = arith.truncf %30 : vector<128x64xf32> to vector<128x64xbf16>
    %c0_24 = arith.constant 0 : index
    %c0_25 = arith.constant 0 : index
    %c0_26 = arith.constant 0 : index
    %32 = vector.load %arg4[%c0_24, %c0_25, %c0_26] : memref<1x128x64xbf16, #tpu.memory_space<vmem>>, vector<1x128x64xbf16>
    %33 = vector.shape_cast %32 : vector<1x128x64xbf16> to vector<128x64xbf16>
    %34 = vector.shape_cast %31 : vector<128x64xbf16> to vector<1x128x64xbf16>
    tpu.vector_store %arg4[%c0_24, %c0_25, %c0_26], %34 {strides = array<i32>} : memref<1x128x64xbf16, #tpu.memory_space<vmem>>, vector<1x128x64xbf16>,
    return
  }
  func.func @transform_0(%arg0: i32) -> (i32, i32, i32, i32) {
    %c0_i32 = arith.constant 0 : i32
    %c0_i32_0 = arith.constant 0 : i32
    %c0_i32_1 = arith.constant 0 : i32
    %c0_i32_2 = arith.constant 0 : i32
    return %arg0, %c0_i32, %c0_i32_0, %c0_i32_1 : i32, i32, i32, i32
  }
  func.func @transform_1(%arg0: i32) -> (i32, i32, i32) {
    %c0_i32 = arith.constant 0 : i32
    %c0_i32_0 = arith.constant 0 : i32
    %c0_i32_1 = arith.constant 0 : i32
    %c0_i32_2 = arith.constant 0 : i32
    return %c0_i32, %c0_i32_0, %c0_i32_1 : i32, i32, i32
  }
  func.func @transform_2(%arg0: i32) -> (i32, i32) {
    %c0_i32 = arith.constant 0 : i32
    %c0_i32_0 = arith.constant 0 : i32
    %c0_i32_1 = arith.constant 0 : i32
    return %c0_i32, %c0_i32_0 : i32, i32
  }
  func.func @transform_3(%arg0: i32) -> (i32, i32, i32) {
    %c0_i32 = arith.constant 0 : i32
    %c0_i32_0 = arith.constant 0 : i32
    %c0_i32_1 = arith.constant 0 : i32
    return %arg0, %c0_i32, %c0_i32_0 : i32, i32, i32
  }
}

module attributes {stable_mosaic.version = 11 : i64} {
  func.func @_conv3x3_relu_kernel(%arg0: i32, %arg1: memref<1x6x10x128xbf16, #tpu.memory_space<vmem>>, %arg2: memref<3x384x128xbf16, #tpu.memory_space<vmem>>, %arg3: memref<1x128xf32, #tpu.memory_space<vmem>>, %arg4: memref<1x32x128xbf16, #tpu.memory_space<vmem>>) attributes {dimension_semantics = [#tpu.dimension_semantics<parallel>], iteration_bounds = array<i64: 2>, scalar_prefetch = 0 : i64, scratch_operands = 0 : i64, tpu.core_type = #tpu.core_type<tc>, window_params = [{transform_indices = @transform_0, window_bounds = array<i64: 1, 6, 10, 128>}, {pipeline_mode = #tpu.pipeline_mode<synchronous>, transform_indices = @transform_1, window_bounds = array<i64: 3, 384, 128>}, {pipeline_mode = #tpu.pipeline_mode<synchronous>, transform_indices = @transform_2, window_bounds = array<i64: 1, 128>}, {transform_indices = @transform_3, window_bounds = array<i64: 1, 32, 128>}]} {
    %c0 = arith.constant 0 : index
    %c0_0 = arith.constant 0 : index
    %c0_1 = arith.constant 0 : index
    %c0_2 = arith.constant 0 : index
    %0 = vector.load %arg1[%c0, %c0_0, %c0_1, %c0_2] : memref<1x6x10x128xbf16, #tpu.memory_space<vmem>>, vector<1x6x8x128xbf16>
    %1 = vector.shape_cast %0 : vector<1x6x8x128xbf16> to vector<6x8x128xbf16>
    %c0_3 = arith.constant 0 : index
    %c0_4 = arith.constant 0 : index
    %c1 = arith.constant 1 : index
    %c0_5 = arith.constant 0 : index
    %2 = vector.load %arg1[%c0_3, %c0_4, %c1, %c0_5] : memref<1x6x10x128xbf16, #tpu.memory_space<vmem>>, vector<1x6x8x128xbf16>
    %3 = vector.shape_cast %2 : vector<1x6x8x128xbf16> to vector<6x8x128xbf16>
    %c0_6 = arith.constant 0 : index
    %c0_7 = arith.constant 0 : index
    %c2 = arith.constant 2 : index
    %c0_8 = arith.constant 0 : index
    %4 = vector.load %arg1[%c0_6, %c0_7, %c2, %c0_8] : memref<1x6x10x128xbf16, #tpu.memory_space<vmem>>, vector<1x6x8x128xbf16>
    %5 = vector.shape_cast %4 : vector<1x6x8x128xbf16> to vector<6x8x128xbf16>
    %6 = tpu.concatenate %1, %3, %5 in 2 : vector<6x8x128xbf16>, vector<6x8x128xbf16>, vector<6x8x128xbf16> -> vector<6x8x384xbf16>
    %cst = arith.constant 0.000000e+00 : f32
    %7 = vector.broadcast %cst : f32 to vector<32x128xf32>
    %8 = vector.extract_strided_slice %6 {offsets = [0, 0, 0], sizes = [4, 8, 384], strides = [1, 1, 1]} : vector<6x8x384xbf16> to vector<4x8x384xbf16>
    %9 = vector.shape_cast %8 : vector<4x8x384xbf16> to vector<32x384xbf16>
    %c0_9 = arith.constant 0 : index
    %c0_10 = arith.constant 0 : index
    %c0_11 = arith.constant 0 : index
    %10 = vector.load %arg2[%c0_9, %c0_10, %c0_11] : memref<3x384x128xbf16, #tpu.memory_space<vmem>>, vector<1x384x128xbf16>
    %11 = vector.shape_cast %10 : vector<1x384x128xbf16> to vector<384x128xbf16>
    %cst_12 = arith.constant dense<0.000000e+00> : vector<32x128xf32>
    %12 = tpu.matmul %9, %11, %cst_12 {dimension_numbers = #tpu.dot_dimension_numbers<[1], [0], [0], [1], [0, 0, 1, 1], [], []>} : vector<32x384xbf16>, vector<384x128xbf16>, vector<32x128xf32> -> vector<32x128xf32>
    %13 = arith.addf %7, %12 : vector<32x128xf32>
    %14 = vector.extract_strided_slice %6 {offsets = [1, 0, 0], sizes = [4, 8, 384], strides = [1, 1, 1]} : vector<6x8x384xbf16> to vector<4x8x384xbf16>
    %15 = vector.shape_cast %14 : vector<4x8x384xbf16> to vector<32x384xbf16>
    %c1_13 = arith.constant 1 : index
    %c0_14 = arith.constant 0 : index
    %c0_15 = arith.constant 0 : index
    %16 = vector.load %arg2[%c1_13, %c0_14, %c0_15] : memref<3x384x128xbf16, #tpu.memory_space<vmem>>, vector<1x384x128xbf16>
    %17 = vector.shape_cast %16 : vector<1x384x128xbf16> to vector<384x128xbf16>
    %cst_16 = arith.constant dense<0.000000e+00> : vector<32x128xf32>
    %18 = tpu.matmul %15, %17, %cst_16 {dimension_numbers = #tpu.dot_dimension_numbers<[1], [0], [0], [1], [0, 0, 1, 1], [], []>} : vector<32x384xbf16>, vector<384x128xbf16>, vector<32x128xf32> -> vector<32x128xf32>
    %19 = arith.addf %13, %18 : vector<32x128xf32>
    %20 = vector.extract_strided_slice %6 {offsets = [2, 0, 0], sizes = [4, 8, 384], strides = [1, 1, 1]} : vector<6x8x384xbf16> to vector<4x8x384xbf16>
    %21 = vector.shape_cast %20 : vector<4x8x384xbf16> to vector<32x384xbf16>
    %c2_17 = arith.constant 2 : index
    %c0_18 = arith.constant 0 : index
    %c0_19 = arith.constant 0 : index
    %22 = vector.load %arg2[%c2_17, %c0_18, %c0_19] : memref<3x384x128xbf16, #tpu.memory_space<vmem>>, vector<1x384x128xbf16>
    %23 = vector.shape_cast %22 : vector<1x384x128xbf16> to vector<384x128xbf16>
    %cst_20 = arith.constant dense<0.000000e+00> : vector<32x128xf32>
    %24 = tpu.matmul %21, %23, %cst_20 {dimension_numbers = #tpu.dot_dimension_numbers<[1], [0], [0], [1], [0, 0, 1, 1], [], []>} : vector<32x384xbf16>, vector<384x128xbf16>, vector<32x128xf32> -> vector<32x128xf32>
    %25 = arith.addf %19, %24 : vector<32x128xf32>
    %c0_21 = arith.constant 0 : index
    %c0_22 = arith.constant 0 : index
    %26 = vector.load %arg3[%c0_21, %c0_22] : memref<1x128xf32, #tpu.memory_space<vmem>>, vector<1x128xf32>
    %27 = vector.broadcast %26 : vector<1x128xf32> to vector<32x128xf32>
    %28 = arith.addf %25, %27 : vector<32x128xf32>
    %cst_23 = arith.constant 0.000000e+00 : f32
    %29 = vector.broadcast %cst_23 : f32 to vector<32x128xf32>
    %30 = arith.maximumf %28, %29 : vector<32x128xf32>
    %31 = arith.truncf %30 : vector<32x128xf32> to vector<32x128xbf16>
    %c0_24 = arith.constant 0 : index
    %c0_25 = arith.constant 0 : index
    %c0_26 = arith.constant 0 : index
    %32 = vector.load %arg4[%c0_24, %c0_25, %c0_26] : memref<1x32x128xbf16, #tpu.memory_space<vmem>>, vector<1x32x128xbf16>
    %33 = vector.shape_cast %32 : vector<1x32x128xbf16> to vector<32x128xbf16>
    %34 = vector.shape_cast %31 : vector<32x128xbf16> to vector<1x32x128xbf16>
    tpu.vector_store %arg4[%c0_24, %c0_25, %c0_26], %34 {strides = array<i32>} : memref<1x32x128xbf16, #tpu.memory_space<vmem>>, vector<1x32x128xbf16>,
    return
  }
  func.func @transform_0(%arg0: i32) -> (i32, i32, i32, i32) {
    %c0_i32 = arith.constant 0 : i32
    %c0_i32_0 = arith.constant 0 : i32
    %c0_i32_1 = arith.constant 0 : i32
    %c0_i32_2 = arith.constant 0 : i32
    return %arg0, %c0_i32, %c0_i32_0, %c0_i32_1 : i32, i32, i32, i32
  }
  func.func @transform_1(%arg0: i32) -> (i32, i32, i32) {
    %c0_i32 = arith.constant 0 : i32
    %c0_i32_0 = arith.constant 0 : i32
    %c0_i32_1 = arith.constant 0 : i32
    %c0_i32_2 = arith.constant 0 : i32
    return %c0_i32, %c0_i32_0, %c0_i32_1 : i32, i32, i32
  }
  func.func @transform_2(%arg0: i32) -> (i32, i32) {
    %c0_i32 = arith.constant 0 : i32
    %c0_i32_0 = arith.constant 0 : i32
    %c0_i32_1 = arith.constant 0 : i32
    return %c0_i32, %c0_i32_0 : i32, i32
  }
  func.func @transform_3(%arg0: i32) -> (i32, i32, i32) {
    %c0_i32 = arith.constant 0 : i32
    %c0_i32_0 = arith.constant 0 : i32
    %c0_i32_1 = arith.constant 0 : i32
    return %arg0, %c0_i32, %c0_i32_0 : i32, i32, i32
  }
}

module attributes {stable_mosaic.version = 11 : i64} {
  func.func @_matmul_bias_act_kernel(%arg0: i32, %arg1: i32, %arg2: memref<8x256xbf16, #tpu.memory_space<vmem>>, %arg3: memref<256x512xbf16, #tpu.memory_space<vmem>>, %arg4: memref<1x512xf32, #tpu.memory_space<vmem>>, %arg5: memref<8x512xbf16, #tpu.memory_space<vmem>>) attributes {dimension_semantics = [#tpu.dimension_semantics<parallel>, #tpu.dimension_semantics<parallel>], iteration_bounds = array<i64: 1, 4>, scalar_prefetch = 0 : i64, scratch_operands = 0 : i64, tpu.core_type = #tpu.core_type<tc>, window_params = [{transform_indices = @transform_0, window_bounds = array<i64: 8, 256>}, {transform_indices = @transform_1, window_bounds = array<i64: 256, 512>}, {transform_indices = @transform_2, window_bounds = array<i64: 1, 512>}, {transform_indices = @transform_3, window_bounds = array<i64: 8, 512>}]} {
    %c0 = arith.constant 0 : index
    %c0_0 = arith.constant 0 : index
    %0 = vector.load %arg2[%c0, %c0_0] : memref<8x256xbf16, #tpu.memory_space<vmem>>, vector<8x256xbf16>
    %c0_1 = arith.constant 0 : index
    %c0_2 = arith.constant 0 : index
    %1 = vector.load %arg3[%c0_1, %c0_2] : memref<256x512xbf16, #tpu.memory_space<vmem>>, vector<256x512xbf16>
    %cst = arith.constant dense<0.000000e+00> : vector<8x512xf32>
    %2 = tpu.matmul %0, %1, %cst {dimension_numbers = #tpu.dot_dimension_numbers<[1], [0], [0], [1], [0, 0, 1, 1], [], []>} : vector<8x256xbf16>, vector<256x512xbf16>, vector<8x512xf32> -> vector<8x512xf32>
    %c0_3 = arith.constant 0 : index
    %c0_4 = arith.constant 0 : index
    %3 = vector.load %arg4[%c0_3, %c0_4] : memref<1x512xf32, #tpu.memory_space<vmem>>, vector<1x512xf32>
    %4 = vector.broadcast %3 : vector<1x512xf32> to vector<8x512xf32>
    %5 = arith.addf %2, %4 : vector<8x512xf32>
    %6 = arith.truncf %5 : vector<8x512xf32> to vector<8x512xbf16>
    %c0_5 = arith.constant 0 : index
    %c0_6 = arith.constant 0 : index
    %7 = vector.load %arg5[%c0_5, %c0_6] : memref<8x512xbf16, #tpu.memory_space<vmem>>, vector<8x512xbf16>
    tpu.vector_store %arg5[%c0_5, %c0_6], %6 {strides = array<i32>} : memref<8x512xbf16, #tpu.memory_space<vmem>>, vector<8x512xbf16>,
    return
  }
  func.func @transform_0(%arg0: i32, %arg1: i32) -> (i32, i32) {
    %c0_i32 = arith.constant 0 : i32
    %c0_i32_0 = arith.constant 0 : i32
    return %arg0, %c0_i32 : i32, i32
  }
  func.func @transform_1(%arg0: i32, %arg1: i32) -> (i32, i32) {
    %c0_i32 = arith.constant 0 : i32
    %c0_i32_0 = arith.constant 0 : i32
    return %c0_i32, %arg1 : i32, i32
  }
  func.func @transform_2(%arg0: i32, %arg1: i32) -> (i32, i32) {
    %c0_i32 = arith.constant 0 : i32
    %c0_i32_0 = arith.constant 0 : i32
    return %c0_i32, %arg1 : i32, i32
  }
  func.func @transform_3(%arg0: i32, %arg1: i32) -> (i32, i32) {
    %c0_i32 = arith.constant 0 : i32
    return %arg0, %arg1 : i32, i32
  }
}

module attributes {stable_mosaic.version = 11 : i64} {
  func.func @_bilstm_kernel(%arg0: i32, %arg1: i32, %arg2: memref<4x2x1024xbf16, #tpu.memory_space<vmem>>, %arg3: memref<1x256x1024xbf16, #tpu.memory_space<vmem>>, %arg4: memref<1x4x2x256xbf16, #tpu.memory_space<vmem>>, %arg5: memref<2x256xf32, #tpu.memory_space<vmem>>, %arg6: memref<2x256xf32, #tpu.memory_space<vmem>>) attributes {dimension_semantics = [#tpu.dimension_semantics<parallel>, #tpu.dimension_semantics<arbitrary>], iteration_bounds = array<i64: 2, 1>, scalar_prefetch = 0 : i64, scratch_operands = 2 : i64, tpu.core_type = #tpu.core_type<tc>, window_params = [{transform_indices = @transform_0, window_bounds = array<i64: 4, 2, 1024>}, {transform_indices = @transform_1, window_bounds = array<i64: 1, 256, 1024>}, {transform_indices = @transform_2, window_bounds = array<i64: 1, 4, 2, 256>}]} {
    %c0_i32 = arith.constant 0 : i32
    %0 = arith.cmpi eq, %arg1, %c0_i32 : i32
    %1 = arith.extui %0 : i1 to i32
    %c0_i32_0 = arith.constant 0 : i32
    %2 = arith.cmpi ne, %1, %c0_i32_0 : i32
    scf.if %2 {
      %cst_112 = arith.constant 0.000000e+00 : f32
      %215 = vector.broadcast %cst_112 : f32 to vector<2x256xf32>
      %c0_113 = arith.constant 0 : index
      %c0_114 = arith.constant 0 : index
      %216 = vector.load %arg5[%c0_113, %c0_114] : memref<2x256xf32, #tpu.memory_space<vmem>>, vector<2x256xf32>
      tpu.vector_store %arg5[%c0_113, %c0_114], %215 {strides = array<i32>} : memref<2x256xf32, #tpu.memory_space<vmem>>, vector<2x256xf32>,
      %cst_115 = arith.constant 0.000000e+00 : f32
      %217 = vector.broadcast %cst_115 : f32 to vector<2x256xf32>
      %c0_116 = arith.constant 0 : index
      %c0_117 = arith.constant 0 : index
      %218 = vector.load %arg6[%c0_116, %c0_117] : memref<2x256xf32, #tpu.memory_space<vmem>>, vector<2x256xf32>
      tpu.vector_store %arg6[%c0_116, %c0_117], %217 {strides = array<i32>} : memref<2x256xf32, #tpu.memory_space<vmem>>, vector<2x256xf32>,
    } else {
    }
    %c1_i32 = arith.constant 1 : i32
    %3 = arith.subi %c1_i32, %arg0 : i32
    %c0_i32_1 = arith.constant 0 : i32
    %4 = arith.muli %3, %c0_i32_1 : i32
    %c3_i32 = arith.constant 3 : i32
    %5 = arith.muli %arg0, %c3_i32 : i32
    %6 = arith.addi %4, %5 : i32
    %7 = arith.index_cast %6 : i32 to index
    %c0 = arith.constant 0 : index
    %c0_2 = arith.constant 0 : index
    %8 = vector.load %arg2[%7, %c0, %c0_2] : memref<4x2x1024xbf16, #tpu.memory_space<vmem>>, vector<1x2x1024xbf16>
    %9 = vector.shape_cast %8 : vector<1x2x1024xbf16> to vector<2x1024xbf16>
    %10 = arith.extf %9 : vector<2x1024xbf16> to vector<2x1024xf32>
    %c0_3 = arith.constant 0 : index
    %c0_4 = arith.constant 0 : index
    %11 = vector.load %arg5[%c0_3, %c0_4] : memref<2x256xf32, #tpu.memory_space<vmem>>, vector<2x256xf32>
    %12 = arith.truncf %11 : vector<2x256xf32> to vector<2x256xbf16>
    %c0_5 = arith.constant 0 : index
    %c0_6 = arith.constant 0 : index
    %c0_7 = arith.constant 0 : index
    %13 = vector.load %arg3[%c0_5, %c0_6, %c0_7] : memref<1x256x1024xbf16, #tpu.memory_space<vmem>>, vector<1x256x1024xbf16>
    %14 = vector.shape_cast %13 : vector<1x256x1024xbf16> to vector<256x1024xbf16>
    %cst = arith.constant dense<0.000000e+00> : vector<2x1024xf32>
    %15 = tpu.matmul %12, %14, %cst {dimension_numbers = #tpu.dot_dimension_numbers<[1], [0], [0], [1], [0, 0, 1, 1], [], []>} : vector<2x256xbf16>, vector<256x1024xbf16>, vector<2x1024xf32> -> vector<2x1024xf32>
    %16 = arith.addf %10, %15 : vector<2x1024xf32>
    %17 = vector.extract_strided_slice %16 {offsets = [0, 0], sizes = [2, 256], strides = [1, 1]} : vector<2x1024xf32> to vector<2x256xf32>
    %cst_8 = arith.constant 5.000000e-01 : f32
    %18 = vector.broadcast %cst_8 : f32 to vector<2x256xf32>
    %19 = arith.mulf %18, %17 : vector<2x256xf32>
    %20 = math.tanh %19 : vector<2x256xf32>
    %cst_9 = arith.constant 5.000000e-01 : f32
    %21 = vector.broadcast %cst_9 : f32 to vector<2x256xf32>
    %22 = arith.mulf %21, %20 : vector<2x256xf32>
    %cst_10 = arith.constant 5.000000e-01 : f32
    %23 = vector.broadcast %cst_10 : f32 to vector<2x256xf32>
    %24 = arith.addf %22, %23 : vector<2x256xf32>
    %25 = vector.extract_strided_slice %16 {offsets = [0, 256], sizes = [2, 256], strides = [1, 1]} : vector<2x1024xf32> to vector<2x256xf32>
    %cst_11 = arith.constant 5.000000e-01 : f32
    %26 = vector.broadcast %cst_11 : f32 to vector<2x256xf32>
    %27 = arith.mulf %26, %25 : vector<2x256xf32>
    %28 = math.tanh %27 : vector<2x256xf32>
    %cst_12 = arith.constant 5.000000e-01 : f32
    %29 = vector.broadcast %cst_12 : f32 to vector<2x256xf32>
    %30 = arith.mulf %29, %28 : vector<2x256xf32>
    %cst_13 = arith.constant 5.000000e-01 : f32
    %31 = vector.broadcast %cst_13 : f32 to vector<2x256xf32>
    %32 = arith.addf %30, %31 : vector<2x256xf32>
    %33 = vector.extract_strided_slice %16 {offsets = [0, 512], sizes = [2, 256], strides = [1, 1]} : vector<2x1024xf32> to vector<2x256xf32>
    %34 = math.tanh %33 : vector<2x256xf32>
    %35 = vector.extract_strided_slice %16 {offsets = [0, 768], sizes = [2, 256], strides = [1, 1]} : vector<2x1024xf32> to vector<2x256xf32>
    %cst_14 = arith.constant 5.000000e-01 : f32
    %36 = vector.broadcast %cst_14 : f32 to vector<2x256xf32>
    %37 = arith.mulf %36, %35 : vector<2x256xf32>
    %38 = math.tanh %37 : vector<2x256xf32>
    %cst_15 = arith.constant 5.000000e-01 : f32
    %39 = vector.broadcast %cst_15 : f32 to vector<2x256xf32>
    %40 = arith.mulf %39, %38 : vector<2x256xf32>
    %cst_16 = arith.constant 5.000000e-01 : f32
    %41 = vector.broadcast %cst_16 : f32 to vector<2x256xf32>
    %42 = arith.addf %40, %41 : vector<2x256xf32>
    %c0_17 = arith.constant 0 : index
    %c0_18 = arith.constant 0 : index
    %43 = vector.load %arg6[%c0_17, %c0_18] : memref<2x256xf32, #tpu.memory_space<vmem>>, vector<2x256xf32>
    %44 = arith.mulf %32, %43 : vector<2x256xf32>
    %45 = arith.mulf %24, %34 : vector<2x256xf32>
    %46 = arith.addf %44, %45 : vector<2x256xf32>
    %47 = math.tanh %46 : vector<2x256xf32>
    %48 = arith.mulf %42, %47 : vector<2x256xf32>
    %c0_19 = arith.constant 0 : index
    %c0_20 = arith.constant 0 : index
    %49 = vector.load %arg5[%c0_19, %c0_20] : memref<2x256xf32, #tpu.memory_space<vmem>>, vector<2x256xf32>
    tpu.vector_store %arg5[%c0_19, %c0_20], %48 {strides = array<i32>} : memref<2x256xf32, #tpu.memory_space<vmem>>, vector<2x256xf32>,
    %c0_21 = arith.constant 0 : index
    %c0_22 = arith.constant 0 : index
    %50 = vector.load %arg6[%c0_21, %c0_22] : memref<2x256xf32, #tpu.memory_space<vmem>>, vector<2x256xf32>
    tpu.vector_store %arg6[%c0_21, %c0_22], %46 {strides = array<i32>} : memref<2x256xf32, #tpu.memory_space<vmem>>, vector<2x256xf32>,
    %51 = arith.truncf %48 : vector<2x256xf32> to vector<2x256xbf16>
    %c0_23 = arith.constant 0 : index
    %52 = arith.index_cast %6 : i32 to index
    %c0_24 = arith.constant 0 : index
    %c0_25 = arith.constant 0 : index
    %53 = vector.load %arg4[%c0_23, %52, %c0_24, %c0_25] : memref<1x4x2x256xbf16, #tpu.memory_space<vmem>>, vector<1x1x2x256xbf16>
    %54 = vector.shape_cast %53 : vector<1x1x2x256xbf16> to vector<2x256xbf16>
    %55 = vector.shape_cast %51 : vector<2x256xbf16> to vector<1x1x2x256xbf16>
    tpu.vector_store %arg4[%c0_23, %52, %c0_24, %c0_25], %55 {strides = array<i32>} : memref<1x4x2x256xbf16, #tpu.memory_space<vmem>>, vector<1x1x2x256xbf16>,
    %c1_i32_26 = arith.constant 1 : i32
    %56 = arith.subi %c1_i32_26, %arg0 : i32
    %c1_i32_27 = arith.constant 1 : i32
    %57 = arith.muli %56, %c1_i32_27 : i32
    %c2_i32 = arith.constant 2 : i32
    %58 = arith.muli %arg0, %c2_i32 : i32
    %59 = arith.addi %57, %58 : i32
    %60 = arith.index_cast %59 : i32 to index
    %c0_28 = arith.constant 0 : index
    %c0_29 = arith.constant 0 : index
    %61 = vector.load %arg2[%60, %c0_28, %c0_29] : memref<4x2x1024xbf16, #tpu.memory_space<vmem>>, vector<1x2x1024xbf16>
    %62 = vector.shape_cast %61 : vector<1x2x1024xbf16> to vector<2x1024xbf16>
    %63 = arith.extf %62 : vector<2x1024xbf16> to vector<2x1024xf32>
    %c0_30 = arith.constant 0 : index
    %c0_31 = arith.constant 0 : index
    %64 = vector.load %arg5[%c0_30, %c0_31] : memref<2x256xf32, #tpu.memory_space<vmem>>, vector<2x256xf32>
    %65 = arith.truncf %64 : vector<2x256xf32> to vector<2x256xbf16>
    %c0_32 = arith.constant 0 : index
    %c0_33 = arith.constant 0 : index
    %c0_34 = arith.constant 0 : index
    %66 = vector.load %arg3[%c0_32, %c0_33, %c0_34] : memref<1x256x1024xbf16, #tpu.memory_space<vmem>>, vector<1x256x1024xbf16>
    %67 = vector.shape_cast %66 : vector<1x256x1024xbf16> to vector<256x1024xbf16>
    %cst_35 = arith.constant dense<0.000000e+00> : vector<2x1024xf32>
    %68 = tpu.matmul %65, %67, %cst_35 {dimension_numbers = #tpu.dot_dimension_numbers<[1], [0], [0], [1], [0, 0, 1, 1], [], []>} : vector<2x256xbf16>, vector<256x1024xbf16>, vector<2x1024xf32> -> vector<2x1024xf32>
    %69 = arith.addf %63, %68 : vector<2x1024xf32>
    %70 = vector.extract_strided_slice %69 {offsets = [0, 0], sizes = [2, 256], strides = [1, 1]} : vector<2x1024xf32> to vector<2x256xf32>
    %cst_36 = arith.constant 5.000000e-01 : f32
    %71 = vector.broadcast %cst_36 : f32 to vector<2x256xf32>
    %72 = arith.mulf %71, %70 : vector<2x256xf32>
    %73 = math.tanh %72 : vector<2x256xf32>
    %cst_37 = arith.constant 5.000000e-01 : f32
    %74 = vector.broadcast %cst_37 : f32 to vector<2x256xf32>
    %75 = arith.mulf %74, %73 : vector<2x256xf32>
    %cst_38 = arith.constant 5.000000e-01 : f32
    %76 = vector.broadcast %cst_38 : f32 to vector<2x256xf32>
    %77 = arith.addf %75, %76 : vector<2x256xf32>
    %78 = vector.extract_strided_slice %69 {offsets = [0, 256], sizes = [2, 256], strides = [1, 1]} : vector<2x1024xf32> to vector<2x256xf32>
    %cst_39 = arith.constant 5.000000e-01 : f32
    %79 = vector.broadcast %cst_39 : f32 to vector<2x256xf32>
    %80 = arith.mulf %79, %78 : vector<2x256xf32>
    %81 = math.tanh %80 : vector<2x256xf32>
    %cst_40 = arith.constant 5.000000e-01 : f32
    %82 = vector.broadcast %cst_40 : f32 to vector<2x256xf32>
    %83 = arith.mulf %82, %81 : vector<2x256xf32>
    %cst_41 = arith.constant 5.000000e-01 : f32
    %84 = vector.broadcast %cst_41 : f32 to vector<2x256xf32>
    %85 = arith.addf %83, %84 : vector<2x256xf32>
    %86 = vector.extract_strided_slice %69 {offsets = [0, 512], sizes = [2, 256], strides = [1, 1]} : vector<2x1024xf32> to vector<2x256xf32>
    %87 = math.tanh %86 : vector<2x256xf32>
    %88 = vector.extract_strided_slice %69 {offsets = [0, 768], sizes = [2, 256], strides = [1, 1]} : vector<2x1024xf32> to vector<2x256xf32>
    %cst_42 = arith.constant 5.000000e-01 : f32
    %89 = vector.broadcast %cst_42 : f32 to vector<2x256xf32>
    %90 = arith.mulf %89, %88 : vector<2x256xf32>
    %91 = math.tanh %90 : vector<2x256xf32>
    %cst_43 = arith.constant 5.000000e-01 : f32
    %92 = vector.broadcast %cst_43 : f32 to vector<2x256xf32>
    %93 = arith.mulf %92, %91 : vector<2x256xf32>
    %cst_44 = arith.constant 5.000000e-01 : f32
    %94 = vector.broadcast %cst_44 : f32 to vector<2x256xf32>
    %95 = arith.addf %93, %94 : vector<2x256xf32>
    %c0_45 = arith.constant 0 : index
    %c0_46 = arith.constant 0 : index
    %96 = vector.load %arg6[%c0_45, %c0_46] : memref<2x256xf32, #tpu.memory_space<vmem>>, vector<2x256xf32>
    %97 = arith.mulf %85, %96 : vector<2x256xf32>
    %98 = arith.mulf %77, %87 : vector<2x256xf32>
    %99 = arith.addf %97, %98 : vector<2x256xf32>
    %100 = math.tanh %99 : vector<2x256xf32>
    %101 = arith.mulf %95, %100 : vector<2x256xf32>
    %c0_47 = arith.constant 0 : index
    %c0_48 = arith.constant 0 : index
    %102 = vector.load %arg5[%c0_47, %c0_48] : memref<2x256xf32, #tpu.memory_space<vmem>>, vector<2x256xf32>
    tpu.vector_store %arg5[%c0_47, %c0_48], %101 {strides = array<i32>} : memref<2x256xf32, #tpu.memory_space<vmem>>, vector<2x256xf32>,
    %c0_49 = arith.constant 0 : index
    %c0_50 = arith.constant 0 : index
    %103 = vector.load %arg6[%c0_49, %c0_50] : memref<2x256xf32, #tpu.memory_space<vmem>>, vector<2x256xf32>
    tpu.vector_store %arg6[%c0_49, %c0_50], %99 {strides = array<i32>} : memref<2x256xf32, #tpu.memory_space<vmem>>, vector<2x256xf32>,
    %104 = arith.truncf %101 : vector<2x256xf32> to vector<2x256xbf16>
    %c0_51 = arith.constant 0 : index
    %105 = arith.index_cast %59 : i32 to index
    %c0_52 = arith.constant 0 : index
    %c0_53 = arith.constant 0 : index
    %106 = vector.load %arg4[%c0_51, %105, %c0_52, %c0_53] : memref<1x4x2x256xbf16, #tpu.memory_space<vmem>>, vector<1x1x2x256xbf16>
    %107 = vector.shape_cast %106 : vector<1x1x2x256xbf16> to vector<2x256xbf16>
    %108 = vector.shape_cast %104 : vector<2x256xbf16> to vector<1x1x2x256xbf16>
    tpu.vector_store %arg4[%c0_51, %105, %c0_52, %c0_53], %108 {strides = array<i32>} : memref<1x4x2x256xbf16, #tpu.memory_space<vmem>>, vector<1x1x2x256xbf16>,
    %c1_i32_54 = arith.constant 1 : i32
    %109 = arith.subi %c1_i32_54, %arg0 : i32
    %c2_i32_55 = arith.constant 2 : i32
    %110 = arith.muli %109, %c2_i32_55 : i32
    %c1_i32_56 = arith.constant 1 : i32
    %111 = arith.muli %arg0, %c1_i32_56 : i32
    %112 = arith.addi %110, %111 : i32
    %113 = arith.index_cast %112 : i32 to index
    %c0_57 = arith.constant 0 : index
    %c0_58 = arith.constant 0 : index
    %114 = vector.load %arg2[%113, %c0_57, %c0_58] : memref<4x2x1024xbf16, #tpu.memory_space<vmem>>, vector<1x2x1024xbf16>
    %115 = vector.shape_cast %114 : vector<1x2x1024xbf16> to vector<2x1024xbf16>
    %116 = arith.extf %115 : vector<2x1024xbf16> to vector<2x1024xf32>
    %c0_59 = arith.constant 0 : index
    %c0_60 = arith.constant 0 : index
    %117 = vector.load %arg5[%c0_59, %c0_60] : memref<2x256xf32, #tpu.memory_space<vmem>>, vector<2x256xf32>
    %118 = arith.truncf %117 : vector<2x256xf32> to vector<2x256xbf16>
    %c0_61 = arith.constant 0 : index
    %c0_62 = arith.constant 0 : index
    %c0_63 = arith.constant 0 : index
    %119 = vector.load %arg3[%c0_61, %c0_62, %c0_63] : memref<1x256x1024xbf16, #tpu.memory_space<vmem>>, vector<1x256x1024xbf16>
    %120 = vector.shape_cast %119 : vector<1x256x1024xbf16> to vector<256x1024xbf16>
    %cst_64 = arith.constant dense<0.000000e+00> : vector<2x1024xf32>
    %121 = tpu.matmul %118, %120, %cst_64 {dimension_numbers = #tpu.dot_dimension_numbers<[1], [0], [0], [1], [0, 0, 1, 1], [], []>} : vector<2x256xbf16>, vector<256x1024xbf16>, vector<2x1024xf32> -> vector<2x1024xf32>
    %122 = arith.addf %116, %121 : vector<2x1024xf32>
    %123 = vector.extract_strided_slice %122 {offsets = [0, 0], sizes = [2, 256], strides = [1, 1]} : vector<2x1024xf32> to vector<2x256xf32>
    %cst_65 = arith.constant 5.000000e-01 : f32
    %124 = vector.broadcast %cst_65 : f32 to vector<2x256xf32>
    %125 = arith.mulf %124, %123 : vector<2x256xf32>
    %126 = math.tanh %125 : vector<2x256xf32>
    %cst_66 = arith.constant 5.000000e-01 : f32
    %127 = vector.broadcast %cst_66 : f32 to vector<2x256xf32>
    %128 = arith.mulf %127, %126 : vector<2x256xf32>
    %cst_67 = arith.constant 5.000000e-01 : f32
    %129 = vector.broadcast %cst_67 : f32 to vector<2x256xf32>
    %130 = arith.addf %128, %129 : vector<2x256xf32>
    %131 = vector.extract_strided_slice %122 {offsets = [0, 256], sizes = [2, 256], strides = [1, 1]} : vector<2x1024xf32> to vector<2x256xf32>
    %cst_68 = arith.constant 5.000000e-01 : f32
    %132 = vector.broadcast %cst_68 : f32 to vector<2x256xf32>
    %133 = arith.mulf %132, %131 : vector<2x256xf32>
    %134 = math.tanh %133 : vector<2x256xf32>
    %cst_69 = arith.constant 5.000000e-01 : f32
    %135 = vector.broadcast %cst_69 : f32 to vector<2x256xf32>
    %136 = arith.mulf %135, %134 : vector<2x256xf32>
    %cst_70 = arith.constant 5.000000e-01 : f32
    %137 = vector.broadcast %cst_70 : f32 to vector<2x256xf32>
    %138 = arith.addf %136, %137 : vector<2x256xf32>
    %139 = vector.extract_strided_slice %122 {offsets = [0, 512], sizes = [2, 256], strides = [1, 1]} : vector<2x1024xf32> to vector<2x256xf32>
    %140 = math.tanh %139 : vector<2x256xf32>
    %141 = vector.extract_strided_slice %122 {offsets = [0, 768], sizes = [2, 256], strides = [1, 1]} : vector<2x1024xf32> to vector<2x256xf32>
    %cst_71 = arith.constant 5.000000e-01 : f32
    %142 = vector.broadcast %cst_71 : f32 to vector<2x256xf32>
    %143 = arith.mulf %142, %141 : vector<2x256xf32>
    %144 = math.tanh %143 : vector<2x256xf32>
    %cst_72 = arith.constant 5.000000e-01 : f32
    %145 = vector.broadcast %cst_72 : f32 to vector<2x256xf32>
    %146 = arith.mulf %145, %144 : vector<2x256xf32>
    %cst_73 = arith.constant 5.000000e-01 : f32
    %147 = vector.broadcast %cst_73 : f32 to vector<2x256xf32>
    %148 = arith.addf %146, %147 : vector<2x256xf32>
    %c0_74 = arith.constant 0 : index
    %c0_75 = arith.constant 0 : index
    %149 = vector.load %arg6[%c0_74, %c0_75] : memref<2x256xf32, #tpu.memory_space<vmem>>, vector<2x256xf32>
    %150 = arith.mulf %138, %149 : vector<2x256xf32>
    %151 = arith.mulf %130, %140 : vector<2x256xf32>
    %152 = arith.addf %150, %151 : vector<2x256xf32>
    %153 = math.tanh %152 : vector<2x256xf32>
    %154 = arith.mulf %148, %153 : vector<2x256xf32>
    %c0_76 = arith.constant 0 : index
    %c0_77 = arith.constant 0 : index
    %155 = vector.load %arg5[%c0_76, %c0_77] : memref<2x256xf32, #tpu.memory_space<vmem>>, vector<2x256xf32>
    tpu.vector_store %arg5[%c0_76, %c0_77], %154 {strides = array<i32>} : memref<2x256xf32, #tpu.memory_space<vmem>>, vector<2x256xf32>,
    %c0_78 = arith.constant 0 : index
    %c0_79 = arith.constant 0 : index
    %156 = vector.load %arg6[%c0_78, %c0_79] : memref<2x256xf32, #tpu.memory_space<vmem>>, vector<2x256xf32>
    tpu.vector_store %arg6[%c0_78, %c0_79], %152 {strides = array<i32>} : memref<2x256xf32, #tpu.memory_space<vmem>>, vector<2x256xf32>,
    %157 = arith.truncf %154 : vector<2x256xf32> to vector<2x256xbf16>
    %c0_80 = arith.constant 0 : index
    %158 = arith.index_cast %112 : i32 to index
    %c0_81 = arith.constant 0 : index
    %c0_82 = arith.constant 0 : index
    %159 = vector.load %arg4[%c0_80, %158, %c0_81, %c0_82] : memref<1x4x2x256xbf16, #tpu.memory_space<vmem>>, vector<1x1x2x256xbf16>
    %160 = vector.shape_cast %159 : vector<1x1x2x256xbf16> to vector<2x256xbf16>
    %161 = vector.shape_cast %157 : vector<2x256xbf16> to vector<1x1x2x256xbf16>
    tpu.vector_store %arg4[%c0_80, %158, %c0_81, %c0_82], %161 {strides = array<i32>} : memref<1x4x2x256xbf16, #tpu.memory_space<vmem>>, vector<1x1x2x256xbf16>,
    %c1_i32_83 = arith.constant 1 : i32
    %162 = arith.subi %c1_i32_83, %arg0 : i32
    %c3_i32_84 = arith.constant 3 : i32
    %163 = arith.muli %162, %c3_i32_84 : i32
    %c0_i32_85 = arith.constant 0 : i32
    %164 = arith.muli %arg0, %c0_i32_85 : i32
    %165 = arith.addi %163, %164 : i32
    %166 = arith.index_cast %165 : i32 to index
    %c0_86 = arith.constant 0 : index
    %c0_87 = arith.constant 0 : index
    %167 = vector.load %arg2[%166, %c0_86, %c0_87] : memref<4x2x1024xbf16, #tpu.memory_space<vmem>>, vector<1x2x1024xbf16>
    %168 = vector.shape_cast %167 : vector<1x2x1024xbf16> to vector<2x1024xbf16>
    %169 = arith.extf %168 : vector<2x1024xbf16> to vector<2x1024xf32>
    %c0_88 = arith.constant 0 : index
    %c0_89 = arith.constant 0 : index
    %170 = vector.load %arg5[%c0_88, %c0_89] : memref<2x256xf32, #tpu.memory_space<vmem>>, vector<2x256xf32>
    %171 = arith.truncf %170 : vector<2x256xf32> to vector<2x256xbf16>
    %c0_90 = arith.constant 0 : index
    %c0_91 = arith.constant 0 : index
    %c0_92 = arith.constant 0 : index
    %172 = vector.load %arg3[%c0_90, %c0_91, %c0_92] : memref<1x256x1024xbf16, #tpu.memory_space<vmem>>, vector<1x256x1024xbf16>
    %173 = vector.shape_cast %172 : vector<1x256x1024xbf16> to vector<256x1024xbf16>
    %cst_93 = arith.constant dense<0.000000e+00> : vector<2x1024xf32>
    %174 = tpu.matmul %171, %173, %cst_93 {dimension_numbers = #tpu.dot_dimension_numbers<[1], [0], [0], [1], [0, 0, 1, 1], [], []>} : vector<2x256xbf16>, vector<256x1024xbf16>, vector<2x1024xf32> -> vector<2x1024xf32>
    %175 = arith.addf %169, %174 : vector<2x1024xf32>
    %176 = vector.extract_strided_slice %175 {offsets = [0, 0], sizes = [2, 256], strides = [1, 1]} : vector<2x1024xf32> to vector<2x256xf32>
    %cst_94 = arith.constant 5.000000e-01 : f32
    %177 = vector.broadcast %cst_94 : f32 to vector<2x256xf32>
    %178 = arith.mulf %177, %176 : vector<2x256xf32>
    %179 = math.tanh %178 : vector<2x256xf32>
    %cst_95 = arith.constant 5.000000e-01 : f32
    %180 = vector.broadcast %cst_95 : f32 to vector<2x256xf32>
    %181 = arith.mulf %180, %179 : vector<2x256xf32>
    %cst_96 = arith.constant 5.000000e-01 : f32
    %182 = vector.broadcast %cst_96 : f32 to vector<2x256xf32>
    %183 = arith.addf %181, %182 : vector<2x256xf32>
    %184 = vector.extract_strided_slice %175 {offsets = [0, 256], sizes = [2, 256], strides = [1, 1]} : vector<2x1024xf32> to vector<2x256xf32>
    %cst_97 = arith.constant 5.000000e-01 : f32
    %185 = vector.broadcast %cst_97 : f32 to vector<2x256xf32>
    %186 = arith.mulf %185, %184 : vector<2x256xf32>
    %187 = math.tanh %186 : vector<2x256xf32>
    %cst_98 = arith.constant 5.000000e-01 : f32
    %188 = vector.broadcast %cst_98 : f32 to vector<2x256xf32>
    %189 = arith.mulf %188, %187 : vector<2x256xf32>
    %cst_99 = arith.constant 5.000000e-01 : f32
    %190 = vector.broadcast %cst_99 : f32 to vector<2x256xf32>
    %191 = arith.addf %189, %190 : vector<2x256xf32>
    %192 = vector.extract_strided_slice %175 {offsets = [0, 512], sizes = [2, 256], strides = [1, 1]} : vector<2x1024xf32> to vector<2x256xf32>
    %193 = math.tanh %192 : vector<2x256xf32>
    %194 = vector.extract_strided_slice %175 {offsets = [0, 768], sizes = [2, 256], strides = [1, 1]} : vector<2x1024xf32> to vector<2x256xf32>
    %cst_100 = arith.constant 5.000000e-01 : f32
    %195 = vector.broadcast %cst_100 : f32 to vector<2x256xf32>
    %196 = arith.mulf %195, %194 : vector<2x256xf32>
    %197 = math.tanh %196 : vector<2x256xf32>
    %cst_101 = arith.constant 5.000000e-01 : f32
    %198 = vector.broadcast %cst_101 : f32 to vector<2x256xf32>
    %199 = arith.mulf %198, %197 : vector<2x256xf32>
    %cst_102 = arith.constant 5.000000e-01 : f32
    %200 = vector.broadcast %cst_102 : f32 to vector<2x256xf32>
    %201 = arith.addf %199, %200 : vector<2x256xf32>
    %c0_103 = arith.constant 0 : index
    %c0_104 = arith.constant 0 : index
    %202 = vector.load %arg6[%c0_103, %c0_104] : memref<2x256xf32, #tpu.memory_space<vmem>>, vector<2x256xf32>
    %203 = arith.mulf %191, %202 : vector<2x256xf32>
    %204 = arith.mulf %183, %193 : vector<2x256xf32>
    %205 = arith.addf %203, %204 : vector<2x256xf32>
    %206 = math.tanh %205 : vector<2x256xf32>
    %207 = arith.mulf %201, %206 : vector<2x256xf32>
    %c0_105 = arith.constant 0 : index
    %c0_106 = arith.constant 0 : index
    %208 = vector.load %arg5[%c0_105, %c0_106] : memref<2x256xf32, #tpu.memory_space<vmem>>, vector<2x256xf32>
    tpu.vector_store %arg5[%c0_105, %c0_106], %207 {strides = array<i32>} : memref<2x256xf32, #tpu.memory_space<vmem>>, vector<2x256xf32>,
    %c0_107 = arith.constant 0 : index
    %c0_108 = arith.constant 0 : index
    %209 = vector.load %arg6[%c0_107, %c0_108] : memref<2x256xf32, #tpu.memory_space<vmem>>, vector<2x256xf32>
    tpu.vector_store %arg6[%c0_107, %c0_108], %205 {strides = array<i32>} : memref<2x256xf32, #tpu.memory_space<vmem>>, vector<2x256xf32>,
    %210 = arith.truncf %207 : vector<2x256xf32> to vector<2x256xbf16>
    %c0_109 = arith.constant 0 : index
    %211 = arith.index_cast %165 : i32 to index
    %c0_110 = arith.constant 0 : index
    %c0_111 = arith.constant 0 : index
    %212 = vector.load %arg4[%c0_109, %211, %c0_110, %c0_111] : memref<1x4x2x256xbf16, #tpu.memory_space<vmem>>, vector<1x1x2x256xbf16>
    %213 = vector.shape_cast %212 : vector<1x1x2x256xbf16> to vector<2x256xbf16>
    %214 = vector.shape_cast %210 : vector<2x256xbf16> to vector<1x1x2x256xbf16>
    tpu.vector_store %arg4[%c0_109, %211, %c0_110, %c0_111], %214 {strides = array<i32>} : memref<1x4x2x256xbf16, #tpu.memory_space<vmem>>, vector<1x1x2x256xbf16>,
    return
  }
  func.func @transform_0(%arg0: i32, %arg1: i32) -> (i32, i32, i32) {
    %c0_i32 = arith.constant 0 : i32
    %0 = arith.subi %c0_i32, %arg1 : i32
    %1 = arith.muli %arg0, %0 : i32
    %c1_i32 = arith.constant 1 : i32
    %2 = arith.subi %c1_i32, %arg0 : i32
    %3 = arith.muli %2, %arg1 : i32
    %4 = arith.addi %1, %3 : i32
    %c0_i32_0 = arith.constant 0 : i32
    %c0_i32_1 = arith.constant 0 : i32
    return %4, %c0_i32_0, %arg0 : i32, i32, i32
  }
  func.func @transform_1(%arg0: i32, %arg1: i32) -> (i32, i32, i32) {
    %c0_i32 = arith.constant 0 : i32
    %c0_i32_0 = arith.constant 0 : i32
    %c0_i32_1 = arith.constant 0 : i32
    return %arg0, %c0_i32, %c0_i32_0 : i32, i32, i32
  }
  func.func @transform_2(%arg0: i32, %arg1: i32) -> (i32, i32, i32, i32) {
    %c0_i32 = arith.constant 0 : i32
    %0 = arith.subi %c0_i32, %arg1 : i32
    %1 = arith.muli %arg0, %0 : i32
    %c1_i32 = arith.constant 1 : i32
    %2 = arith.subi %c1_i32, %arg0 : i32
    %3 = arith.muli %2, %arg1 : i32
    %4 = arith.addi %1, %3 : i32
    %c0_i32_0 = arith.constant 0 : i32
    %c0_i32_1 = arith.constant 0 : i32
    %c0_i32_2 = arith.constant 0 : i32
    return %arg0, %4, %c0_i32_0, %c0_i32_1 : i32, i32, i32, i32
  }
}

module attributes {stable_mosaic.version = 11 : i64} {
  func.func @_fc_bidir_kernel(%arg0: i32, %arg1: memref<1x8x256xbf16, #tpu.memory_space<vmem>>, %arg2: memref<1x8x256xbf16, #tpu.memory_space<vmem>>, %arg3: memref<256x128xbf16, #tpu.memory_space<vmem>>, %arg4: memref<256x128xbf16, #tpu.memory_space<vmem>>, %arg5: memref<1x128xf32, #tpu.memory_space<vmem>>, %arg6: memref<8x128xf32, #tpu.memory_space<vmem>>) attributes {dimension_semantics = [#tpu.dimension_semantics<parallel>], iteration_bounds = array<i64: 1>, scalar_prefetch = 0 : i64, scratch_operands = 0 : i64, tpu.core_type = #tpu.core_type<tc>, window_params = [{transform_indices = @transform_0, window_bounds = array<i64: 1, 8, 256>}, {transform_indices = @transform_1, window_bounds = array<i64: 1, 8, 256>}, {pipeline_mode = #tpu.pipeline_mode<synchronous>, transform_indices = @transform_2, window_bounds = array<i64: 256, 128>}, {pipeline_mode = #tpu.pipeline_mode<synchronous>, transform_indices = @transform_3, window_bounds = array<i64: 256, 128>}, {pipeline_mode = #tpu.pipeline_mode<synchronous>, transform_indices = @transform_4, window_bounds = array<i64: 1, 128>}, {transform_indices = @transform_5, window_bounds = array<i64: 8, 128>}]} {
    %c0 = arith.constant 0 : index
    %c0_0 = arith.constant 0 : index
    %c0_1 = arith.constant 0 : index
    %0 = vector.load %arg1[%c0, %c0_0, %c0_1] : memref<1x8x256xbf16, #tpu.memory_space<vmem>>, vector<1x8x256xbf16>
    %1 = vector.shape_cast %0 : vector<1x8x256xbf16> to vector<8x256xbf16>
    %c0_2 = arith.constant 0 : index
    %c0_3 = arith.constant 0 : index
    %2 = vector.load %arg3[%c0_2, %c0_3] : memref<256x128xbf16, #tpu.memory_space<vmem>>, vector<256x128xbf16>
    %cst = arith.constant dense<0.000000e+00> : vector<8x128xf32>
    %3 = tpu.matmul %1, %2, %cst {dimension_numbers = #tpu.dot_dimension_numbers<[1], [0], [0], [1], [0, 0, 1, 1], [], []>} : vector<8x256xbf16>, vector<256x128xbf16>, vector<8x128xf32> -> vector<8x128xf32>
    %c0_4 = arith.constant 0 : index
    %c0_5 = arith.constant 0 : index
    %c0_6 = arith.constant 0 : index
    %4 = vector.load %arg2[%c0_4, %c0_5, %c0_6] : memref<1x8x256xbf16, #tpu.memory_space<vmem>>, vector<1x8x256xbf16>
    %5 = vector.shape_cast %4 : vector<1x8x256xbf16> to vector<8x256xbf16>
    %c0_7 = arith.constant 0 : index
    %c0_8 = arith.constant 0 : index
    %6 = vector.load %arg4[%c0_7, %c0_8] : memref<256x128xbf16, #tpu.memory_space<vmem>>, vector<256x128xbf16>
    %cst_9 = arith.constant dense<0.000000e+00> : vector<8x128xf32>
    %7 = tpu.matmul %5, %6, %cst_9 {dimension_numbers = #tpu.dot_dimension_numbers<[1], [0], [0], [1], [0, 0, 1, 1], [], []>} : vector<8x256xbf16>, vector<256x128xbf16>, vector<8x128xf32> -> vector<8x128xf32>
    %8 = arith.addf %3, %7 : vector<8x128xf32>
    %c0_10 = arith.constant 0 : index
    %c0_11 = arith.constant 0 : index
    %9 = vector.load %arg5[%c0_10, %c0_11] : memref<1x128xf32, #tpu.memory_space<vmem>>, vector<1x128xf32>
    %10 = vector.broadcast %9 : vector<1x128xf32> to vector<8x128xf32>
    %11 = arith.addf %8, %10 : vector<8x128xf32>
    %c0_12 = arith.constant 0 : index
    %c0_13 = arith.constant 0 : index
    %12 = vector.load %arg6[%c0_12, %c0_13] : memref<8x128xf32, #tpu.memory_space<vmem>>, vector<8x128xf32>
    tpu.vector_store %arg6[%c0_12, %c0_13], %11 {strides = array<i32>} : memref<8x128xf32, #tpu.memory_space<vmem>>, vector<8x128xf32>,
    return
  }
  func.func @transform_0(%arg0: i32) -> (i32, i32, i32) {
    %c0_i32 = arith.constant 0 : i32
    %c0_i32_0 = arith.constant 0 : i32
    %c0_i32_1 = arith.constant 0 : i32
    return %c0_i32, %arg0, %c0_i32_0 : i32, i32, i32
  }
  func.func @transform_1(%arg0: i32) -> (i32, i32, i32) {
    %c1_i32 = arith.constant 1 : i32
    %c0_i32 = arith.constant 0 : i32
    %c0_i32_0 = arith.constant 0 : i32
    return %c1_i32, %arg0, %c0_i32 : i32, i32, i32
  }
  func.func @transform_2(%arg0: i32) -> (i32, i32) {
    %c0_i32 = arith.constant 0 : i32
    %c0_i32_0 = arith.constant 0 : i32
    %c0_i32_1 = arith.constant 0 : i32
    return %c0_i32, %c0_i32_0 : i32, i32
  }
  func.func @transform_3(%arg0: i32) -> (i32, i32) {
    %c0_i32 = arith.constant 0 : i32
    %c0_i32_0 = arith.constant 0 : i32
    %c0_i32_1 = arith.constant 0 : i32
    return %c0_i32, %c0_i32_0 : i32, i32
  }
  func.func @transform_4(%arg0: i32) -> (i32, i32) {
    %c0_i32 = arith.constant 0 : i32
    %c0_i32_0 = arith.constant 0 : i32
    %c0_i32_1 = arith.constant 0 : i32
    return %c0_i32, %c0_i32_0 : i32, i32
  }
  func.func @transform_5(%arg0: i32) -> (i32, i32) {
    %c0_i32 = arith.constant 0 : i32
    %c0_i32_0 = arith.constant 0 : i32
    return %arg0, %c0_i32 : i32, i32
  }
}

</mosaic_0001>

<llo_original>
// kernel: crnn_forward.7
$region0: #{crnn_forward.7}
  #allocation0 [shape = 'u32[]', space=smem, size = 0x4, offset = 0x4, fixed_abs, tag = 'smem constant byte address 0x4 - core index']
  #allocation1 [shape = 'u32[72,128]{1,0:T(1,128)}', space=vmem, size = 0x9000, scoped, tag = 'internal scratch']
  %s0 = inlined_call_operand.vmem [shape: bf16[256,27], index: 0, kind: input, shape index: {}]
  %s1 = inlined_call_operand.vmem [shape: bf16[27,64], index: 1, kind: input, shape index: {}]
  %s2 = inlined_call_operand.vmem [shape: f32[1,64], index: 2, kind: input, shape index: {}]
  %s3 = inlined_call_operand.vmem [shape: bf16[256,64], index: 3, kind: output, shape index: {}]
  %s4 = sld [smem:[#allocation0]]
  $region22: #{crnn_forward.7} parent=0
    _
  %s6 = ssub.s32 1, %s4
  %s7 = scalar_select 0, %s6, %s4
  // Predicated region
  $region2: #{crnn_forward.7} parent=0 // pred_check
    _
  $region3: #{crnn_forward.7} parent=0 // pred_check_branch
    %9 = sbr.rel (0) target = $region5
  $region4: #{crnn_forward.7} parent=0 // pred_region
    _
  $region5: #{crnn_forward.7} parent=0 // pred_fallthru
    _
  // Predicated region
  $region6: #{crnn_forward.7} parent=0 // pred_check
    _
  $region7: #{crnn_forward.7} parent=0 // pred_check_branch
    %11 = sbr.rel (0) target = $region9
  $region8: #{crnn_forward.7} parent=0 // pred_region
    _
  $region9: #{crnn_forward.7} parent=0 // pred_fallthru
    _
  // Predicated region
  $region10: #{crnn_forward.7} parent=0 // pred_check
    _
  $region11: #{crnn_forward.7} parent=0 // pred_check_branch
    %13 = sbr.rel (0) target = $region13
  $region12: #{crnn_forward.7} parent=0 // pred_region
    _
  $region13: #{crnn_forward.7} parent=0 // pred_fallthru
    _
  %v15 = vld [vmem:[%s0] sm:$0xf]
  %v16 = vld [vmem:[%s0 + $0x4] sm:$0xf]
  %v17 = vld [vmem:[%s0 + $0x8] sm:$0xf]
  %v18 = vld [vmem:[%s0 + $0xc] sm:$0xf]
  %v19 = vld [vmem:[%s0 + $0x10] sm:$0xf]
  %v20 = vld [vmem:[%s0 + $0x14] sm:$0xf]
  %v21 = vld [vmem:[%s0 + $0x18] sm:$0xf]
  %v22 = vld [vmem:[%s0 + $0x1c] sm:$0xf]
  %v23 = vld [vmem:[%s0 + $0x20] sm:$0xf]
  %v24 = vld [vmem:[%s0 + $0x24] sm:$0xf]
  %v25 = vld [vmem:[%s0 + $0x28] sm:$0xf]
  %v26 = vld [vmem:[%s0 + $0x2c] sm:$0xf]
  %v27 = vld [vmem:[%s0 + $0x30] sm:$0xf]
  %v28 = vld [vmem:[%s0 + $0x34] sm:$0xf]
  %v29 = vld [vmem:[%s0 + $0x38] sm:$0xf]
  %v30 = vld [vmem:[%s0 + $0x3c] sm:$0xf]
  %v31 = vld [vmem:[%s0 + $0x40] sm:$0xf]
  %v32 = vld [vmem:[%s0 + $0x44] sm:$0xf]
  %v33 = vld [vmem:[%s0 + $0x48] sm:$0xf]
  %v34 = vld [vmem:[%s0 + $0x4c] sm:$0xf]
  %v35 = vld [vmem:[%s0 + $0x50] sm:$0xf]
  %v36 = vld [vmem:[%s0 + $0x54] sm:$0xf]
  %v37 = vld [vmem:[%s0 + $0x58] sm:$0xf]
  %v38 = vld [vmem:[%s0 + $0x5c] sm:$0xf]
  %v39 = vld [vmem:[%s0 + $0x60] sm:$0xf]
  %v40 = vld [vmem:[%s0 + $0x64] sm:$0xf]
  %v41 = vld [vmem:[%s0 + $0x68] sm:$0xf]
  %v42 = vld [vmem:[%s0 + $0x6c] sm:$0xf]
  %v43 = vld [vmem:[%s0 + $0x70] sm:$0xf]
  %v44 = vld [vmem:[%s0 + $0x74] sm:$0xf]
  %v45 = vld [vmem:[%s0 + $0x78] sm:$0xf]
  %v46 = vld [vmem:[%s0 + $0x7c] sm:$0xf]
  %v47 = vld [vmem:[%s1] sm:$0xf]
  %v48 = vld [vmem:[%s1 + $0x4] sm:$0xf]
  %v49 = vld [vmem:[%s1 + $0x8] sm:$0xf]
  %v50 = vld [vmem:[%s1 + $0xc] sm:$0x3]
  %v51 = vld [vmem:[%s2] sm:$0x1]
  %v53 = vperm.slane %v51, 0
  %v87 = vunpack.c.l.b16 %v15
  %v88 = vunpack.c.l.b16 %v16
  %v89 = vunpack.c.l.b16 %v17
  %v90 = vunpack.c.l.b16 %v18
  %v91 = vunpack.c.l.b16 %v19
  %v92 = vunpack.c.l.b16 %v20
  %v93 = vunpack.c.l.b16 %v21
  %v94 = vunpack.c.l.b16 %v22
  %v95 = vunpack.c.l.b16 %v23
  %v96 = vunpack.c.l.b16 %v24
  %v97 = vunpack.c.l.b16 %v25
  %v98 = vunpack.c.l.b16 %v26
  %v99 = vunpack.c.l.b16 %v27
  %v100 = vunpack.c.l.b16 %v28
  %v101 = vunpack.c.l.b16 %v29
  %v102 = vunpack.c.l.b16 %v30
  %v103 = vunpack.c.l.b16 %v31
  %v104 = vunpack.c.l.b16 %v32
  %v105 = vunpack.c.l.b16 %v33
  %v106 = vunpack.c.l.b16 %v34
  %v107 = vunpack.c.l.b16 %v35
  %v108 = vunpack.c.l.b16 %v36
  %v109 = vunpack.c.l.b16 %v37
  %v110 = vunpack.c.l.b16 %v38
  %v111 = vunpack.c.l.b16 %v39
  %v112 = vunpack.c.l.b16 %v40
  %v113 = vunpack.c.l.b16 %v41
  %v114 = vunpack.c.l.b16 %v42
  %v115 = vunpack.c.l.b16 %v43
  %v116 = vunpack.c.l.b16 %v44
  %v117 = vunpack.c.l.b16 %v45
  %v118 = vunpack.c.l.b16 %v46
  %v119 = vpack.c.b16 %v88, %v87
  %v120 = vpack.c.b16 %v90, %v89
  %v121 = vpack.c.b16 %v92, %v91
  %v122 = vpack.c.b16 %v94, %v93
  %v123 = vpack.c.b16 %v96, %v95
  %v124 = vpack.c.b16 %v98, %v97
  %v125 = vpack.c.b16 %v100, %v99
  %v126 = vpack.c.b16 %v102, %v101
  %v127 = vpack.c.b16 %v104, %v103
  %v128 = vpack.c.b16 %v106, %v105
  %v129 = vpack.c.b16 %v108, %v107
  %v130 = vpack.c.b16 %v110, %v109
  %v131 = vpack.c.b16 %v112, %v111
  %v132 = vpack.c.b16 %v114, %v113
  %v133 = vpack.c.b16 %v116, %v115
  %v134 = vpack.c.b16 %v118, %v117
  %v139 = vunpack.c.l.b16 %v47
  %v140 = vunpack.c.l.b16 %v48
  %v141 = vunpack.c.l.b16 %v49
  %v142 = vunpack.c.l.b16 %v50
  %v143 = vpack.c.b16 %v140, %v139
  %v144 = vpack.c.b16 %v142, %v141
  %vm146 = vcmask 220160
  %v148 = vsel %vm146, %v119, 0
  %v151 = vsel %vm146, %v120, 0
  %v154 = vsel %vm146, %v121, 0
  %v157 = vsel %vm146, %v122, 0
  %v160 = vsel %vm146, %v123, 0
  %v163 = vsel %vm146, %v124, 0
  %v166 = vsel %vm146, %v125, 0
  %v169 = vsel %vm146, %v126, 0
  %v172 = vsel %vm146, %v127, 0
  %v175 = vsel %vm146, %v128, 0
  %v178 = vsel %vm146, %v129, 0
  %v181 = vsel %vm146, %v130, 0
  %v184 = vsel %vm146, %v131, 0
  %v187 = vsel %vm146, %v132, 0
  %v190 = vsel %vm146, %v133, 0
  %v193 = vsel %vm146, %v134, 0
  %vm195 = vcmask 1044480
  %vm196 = vcmask 1045504
  %v197 = vsel %vm195, 4294967295, 65535
  %v198 = vsel %vm196, %v197, 0
  %v200 = vand.u32 %v144, %v198
  %202 = vmatpush.bf16.msra.mxu0 0
  %203 = vmatpush.bf16.msra.mxu0 0
  %204 = vmatpush.bf16.msra.mxu0 0
  %205 = vmatpush.bf16.msra.mxu0 0
  %206 = vmatpush.bf16.msra.mxu0 0
  %207 = vmatpush.bf16.msra.mxu0 0
  %208 = vmatpush.bf16.msra.mxu0 %v200
  %209 = vmatpush.bf16.msra.mxu0 %v143
  %210 = vmatmul.bf16.gmra.mxu0 %v148
  %v211 = vpop.f32.mrf.mxu0
  %v212 = vadd.f32 %v53, %v211
  %v213 = vpop.f32.mrf.mxu0
  %v214 = vadd.f32 %v53, %v213
  %215 = vmatmul.bf16.gmra.mxu0 %v151
  %v216 = vpop.f32.mrf.mxu0
  %v217 = vadd.f32 %v53, %v216
  %v218 = vpop.f32.mrf.mxu0
  %v219 = vadd.f32 %v53, %v218
  %220 = vmatmul.bf16.gmra.mxu0 %v154
  %v221 = vpop.f32.mrf.mxu0
  %v222 = vadd.f32 %v53, %v221
  %v223 = vpop.f32.mrf.mxu0
  %v224 = vadd.f32 %v53, %v223
  %225 = vmatmul.bf16.gmra.mxu0 %v157
  %v226 = vpop.f32.mrf.mxu0
  %v227 = vadd.f32 %v53, %v226
  %v228 = vpop.f32.mrf.mxu0
  %v229 = vadd.f32 %v53, %v228
  %230 = vmatmul.bf16.gmra.mxu0 %v160
  %v231 = vpop.f32.mrf.mxu0
  %v232 = vadd.f32 %v53, %v231
  %v233 = vpop.f32.mrf.mxu0
  %v234 = vadd.f32 %v53, %v233
  %235 = vmatmul.bf16.gmra.mxu0 %v163
  %v236 = vpop.f32.mrf.mxu0
  %v237 = vadd.f32 %v53, %v236
  %v238 = vpop.f32.mrf.mxu0
  %v239 = vadd.f32 %v53, %v238
  %240 = vmatmul.bf16.gmra.mxu0 %v166
  %v241 = vpop.f32.mrf.mxu0
  %v242 = vadd.f32 %v53, %v241
  %v243 = vpop.f32.mrf.mxu0
  %v244 = vadd.f32 %v53, %v243
  %245 = vmatmul.bf16.gmra.mxu0 %v169
  %v246 = vpop.f32.mrf.mxu0
  %v247 = vadd.f32 %v53, %v246
  %v248 = vpop.f32.mrf.mxu0
  %v249 = vadd.f32 %v53, %v248
  %250 = vmatmul.bf16.gmra.mxu0 %v172
  %v251 = vpop.f32.mrf.mxu0
  %v252 = vadd.f32 %v53, %v251
  %v253 = vpop.f32.mrf.mxu0
  %v254 = vadd.f32 %v53, %v253
  %255 = vmatmul.bf16.gmra.mxu0 %v175
  %v256 = vpop.f32.mrf.mxu0
  %v257 = vadd.f32 %v53, %v256
  %v258 = vpop.f32.mrf.mxu0
  %v259 = vadd.f32 %v53, %v258
  %260 = vmatmul.bf16.gmra.mxu0 %v178
  %v261 = vpop.f32.mrf.mxu0
  %v262 = vadd.f32 %v53, %v261
  %v263 = vpop.f32.mrf.mxu0
  %v264 = vadd.f32 %v53, %v263
  %265 = vmatmul.bf16.gmra.mxu0 %v181
  %v266 = vpop.f32.mrf.mxu0
  %v267 = vadd.f32 %v53, %v266
  %v268 = vpop.f32.mrf.mxu0
  %v269 = vadd.f32 %v53, %v268
  %270 = vmatmul.bf16.gmra.mxu0 %v184
  %v271 = vpop.f32.mrf.mxu0
  %v272 = vadd.f32 %v53, %v271
  %v273 = vpop.f32.mrf.mxu0
  %v274 = vadd.f32 %v53, %v273
  %275 = vmatmul.bf16.gmra.mxu0 %v187
  %v276 = vpop.f32.mrf.mxu0
  %v277 = vadd.f32 %v53, %v276
  %v278 = vpop.f32.mrf.mxu0
  %v279 = vadd.f32 %v53, %v278
  %280 = vmatmul.bf16.gmra.mxu0 %v190
  %v281 = vpop.f32.mrf.mxu0
  %v282 = vadd.f32 %v53, %v281
  %v283 = vpop.f32.mrf.mxu0
  %v284 = vadd.f32 %v53, %v283
  %285 = vmatmul.bf16.gmra.mxu0 %v193
  %v286 = vpop.f32.mrf.mxu0
  %v287 = vadd.f32 %v53, %v286
  %v288 = vpop.f32.mrf.mxu0
  %v289 = vadd.f32 %v53, %v288
  %290 = vdwg.mxu0
  %v291 = vmax.f32 %v212, 0.0
  %v292 = vmax.f32 %v214, 0.0
  %v293 = vmax.f32 %v217, 0.0
  %v294 = vmax.f32 %v219, 0.0
  %v295 = vmax.f32 %v222, 0.0
  %v296 = vmax.f32 %v224, 0.0
  %v297 = vmax.f32 %v227, 0.0
  %v298 = vmax.f32 %v229, 0.0
  %v299 = vmax.f32 %v232, 0.0
  %v300 = vmax.f32 %v234, 0.0
  %v301 = vmax.f32 %v237, 0.0
  %v302 = vmax.f32 %v239, 0.0
  %v303 = vmax.f32 %v242, 0.0
  %v304 = vmax.f32 %v244, 0.0
  %v305 = vmax.f32 %v247, 0.0
  %v306 = vmax.f32 %v249, 0.0
  %v307 = vmax.f32 %v252, 0.0
  %v308 = vmax.f32 %v254, 0.0
  %v309 = vmax.f32 %v257, 0.0
  %v310 = vmax.f32 %v259, 0.0
  %v311 = vmax.f32 %v262, 0.0
  %v312 = vmax.f32 %v264, 0.0
  %v313 = vmax.f32 %v267, 0.0
  %v314 = vmax.f32 %v269, 0.0
  %v315 = vmax.f32 %v272, 0.0
  %v316 = vmax.f32 %v274, 0.0
  %v317 = vmax.f32 %v277, 0.0
  %v318 = vmax.f32 %v279, 0.0
  %v319 = vmax.f32 %v282, 0.0
  %v320 = vmax.f32 %v284, 0.0
  %v321 = vmax.f32 %v287, 0.0
  %v322 = vmax.f32 %v289, 0.0
  %v323 = vpack.c.bf16 %v291, %v291
  %v324 = vpack.c.bf16 %v292, %v292
  %v325 = vpack.c.bf16 %v293, %v293
  %v326 = vpack.c.bf16 %v294, %v294
  %v327 = vpack.c.bf16 %v295, %v295
  %v328 = vpack.c.bf16 %v296, %v296
  %v329 = vpack.c.bf16 %v297, %v297
  %v330 = vpack.c.bf16 %v298, %v298
  %v331 = vpack.c.bf16 %v299, %v299
  %v332 = vpack.c.bf16 %v300, %v300
  %v333 = vpack.c.bf16 %v301, %v301
  %v334 = vpack.c.bf16 %v302, %v302
  %v335 = vpack.c.bf16 %v303, %v303
  %v336 = vpack.c.bf16 %v304, %v304
  %v337 = vpack.c.bf16 %v305, %v305
  %v338 = vpack.c.bf16 %v306, %v306
  %v339 = vpack.c.bf16 %v307, %v307
  %v340 = vpack.c.bf16 %v308, %v308
  %v341 = vpack.c.bf16 %v309, %v309
  %v342 = vpack.c.bf16 %v310, %v310
  %v343 = vpack.c.bf16 %v311, %v311
  %v344 = vpack.c.bf16 %v312, %v312
  %v345 = vpack.c.bf16 %v313, %v313
  %v346 = vpack.c.bf16 %v314, %v314
  %v347 = vpack.c.bf16 %v315, %v315
  %v348 = vpack.c.bf16 %v316, %v316
  %v349 = vpack.c.bf16 %v317, %v317
  %v350 = vpack.c.bf16 %v318, %v318
  %v351 = vpack.c.bf16 %v319, %v319
  %v352 = vpack.c.bf16 %v320, %v320
  %v353 = vpack.c.bf16 %v321, %v321
  %v354 = vpack.c.bf16 %v322, %v322
  %vm355 = vcmask 519168
  %356 = vst.msk [vmem:[%s3] sm:$0xf] %vm355, %v323
  %357 = vst.msk [vmem:[%s3 + $0x4] sm:$0xf] %vm355, %v324
  %358 = vst.msk [vmem:[%s3 + $0x8] sm:$0xf] %vm355, %v325
  %359 = vst.msk [vmem:[%s3 + $0xc] sm:$0xf] %vm355, %v326
  %360 = vst.msk [vmem:[%s3 + $0x10] sm:$0xf] %vm355, %v327
  %361 = vst.msk [vmem:[%s3 + $0x14] sm:$0xf] %vm355, %v328
  %362 = vst.msk [vmem:[%s3 + $0x18] sm:$0xf] %vm355, %v329
  %363 = vst.msk [vmem:[%s3 + $0x1c] sm:$0xf] %vm355, %v330
  %364 = vst.msk [vmem:[%s3 + $0x20] sm:$0xf] %vm355, %v331
  %365 = vst.msk [vmem:[%s3 + $0x24] sm:$0xf] %vm355, %v332
  %366 = vst.msk [vmem:[%s3 + $0x28] sm:$0xf] %vm355, %v333
  %367 = vst.msk [vmem:[%s3 + $0x2c] sm:$0xf] %vm355, %v334
  %368 = vst.msk [vmem:[%s3 + $0x30] sm:$0xf] %vm355, %v335
  %369 = vst.msk [vmem:[%s3 + $0x34] sm:$0xf] %vm355, %v336
  %370 = vst.msk [vmem:[%s3 + $0x38] sm:$0xf] %vm355, %v337
  %371 = vst.msk [vmem:[%s3 + $0x3c] sm:$0xf] %vm355, %v338
  %372 = vst.msk [vmem:[%s3 + $0x40] sm:$0xf] %vm355, %v339
  %373 = vst.msk [vmem:[%s3 + $0x44] sm:$0xf] %vm355, %v340
  %374 = vst.msk [vmem:[%s3 + $0x48] sm:$0xf] %vm355, %v341
  %375 = vst.msk [vmem:[%s3 + $0x4c] sm:$0xf] %vm355, %v342
  %376 = vst.msk [vmem:[%s3 + $0x50] sm:$0xf] %vm355, %v343
  %377 = vst.msk [vmem:[%s3 + $0x54] sm:$0xf] %vm355, %v344
  %378 = vst.msk [vmem:[%s3 + $0x58] sm:$0xf] %vm355, %v345
  %379 = vst.msk [vmem:[%s3 + $0x5c] sm:$0xf] %vm355, %v346
  %380 = vst.msk [vmem:[%s3 + $0x60] sm:$0xf] %vm355, %v347
  %381 = vst.msk [vmem:[%s3 + $0x64] sm:$0xf] %vm355, %v348
  %382 = vst.msk [vmem:[%s3 + $0x68] sm:$0xf] %vm355, %v349
  %383 = vst.msk [vmem:[%s3 + $0x6c] sm:$0xf] %vm355, %v350
  %384 = vst.msk [vmem:[%s3 + $0x70] sm:$0xf] %vm355, %v351
  %385 = vst.msk [vmem:[%s3 + $0x74] sm:$0xf] %vm355, %v352
  %386 = vst.msk [vmem:[%s3 + $0x78] sm:$0xf] %vm355, %v353
  %387 = vst.msk [vmem:[%s3 + $0x7c] sm:$0xf] %vm355, %v354
  // Predicated region
  $region14: #{crnn_forward.7} parent=0 // pred_check
    _
  $region15: #{crnn_forward.7} parent=0 // pred_check_branch
    %389 = sbr.rel (0) target = $region17
  $region16: #{crnn_forward.7} parent=0 // pred_region
    _
  $region17: #{crnn_forward.7} parent=0 // pred_fallthru
    _
  // Predicated region
  $region18: #{crnn_forward.7} parent=0 // pred_check
    _
  $region19: #{crnn_forward.7} parent=0 // pred_check_branch
    %391 = sbr.rel (0) target = $region21
  $region20: #{crnn_forward.7} parent=0 // pred_region
    _
  $region21: #{crnn_forward.7} parent=0 // pred_fallthru
    _

// kernel: crnn_forward.9
$region0: #{crnn_forward.9}
  #allocation0 [shape = 'u32[]', space=smem, size = 0x4, offset = 0x4, fixed_abs, tag = 'smem constant byte address 0x4 - core index']
  #allocation1 [shape = 'u32[72,128]{1,0:T(1,128)}', space=vmem, size = 0x9000, scoped, tag = 'internal scratch']
  %s0 = inlined_call_operand.vmem [shape: bf16[2,6,10,64], index: 0, kind: input, shape index: {}]
  %s1 = inlined_call_operand.vmem [shape: bf16[3,192,128], index: 1, kind: input, shape index: {}]
  %s2 = inlined_call_operand.vmem [shape: f32[1,128], index: 2, kind: input, shape index: {}]
  %s3 = inlined_call_operand.vmem [shape: bf16[2,32,128], index: 3, kind: output, shape index: {}]
  %s4 = sld [smem:[#allocation0]]
  $region45: #{crnn_forward.9} parent=0
    _
  %s6 = ssub.s32 1, %s4
  %s7 = scalar_select 0, %s6, %s4
  loop: start=0, step=1, limit=4
  $region2: #{crnn_forward.9} parent=0 // loop_pre_header
    _
  $region3: #{crnn_forward.9} parent=0 // loop_header
    %s9 = sphi 0, %s13
    %p10 = scmp.ge.s32.totalorder %s9, 4
    %s19 = sphi 0, %s21
    %s22 = sphi 0, %s19
    %s23 = sphi 0, %s22
    %s39 = sphi 0, %s23
    %s43 = sphi 0, %s43
    %s45 = sphi 0, %s43
    %s46 = sphi 0, %s45
    %s60 = sphi 0, %s46
    %s64 = sphi 0, %s64
    %s66 = sphi 0, %s64
    %s67 = sphi 0, %s66
    %s81 = sphi 0, %s67
    %s87 = sphi 0, %s89
    %s90 = sphi 0, %s87
    %s91 = sphi 0, %s90
    %s107 = sphi 0, %s91
  $region4: #{crnn_forward.9} parent=0 // loop_header_branch
    %12 = sbr.rel (%p10) target = $region8
  $region5: #{crnn_forward.9} parent=0 // loop_body
    %s14 = ssub.s32 %s9, 1
    %s15 = ssub.s32 %s9, 2
    %s16 = sadd.s32 %s9, 1
    %s17 = ssub.s32 %s9, %s16
    %p18 = scmp.eq.s32.totalorder %s17, 0
    %s20 = sadd.s32 %s19, 1
    %s21 = scalar_select %p18, %s19, %s20
    %p24 = pneg %p18
    %p25 = scmp.eq.s32.totalorder %s9, 1
    %p26 = por %p24, %p25
    %p27 = scmp.ne.s32.totalorder %s19, %s22
    %p28 = scmp.eq.s32.totalorder %s9, 0
    %p29 = por %p27, %p28
    %p30 = scmp.ne.s32.totalorder %s19, %s22
    %p31 = scmp.eq.s32.totalorder %s14, 1
    %p32 = por %p30, %p31
    %p33 = scmp.ne.s32.totalorder %s22, %s23
    %p34 = scmp.eq.s32.totalorder %s14, 0
    %p35 = por %p33, %p34
    %p36 = scmp.ne.s32.totalorder %s22, %s23
    %p37 = scmp.eq.s32.totalorder %s15, 1
    %p38 = por %p36, %p37
    %p40 = scmp.ne.s32.totalorder %s23, %s39
    %p41 = scmp.eq.s32.totalorder %s15, 0
    %p42 = por %p40, %p41
    %s44 = sadd.s32 %s43, 1
    %p47 = scmp.eq.s32.totalorder %s9, 1
    %p48 = scmp.ne.s32.totalorder %s43, %s45
    %p49 = scmp.eq.s32.totalorder %s9, 0
    %p50 = por %p48, %p49
    %p51 = scmp.ne.s32.totalorder %s43, %s45
    %p52 = scmp.eq.s32.totalorder %s14, 1
    %p53 = por %p51, %p52
    %p54 = scmp.ne.s32.totalorder %s45, %s46
    %p55 = scmp.eq.s32.totalorder %s14, 0
    %p56 = por %p54, %p55
    %p57 = scmp.ne.s32.totalorder %s45, %s46
    %p58 = scmp.eq.s32.totalorder %s15, 1
    %p59 = por %p57, %p58
    %p61 = scmp.ne.s32.totalorder %s46, %s60
    %p62 = scmp.eq.s32.totalorder %s15, 0
    %p63 = por %p61, %p62
    %s65 = sadd.s32 %s64, 1
    %p68 = scmp.eq.s32.totalorder %s9, 1
    %p69 = scmp.ne.s32.totalorder %s64, %s66
    %p70 = scmp.eq.s32.totalorder %s9, 0
    %p71 = por %p69, %p70
    %p72 = scmp.ne.s32.totalorder %s64, %s66
    %p73 = scmp.eq.s32.totalorder %s14, 1
    %p74 = por %p72, %p73
    %p75 = scmp.ne.s32.totalorder %s66, %s67
    %p76 = scmp.eq.s32.totalorder %s14, 0
    %p77 = por %p75, %p76
    %p78 = scmp.ne.s32.totalorder %s66, %s67
    %p79 = scmp.eq.s32.totalorder %s15, 1
    %p80 = por %p78, %p79
    %p82 = scmp.ne.s32.totalorder %s67, %s81
    %p83 = scmp.eq.s32.totalorder %s15, 0
    %p84 = por %p82, %p83
    %s85 = ssub.s32 %s9, %s16
    %p86 = scmp.eq.s32.totalorder %s85, 0
    %s88 = sadd.s32 %s87, 1
    %s89 = scalar_select %p86, %s87, %s88
    %p92 = pneg %p86
    %p93 = scmp.eq.s32.totalorder %s9, 1
    %p94 = por %p92, %p93
    %p95 = scmp.ne.s32.totalorder %s87, %s90
    %p96 = scmp.eq.s32.totalorder %s9, 0
    %p97 = por %p95, %p96
    %p98 = scmp.ne.s32.totalorder %s87, %s90
    %p99 = scmp.eq.s32.totalorder %s14, 1
    %p100 = por %p98, %p99
    %p101 = scmp.ne.s32.totalorder %s90, %s91
    %p102 = scmp.eq.s32.totalorder %s14, 0
    %p103 = por %p101, %p102
    %p104 = scmp.ne.s32.totalorder %s90, %s91
    %p105 = scmp.eq.s32.totalorder %s15, 1
    %p106 = por %p104, %p105
    %p108 = scmp.ne.s32.totalorder %s91, %s107
    %p109 = scmp.eq.s32.totalorder %s15, 0
    %p110 = por %p108, %p109
    %p111 = scmp.le.s32.totalorder 1, %s9
    %p112 = scmp.lt.s32.totalorder %s9, 3
    %p113 = pnand %p111, %p112
    %p114 = pneg %p113
    // Predicated region
    $region9: #{crnn_forward.9} parent=5 // pred_check
      _
    $region10: #{crnn_forward.9} parent=5 // pred_check_branch
      %116 = sbr.rel (%p113) target = $region12
    $region11: #{crnn_forward.9} parent=5 // pred_region
      %s117 = ssub.s32 %s9, 1
      // Predicated region
      $region13: #{crnn_forward.9} parent=11 // pred_check
        %p118 = pneg %p56
      $region14: #{crnn_forward.9} parent=11 // pred_check_branch
        %120 = sbr.rel (%p118) target = $region16
      $region15: #{crnn_forward.9} parent=11 // pred_region
        _
      $region16: #{crnn_forward.9} parent=11 // pred_fallthru
        _
      // Predicated region
      $region17: #{crnn_forward.9} parent=11 // pred_check
        %p121 = pneg %p77
      $region18: #{crnn_forward.9} parent=11 // pred_check_branch
        %123 = sbr.rel (%p121) target = $region20
      $region19: #{crnn_forward.9} parent=11 // pred_region
        _
      $region20: #{crnn_forward.9} parent=11 // pred_fallthru
        _
    $region12: #{crnn_forward.9} parent=5 // pred_fallthru
      _
    %p124 = scmp.lt.s32.totalorder %s9, 2
    // Predicated region
    $region21: #{crnn_forward.9} parent=5 // pred_check
      %p125 = pneg %p124
    $region22: #{crnn_forward.9} parent=5 // pred_check_branch
      %127 = sbr.rel (%p125) target = $region24
    $region23: #{crnn_forward.9} parent=5 // pred_region
      // Predicated region
      $region25: #{crnn_forward.9} parent=23 // pred_check
        %p128 = pneg %p29
      $region26: #{crnn_forward.9} parent=23 // pred_check_branch
        %130 = sbr.rel (%p128) target = $region28
      $region27: #{crnn_forward.9} parent=23 // pred_region
        %p131 = scmp.lt.s32.totalorder %s9, 1
        %s132 = scalar_select %p131, %s9, 1
        %s133 = smul.addr %s132, 12
        %s134 = smul.addr %s133, 4
        %s135 = scalar_lea.vmem %s0, %s134
      $region28: #{crnn_forward.9} parent=23 // pred_fallthru
        _
    $region24: #{crnn_forward.9} parent=5 // pred_fallthru
      _
    %p136 = scmp.le.s32.totalorder 1, %s9
    %p137 = scmp.lt.s32.totalorder %s9, 3
    %p138 = pnand %p136, %p137
    %p139 = pneg %p138
    // Predicated region
    $region29: #{crnn_forward.9} parent=5 // pred_check
      _
    $region30: #{crnn_forward.9} parent=5 // pred_check_branch
      %141 = sbr.rel (%p138) target = $region32
    $region31: #{crnn_forward.9} parent=5 // pred_region
      %s142 = ssub.s32 %s9, 1
      %p143 = scmp.lt.s32.totalorder %s14, 1
      %s144 = scalar_select %p143, %s14, 1
      %s145 = smul.addr %s144, 12
      %s146 = smul.addr %s145, 4
      %s147 = scalar_lea.vmem %s0, %s146
      %p148 = pneg %p35
      %p149 = pneg %p32
      %p150 = pneg %p56
      %p151 = pneg %p53
      %p152 = pneg %p77
      %p153 = pneg %p74
      %p154 = pneg %p103
      %p155 = pneg %p100
      %p156 = scmp.lt.s32.totalorder %s14, 1
      %s157 = scalar_select %p156, %s14, 1
      %s158 = smul.addr %s157, 4
      %s159 = smul.addr %s158, 4
      %s160 = scalar_lea.vmem %s3, %s159
      %p161 = scmp.lt.s32.totalorder %s14, 1
      %s162 = scalar_select %p161, %s14, 1
      %s163 = smul.addr %s162, 12
      %s164 = smul.addr %s163, 4
      %s165 = scalar_lea.vmem %s0, %s164
      %p166 = scmp.lt.s32.totalorder %s14, 1
      %s167 = scalar_select %p166, %s14, 1
      %s168 = smul.addr %s167, 4
      %s169 = smul.addr %s168, 4
      %s170 = scalar_lea.vmem %s3, %s169
      %v172 = vld [vmem:[%s165] sm:$0xf]
      %v173 = vld [vmem:[%s165 + $0x8] sm:$0xf]
      %v174 = vld [vmem:[%s165 + $0x10] sm:$0xf]
      %v175 = vld [vmem:[%s165 + $0x18] sm:$0xf]
      %v176 = vld [vmem:[%s165 + $0x20] sm:$0xf]
      %v177 = vld [vmem:[%s165 + $0x28] sm:$0xf]
      %v178 = vld [vmem:[%s165 + $0x4] sm:$0x1]
      %v179 = vld [vmem:[%s165 + $0xc] sm:$0x1]
      %v180 = vld [vmem:[%s165 + $0x14] sm:$0x1]
      %v181 = vld [vmem:[%s165 + $0x1c] sm:$0x1]
      %v182 = vld [vmem:[%s165 + $0x24] sm:$0x1]
      %v183 = vld [vmem:[%s165 + $0x2c] sm:$0x1]
      %v184 = vld [vmem:[%s165] sm:$0xe]
      %v185 = vld [vmem:[%s165 + $0x8] sm:$0xe]
      %v186 = vld [vmem:[%s165 + $0x10] sm:$0xe]
      %v187 = vld [vmem:[%s165 + $0x18] sm:$0xe]
      %v188 = vld [vmem:[%s165 + $0x20] sm:$0xe]
      %v189 = vld [vmem:[%s165 + $0x28] sm:$0xe]
      %v202 = vunpack.c.l.b16 %v172
      %v203 = vunpack.c.l.b16 %v178
      %v204 = vunpack.c.l.b16 %v173
      %v205 = vunpack.c.l.b16 %v179
      %v206 = vunpack.c.l.b16 %v174
      %v207 = vunpack.c.l.b16 %v180
      %v208 = vunpack.c.l.b16 %v175
      %v209 = vunpack.c.l.b16 %v181
      %v210 = vunpack.c.l.b16 %v176
      %v211 = vunpack.c.l.b16 %v182
      %v212 = vunpack.c.l.b16 %v177
      %v213 = vunpack.c.l.b16 %v183
      %v214 = vpack.c.b16 %v203, %v202
      %v215 = vpack.c.b16 %v205, %v204
      %v216 = vpack.c.b16 %v207, %v206
      %v217 = vpack.c.b16 %v209, %v208
      %v218 = vpack.c.b16 %v211, %v210
      %v219 = vpack.c.b16 %v213, %v212
      %v221 = vshrl.u32 %v214, 16
      %v223 = vshll.u32 %v214, 16
      %v225 = vrot.slane %v223, 1
      %v226 = vor.u32 %v221, %v225
      %v228 = vshrl.u32 %v215, 16
      %v230 = vshll.u32 %v215, 16
      %v232 = vrot.slane %v230, 1
      %v233 = vor.u32 %v228, %v232
      %v235 = vshrl.u32 %v216, 16
      %v237 = vshll.u32 %v216, 16
      %v239 = vrot.slane %v237, 1
      %v240 = vor.u32 %v235, %v239
      %v242 = vshrl.u32 %v217, 16
      %v244 = vshll.u32 %v217, 16
      %v246 = vrot.slane %v244, 1
      %v247 = vor.u32 %v242, %v246
      %v249 = vshrl.u32 %v218, 16
      %v251 = vshll.u32 %v218, 16
      %v253 = vrot.slane %v251, 1
      %v254 = vor.u32 %v249, %v253
      %v256 = vshrl.u32 %v219, 16
      %v258 = vshll.u32 %v219, 16
      %v260 = vrot.slane %v258, 1
      %v261 = vor.u32 %v256, %v260
      %262 = vrot.lane.b32.xlu0 %v226, 64
      %v263 = vpop.permute.xlu0 %262
      %264 = vrot.lane.b32.xlu0 %v233, 64
      %v265 = vpop.permute.xlu0 %264
      %266 = vrot.lane.b32.xlu0 %v240, 64
      %v267 = vpop.permute.xlu0 %266
      %268 = vrot.lane.b32.xlu0 %v247, 64
      %v269 = vpop.permute.xlu0 %268
      %270 = vrot.lane.b32.xlu0 %v254, 64
      %v271 = vpop.permute.xlu0 %270
      %272 = vrot.lane.b32.xlu0 %v261, 64
      %v273 = vpop.permute.xlu0 %272
      %v280 = vunpack.c.l.b16 %v184
      %v281 = vunpack.c.l.b16 %v185
      %v282 = vunpack.c.l.b16 %v186
      %v283 = vunpack.c.l.b16 %v187
      %v284 = vunpack.c.l.b16 %v188
      %v285 = vunpack.c.l.b16 %v189
      %v286 = vpack.c.b16 %v203, %v280
      %v287 = vpack.c.b16 %v205, %v281
      %v288 = vpack.c.b16 %v207, %v282
      %v289 = vpack.c.b16 %v209, %v283
      %v290 = vpack.c.b16 %v211, %v284
      %v291 = vpack.c.b16 %v213, %v285
      %v292 = vrot.slane %v286, 1
      %v293 = vrot.slane %v287, 1
      %v294 = vrot.slane %v288, 1
      %v295 = vrot.slane %v289, 1
      %v296 = vrot.slane %v290, 1
      %v297 = vrot.slane %v291, 1
      %vm298 = vcmask 523264
      %v301 = vsel %vm298, %v172, %v263
      %v304 = vsel %vm298, %v173, %v265
      %v307 = vsel %vm298, %v174, %v267
      %v310 = vsel %vm298, %v175, %v269
      %v313 = vsel %vm298, %v176, %v271
      %v316 = vsel %vm298, %v177, %v273
      %v321 = vunpack.c.l.b16 %v301
      %v322 = vunpack.c.l.b16 %v292
      %v323 = vunpack.c.l.b16 %v304
      %v324 = vunpack.c.l.b16 %v293
      %v325 = vunpack.c.l.b16 %v307
      %v326 = vunpack.c.l.b16 %v294
      %v327 = vunpack.c.l.b16 %v310
      %v328 = vunpack.c.l.b16 %v295
      %v329 = vld [vmem:[%s1] sm:$0xf]
      %v330 = vld [vmem:[%s1 + $0x4] sm:$0xf]
      %v331 = vld [vmem:[%s1 + $0x8] sm:$0xf]
      %v332 = vld [vmem:[%s1 + $0xc] sm:$0xf]
      %v333 = vld [vmem:[%s1 + $0x10] sm:$0xf]
      %v334 = vld [vmem:[%s1 + $0x14] sm:$0xf]
      %v335 = vld [vmem:[%s1 + $0x18] sm:$0xf]
      %v336 = vld [vmem:[%s1 + $0x1c] sm:$0xf]
      %v337 = vld [vmem:[%s1 + $0x20] sm:$0xf]
      %v338 = vld [vmem:[%s1 + $0x24] sm:$0xf]
      %v339 = vld [vmem:[%s1 + $0x28] sm:$0xf]
      %v340 = vld [vmem:[%s1 + $0x2c] sm:$0xf]
      %v341 = vld [vmem:[%s1 + $0x30] sm:$0xf]
      %v342 = vld [vmem:[%s1 + $0x34] sm:$0xf]
      %v343 = vld [vmem:[%s1 + $0x38] sm:$0xf]
      %v344 = vld [vmem:[%s1 + $0x3c] sm:$0xf]
      %v345 = vld [vmem:[%s1 + $0x40] sm:$0xf]
      %v346 = vld [vmem:[%s1 + $0x44] sm:$0xf]
      %v347 = vld [vmem:[%s1 + $0x48] sm:$0xf]
      %v348 = vld [vmem:[%s1 + $0x4c] sm:$0xf]
      %v349 = vld [vmem:[%s1 + $0x50] sm:$0xf]
      %v350 = vld [vmem:[%s1 + $0x54] sm:$0xf]
      %v351 = vld [vmem:[%s1 + $0x58] sm:$0xf]
      %v352 = vld [vmem:[%s1 + $0x5c] sm:$0xf]
      %v354 = vunpack.c.l.b16 %v313
      %v355 = vunpack.c.l.b16 %v296
      %s356 = scalar_lea.vmem %s1, 96
      %v357 = vld [vmem:[%s356] sm:$0xf]
      %v358 = vld [vmem:[%s356 + $0x4] sm:$0xf]
      %v359 = vld [vmem:[%s356 + $0x8] sm:$0xf]
      %v360 = vld [vmem:[%s356 + $0xc] sm:$0xf]
      %v361 = vld [vmem:[%s356 + $0x10] sm:$0xf]
      %v362 = vld [vmem:[%s356 + $0x14] sm:$0xf]
      %v363 = vld [vmem:[%s356 + $0x18] sm:$0xf]
      %v364 = vld [vmem:[%s356 + $0x1c] sm:$0xf]
      %v365 = vld [vmem:[%s356 + $0x20] sm:$0xf]
      %v366 = vld [vmem:[%s356 + $0x24] sm:$0xf]
      %v367 = vld [vmem:[%s356 + $0x28] sm:$0xf]
      %v368 = vld [vmem:[%s356 + $0x2c] sm:$0xf]
      %v369 = vld [vmem:[%s356 + $0x30] sm:$0xf]
      %v370 = vld [vmem:[%s356 + $0x34] sm:$0xf]
      %v371 = vld [vmem:[%s356 + $0x38] sm:$0xf]
      %v372 = vld [vmem:[%s356 + $0x3c] sm:$0xf]
      %v373 = vld [vmem:[%s356 + $0x40] sm:$0xf]
      %v374 = vld [vmem:[%s356 + $0x44] sm:$0xf]
      %v375 = vld [vmem:[%s356 + $0x48] sm:$0xf]
      %v376 = vld [vmem:[%s356 + $0x4c] sm:$0xf]
      %v377 = vld [vmem:[%s356 + $0x50] sm:$0xf]
      %v378 = vld [vmem:[%s356 + $0x54] sm:$0xf]
      %v379 = vld [vmem:[%s356 + $0x58] sm:$0xf]
      %v380 = vld [vmem:[%s356 + $0x5c] sm:$0xf]
      %v381 = vpack.c.b16 %v325, %v323
      %v382 = vpack.c.b16 %v326, %v324
      %v383 = vpack.c.b16 %v354, %v327
      %v384 = vpack.c.b16 %v355, %v328
      %v411 = vunpack.c.l.b16 %v357
      %v412 = vunpack.c.l.b16 %v358
      %v413 = vunpack.c.l.b16 %v359
      %v414 = vunpack.c.l.b16 %v360
      %v415 = vunpack.c.l.b16 %v361
      %v416 = vunpack.c.l.b16 %v362
      %v417 = vunpack.c.l.b16 %v363
      %v418 = vunpack.c.l.b16 %v364
      %v419 = vunpack.c.l.b16 %v365
      %v420 = vunpack.c.l.b16 %v366
      %v421 = vunpack.c.l.b16 %v367
      %v422 = vunpack.c.l.b16 %v368
      %v423 = vunpack.c.l.b16 %v369
      %v424 = vunpack.c.l.b16 %v370
      %v425 = vunpack.c.l.b16 %v371
      %v426 = vunpack.c.l.b16 %v372
      %v427 = vunpack.c.l.b16 %v373
      %v428 = vunpack.c.l.b16 %v374
      %v429 = vunpack.c.l.b16 %v375
      %v430 = vunpack.c.l.b16 %v376
      %v431 = vunpack.c.l.b16 %v377
      %v432 = vunpack.c.l.b16 %v378
      %v433 = vunpack.c.l.b16 %v379
      %v434 = vunpack.c.l.b16 %v380
      %v435 = vpack.c.b16 %v412, %v411
      %v436 = vpack.c.b16 %v414, %v413
      %v437 = vpack.c.b16 %v416, %v415
      %v438 = vpack.c.b16 %v418, %v417
      %v439 = vpack.c.b16 %v420, %v419
      %v440 = vpack.c.b16 %v422, %v421
      %v441 = vpack.c.b16 %v424, %v423
      %v442 = vpack.c.b16 %v426, %v425
      %v443 = vpack.c.b16 %v428, %v427
      %v444 = vpack.c.b16 %v430, %v429
      %v445 = vpack.c.b16 %v432, %v431
      %v446 = vpack.c.b16 %v434, %v433
      %v460 = vsel %vm298, %v382, 0
      %v463 = vsel %vm298, %v384, 0
      %465 = vmatpush.bf16.msra.mxu0 %v442
      %466 = vmatpush.bf16.msra.mxu0 %v441
      %467 = vmatpush.bf16.msra.mxu0 %v440
      %468 = vmatpush.bf16.msra.mxu0 %v439
      %469 = vmatpush.bf16.msra.mxu0 %v438
      %470 = vmatpush.bf16.msra.mxu0 %v437
      %471 = vmatpush.bf16.msra.mxu0 %v436
      %472 = vmatpush.bf16.msra.mxu0 %v435
      %473 = vmatmul.bf16.gmra.mxu0 %v381
      %v474 = vpop.f32.mrf.mxu0
      %v475 = vadd.f32 0.0, %v474
      %v476 = vpop.f32.mrf.mxu0
      %v477 = vadd.f32 0.0, %v476
      %478 = vmatmul.bf16.gmra.mxu0 %v383
      %v479 = vpop.f32.mrf.mxu0
      %v480 = vadd.f32 0.0, %v479
      %v481 = vpop.f32.mrf.mxu0
      %v482 = vadd.f32 0.0, %v481
      %483 = vdwg.mxu0
      %484 = vmatpush.bf16.msra.mxu0 0
      %485 = vmatpush.bf16.msra.mxu0 0
      %486 = vmatpush.bf16.msra.mxu0 0
      %487 = vmatpush.bf16.msra.mxu0 0
      %488 = vmatpush.bf16.msra.mxu0 %v446
      %489 = vmatpush.bf16.msra.mxu0 %v445
      %490 = vmatpush.bf16.msra.mxu0 %v444
      %491 = vmatpush.bf16.msra.mxu0 %v443
      %492 = vmatmul.bf16.gmra.mxu0 %v460
      %v493 = vpop.f32.mrf.mxu0
      %v494 = vadd.f32 %v475, %v493
      %v495 = vpop.f32.mrf.mxu0
      %v496 = vadd.f32 %v477, %v495
      %497 = vmatmul.bf16.gmra.mxu0 %v463
      %v498 = vpop.f32.mrf.mxu0
      %v499 = vadd.f32 %v480, %v498
      %v500 = vpop.f32.mrf.mxu0
      %v501 = vadd.f32 %v482, %v500
      %502 = vdwg.mxu0
      %v503 = vpack.c.b16 %v323, %v321
      %v504 = vpack.c.b16 %v324, %v322
      %v505 = vpack.c.b16 %v327, %v325
      %v506 = vpack.c.b16 %v328, %v326
      %v533 = vunpack.c.l.b16 %v329
      %v534 = vunpack.c.l.b16 %v330
      %v535 = vunpack.c.l.b16 %v331
      %v536 = vunpack.c.l.b16 %v332
      %v537 = vunpack.c.l.b16 %v333
      %v538 = vunpack.c.l.b16 %v334
      %v539 = vunpack.c.l.b16 %v335
      %v540 = vunpack.c.l.b16 %v336
      %v541 = vunpack.c.l.b16 %v337
      %v542 = vunpack.c.l.b16 %v338
      %v543 = vunpack.c.l.b16 %v339
      %v544 = vunpack.c.l.b16 %v340
      %v545 = vunpack.c.l.b16 %v341
      %v546 = vunpack.c.l.b16 %v342
      %v547 = vunpack.c.l.b16 %v343
      %v548 = vunpack.c.l.b16 %v344
      %v549 = vunpack.c.l.b16 %v345
      %v550 = vunpack.c.l.b16 %v346
      %v551 = vunpack.c.l.b16 %v347
      %v552 = vunpack.c.l.b16 %v348
      %v553 = vunpack.c.l.b16 %v349
      %v554 = vunpack.c.l.b16 %v350
      %v555 = vunpack.c.l.b16 %v351
      %v556 = vunpack.c.l.b16 %v352
      %v557 = vpack.c.b16 %v534, %v533
      %v558 = vpack.c.b16 %v536, %v535
      %v559 = vpack.c.b16 %v538, %v537
      %v560 = vpack.c.b16 %v540, %v539
      %v561 = vpack.c.b16 %v542, %v541
      %v562 = vpack.c.b16 %v544, %v543
      %v563 = vpack.c.b16 %v546, %v545
      %v564 = vpack.c.b16 %v548, %v547
      %v565 = vpack.c.b16 %v550, %v549
      %v566 = vpack.c.b16 %v552, %v551
      %v567 = vpack.c.b16 %v554, %v553
      %v568 = vpack.c.b16 %v556, %v555
      %v582 = vsel %vm298, %v504, 0
      %v585 = vsel %vm298, %v506, 0
      %587 = vmatpush.bf16.msra.mxu0 %v564
      %588 = vmatpush.bf16.msra.mxu0 %v563
      %589 = vmatpush.bf16.msra.mxu0 %v562
      %590 = vmatpush.bf16.msra.mxu0 %v561
      %591 = vmatpush.bf16.msra.mxu0 %v560
      %592 = vmatpush.bf16.msra.mxu0 %v559
      %593 = vmatpush.bf16.msra.mxu0 %v558
      %594 = vmatpush.bf16.msra.mxu0 %v557
      %595 = vmatmul.bf16.gmra.mxu0 %v503
      %v596 = vpop.f32.mrf.mxu0
      %v597 = vadd.f32 %v494, %v596
      %v598 = vpop.f32.mrf.mxu0
      %v599 = vadd.f32 %v496, %v598
      %600 = vmatmul.bf16.gmra.mxu0 %v505
      %v601 = vpop.f32.mrf.mxu0
      %v602 = vadd.f32 %v499, %v601
      %v603 = vpop.f32.mrf.mxu0
      %v604 = vadd.f32 %v501, %v603
      %605 = vdwg.mxu0
      %606 = vmatpush.bf16.msra.mxu0 0
      %607 = vmatpush.bf16.msra.mxu0 0
      %608 = vmatpush.bf16.msra.mxu0 0
      %609 = vmatpush.bf16.msra.mxu0 0
      %610 = vmatpush.bf16.msra.mxu0 %v568
      %611 = vmatpush.bf16.msra.mxu0 %v567
      %612 = vmatpush.bf16.msra.mxu0 %v566
      %613 = vmatpush.bf16.msra.mxu0 %v565
      %614 = vmatmul.bf16.gmra.mxu0 %v582
      %v615 = vpop.f32.mrf.mxu0
      %v616 = vadd.f32 %v597, %v615
      %v617 = vpop.f32.mrf.mxu0
      %v618 = vadd.f32 %v599, %v617
      %619 = vmatmul.bf16.gmra.mxu0 %v585
      %v620 = vpop.f32.mrf.mxu0
      %v621 = vadd.f32 %v602, %v620
      %v622 = vpop.f32.mrf.mxu0
      %v623 = vadd.f32 %v604, %v622
      %624 = vdwg.mxu0
      %v626 = vunpack.c.l.b16 %v316
      %v627 = vunpack.c.l.b16 %v297
      %s628 = scalar_lea.vmem %s1, 192
      %v629 = vld [vmem:[%s628] sm:$0xf]
      %v630 = vld [vmem:[%s628 + $0x4] sm:$0xf]
      %v631 = vld [vmem:[%s628 + $0x8] sm:$0xf]
      %v632 = vld [vmem:[%s628 + $0xc] sm:$0xf]
      %v633 = vld [vmem:[%s628 + $0x10] sm:$0xf]
      %v634 = vld [vmem:[%s628 + $0x14] sm:$0xf]
      %v635 = vld [vmem:[%s628 + $0x18] sm:$0xf]
      %v636 = vld [vmem:[%s628 + $0x1c] sm:$0xf]
      %v637 = vld [vmem:[%s628 + $0x20] sm:$0xf]
      %v638 = vld [vmem:[%s628 + $0x24] sm:$0xf]
      %v639 = vld [vmem:[%s628 + $0x28] sm:$0xf]
      %v640 = vld [vmem:[%s628 + $0x2c] sm:$0xf]
      %v641 = vld [vmem:[%s628 + $0x30] sm:$0xf]
      %v642 = vld [vmem:[%s628 + $0x34] sm:$0xf]
      %v643 = vld [vmem:[%s628 + $0x38] sm:$0xf]
      %v644 = vld [vmem:[%s628 + $0x3c] sm:$0xf]
      %v645 = vld [vmem:[%s628 + $0x40] sm:$0xf]
      %v646 = vld [vmem:[%s628 + $0x44] sm:$0xf]
      %v647 = vld [vmem:[%s628 + $0x48] sm:$0xf]
      %v648 = vld [vmem:[%s628 + $0x4c] sm:$0xf]
      %v649 = vld [vmem:[%s628 + $0x50] sm:$0xf]
      %v650 = vld [vmem:[%s628 + $0x54] sm:$0xf]
      %v651 = vld [vmem:[%s628 + $0x58] sm:$0xf]
      %v652 = vld [vmem:[%s628 + $0x5c] sm:$0xf]
      %v653 = vpack.c.b16 %v626, %v354
      %v654 = vpack.c.b16 %v627, %v355
      %v680 = vunpack.c.l.b16 %v629
      %v681 = vunpack.c.l.b16 %v630
      %v682 = vunpack.c.l.b16 %v631
      %v683 = vunpack.c.l.b16 %v632
      %v684 = vunpack.c.l.b16 %v633
      %v685 = vunpack.c.l.b16 %v634
      %v686 = vunpack.c.l.b16 %v635
      %v687 = vunpack.c.l.b16 %v636
      %v688 = vunpack.c.l.b16 %v637
      %v689 = vunpack.c.l.b16 %v638
      %v690 = vunpack.c.l.b16 %v639
      %v691 = vunpack.c.l.b16 %v640
      %v692 = vunpack.c.l.b16 %v641
      %v693 = vunpack.c.l.b16 %v642
      %v694 = vunpack.c.l.b16 %v643
      %v695 = vunpack.c.l.b16 %v644
      %v696 = vunpack.c.l.b16 %v645
      %v697 = vunpack.c.l.b16 %v646
      %v698 = vunpack.c.l.b16 %v647
      %v699 = vunpack.c.l.b16 %v648
      %v700 = vunpack.c.l.b16 %v649
      %v701 = vunpack.c.l.b16 %v650
      %v702 = vunpack.c.l.b16 %v651
      %v703 = vunpack.c.l.b16 %v652
      %v704 = vpack.c.b16 %v681, %v680
      %v705 = vpack.c.b16 %v683, %v682
      %v706 = vpack.c.b16 %v685, %v684
      %v707 = vpack.c.b16 %v687, %v686
      %v708 = vpack.c.b16 %v689, %v688
      %v709 = vpack.c.b16 %v691, %v690
      %v710 = vpack.c.b16 %v693, %v692
      %v711 = vpack.c.b16 %v695, %v694
      %v712 = vpack.c.b16 %v697, %v696
      %v713 = vpack.c.b16 %v699, %v698
      %v714 = vpack.c.b16 %v701, %v700
      %v715 = vpack.c.b16 %v703, %v702
      %v729 = vsel %vm298, %v654, 0
      %731 = vmatpush.bf16.msra.mxu0 %v711
      %732 = vmatpush.bf16.msra.mxu0 %v710
      %733 = vmatpush.bf16.msra.mxu0 %v709
      %734 = vmatpush.bf16.msra.mxu0 %v708
      %735 = vmatpush.bf16.msra.mxu0 %v707
      %736 = vmatpush.bf16.msra.mxu0 %v706
      %737 = vmatpush.bf16.msra.mxu0 %v705
      %738 = vmatpush.bf16.msra.mxu0 %v704
      %739 = vmatmul.bf16.gmra.mxu0 %v505
      %v740 = vpop.f32.mrf.mxu0
      %v741 = vadd.f32 0.0, %v740
      %v742 = vpop.f32.mrf.mxu0
      %v743 = vadd.f32 0.0, %v742
      %744 = vmatmul.bf16.gmra.mxu0 %v653
      %v745 = vpop.f32.mrf.mxu0
      %v746 = vadd.f32 0.0, %v745
      %v747 = vpop.f32.mrf.mxu0
      %v748 = vadd.f32 0.0, %v747
      %749 = vdwg.mxu0
      %750 = vmatpush.bf16.msra.mxu0 0
      %751 = vmatpush.bf16.msra.mxu0 0
      %752 = vmatpush.bf16.msra.mxu0 0
      %753 = vmatpush.bf16.msra.mxu0 0
      %754 = vmatpush.bf16.msra.mxu0 %v715
      %755 = vmatpush.bf16.msra.mxu0 %v714
      %756 = vmatpush.bf16.msra.mxu0 %v713
      %757 = vmatpush.bf16.msra.mxu0 %v712
      %758 = vmatmul.bf16.gmra.mxu0 %v585
      %v759 = vpop.f32.mrf.mxu0
      %v760 = vadd.f32 %v741, %v759
      %v761 = vpop.f32.mrf.mxu0
      %v762 = vadd.f32 %v743, %v761
      %763 = vmatmul.bf16.gmra.mxu0 %v729
      %v764 = vpop.f32.mrf.mxu0
      %v765 = vadd.f32 %v746, %v764
      %v766 = vpop.f32.mrf.mxu0
      %v767 = vadd.f32 %v748, %v766
      %768 = vdwg.mxu0
      %v769 = vadd.f32 %v616, %v760
      %v770 = vadd.f32 %v618, %v762
      %v771 = vadd.f32 %v621, %v765
      %v772 = vadd.f32 %v623, %v767
      %v773 = vld [vmem:[%s2] sm:$0x1]
      %v775 = vperm.slane %v773, 0
      %v777 = vadd.f32 %v769, %v775
      %v778 = vadd.f32 %v770, %v775
      %v779 = vadd.f32 %v771, %v775
      %v780 = vadd.f32 %v772, %v775
      %v781 = vmax.f32 %v777, 0.0
      %v782 = vmax.f32 %v778, 0.0
      %v783 = vmax.f32 %v779, 0.0
      %v784 = vmax.f32 %v780, 0.0
      %v785 = vpack.c.bf16 %v781, %v781
      %v786 = vpack.c.bf16 %v782, %v782
      %v787 = vpack.c.bf16 %v783, %v783
      %v788 = vpack.c.bf16 %v784, %v784
      %789 = vst [vmem:[%s170] sm:$0xf] %v785
      %790 = vst [vmem:[%s170 + $0x4] sm:$0xf] %v786
      %791 = vst [vmem:[%s170 + $0x8] sm:$0xf] %v787
      %792 = vst [vmem:[%s170 + $0xc] sm:$0xf] %v788
      %p793 = scmp.lt.s32.totalorder %s14, 1
      %s794 = scalar_select %p793, %s14, 1
      %s795 = smul.addr %s794, 4
      %s796 = smul.addr %s795, 4
      %s797 = scalar_lea.vmem %s3, %s796
      // Predicated region
      $region33: #{crnn_forward.9} parent=31 // pred_check
        %p798 = pneg %p100
      $region34: #{crnn_forward.9} parent=31 // pred_check_branch
        %800 = sbr.rel (%p798) target = $region36
      $region35: #{crnn_forward.9} parent=31 // pred_region
        _
      $region36: #{crnn_forward.9} parent=31 // pred_fallthru
        _
    $region32: #{crnn_forward.9} parent=5 // pred_fallthru
      _
    %p801 = scmp.le.s32.totalorder 2, %s9
    // Predicated region
    $region37: #{crnn_forward.9} parent=5 // pred_check
      %p802 = pneg %p801
    $region38: #{crnn_forward.9} parent=5 // pred_check_branch
      %804 = sbr.rel (%p802) target = $region40
    $region39: #{crnn_forward.9} parent=5 // pred_region
      %s805 = ssub.s32 %s9, 2
      // Predicated region
      $region41: #{crnn_forward.9} parent=39 // pred_check
        %p806 = pneg %p106
      $region42: #{crnn_forward.9} parent=39 // pred_check_branch
        %808 = sbr.rel (%p806) target = $region44
      $region43: #{crnn_forward.9} parent=39 // pred_region
        %p809 = scmp.lt.s32.totalorder %s15, 1
        %s810 = scalar_select %p809, %s15, 1
        %s811 = smul.addr %s810, 4
        %s812 = smul.addr %s811, 4
        %s813 = scalar_lea.vmem %s3, %s812
      $region44: #{crnn_forward.9} parent=39 // pred_fallthru
        _
    $region40: #{crnn_forward.9} parent=5 // pred_fallthru
      _
  $region6: #{crnn_forward.9} parent=0 // loop_footer
    %s13 = sadd.s32 1, %s9
  $region7: #{crnn_forward.9} parent=0 // loop_footer_branch
    %8 = sbr.rel target = $region3
  $region8: #{crnn_forward.9} parent=0 // loop_exit
    _

// kernel: crnn_forward.8
$region0: #{crnn_forward.8}
  #allocation0 [shape = 'u32[]', space=smem, size = 0x4, offset = 0x4, fixed_abs, tag = 'smem constant byte address 0x4 - core index']
  #allocation1 [shape = 'u32[72,128]{1,0:T(1,128)}', space=vmem, size = 0x9000, scoped, tag = 'internal scratch']
  %s0 = inlined_call_operand.vmem [shape: bf16[2,10,18,64], index: 0, kind: input, shape index: {}]
  %s1 = inlined_call_operand.vmem [shape: bf16[3,192,64], index: 1, kind: input, shape index: {}]
  %s2 = inlined_call_operand.vmem [shape: f32[1,64], index: 2, kind: input, shape index: {}]
  %s3 = inlined_call_operand.vmem [shape: bf16[2,128,64], index: 3, kind: output, shape index: {}]
  %s4 = sld [smem:[#allocation0]]
  $region45: #{crnn_forward.8} parent=0
    _
  %s6 = ssub.s32 1, %s4
  %s7 = scalar_select 0, %s6, %s4
  loop: start=0, step=1, limit=4
  $region2: #{crnn_forward.8} parent=0 // loop_pre_header
    _
  $region3: #{crnn_forward.8} parent=0 // loop_header
    %s9 = sphi 0, %s13
    %p10 = scmp.ge.s32.totalorder %s9, 4
    %s19 = sphi 0, %s21
    %s22 = sphi 0, %s19
    %s23 = sphi 0, %s22
    %s39 = sphi 0, %s23
    %s43 = sphi 0, %s43
    %s45 = sphi 0, %s43
    %s46 = sphi 0, %s45
    %s60 = sphi 0, %s46
    %s64 = sphi 0, %s64
    %s66 = sphi 0, %s64
    %s67 = sphi 0, %s66
    %s81 = sphi 0, %s67
    %s87 = sphi 0, %s89
    %s90 = sphi 0, %s87
    %s91 = sphi 0, %s90
    %s107 = sphi 0, %s91
  $region4: #{crnn_forward.8} parent=0 // loop_header_branch
    %12 = sbr.rel (%p10) target = $region8
  $region5: #{crnn_forward.8} parent=0 // loop_body
    %s14 = ssub.s32 %s9, 1
    %s15 = ssub.s32 %s9, 2
    %s16 = sadd.s32 %s9, 1
    %s17 = ssub.s32 %s9, %s16
    %p18 = scmp.eq.s32.totalorder %s17, 0
    %s20 = sadd.s32 %s19, 1
    %s21 = scalar_select %p18, %s19, %s20
    %p24 = pneg %p18
    %p25 = scmp.eq.s32.totalorder %s9, 1
    %p26 = por %p24, %p25
    %p27 = scmp.ne.s32.totalorder %s19, %s22
    %p28 = scmp.eq.s32.totalorder %s9, 0
    %p29 = por %p27, %p28
    %p30 = scmp.ne.s32.totalorder %s19, %s22
    %p31 = scmp.eq.s32.totalorder %s14, 1
    %p32 = por %p30, %p31
    %p33 = scmp.ne.s32.totalorder %s22, %s23
    %p34 = scmp.eq.s32.totalorder %s14, 0
    %p35 = por %p33, %p34
    %p36 = scmp.ne.s32.totalorder %s22, %s23
    %p37 = scmp.eq.s32.totalorder %s15, 1
    %p38 = por %p36, %p37
    %p40 = scmp.ne.s32.totalorder %s23, %s39
    %p41 = scmp.eq.s32.totalorder %s15, 0
    %p42 = por %p40, %p41
    %s44 = sadd.s32 %s43, 1
    %p47 = scmp.eq.s32.totalorder %s9, 1
    %p48 = scmp.ne.s32.totalorder %s43, %s45
    %p49 = scmp.eq.s32.totalorder %s9, 0
    %p50 = por %p48, %p49
    %p51 = scmp.ne.s32.totalorder %s43, %s45
    %p52 = scmp.eq.s32.totalorder %s14, 1
    %p53 = por %p51, %p52
    %p54 = scmp.ne.s32.totalorder %s45, %s46
    %p55 = scmp.eq.s32.totalorder %s14, 0
    %p56 = por %p54, %p55
    %p57 = scmp.ne.s32.totalorder %s45, %s46
    %p58 = scmp.eq.s32.totalorder %s15, 1
    %p59 = por %p57, %p58
    %p61 = scmp.ne.s32.totalorder %s46, %s60
    %p62 = scmp.eq.s32.totalorder %s15, 0
    %p63 = por %p61, %p62
    %s65 = sadd.s32 %s64, 1
    %p68 = scmp.eq.s32.totalorder %s9, 1
    %p69 = scmp.ne.s32.totalorder %s64, %s66
    %p70 = scmp.eq.s32.totalorder %s9, 0
    %p71 = por %p69, %p70
    %p72 = scmp.ne.s32.totalorder %s64, %s66
    %p73 = scmp.eq.s32.totalorder %s14, 1
    %p74 = por %p72, %p73
    %p75 = scmp.ne.s32.totalorder %s66, %s67
    %p76 = scmp.eq.s32.totalorder %s14, 0
    %p77 = por %p75, %p76
    %p78 = scmp.ne.s32.totalorder %s66, %s67
    %p79 = scmp.eq.s32.totalorder %s15, 1
    %p80 = por %p78, %p79
    %p82 = scmp.ne.s32.totalorder %s67, %s81
    %p83 = scmp.eq.s32.totalorder %s15, 0
    %p84 = por %p82, %p83
    %s85 = ssub.s32 %s9, %s16
    %p86 = scmp.eq.s32.totalorder %s85, 0
    %s88 = sadd.s32 %s87, 1
    %s89 = scalar_select %p86, %s87, %s88
    %p92 = pneg %p86
    %p93 = scmp.eq.s32.totalorder %s9, 1
    %p94 = por %p92, %p93
    %p95 = scmp.ne.s32.totalorder %s87, %s90
    %p96 = scmp.eq.s32.totalorder %s9, 0
    %p97 = por %p95, %p96
    %p98 = scmp.ne.s32.totalorder %s87, %s90
    %p99 = scmp.eq.s32.totalorder %s14, 1
    %p100 = por %p98, %p99
    %p101 = scmp.ne.s32.totalorder %s90, %s91
    %p102 = scmp.eq.s32.totalorder %s14, 0
    %p103 = por %p101, %p102
    %p104 = scmp.ne.s32.totalorder %s90, %s91
    %p105 = scmp.eq.s32.totalorder %s15, 1
    %p106 = por %p104, %p105
    %p108 = scmp.ne.s32.totalorder %s91, %s107
    %p109 = scmp.eq.s32.totalorder %s15, 0
    %p110 = por %p108, %p109
    %p111 = scmp.le.s32.totalorder 1, %s9
    %p112 = scmp.lt.s32.totalorder %s9, 3
    %p113 = pnand %p111, %p112
    %p114 = pneg %p113
    // Predicated region
    $region9: #{crnn_forward.8} parent=5 // pred_check
      _
    $region10: #{crnn_forward.8} parent=5 // pred_check_branch
      %116 = sbr.rel (%p113) target = $region12
    $region11: #{crnn_forward.8} parent=5 // pred_region
      %s117 = ssub.s32 %s9, 1
      // Predicated region
      $region13: #{crnn_forward.8} parent=11 // pred_check
        %p118 = pneg %p56
      $region14: #{crnn_forward.8} parent=11 // pred_check_branch
        %120 = sbr.rel (%p118) target = $region16
      $region15: #{crnn_forward.8} parent=11 // pred_region
        _
      $region16: #{crnn_forward.8} parent=11 // pred_fallthru
        _
      // Predicated region
      $region17: #{crnn_forward.8} parent=11 // pred_check
        %p121 = pneg %p77
      $region18: #{crnn_forward.8} parent=11 // pred_check_branch
        %123 = sbr.rel (%p121) target = $region20
      $region19: #{crnn_forward.8} parent=11 // pred_region
        _
      $region20: #{crnn_forward.8} parent=11 // pred_fallthru
        _
    $region12: #{crnn_forward.8} parent=5 // pred_fallthru
      _
    %p124 = scmp.lt.s32.totalorder %s9, 2
    // Predicated region
    $region21: #{crnn_forward.8} parent=5 // pred_check
      %p125 = pneg %p124
    $region22: #{crnn_forward.8} parent=5 // pred_check_branch
      %127 = sbr.rel (%p125) target = $region24
    $region23: #{crnn_forward.8} parent=5 // pred_region
      // Predicated region
      $region25: #{crnn_forward.8} parent=23 // pred_check
        %p128 = pneg %p29
      $region26: #{crnn_forward.8} parent=23 // pred_check_branch
        %130 = sbr.rel (%p128) target = $region28
      $region27: #{crnn_forward.8} parent=23 // pred_region
        %p131 = scmp.lt.s32.totalorder %s9, 1
        %s132 = scalar_select %p131, %s9, 1
        %s133 = smul.addr %s132, 30
        %s134 = smul.addr %s133, 4
        %s135 = scalar_lea.vmem %s0, %s134
      $region28: #{crnn_forward.8} parent=23 // pred_fallthru
        _
    $region24: #{crnn_forward.8} parent=5 // pred_fallthru
      _
    %p136 = scmp.le.s32.totalorder 1, %s9
    %p137 = scmp.lt.s32.totalorder %s9, 3
    %p138 = pnand %p136, %p137
    %p139 = pneg %p138
    // Predicated region
    $region29: #{crnn_forward.8} parent=5 // pred_check
      _
    $region30: #{crnn_forward.8} parent=5 // pred_check_branch
      %141 = sbr.rel (%p138) target = $region32
    $region31: #{crnn_forward.8} parent=5 // pred_region
      %s142 = ssub.s32 %s9, 1
      %p143 = scmp.lt.s32.totalorder %s14, 1
      %s144 = scalar_select %p143, %s14, 1
      %s145 = smul.addr %s144, 30
      %s146 = smul.addr %s145, 4
      %s147 = scalar_lea.vmem %s0, %s146
      %p148 = pneg %p35
      %p149 = pneg %p32
      %p150 = pneg %p56
      %p151 = pneg %p53
      %p152 = pneg %p77
      %p153 = pneg %p74
      %p154 = pneg %p103
      %p155 = pneg %p100
      %p156 = scmp.lt.s32.totalorder %s14, 1
      %s157 = scalar_select %p156, %s14, 1
      %s158 = smul.addr %s157, 16
      %s159 = smul.addr %s158, 4
      %s160 = scalar_lea.vmem %s3, %s159
      %p161 = scmp.lt.s32.totalorder %s14, 1
      %s162 = scalar_select %p161, %s14, 1
      %s163 = smul.addr %s162, 30
      %s164 = smul.addr %s163, 4
      %s165 = scalar_lea.vmem %s0, %s164
      %p166 = scmp.lt.s32.totalorder %s14, 1
      %s167 = scalar_select %p166, %s14, 1
      %s168 = smul.addr %s167, 16
      %s169 = smul.addr %s168, 4
      %s170 = scalar_lea.vmem %s3, %s169
      %v172 = vld [vmem:[%s165] sm:$0xf]
      %v173 = vld [vmem:[%s165 + $0x4] sm:$0xf]
      %v174 = vld [vmem:[%s165 + $0xc] sm:$0xf]
      %v175 = vld [vmem:[%s165 + $0x10] sm:$0xf]
      %v176 = vld [vmem:[%s165 + $0x18] sm:$0xf]
      %v177 = vld [vmem:[%s165 + $0x1c] sm:$0xf]
      %v178 = vld [vmem:[%s165 + $0x24] sm:$0xf]
      %v179 = vld [vmem:[%s165 + $0x28] sm:$0xf]
      %v180 = vld [vmem:[%s165 + $0x30] sm:$0xf]
      %v181 = vld [vmem:[%s165 + $0x34] sm:$0xf]
      %v182 = vld [vmem:[%s165 + $0x3c] sm:$0xf]
      %v183 = vld [vmem:[%s165 + $0x40] sm:$0xf]
      %v184 = vld [vmem:[%s165 + $0x48] sm:$0xf]
      %v185 = vld [vmem:[%s165 + $0x4c] sm:$0xf]
      %v186 = vld [vmem:[%s165 + $0x54] sm:$0xf]
      %v187 = vld [vmem:[%s165 + $0x58] sm:$0xf]
      %v188 = vld [vmem:[%s165 + $0x60] sm:$0xf]
      %v189 = vld [vmem:[%s165 + $0x64] sm:$0xf]
      %v190 = vld [vmem:[%s165 + $0x6c] sm:$0xf]
      %v191 = vld [vmem:[%s165 + $0x70] sm:$0xf]
      %v192 = vld [vmem:[%s165 + $0x8] sm:$0x1]
      %v193 = vld [vmem:[%s165 + $0x14] sm:$0x1]
      %v194 = vld [vmem:[%s165 + $0x20] sm:$0x1]
      %v195 = vld [vmem:[%s165 + $0x2c] sm:$0x1]
      %v196 = vld [vmem:[%s165 + $0x38] sm:$0x1]
      %v197 = vld [vmem:[%s165 + $0x44] sm:$0x1]
      %v198 = vld [vmem:[%s165 + $0x50] sm:$0x1]
      %v199 = vld [vmem:[%s165 + $0x5c] sm:$0x1]
      %v200 = vld [vmem:[%s165 + $0x68] sm:$0x1]
      %v201 = vld [vmem:[%s165 + $0x74] sm:$0x1]
      %v202 = vld [vmem:[%s165] sm:$0xe]
      %v203 = vld [vmem:[%s165 + $0xc] sm:$0xe]
      %v204 = vld [vmem:[%s165 + $0x18] sm:$0xe]
      %v205 = vld [vmem:[%s165 + $0x24] sm:$0xe]
      %v206 = vld [vmem:[%s165 + $0x30] sm:$0xe]
      %v207 = vld [vmem:[%s165 + $0x3c] sm:$0xe]
      %v208 = vld [vmem:[%s165 + $0x48] sm:$0xe]
      %v209 = vld [vmem:[%s165 + $0x54] sm:$0xe]
      %v210 = vld [vmem:[%s165 + $0x60] sm:$0xe]
      %v211 = vld [vmem:[%s165 + $0x6c] sm:$0xe]
      %v232 = vunpack.c.l.b16 %v172
      %v233 = vunpack.c.l.b16 %v173
      %v234 = vunpack.c.l.b16 %v174
      %v235 = vunpack.c.l.b16 %v175
      %v236 = vunpack.c.l.b16 %v176
      %v237 = vunpack.c.l.b16 %v177
      %v238 = vunpack.c.l.b16 %v178
      %v239 = vunpack.c.l.b16 %v179
      %v240 = vunpack.c.l.b16 %v180
      %v241 = vunpack.c.l.b16 %v181
      %v242 = vunpack.c.l.b16 %v182
      %v243 = vunpack.c.l.b16 %v183
      %v244 = vunpack.c.l.b16 %v184
      %v245 = vunpack.c.l.b16 %v185
      %v246 = vunpack.c.l.b16 %v186
      %v247 = vunpack.c.l.b16 %v187
      %v248 = vunpack.c.l.b16 %v188
      %v249 = vunpack.c.l.b16 %v189
      %v250 = vunpack.c.l.b16 %v190
      %v251 = vunpack.c.l.b16 %v191
      %v252 = vpack.c.b16 %v233, %v232
      %v253 = vpack.c.b16 %v235, %v234
      %v254 = vpack.c.b16 %v237, %v236
      %v255 = vpack.c.b16 %v239, %v238
      %v256 = vpack.c.b16 %v241, %v240
      %v257 = vpack.c.b16 %v243, %v242
      %v258 = vpack.c.b16 %v245, %v244
      %v259 = vpack.c.b16 %v247, %v246
      %v260 = vpack.c.b16 %v249, %v248
      %v261 = vpack.c.b16 %v251, %v250
      %v272 = vunpack.c.l.b16 %v192
      %v273 = vunpack.c.l.b16 %v193
      %v274 = vunpack.c.l.b16 %v194
      %v275 = vunpack.c.l.b16 %v195
      %v276 = vunpack.c.l.b16 %v196
      %v277 = vunpack.c.l.b16 %v197
      %v278 = vunpack.c.l.b16 %v198
      %v279 = vunpack.c.l.b16 %v199
      %v280 = vunpack.c.l.b16 %v200
      %v281 = vunpack.c.l.b16 %v201
      %v282 = vpack.c.b16 %v272, %v272
      %v283 = vpack.c.b16 %v273, %v273
      %v284 = vpack.c.b16 %v274, %v274
      %v285 = vpack.c.b16 %v275, %v275
      %v286 = vpack.c.b16 %v276, %v276
      %v287 = vpack.c.b16 %v277, %v277
      %v288 = vpack.c.b16 %v278, %v278
      %v289 = vpack.c.b16 %v279, %v279
      %v290 = vpack.c.b16 %v280, %v280
      %v291 = vpack.c.b16 %v281, %v281
      %vm292 = vsmask.f32 7424
      %v294 = vshrl.u32 %v252, 16
      %v296 = vshll.u32 %v252, 16
      %v298 = vrot.slane %v296, 1
      %v299 = vor.u32 %v294, %v298
      %v301 = vshll.u32 %v282, 16
      %v303 = vrot.slane %v301, 1
      %v304 = vsel %vm292, %v299, %v303
      %v306 = vshrl.u32 %v253, 16
      %v308 = vshll.u32 %v253, 16
      %v310 = vrot.slane %v308, 1
      %v311 = vor.u32 %v306, %v310
      %v313 = vshll.u32 %v283, 16
      %v315 = vrot.slane %v313, 1
      %v316 = vsel %vm292, %v311, %v315
      %v318 = vshrl.u32 %v254, 16
      %v320 = vshll.u32 %v254, 16
      %v322 = vrot.slane %v320, 1
      %v323 = vor.u32 %v318, %v322
      %v325 = vshll.u32 %v284, 16
      %v327 = vrot.slane %v325, 1
      %v328 = vsel %vm292, %v323, %v327
      %v330 = vshrl.u32 %v255, 16
      %v332 = vshll.u32 %v255, 16
      %v334 = vrot.slane %v332, 1
      %v335 = vor.u32 %v330, %v334
      %v337 = vshll.u32 %v285, 16
      %v339 = vrot.slane %v337, 1
      %v340 = vsel %vm292, %v335, %v339
      %v342 = vshrl.u32 %v256, 16
      %v344 = vshll.u32 %v256, 16
      %v346 = vrot.slane %v344, 1
      %v347 = vor.u32 %v342, %v346
      %v349 = vshll.u32 %v286, 16
      %v351 = vrot.slane %v349, 1
      %v352 = vsel %vm292, %v347, %v351
      %v354 = vshrl.u32 %v257, 16
      %v356 = vshll.u32 %v257, 16
      %v358 = vrot.slane %v356, 1
      %v359 = vor.u32 %v354, %v358
      %v361 = vshll.u32 %v287, 16
      %v363 = vrot.slane %v361, 1
      %v364 = vsel %vm292, %v359, %v363
      %v366 = vshrl.u32 %v258, 16
      %v368 = vshll.u32 %v258, 16
      %v370 = vrot.slane %v368, 1
      %v371 = vor.u32 %v366, %v370
      %v373 = vshll.u32 %v288, 16
      %v375 = vrot.slane %v373, 1
      %v376 = vsel %vm292, %v371, %v375
      %v378 = vshrl.u32 %v259, 16
      %v380 = vshll.u32 %v259, 16
      %v382 = vrot.slane %v380, 1
      %v383 = vor.u32 %v378, %v382
      %v385 = vshll.u32 %v289, 16
      %v387 = vrot.slane %v385, 1
      %v388 = vsel %vm292, %v383, %v387
      %v390 = vshrl.u32 %v260, 16
      %v392 = vshll.u32 %v260, 16
      %v394 = vrot.slane %v392, 1
      %v395 = vor.u32 %v390, %v394
      %v397 = vshll.u32 %v290, 16
      %v399 = vrot.slane %v397, 1
      %v400 = vsel %vm292, %v395, %v399
      %v402 = vshrl.u32 %v261, 16
      %v404 = vshll.u32 %v261, 16
      %v406 = vrot.slane %v404, 1
      %v407 = vor.u32 %v402, %v406
      %v409 = vshll.u32 %v291, 16
      %v411 = vrot.slane %v409, 1
      %v412 = vsel %vm292, %v407, %v411
      %413 = vrot.lane.b32.xlu0 %v304, 64
      %v414 = vpop.permute.xlu0 %413
      %415 = vrot.lane.b32.xlu0 %v316, 64
      %v416 = vpop.permute.xlu0 %415
      %417 = vrot.lane.b32.xlu0 %v328, 64
      %v418 = vpop.permute.xlu0 %417
      %419 = vrot.lane.b32.xlu0 %v340, 64
      %v420 = vpop.permute.xlu0 %419
      %421 = vrot.lane.b32.xlu0 %v352, 64
      %v422 = vpop.permute.xlu0 %421
      %423 = vrot.lane.b32.xlu0 %v364, 64
      %v424 = vpop.permute.xlu0 %423
      %425 = vrot.lane.b32.xlu0 %v376, 64
      %v426 = vpop.permute.xlu0 %425
      %427 = vrot.lane.b32.xlu0 %v388, 64
      %v428 = vpop.permute.xlu0 %427
      %429 = vrot.lane.b32.xlu0 %v400, 64
      %v430 = vpop.permute.xlu0 %429
      %431 = vrot.lane.b32.xlu0 %v412, 64
      %v432 = vpop.permute.xlu0 %431
      %v443 = vunpack.c.l.b16 %v202
      %v444 = vunpack.c.l.b16 %v203
      %v445 = vunpack.c.l.b16 %v204
      %v446 = vunpack.c.l.b16 %v205
      %v447 = vunpack.c.l.b16 %v206
      %v448 = vunpack.c.l.b16 %v207
      %v449 = vunpack.c.l.b16 %v208
      %v450 = vunpack.c.l.b16 %v209
      %v451 = vunpack.c.l.b16 %v210
      %v452 = vunpack.c.l.b16 %v211
      %v453 = vpack.c.b16 %v233, %v443
      %v454 = vpack.c.b16 %v235, %v444
      %v455 = vpack.c.b16 %v237, %v445
      %v456 = vpack.c.b16 %v239, %v446
      %v457 = vpack.c.b16 %v241, %v447
      %v458 = vpack.c.b16 %v243, %v448
      %v459 = vpack.c.b16 %v245, %v449
      %v460 = vpack.c.b16 %v247, %v450
      %v461 = vpack.c.b16 %v249, %v451
      %v462 = vpack.c.b16 %v251, %v452
      %vm463 = vcmask 1046528
      %v464 = vrot.slane %v453, 1
      %v465 = vrot.slane %v282, 1
      %v466 = vsel %vm463, %v464, %v465
      %v467 = vrot.slane %v454, 1
      %v468 = vrot.slane %v283, 1
      %v469 = vsel %vm463, %v467, %v468
      %v470 = vrot.slane %v455, 1
      %v471 = vrot.slane %v284, 1
      %v472 = vsel %vm463, %v470, %v471
      %v473 = vrot.slane %v456, 1
      %v474 = vrot.slane %v285, 1
      %v475 = vsel %vm463, %v473, %v474
      %v476 = vrot.slane %v457, 1
      %v477 = vrot.slane %v286, 1
      %v478 = vsel %vm463, %v476, %v477
      %v479 = vrot.slane %v458, 1
      %v480 = vrot.slane %v287, 1
      %v481 = vsel %vm463, %v479, %v480
      %v482 = vrot.slane %v459, 1
      %v483 = vrot.slane %v288, 1
      %v484 = vsel %vm463, %v482, %v483
      %v485 = vrot.slane %v460, 1
      %v486 = vrot.slane %v289, 1
      %v487 = vsel %vm463, %v485, %v486
      %v488 = vrot.slane %v461, 1
      %v489 = vrot.slane %v290, 1
      %v490 = vsel %vm463, %v488, %v489
      %v491 = vrot.slane %v462, 1
      %v492 = vrot.slane %v291, 1
      %v493 = vsel %vm463, %v491, %v492
      %vm494 = vcmask 523264
      %v496 = vsel %vm494, %v252, %v414
      %v499 = vsel %vm494, %v253, %v416
      %v502 = vsel %vm494, %v254, %v418
      %v505 = vsel %vm494, %v255, %v420
      %v508 = vsel %vm494, %v256, %v422
      %v511 = vsel %vm494, %v257, %v424
      %v514 = vsel %vm494, %v258, %v426
      %v517 = vsel %vm494, %v259, %v428
      %v520 = vsel %vm494, %v260, %v430
      %v523 = vsel %vm494, %v261, %v432
      %v525 = vld [vmem:[%s1] sm:$0xf]
      %v526 = vld [vmem:[%s1 + $0x4] sm:$0xf]
      %v527 = vld [vmem:[%s1 + $0x8] sm:$0xf]
      %v528 = vld [vmem:[%s1 + $0xc] sm:$0xf]
      %v529 = vld [vmem:[%s1 + $0x10] sm:$0xf]
      %v530 = vld [vmem:[%s1 + $0x14] sm:$0xf]
      %v531 = vld [vmem:[%s1 + $0x18] sm:$0xf]
      %v532 = vld [vmem:[%s1 + $0x1c] sm:$0xf]
      %v533 = vld [vmem:[%s1 + $0x20] sm:$0xf]
      %v534 = vld [vmem:[%s1 + $0x24] sm:$0xf]
      %v535 = vld [vmem:[%s1 + $0x28] sm:$0xf]
      %v536 = vld [vmem:[%s1 + $0x2c] sm:$0xf]
      %v537 = vld [vmem:[%s1 + $0x30] sm:$0xf]
      %v538 = vld [vmem:[%s1 + $0x34] sm:$0xf]
      %v539 = vld [vmem:[%s1 + $0x38] sm:$0xf]
      %v540 = vld [vmem:[%s1 + $0x3c] sm:$0xf]
      %v541 = vld [vmem:[%s1 + $0x40] sm:$0xf]
      %v542 = vld [vmem:[%s1 + $0x44] sm:$0xf]
      %v543 = vld [vmem:[%s1 + $0x48] sm:$0xf]
      %v544 = vld [vmem:[%s1 + $0x4c] sm:$0xf]
      %v545 = vld [vmem:[%s1 + $0x50] sm:$0xf]
      %v546 = vld [vmem:[%s1 + $0x54] sm:$0xf]
      %v547 = vld [vmem:[%s1 + $0x58] sm:$0xf]
      %v548 = vld [vmem:[%s1 + $0x5c] sm:$0xf]
      %s549 = scalar_lea.vmem %s1, 96
      %v550 = vld [vmem:[%s549] sm:$0xf]
      %v551 = vld [vmem:[%s549 + $0x4] sm:$0xf]
      %v552 = vld [vmem:[%s549 + $0x8] sm:$0xf]
      %v553 = vld [vmem:[%s549 + $0xc] sm:$0xf]
      %v554 = vld [vmem:[%s549 + $0x10] sm:$0xf]
      %v555 = vld [vmem:[%s549 + $0x14] sm:$0xf]
      %v556 = vld [vmem:[%s549 + $0x18] sm:$0xf]
      %v557 = vld [vmem:[%s549 + $0x1c] sm:$0xf]
      %v558 = vld [vmem:[%s549 + $0x20] sm:$0xf]
      %v559 = vld [vmem:[%s549 + $0x24] sm:$0xf]
      %v560 = vld [vmem:[%s549 + $0x28] sm:$0xf]
      %v561 = vld [vmem:[%s549 + $0x2c] sm:$0xf]
      %v562 = vld [vmem:[%s549 + $0x30] sm:$0xf]
      %v563 = vld [vmem:[%s549 + $0x34] sm:$0xf]
      %v564 = vld [vmem:[%s549 + $0x38] sm:$0xf]
      %v565 = vld [vmem:[%s549 + $0x3c] sm:$0xf]
      %v566 = vld [vmem:[%s549 + $0x40] sm:$0xf]
      %v567 = vld [vmem:[%s549 + $0x44] sm:$0xf]
      %v568 = vld [vmem:[%s549 + $0x48] sm:$0xf]
      %v569 = vld [vmem:[%s549 + $0x4c] sm:$0xf]
      %v570 = vld [vmem:[%s549 + $0x50] sm:$0xf]
      %v571 = vld [vmem:[%s549 + $0x54] sm:$0xf]
      %v572 = vld [vmem:[%s549 + $0x58] sm:$0xf]
      %v573 = vld [vmem:[%s549 + $0x5c] sm:$0xf]
      %v598 = vunpack.c.l.b16 %v550
      %v599 = vunpack.c.l.b16 %v551
      %v600 = vunpack.c.l.b16 %v552
      %v601 = vunpack.c.l.b16 %v553
      %v602 = vunpack.c.l.b16 %v554
      %v603 = vunpack.c.l.b16 %v555
      %v604 = vunpack.c.l.b16 %v556
      %v605 = vunpack.c.l.b16 %v557
      %v606 = vunpack.c.l.b16 %v558
      %v607 = vunpack.c.l.b16 %v559
      %v608 = vunpack.c.l.b16 %v560
      %v609 = vunpack.c.l.b16 %v561
      %v610 = vunpack.c.l.b16 %v562
      %v611 = vunpack.c.l.b16 %v563
      %v612 = vunpack.c.l.b16 %v564
      %v613 = vunpack.c.l.b16 %v565
      %v614 = vunpack.c.l.b16 %v566
      %v615 = vunpack.c.l.b16 %v567
      %v616 = vunpack.c.l.b16 %v568
      %v617 = vunpack.c.l.b16 %v569
      %v618 = vunpack.c.l.b16 %v570
      %v619 = vunpack.c.l.b16 %v571
      %v620 = vunpack.c.l.b16 %v572
      %v621 = vunpack.c.l.b16 %v573
      %v622 = vpack.c.b16 %v599, %v598
      %v623 = vpack.c.b16 %v601, %v600
      %v624 = vpack.c.b16 %v603, %v602
      %v625 = vpack.c.b16 %v605, %v604
      %v626 = vpack.c.b16 %v607, %v606
      %v627 = vpack.c.b16 %v609, %v608
      %v628 = vpack.c.b16 %v611, %v610
      %v629 = vpack.c.b16 %v613, %v612
      %v630 = vpack.c.b16 %v615, %v614
      %v631 = vpack.c.b16 %v617, %v616
      %v632 = vpack.c.b16 %v619, %v618
      %v633 = vpack.c.b16 %v621, %v620
      %v647 = vsel %vm494, %v469, 0
      %v650 = vsel %vm494, %v472, 0
      %v653 = vsel %vm494, %v475, 0
      %v656 = vsel %vm494, %v478, 0
      %v659 = vsel %vm494, %v481, 0
      %v662 = vsel %vm494, %v484, 0
      %v665 = vsel %vm494, %v487, 0
      %v668 = vsel %vm494, %v490, 0
      %670 = vmatpush.bf16.msra.mxu0 %v629
      %671 = vmatpush.bf16.msra.mxu0 %v628
      %672 = vmatpush.bf16.msra.mxu0 %v627
      %673 = vmatpush.bf16.msra.mxu0 %v626
      %674 = vmatpush.bf16.msra.mxu0 %v625
      %675 = vmatpush.bf16.msra.mxu0 %v624
      %676 = vmatpush.bf16.msra.mxu0 %v623
      %677 = vmatpush.bf16.msra.mxu0 %v622
      %678 = vmatmul.bf16.gmra.mxu0 %v499
      %v679 = vpop.f32.mrf.mxu0
      %v680 = vadd.f32 0.0, %v679
      %v681 = vpop.f32.mrf.mxu0
      %v682 = vadd.f32 0.0, %v681
      %683 = vmatmul.bf16.gmra.mxu0 %v502
      %v684 = vpop.f32.mrf.mxu0
      %v685 = vadd.f32 0.0, %v684
      %v686 = vpop.f32.mrf.mxu0
      %v687 = vadd.f32 0.0, %v686
      %688 = vmatmul.bf16.gmra.mxu0 %v505
      %v689 = vpop.f32.mrf.mxu0
      %v690 = vadd.f32 0.0, %v689
      %v691 = vpop.f32.mrf.mxu0
      %v692 = vadd.f32 0.0, %v691
      %693 = vmatmul.bf16.gmra.mxu0 %v508
      %v694 = vpop.f32.mrf.mxu0
      %v695 = vadd.f32 0.0, %v694
      %v696 = vpop.f32.mrf.mxu0
      %v697 = vadd.f32 0.0, %v696
      %698 = vmatmul.bf16.gmra.mxu0 %v511
      %v699 = vpop.f32.mrf.mxu0
      %v700 = vadd.f32 0.0, %v699
      %v701 = vpop.f32.mrf.mxu0
      %v702 = vadd.f32 0.0, %v701
      %703 = vmatmul.bf16.gmra.mxu0 %v514
      %v704 = vpop.f32.mrf.mxu0
      %v705 = vadd.f32 0.0, %v704
      %v706 = vpop.f32.mrf.mxu0
      %v707 = vadd.f32 0.0, %v706
      %708 = vmatmul.bf16.gmra.mxu0 %v517
      %v709 = vpop.f32.mrf.mxu0
      %v710 = vadd.f32 0.0, %v709
      %v711 = vpop.f32.mrf.mxu0
      %v712 = vadd.f32 0.0, %v711
      %713 = vmatmul.bf16.gmra.mxu0 %v520
      %v714 = vpop.f32.mrf.mxu0
      %v715 = vadd.f32 0.0, %v714
      %v716 = vpop.f32.mrf.mxu0
      %v717 = vadd.f32 0.0, %v716
      %718 = vdwg.mxu0
      %719 = vmatpush.bf16.msra.mxu0 0
      %720 = vmatpush.bf16.msra.mxu0 0
      %721 = vmatpush.bf16.msra.mxu0 0
      %722 = vmatpush.bf16.msra.mxu0 0
      %723 = vmatpush.bf16.msra.mxu0 %v633
      %724 = vmatpush.bf16.msra.mxu0 %v632
      %725 = vmatpush.bf16.msra.mxu0 %v631
      %726 = vmatpush.bf16.msra.mxu0 %v630
      %727 = vmatmul.bf16.gmra.mxu0 %v647
      %v728 = vpop.f32.mrf.mxu0
      %v729 = vadd.f32 %v680, %v728
      %v730 = vpop.f32.mrf.mxu0
      %v731 = vadd.f32 %v682, %v730
      %732 = vmatmul.bf16.gmra.mxu0 %v650
      %v733 = vpop.f32.mrf.mxu0
      %v734 = vadd.f32 %v685, %v733
      %v735 = vpop.f32.mrf.mxu0
      %v736 = vadd.f32 %v687, %v735
      %737 = vmatmul.bf16.gmra.mxu0 %v653
      %v738 = vpop.f32.mrf.mxu0
      %v739 = vadd.f32 %v690, %v738
      %v740 = vpop.f32.mrf.mxu0
      %v741 = vadd.f32 %v692, %v740
      %742 = vmatmul.bf16.gmra.mxu0 %v656
      %v743 = vpop.f32.mrf.mxu0
      %v744 = vadd.f32 %v695, %v743
      %v745 = vpop.f32.mrf.mxu0
      %v746 = vadd.f32 %v697, %v745
      %747 = vmatmul.bf16.gmra.mxu0 %v659
      %v748 = vpop.f32.mrf.mxu0
      %v749 = vadd.f32 %v700, %v748
      %v750 = vpop.f32.mrf.mxu0
      %v751 = vadd.f32 %v702, %v750
      %752 = vmatmul.bf16.gmra.mxu0 %v662
      %v753 = vpop.f32.mrf.mxu0
      %v754 = vadd.f32 %v705, %v753
      %v755 = vpop.f32.mrf.mxu0
      %v756 = vadd.f32 %v707, %v755
      %757 = vmatmul.bf16.gmra.mxu0 %v665
      %v758 = vpop.f32.mrf.mxu0
      %v759 = vadd.f32 %v710, %v758
      %v760 = vpop.f32.mrf.mxu0
      %v761 = vadd.f32 %v712, %v760
      %762 = vmatmul.bf16.gmra.mxu0 %v668
      %v763 = vpop.f32.mrf.mxu0
      %v764 = vadd.f32 %v715, %v763
      %v765 = vpop.f32.mrf.mxu0
      %v766 = vadd.f32 %v717, %v765
      %767 = vdwg.mxu0
      %v792 = vunpack.c.l.b16 %v525
      %v793 = vunpack.c.l.b16 %v526
      %v794 = vunpack.c.l.b16 %v527
      %v795 = vunpack.c.l.b16 %v528
      %v796 = vunpack.c.l.b16 %v529
      %v797 = vunpack.c.l.b16 %v530
      %v798 = vunpack.c.l.b16 %v531
      %v799 = vunpack.c.l.b16 %v532
      %v800 = vunpack.c.l.b16 %v533
      %v801 = vunpack.c.l.b16 %v534
      %v802 = vunpack.c.l.b16 %v535
      %v803 = vunpack.c.l.b16 %v536
      %v804 = vunpack.c.l.b16 %v537
      %v805 = vunpack.c.l.b16 %v538
      %v806 = vunpack.c.l.b16 %v539
      %v807 = vunpack.c.l.b16 %v540
      %v808 = vunpack.c.l.b16 %v541
      %v809 = vunpack.c.l.b16 %v542
      %v810 = vunpack.c.l.b16 %v543
      %v811 = vunpack.c.l.b16 %v544
      %v812 = vunpack.c.l.b16 %v545
      %v813 = vunpack.c.l.b16 %v546
      %v814 = vunpack.c.l.b16 %v547
      %v815 = vunpack.c.l.b16 %v548
      %v816 = vpack.c.b16 %v793, %v792
      %v817 = vpack.c.b16 %v795, %v794
      %v818 = vpack.c.b16 %v797, %v796
      %v819 = vpack.c.b16 %v799, %v798
      %v820 = vpack.c.b16 %v801, %v800
      %v821 = vpack.c.b16 %v803, %v802
      %v822 = vpack.c.b16 %v805, %v804
      %v823 = vpack.c.b16 %v807, %v806
      %v824 = vpack.c.b16 %v809, %v808
      %v825 = vpack.c.b16 %v811, %v810
      %v826 = vpack.c.b16 %v813, %v812
      %v827 = vpack.c.b16 %v815, %v814
      %v841 = vsel %vm494, %v466, 0
      %843 = vmatpush.bf16.msra.mxu0 %v823
      %844 = vmatpush.bf16.msra.mxu0 %v822
      %845 = vmatpush.bf16.msra.mxu0 %v821
      %846 = vmatpush.bf16.msra.mxu0 %v820
      %847 = vmatpush.bf16.msra.mxu0 %v819
      %848 = vmatpush.bf16.msra.mxu0 %v818
      %849 = vmatpush.bf16.msra.mxu0 %v817
      %850 = vmatpush.bf16.msra.mxu0 %v816
      %851 = vmatmul.bf16.gmra.mxu0 %v496
      %v852 = vpop.f32.mrf.mxu0
      %v853 = vadd.f32 %v729, %v852
      %v854 = vpop.f32.mrf.mxu0
      %v855 = vadd.f32 %v731, %v854
      %856 = vmatmul.bf16.gmra.mxu0 %v499
      %v857 = vpop.f32.mrf.mxu0
      %v858 = vadd.f32 %v734, %v857
      %v859 = vpop.f32.mrf.mxu0
      %v860 = vadd.f32 %v736, %v859
      %861 = vmatmul.bf16.gmra.mxu0 %v502
      %v862 = vpop.f32.mrf.mxu0
      %v863 = vadd.f32 %v739, %v862
      %v864 = vpop.f32.mrf.mxu0
      %v865 = vadd.f32 %v741, %v864
      %866 = vmatmul.bf16.gmra.mxu0 %v505
      %v867 = vpop.f32.mrf.mxu0
      %v868 = vadd.f32 %v744, %v867
      %v869 = vpop.f32.mrf.mxu0
      %v870 = vadd.f32 %v746, %v869
      %871 = vmatmul.bf16.gmra.mxu0 %v508
      %v872 = vpop.f32.mrf.mxu0
      %v873 = vadd.f32 %v749, %v872
      %v874 = vpop.f32.mrf.mxu0
      %v875 = vadd.f32 %v751, %v874
      %876 = vmatmul.bf16.gmra.mxu0 %v511
      %v877 = vpop.f32.mrf.mxu0
      %v878 = vadd.f32 %v754, %v877
      %v879 = vpop.f32.mrf.mxu0
      %v880 = vadd.f32 %v756, %v879
      %881 = vmatmul.bf16.gmra.mxu0 %v514
      %v882 = vpop.f32.mrf.mxu0
      %v883 = vadd.f32 %v759, %v882
      %v884 = vpop.f32.mrf.mxu0
      %v885 = vadd.f32 %v761, %v884
      %886 = vmatmul.bf16.gmra.mxu0 %v517
      %v887 = vpop.f32.mrf.mxu0
      %v888 = vadd.f32 %v764, %v887
      %v889 = vpop.f32.mrf.mxu0
      %v890 = vadd.f32 %v766, %v889
      %891 = vdwg.mxu0
      %892 = vmatpush.bf16.msra.mxu0 0
      %893 = vmatpush.bf16.msra.mxu0 0
      %894 = vmatpush.bf16.msra.mxu0 0
      %895 = vmatpush.bf16.msra.mxu0 0
      %896 = vmatpush.bf16.msra.mxu0 %v827
      %897 = vmatpush.bf16.msra.mxu0 %v826
      %898 = vmatpush.bf16.msra.mxu0 %v825
      %899 = vmatpush.bf16.msra.mxu0 %v824
      %900 = vmatmul.bf16.gmra.mxu0 %v841
      %v901 = vpop.f32.mrf.mxu0
      %v902 = vadd.f32 %v853, %v901
      %v903 = vpop.f32.mrf.mxu0
      %v904 = vadd.f32 %v855, %v903
      %905 = vmatmul.bf16.gmra.mxu0 %v647
      %v906 = vpop.f32.mrf.mxu0
      %v907 = vadd.f32 %v858, %v906
      %v908 = vpop.f32.mrf.mxu0
      %v909 = vadd.f32 %v860, %v908
      %910 = vmatmul.bf16.gmra.mxu0 %v650
      %v911 = vpop.f32.mrf.mxu0
      %v912 = vadd.f32 %v863, %v911
      %v913 = vpop.f32.mrf.mxu0
      %v914 = vadd.f32 %v865, %v913
      %915 = vmatmul.bf16.gmra.mxu0 %v653
      %v916 = vpop.f32.mrf.mxu0
      %v917 = vadd.f32 %v868, %v916
      %v918 = vpop.f32.mrf.mxu0
      %v919 = vadd.f32 %v870, %v918
      %920 = vmatmul.bf16.gmra.mxu0 %v656
      %v921 = vpop.f32.mrf.mxu0
      %v922 = vadd.f32 %v873, %v921
      %v923 = vpop.f32.mrf.mxu0
      %v924 = vadd.f32 %v875, %v923
      %925 = vmatmul.bf16.gmra.mxu0 %v659
      %v926 = vpop.f32.mrf.mxu0
      %v927 = vadd.f32 %v878, %v926
      %v928 = vpop.f32.mrf.mxu0
      %v929 = vadd.f32 %v880, %v928
      %930 = vmatmul.bf16.gmra.mxu0 %v662
      %v931 = vpop.f32.mrf.mxu0
      %v932 = vadd.f32 %v883, %v931
      %v933 = vpop.f32.mrf.mxu0
      %v934 = vadd.f32 %v885, %v933
      %935 = vmatmul.bf16.gmra.mxu0 %v665
      %v936 = vpop.f32.mrf.mxu0
      %v937 = vadd.f32 %v888, %v936
      %v938 = vpop.f32.mrf.mxu0
      %v939 = vadd.f32 %v890, %v938
      %940 = vdwg.mxu0
      %s941 = scalar_lea.vmem %s1, 192
      %v942 = vld [vmem:[%s941] sm:$0xf]
      %v943 = vld [vmem:[%s941 + $0x4] sm:$0xf]
      %v944 = vld [vmem:[%s941 + $0x8] sm:$0xf]
      %v945 = vld [vmem:[%s941 + $0xc] sm:$0xf]
      %v946 = vld [vmem:[%s941 + $0x10] sm:$0xf]
      %v947 = vld [vmem:[%s941 + $0x14] sm:$0xf]
      %v948 = vld [vmem:[%s941 + $0x18] sm:$0xf]
      %v949 = vld [vmem:[%s941 + $0x1c] sm:$0xf]
      %v950 = vld [vmem:[%s941 + $0x20] sm:$0xf]
      %v951 = vld [vmem:[%s941 + $0x24] sm:$0xf]
      %v952 = vld [vmem:[%s941 + $0x28] sm:$0xf]
      %v953 = vld [vmem:[%s941 + $0x2c] sm:$0xf]
      %v954 = vld [vmem:[%s941 + $0x30] sm:$0xf]
      %v955 = vld [vmem:[%s941 + $0x34] sm:$0xf]
      %v956 = vld [vmem:[%s941 + $0x38] sm:$0xf]
      %v957 = vld [vmem:[%s941 + $0x3c] sm:$0xf]
      %v958 = vld [vmem:[%s941 + $0x40] sm:$0xf]
      %v959 = vld [vmem:[%s941 + $0x44] sm:$0xf]
      %v960 = vld [vmem:[%s941 + $0x48] sm:$0xf]
      %v961 = vld [vmem:[%s941 + $0x4c] sm:$0xf]
      %v962 = vld [vmem:[%s941 + $0x50] sm:$0xf]
      %v963 = vld [vmem:[%s941 + $0x54] sm:$0xf]
      %v964 = vld [vmem:[%s941 + $0x58] sm:$0xf]
      %v965 = vld [vmem:[%s941 + $0x5c] sm:$0xf]
      %v990 = vunpack.c.l.b16 %v942
      %v991 = vunpack.c.l.b16 %v943
      %v992 = vunpack.c.l.b16 %v944
      %v993 = vunpack.c.l.b16 %v945
      %v994 = vunpack.c.l.b16 %v946
      %v995 = vunpack.c.l.b16 %v947
      %v996 = vunpack.c.l.b16 %v948
      %v997 = vunpack.c.l.b16 %v949
      %v998 = vunpack.c.l.b16 %v950
      %v999 = vunpack.c.l.b16 %v951
      %v1000 = vunpack.c.l.b16 %v952
      %v1001 = vunpack.c.l.b16 %v953
      %v1002 = vunpack.c.l.b16 %v954
      %v1003 = vunpack.c.l.b16 %v955
      %v1004 = vunpack.c.l.b16 %v956
      %v1005 = vunpack.c.l.b16 %v957
      %v1006 = vunpack.c.l.b16 %v958
      %v1007 = vunpack.c.l.b16 %v959
      %v1008 = vunpack.c.l.b16 %v960
      %v1009 = vunpack.c.l.b16 %v961
      %v1010 = vunpack.c.l.b16 %v962
      %v1011 = vunpack.c.l.b16 %v963
      %v1012 = vunpack.c.l.b16 %v964
      %v1013 = vunpack.c.l.b16 %v965
      %v1014 = vpack.c.b16 %v991, %v990
      %v1015 = vpack.c.b16 %v993, %v992
      %v1016 = vpack.c.b16 %v995, %v994
      %v1017 = vpack.c.b16 %v997, %v996
      %v1018 = vpack.c.b16 %v999, %v998
      %v1019 = vpack.c.b16 %v1001, %v1000
      %v1020 = vpack.c.b16 %v1003, %v1002
      %v1021 = vpack.c.b16 %v1005, %v1004
      %v1022 = vpack.c.b16 %v1007, %v1006
      %v1023 = vpack.c.b16 %v1009, %v1008
      %v1024 = vpack.c.b16 %v1011, %v1010
      %v1025 = vpack.c.b16 %v1013, %v1012
      %v1039 = vsel %vm494, %v493, 0
      %1041 = vmatpush.bf16.msra.mxu0 %v1021
      %1042 = vmatpush.bf16.msra.mxu0 %v1020
      %1043 = vmatpush.bf16.msra.mxu0 %v1019
      %1044 = vmatpush.bf16.msra.mxu0 %v1018
      %1045 = vmatpush.bf16.msra.mxu0 %v1017
      %1046 = vmatpush.bf16.msra.mxu0 %v1016
      %1047 = vmatpush.bf16.msra.mxu0 %v1015
      %1048 = vmatpush.bf16.msra.mxu0 %v1014
      %1049 = vmatmul.bf16.gmra.mxu0 %v502
      %v1050 = vpop.f32.mrf.mxu0
      %v1051 = vadd.f32 0.0, %v1050
      %v1052 = vpop.f32.mrf.mxu0
      %v1053 = vadd.f32 0.0, %v1052
      %1054 = vmatmul.bf16.gmra.mxu0 %v505
      %v1055 = vpop.f32.mrf.mxu0
      %v1056 = vadd.f32 0.0, %v1055
      %v1057 = vpop.f32.mrf.mxu0
      %v1058 = vadd.f32 0.0, %v1057
      %1059 = vmatmul.bf16.gmra.mxu0 %v508
      %v1060 = vpop.f32.mrf.mxu0
      %v1061 = vadd.f32 0.0, %v1060
      %v1062 = vpop.f32.mrf.mxu0
      %v1063 = vadd.f32 0.0, %v1062
      %1064 = vmatmul.bf16.gmra.mxu0 %v511
      %v1065 = vpop.f32.mrf.mxu0
      %v1066 = vadd.f32 0.0, %v1065
      %v1067 = vpop.f32.mrf.mxu0
      %v1068 = vadd.f32 0.0, %v1067
      %1069 = vmatmul.bf16.gmra.mxu0 %v514
      %v1070 = vpop.f32.mrf.mxu0
      %v1071 = vadd.f32 0.0, %v1070
      %v1072 = vpop.f32.mrf.mxu0
      %v1073 = vadd.f32 0.0, %v1072
      %1074 = vmatmul.bf16.gmra.mxu0 %v517
      %v1075 = vpop.f32.mrf.mxu0
      %v1076 = vadd.f32 0.0, %v1075
      %v1077 = vpop.f32.mrf.mxu0
      %v1078 = vadd.f32 0.0, %v1077
      %1079 = vmatmul.bf16.gmra.mxu0 %v520
      %v1080 = vpop.f32.mrf.mxu0
      %v1081 = vadd.f32 0.0, %v1080
      %v1082 = vpop.f32.mrf.mxu0
      %v1083 = vadd.f32 0.0, %v1082
      %1084 = vmatmul.bf16.gmra.mxu0 %v523
      %v1085 = vpop.f32.mrf.mxu0
      %v1086 = vadd.f32 0.0, %v1085
      %v1087 = vpop.f32.mrf.mxu0
      %v1088 = vadd.f32 0.0, %v1087
      %1089 = vdwg.mxu0
      %1090 = vmatpush.bf16.msra.mxu0 0
      %1091 = vmatpush.bf16.msra.mxu0 0
      %1092 = vmatpush.bf16.msra.mxu0 0
      %1093 = vmatpush.bf16.msra.mxu0 0
      %1094 = vmatpush.bf16.msra.mxu0 %v1025
      %1095 = vmatpush.bf16.msra.mxu0 %v1024
      %1096 = vmatpush.bf16.msra.mxu0 %v1023
      %1097 = vmatpush.bf16.msra.mxu0 %v1022
      %1098 = vmatmul.bf16.gmra.mxu0 %v650
      %v1099 = vpop.f32.mrf.mxu0
      %v1100 = vadd.f32 %v1051, %v1099
      %v1101 = vpop.f32.mrf.mxu0
      %v1102 = vadd.f32 %v1053, %v1101
      %1103 = vmatmul.bf16.gmra.mxu0 %v653
      %v1104 = vpop.f32.mrf.mxu0
      %v1105 = vadd.f32 %v1056, %v1104
      %v1106 = vpop.f32.mrf.mxu0
      %v1107 = vadd.f32 %v1058, %v1106
      %1108 = vmatmul.bf16.gmra.mxu0 %v656
      %v1109 = vpop.f32.mrf.mxu0
      %v1110 = vadd.f32 %v1061, %v1109
      %v1111 = vpop.f32.mrf.mxu0
      %v1112 = vadd.f32 %v1063, %v1111
      %1113 = vmatmul.bf16.gmra.mxu0 %v659
      %v1114 = vpop.f32.mrf.mxu0
      %v1115 = vadd.f32 %v1066, %v1114
      %v1116 = vpop.f32.mrf.mxu0
      %v1117 = vadd.f32 %v1068, %v1116
      %1118 = vmatmul.bf16.gmra.mxu0 %v662
      %v1119 = vpop.f32.mrf.mxu0
      %v1120 = vadd.f32 %v1071, %v1119
      %v1121 = vpop.f32.mrf.mxu0
      %v1122 = vadd.f32 %v1073, %v1121
      %1123 = vmatmul.bf16.gmra.mxu0 %v665
      %v1124 = vpop.f32.mrf.mxu0
      %v1125 = vadd.f32 %v1076, %v1124
      %v1126 = vpop.f32.mrf.mxu0
      %v1127 = vadd.f32 %v1078, %v1126
      %1128 = vmatmul.bf16.gmra.mxu0 %v668
      %v1129 = vpop.f32.mrf.mxu0
      %v1130 = vadd.f32 %v1081, %v1129
      %v1131 = vpop.f32.mrf.mxu0
      %v1132 = vadd.f32 %v1083, %v1131
      %1133 = vmatmul.bf16.gmra.mxu0 %v1039
      %v1134 = vpop.f32.mrf.mxu0
      %v1135 = vadd.f32 %v1086, %v1134
      %v1136 = vpop.f32.mrf.mxu0
      %v1137 = vadd.f32 %v1088, %v1136
      %1138 = vdwg.mxu0
      %v1139 = vadd.f32 %v902, %v1100
      %v1140 = vadd.f32 %v904, %v1102
      %v1141 = vadd.f32 %v907, %v1105
      %v1142 = vadd.f32 %v909, %v1107
      %v1143 = vadd.f32 %v912, %v1110
      %v1144 = vadd.f32 %v914, %v1112
      %v1145 = vadd.f32 %v917, %v1115
      %v1146 = vadd.f32 %v919, %v1117
      %v1147 = vadd.f32 %v922, %v1120
      %v1148 = vadd.f32 %v924, %v1122
      %v1149 = vadd.f32 %v927, %v1125
      %v1150 = vadd.f32 %v929, %v1127
      %v1151 = vadd.f32 %v932, %v1130
      %v1152 = vadd.f32 %v934, %v1132
      %v1153 = vadd.f32 %v937, %v1135
      %v1154 = vadd.f32 %v939, %v1137
      %v1155 = vld [vmem:[%s2] sm:$0x1]
      %v1157 = vperm.slane %v1155, 0
      %v1159 = vadd.f32 %v1139, %v1157
      %v1160 = vadd.f32 %v1140, %v1157
      %v1161 = vadd.f32 %v1141, %v1157
      %v1162 = vadd.f32 %v1142, %v1157
      %v1163 = vadd.f32 %v1143, %v1157
      %v1164 = vadd.f32 %v1144, %v1157
      %v1165 = vadd.f32 %v1145, %v1157
      %v1166 = vadd.f32 %v1146, %v1157
      %v1167 = vadd.f32 %v1147, %v1157
      %v1168 = vadd.f32 %v1148, %v1157
      %v1169 = vadd.f32 %v1149, %v1157
      %v1170 = vadd.f32 %v1150, %v1157
      %v1171 = vadd.f32 %v1151, %v1157
      %v1172 = vadd.f32 %v1152, %v1157
      %v1173 = vadd.f32 %v1153, %v1157
      %v1174 = vadd.f32 %v1154, %v1157
      %v1175 = vmax.f32 %v1159, 0.0
      %v1176 = vmax.f32 %v1160, 0.0
      %v1177 = vmax.f32 %v1161, 0.0
      %v1178 = vmax.f32 %v1162, 0.0
      %v1179 = vmax.f32 %v1163, 0.0
      %v1180 = vmax.f32 %v1164, 0.0
      %v1181 = vmax.f32 %v1165, 0.0
      %v1182 = vmax.f32 %v1166, 0.0
      %v1183 = vmax.f32 %v1167, 0.0
      %v1184 = vmax.f32 %v1168, 0.0
      %v1185 = vmax.f32 %v1169, 0.0
      %v1186 = vmax.f32 %v1170, 0.0
      %v1187 = vmax.f32 %v1171, 0.0
      %v1188 = vmax.f32 %v1172, 0.0
      %v1189 = vmax.f32 %v1173, 0.0
      %v1190 = vmax.f32 %v1174, 0.0
      %v1191 = vpack.c.bf16 %v1175, %v1175
      %v1192 = vpack.c.bf16 %v1176, %v1176
      %v1193 = vpack.c.bf16 %v1177, %v1177
      %v1194 = vpack.c.bf16 %v1178, %v1178
      %v1195 = vpack.c.bf16 %v1179, %v1179
      %v1196 = vpack.c.bf16 %v1180, %v1180
      %v1197 = vpack.c.bf16 %v1181, %v1181
      %v1198 = vpack.c.bf16 %v1182, %v1182
      %v1199 = vpack.c.bf16 %v1183, %v1183
      %v1200 = vpack.c.bf16 %v1184, %v1184
      %v1201 = vpack.c.bf16 %v1185, %v1185
      %v1202 = vpack.c.bf16 %v1186, %v1186
      %v1203 = vpack.c.bf16 %v1187, %v1187
      %v1204 = vpack.c.bf16 %v1188, %v1188
      %v1205 = vpack.c.bf16 %v1189, %v1189
      %v1206 = vpack.c.bf16 %v1190, %v1190
      %vm1207 = vcmask 519168
      %1208 = vst.msk [vmem:[%s170] sm:$0xf] %vm1207, %v1191
      %1209 = vst.msk [vmem:[%s170 + $0x4] sm:$0xf] %vm1207, %v1192
      %1210 = vst.msk [vmem:[%s170 + $0x8] sm:$0xf] %vm1207, %v1193
      %1211 = vst.msk [vmem:[%s170 + $0xc] sm:$0xf] %vm1207, %v1194
      %1212 = vst.msk [vmem:[%s170 + $0x10] sm:$0xf] %vm1207, %v1195
      %1213 = vst.msk [vmem:[%s170 + $0x14] sm:$0xf] %vm1207, %v1196
      %1214 = vst.msk [vmem:[%s170 + $0x18] sm:$0xf] %vm1207, %v1197
      %1215 = vst.msk [vmem:[%s170 + $0x1c] sm:$0xf] %vm1207, %v1198
      %1216 = vst.msk [vmem:[%s170 + $0x20] sm:$0xf] %vm1207, %v1199
      %1217 = vst.msk [vmem:[%s170 + $0x24] sm:$0xf] %vm1207, %v1200
      %1218 = vst.msk [vmem:[%s170 + $0x28] sm:$0xf] %vm1207, %v1201
      %1219 = vst.msk [vmem:[%s170 + $0x2c] sm:$0xf] %vm1207, %v1202
      %1220 = vst.msk [vmem:[%s170 + $0x30] sm:$0xf] %vm1207, %v1203
      %1221 = vst.msk [vmem:[%s170 + $0x34] sm:$0xf] %vm1207, %v1204
      %1222 = vst.msk [vmem:[%s170 + $0x38] sm:$0xf] %vm1207, %v1205
      %1223 = vst.msk [vmem:[%s170 + $0x3c] sm:$0xf] %vm1207, %v1206
      %p1224 = scmp.lt.s32.totalorder %s14, 1
      %s1225 = scalar_select %p1224, %s14, 1
      %s1226 = smul.addr %s1225, 16
      %s1227 = smul.addr %s1226, 4
      %s1228 = scalar_lea.vmem %s3, %s1227
      // Predicated region
      $region33: #{crnn_forward.8} parent=31 // pred_check
        %p1229 = pneg %p100
      $region34: #{crnn_forward.8} parent=31 // pred_check_branch
        %1231 = sbr.rel (%p1229) target = $region36
      $region35: #{crnn_forward.8} parent=31 // pred_region
        _
      $region36: #{crnn_forward.8} parent=31 // pred_fallthru
        _
    $region32: #{crnn_forward.8} parent=5 // pred_fallthru
      _
    %p1232 = scmp.le.s32.totalorder 2, %s9
    // Predicated region
    $region37: #{crnn_forward.8} parent=5 // pred_check
      %p1233 = pneg %p1232
    $region38: #{crnn_forward.8} parent=5 // pred_check_branch
      %1235 = sbr.rel (%p1233) target = $region40
    $region39: #{crnn_forward.8} parent=5 // pred_region
      %s1236 = ssub.s32 %s9, 2
      // Predicated region
      $region41: #{crnn_forward.8} parent=39 // pred_check
        %p1237 = pneg %p106
      $region42: #{crnn_forward.8} parent=39 // pred_check_branch
        %1239 = sbr.rel (%p1237) target = $region44
      $region43: #{crnn_forward.8} parent=39 // pred_region
        %p1240 = scmp.lt.s32.totalorder %s15, 1
        %s1241 = scalar_select %p1240, %s15, 1
        %s1242 = smul.addr %s1241, 16
        %s1243 = smul.addr %s1242, 4
        %s1244 = scalar_lea.vmem %s3, %s1243
      $region44: #{crnn_forward.8} parent=39 // pred_fallthru
        _
    $region40: #{crnn_forward.8} parent=5 // pred_fallthru
      _
  $region6: #{crnn_forward.8} parent=0 // loop_footer
    %s13 = sadd.s32 1, %s9
  $region7: #{crnn_forward.8} parent=0 // loop_footer_branch
    %8 = sbr.rel target = $region3
  $region8: #{crnn_forward.8} parent=0 // loop_exit
    _

// kernel: crnn_forward.10
$region0: #{crnn_forward.10}
  #allocation0 [shape = 'u32[]', space=smem, size = 0x4, offset = 0x4, fixed_abs, tag = 'smem constant byte address 0x4 - core index']
  #allocation1 [shape = 'u32[72,128]{1,0:T(1,128)}', space=vmem, size = 0x9000, scoped, tag = 'internal scratch']
  %s0 = inlined_call_operand.vmem [shape: bf16[2,6,10,128], index: 0, kind: input, shape index: {}]
  %s1 = inlined_call_operand.vmem [shape: bf16[3,384,128], index: 1, kind: input, shape index: {}]
  %s2 = inlined_call_operand.vmem [shape: f32[1,128], index: 2, kind: input, shape index: {}]
  %s3 = inlined_call_operand.vmem [shape: bf16[2,32,128], index: 3, kind: output, shape index: {}]
  %s4 = sld [smem:[#allocation0]]
  $region45: #{crnn_forward.10} parent=0
    _
  %s6 = ssub.s32 1, %s4
  %s7 = scalar_select 0, %s6, %s4
  loop: start=0, step=1, limit=4
  $region2: #{crnn_forward.10} parent=0 // loop_pre_header
    _
  $region3: #{crnn_forward.10} parent=0 // loop_header
    %s9 = sphi 0, %s13
    %p10 = scmp.ge.s32.totalorder %s9, 4
    %s19 = sphi 0, %s21
    %s22 = sphi 0, %s19
    %s23 = sphi 0, %s22
    %s39 = sphi 0, %s23
    %s43 = sphi 0, %s43
    %s45 = sphi 0, %s43
    %s46 = sphi 0, %s45
    %s60 = sphi 0, %s46
    %s64 = sphi 0, %s64
    %s66 = sphi 0, %s64
    %s67 = sphi 0, %s66
    %s81 = sphi 0, %s67
    %s87 = sphi 0, %s89
    %s90 = sphi 0, %s87
    %s91 = sphi 0, %s90
    %s107 = sphi 0, %s91
  $region4: #{crnn_forward.10} parent=0 // loop_header_branch
    %12 = sbr.rel (%p10) target = $region8
  $region5: #{crnn_forward.10} parent=0 // loop_body
    %s14 = ssub.s32 %s9, 1
    %s15 = ssub.s32 %s9, 2
    %s16 = sadd.s32 %s9, 1
    %s17 = ssub.s32 %s9, %s16
    %p18 = scmp.eq.s32.totalorder %s17, 0
    %s20 = sadd.s32 %s19, 1
    %s21 = scalar_select %p18, %s19, %s20
    %p24 = pneg %p18
    %p25 = scmp.eq.s32.totalorder %s9, 1
    %p26 = por %p24, %p25
    %p27 = scmp.ne.s32.totalorder %s19, %s22
    %p28 = scmp.eq.s32.totalorder %s9, 0
    %p29 = por %p27, %p28
    %p30 = scmp.ne.s32.totalorder %s19, %s22
    %p31 = scmp.eq.s32.totalorder %s14, 1
    %p32 = por %p30, %p31
    %p33 = scmp.ne.s32.totalorder %s22, %s23
    %p34 = scmp.eq.s32.totalorder %s14, 0
    %p35 = por %p33, %p34
    %p36 = scmp.ne.s32.totalorder %s22, %s23
    %p37 = scmp.eq.s32.totalorder %s15, 1
    %p38 = por %p36, %p37
    %p40 = scmp.ne.s32.totalorder %s23, %s39
    %p41 = scmp.eq.s32.totalorder %s15, 0
    %p42 = por %p40, %p41
    %s44 = sadd.s32 %s43, 1
    %p47 = scmp.eq.s32.totalorder %s9, 1
    %p48 = scmp.ne.s32.totalorder %s43, %s45
    %p49 = scmp.eq.s32.totalorder %s9, 0
    %p50 = por %p48, %p49
    %p51 = scmp.ne.s32.totalorder %s43, %s45
    %p52 = scmp.eq.s32.totalorder %s14, 1
    %p53 = por %p51, %p52
    %p54 = scmp.ne.s32.totalorder %s45, %s46
    %p55 = scmp.eq.s32.totalorder %s14, 0
    %p56 = por %p54, %p55
    %p57 = scmp.ne.s32.totalorder %s45, %s46
    %p58 = scmp.eq.s32.totalorder %s15, 1
    %p59 = por %p57, %p58
    %p61 = scmp.ne.s32.totalorder %s46, %s60
    %p62 = scmp.eq.s32.totalorder %s15, 0
    %p63 = por %p61, %p62
    %s65 = sadd.s32 %s64, 1
    %p68 = scmp.eq.s32.totalorder %s9, 1
    %p69 = scmp.ne.s32.totalorder %s64, %s66
    %p70 = scmp.eq.s32.totalorder %s9, 0
    %p71 = por %p69, %p70
    %p72 = scmp.ne.s32.totalorder %s64, %s66
    %p73 = scmp.eq.s32.totalorder %s14, 1
    %p74 = por %p72, %p73
    %p75 = scmp.ne.s32.totalorder %s66, %s67
    %p76 = scmp.eq.s32.totalorder %s14, 0
    %p77 = por %p75, %p76
    %p78 = scmp.ne.s32.totalorder %s66, %s67
    %p79 = scmp.eq.s32.totalorder %s15, 1
    %p80 = por %p78, %p79
    %p82 = scmp.ne.s32.totalorder %s67, %s81
    %p83 = scmp.eq.s32.totalorder %s15, 0
    %p84 = por %p82, %p83
    %s85 = ssub.s32 %s9, %s16
    %p86 = scmp.eq.s32.totalorder %s85, 0
    %s88 = sadd.s32 %s87, 1
    %s89 = scalar_select %p86, %s87, %s88
    %p92 = pneg %p86
    %p93 = scmp.eq.s32.totalorder %s9, 1
    %p94 = por %p92, %p93
    %p95 = scmp.ne.s32.totalorder %s87, %s90
    %p96 = scmp.eq.s32.totalorder %s9, 0
    %p97 = por %p95, %p96
    %p98 = scmp.ne.s32.totalorder %s87, %s90
    %p99 = scmp.eq.s32.totalorder %s14, 1
    %p100 = por %p98, %p99
    %p101 = scmp.ne.s32.totalorder %s90, %s91
    %p102 = scmp.eq.s32.totalorder %s14, 0
    %p103 = por %p101, %p102
    %p104 = scmp.ne.s32.totalorder %s90, %s91
    %p105 = scmp.eq.s32.totalorder %s15, 1
    %p106 = por %p104, %p105
    %p108 = scmp.ne.s32.totalorder %s91, %s107
    %p109 = scmp.eq.s32.totalorder %s15, 0
    %p110 = por %p108, %p109
    %p111 = scmp.le.s32.totalorder 1, %s9
    %p112 = scmp.lt.s32.totalorder %s9, 3
    %p113 = pnand %p111, %p112
    %p114 = pneg %p113
    // Predicated region
    $region9: #{crnn_forward.10} parent=5 // pred_check
      _
    $region10: #{crnn_forward.10} parent=5 // pred_check_branch
      %116 = sbr.rel (%p113) target = $region12
    $region11: #{crnn_forward.10} parent=5 // pred_region
      %s117 = ssub.s32 %s9, 1
      // Predicated region
      $region13: #{crnn_forward.10} parent=11 // pred_check
        %p118 = pneg %p56
      $region14: #{crnn_forward.10} parent=11 // pred_check_branch
        %120 = sbr.rel (%p118) target = $region16
      $region15: #{crnn_forward.10} parent=11 // pred_region
        _
      $region16: #{crnn_forward.10} parent=11 // pred_fallthru
        _
      // Predicated region
      $region17: #{crnn_forward.10} parent=11 // pred_check
        %p121 = pneg %p77
      $region18: #{crnn_forward.10} parent=11 // pred_check_branch
        %123 = sbr.rel (%p121) target = $region20
      $region19: #{crnn_forward.10} parent=11 // pred_region
        _
      $region20: #{crnn_forward.10} parent=11 // pred_fallthru
        _
    $region12: #{crnn_forward.10} parent=5 // pred_fallthru
      _
    %p124 = scmp.lt.s32.totalorder %s9, 2
    // Predicated region
    $region21: #{crnn_forward.10} parent=5 // pred_check
      %p125 = pneg %p124
    $region22: #{crnn_forward.10} parent=5 // pred_check_branch
      %127 = sbr.rel (%p125) target = $region24
    $region23: #{crnn_forward.10} parent=5 // pred_region
      // Predicated region
      $region25: #{crnn_forward.10} parent=23 // pred_check
        %p128 = pneg %p29
      $region26: #{crnn_forward.10} parent=23 // pred_check_branch
        %130 = sbr.rel (%p128) target = $region28
      $region27: #{crnn_forward.10} parent=23 // pred_region
        %p131 = scmp.lt.s32.totalorder %s9, 1
        %s132 = scalar_select %p131, %s9, 1
        %s133 = smul.addr %s132, 12
        %s134 = smul.addr %s133, 4
        %s135 = scalar_lea.vmem %s0, %s134
      $region28: #{crnn_forward.10} parent=23 // pred_fallthru
        _
    $region24: #{crnn_forward.10} parent=5 // pred_fallthru
      _
    %p136 = scmp.le.s32.totalorder 1, %s9
    %p137 = scmp.lt.s32.totalorder %s9, 3
    %p138 = pnand %p136, %p137
    %p139 = pneg %p138
    // Predicated region
    $region29: #{crnn_forward.10} parent=5 // pred_check
      _
    $region30: #{crnn_forward.10} parent=5 // pred_check_branch
      %141 = sbr.rel (%p138) target = $region32
    $region31: #{crnn_forward.10} parent=5 // pred_region
      %s142 = ssub.s32 %s9, 1
      %p143 = scmp.lt.s32.totalorder %s14, 1
      %s144 = scalar_select %p143, %s14, 1
      %s145 = smul.addr %s144, 12
      %s146 = smul.addr %s145, 4
      %s147 = scalar_lea.vmem %s0, %s146
      %p148 = pneg %p35
      %p149 = pneg %p32
      %p150 = pneg %p56
      %p151 = pneg %p53
      %p152 = pneg %p77
      %p153 = pneg %p74
      %p154 = pneg %p103
      %p155 = pneg %p100
      %p156 = scmp.lt.s32.totalorder %s14, 1
      %s157 = scalar_select %p156, %s14, 1
      %s158 = smul.addr %s157, 4
      %s159 = smul.addr %s158, 4
      %s160 = scalar_lea.vmem %s3, %s159
      %p161 = scmp.lt.s32.totalorder %s14, 1
      %s162 = scalar_select %p161, %s14, 1
      %s163 = smul.addr %s162, 12
      %s164 = smul.addr %s163, 4
      %s165 = scalar_lea.vmem %s0, %s164
      %p166 = scmp.lt.s32.totalorder %s14, 1
      %s167 = scalar_select %p166, %s14, 1
      %s168 = smul.addr %s167, 4
      %s169 = smul.addr %s168, 4
      %s170 = scalar_lea.vmem %s3, %s169
      %v171 = vld [vmem:[%s165] sm:$0xf]
      %v172 = vld [vmem:[%s165 + $0x8] sm:$0xf]
      %v173 = vld [vmem:[%s165 + $0x10] sm:$0xf]
      %v174 = vld [vmem:[%s165 + $0x18] sm:$0xf]
      %v175 = vld [vmem:[%s165 + $0x20] sm:$0xf]
      %v176 = vld [vmem:[%s165 + $0x28] sm:$0xf]
      %v177 = vld [vmem:[%s165 + $0x4] sm:$0x1]
      %v178 = vld [vmem:[%s165 + $0xc] sm:$0x1]
      %v179 = vld [vmem:[%s165 + $0x14] sm:$0x1]
      %v180 = vld [vmem:[%s165 + $0x1c] sm:$0x1]
      %v181 = vld [vmem:[%s165 + $0x24] sm:$0x1]
      %v182 = vld [vmem:[%s165 + $0x2c] sm:$0x1]
      %v183 = vld [vmem:[%s165] sm:$0xe]
      %v184 = vld [vmem:[%s165 + $0x8] sm:$0xe]
      %v185 = vld [vmem:[%s165 + $0x10] sm:$0xe]
      %v186 = vld [vmem:[%s165 + $0x18] sm:$0xe]
      %v187 = vld [vmem:[%s165 + $0x20] sm:$0xe]
      %v188 = vld [vmem:[%s165 + $0x28] sm:$0xe]
      %v201 = vunpack.c.l.b16 %v171
      %v202 = vunpack.c.l.b16 %v177
      %v203 = vunpack.c.l.b16 %v172
      %v204 = vunpack.c.l.b16 %v178
      %v205 = vunpack.c.l.b16 %v173
      %v206 = vunpack.c.l.b16 %v179
      %v207 = vunpack.c.l.b16 %v174
      %v208 = vunpack.c.l.b16 %v180
      %v209 = vunpack.c.l.b16 %v175
      %v210 = vunpack.c.l.b16 %v181
      %v211 = vunpack.c.l.b16 %v176
      %v212 = vunpack.c.l.b16 %v182
      %v213 = vpack.c.b16 %v202, %v201
      %v214 = vpack.c.b16 %v204, %v203
      %v215 = vpack.c.b16 %v206, %v205
      %v216 = vpack.c.b16 %v208, %v207
      %v217 = vpack.c.b16 %v210, %v209
      %v218 = vpack.c.b16 %v212, %v211
      %v220 = vshrl.u32 %v213, 16
      %v222 = vshll.u32 %v213, 16
      %v224 = vrot.slane %v222, 1
      %v225 = vor.u32 %v220, %v224
      %v227 = vshrl.u32 %v214, 16
      %v229 = vshll.u32 %v214, 16
      %v231 = vrot.slane %v229, 1
      %v232 = vor.u32 %v227, %v231
      %v234 = vshrl.u32 %v215, 16
      %v236 = vshll.u32 %v215, 16
      %v238 = vrot.slane %v236, 1
      %v239 = vor.u32 %v234, %v238
      %v241 = vshrl.u32 %v216, 16
      %v243 = vshll.u32 %v216, 16
      %v245 = vrot.slane %v243, 1
      %v246 = vor.u32 %v241, %v245
      %v248 = vshrl.u32 %v217, 16
      %v250 = vshll.u32 %v217, 16
      %v252 = vrot.slane %v250, 1
      %v253 = vor.u32 %v248, %v252
      %v255 = vshrl.u32 %v218, 16
      %v257 = vshll.u32 %v218, 16
      %v259 = vrot.slane %v257, 1
      %v260 = vor.u32 %v255, %v259
      %v267 = vunpack.c.l.b16 %v183
      %v268 = vunpack.c.l.b16 %v184
      %v269 = vunpack.c.l.b16 %v185
      %v270 = vunpack.c.l.b16 %v186
      %v271 = vunpack.c.l.b16 %v187
      %v272 = vunpack.c.l.b16 %v188
      %v273 = vpack.c.b16 %v202, %v267
      %v274 = vpack.c.b16 %v204, %v268
      %v275 = vpack.c.b16 %v206, %v269
      %v276 = vpack.c.b16 %v208, %v270
      %v277 = vpack.c.b16 %v210, %v271
      %v278 = vpack.c.b16 %v212, %v272
      %v279 = vrot.slane %v273, 1
      %v280 = vrot.slane %v274, 1
      %v281 = vrot.slane %v275, 1
      %v282 = vrot.slane %v276, 1
      %v283 = vrot.slane %v277, 1
      %v284 = vrot.slane %v278, 1
      %v285 = vunpack.c.l.b16 %v225
      %v286 = vunpack.c.l.b16 %v279
      %v287 = vunpack.c.l.b16 %v232
      %v288 = vunpack.c.l.b16 %v280
      %v289 = vunpack.c.l.b16 %v239
      %v290 = vunpack.c.l.b16 %v281
      %v291 = vunpack.c.l.b16 %v246
      %v292 = vunpack.c.l.b16 %v282
      %v293 = vld [vmem:[%s1] sm:$0xf]
      %v294 = vld [vmem:[%s1 + $0x4] sm:$0xf]
      %v295 = vld [vmem:[%s1 + $0x8] sm:$0xf]
      %v296 = vld [vmem:[%s1 + $0xc] sm:$0xf]
      %v297 = vld [vmem:[%s1 + $0x10] sm:$0xf]
      %v298 = vld [vmem:[%s1 + $0x14] sm:$0xf]
      %v299 = vld [vmem:[%s1 + $0x18] sm:$0xf]
      %v300 = vld [vmem:[%s1 + $0x1c] sm:$0xf]
      %v301 = vld [vmem:[%s1 + $0x20] sm:$0xf]
      %v302 = vld [vmem:[%s1 + $0x24] sm:$0xf]
      %v303 = vld [vmem:[%s1 + $0x28] sm:$0xf]
      %v304 = vld [vmem:[%s1 + $0x2c] sm:$0xf]
      %v305 = vld [vmem:[%s1 + $0x30] sm:$0xf]
      %v306 = vld [vmem:[%s1 + $0x34] sm:$0xf]
      %v307 = vld [vmem:[%s1 + $0x38] sm:$0xf]
      %v308 = vld [vmem:[%s1 + $0x3c] sm:$0xf]
      %v309 = vld [vmem:[%s1 + $0x40] sm:$0xf]
      %v310 = vld [vmem:[%s1 + $0x44] sm:$0xf]
      %v311 = vld [vmem:[%s1 + $0x48] sm:$0xf]
      %v312 = vld [vmem:[%s1 + $0x4c] sm:$0xf]
      %v313 = vld [vmem:[%s1 + $0x50] sm:$0xf]
      %v314 = vld [vmem:[%s1 + $0x54] sm:$0xf]
      %v315 = vld [vmem:[%s1 + $0x58] sm:$0xf]
      %v316 = vld [vmem:[%s1 + $0x5c] sm:$0xf]
      %v317 = vld [vmem:[%s1 + $0x60] sm:$0xf]
      %v318 = vld [vmem:[%s1 + $0x64] sm:$0xf]
      %v319 = vld [vmem:[%s1 + $0x68] sm:$0xf]
      %v320 = vld [vmem:[%s1 + $0x6c] sm:$0xf]
      %v321 = vld [vmem:[%s1 + $0x70] sm:$0xf]
      %v322 = vld [vmem:[%s1 + $0x74] sm:$0xf]
      %v323 = vld [vmem:[%s1 + $0x78] sm:$0xf]
      %v324 = vld [vmem:[%s1 + $0x7c] sm:$0xf]
      %v325 = vld [vmem:[%s1 + $0x80] sm:$0xf]
      %v326 = vld [vmem:[%s1 + $0x84] sm:$0xf]
      %v327 = vld [vmem:[%s1 + $0x88] sm:$0xf]
      %v328 = vld [vmem:[%s1 + $0x8c] sm:$0xf]
      %v329 = vld [vmem:[%s1 + $0x90] sm:$0xf]
      %v330 = vld [vmem:[%s1 + $0x94] sm:$0xf]
      %v331 = vld [vmem:[%s1 + $0x98] sm:$0xf]
      %v332 = vld [vmem:[%s1 + $0x9c] sm:$0xf]
      %v333 = vld [vmem:[%s1 + $0xa0] sm:$0xf]
      %v334 = vld [vmem:[%s1 + $0xa4] sm:$0xf]
      %v335 = vld [vmem:[%s1 + $0xa8] sm:$0xf]
      %v336 = vld [vmem:[%s1 + $0xac] sm:$0xf]
      %v337 = vld [vmem:[%s1 + $0xb0] sm:$0xf]
      %v338 = vld [vmem:[%s1 + $0xb4] sm:$0xf]
      %v339 = vld [vmem:[%s1 + $0xb8] sm:$0xf]
      %v340 = vld [vmem:[%s1 + $0xbc] sm:$0xf]
      %v341 = vunpack.c.l.b16 %v253
      %v342 = vunpack.c.l.b16 %v283
      %s343 = scalar_lea.vmem %s1, 192
      %v344 = vld [vmem:[%s343] sm:$0xf]
      %v345 = vld [vmem:[%s343 + $0x4] sm:$0xf]
      %v346 = vld [vmem:[%s343 + $0x8] sm:$0xf]
      %v347 = vld [vmem:[%s343 + $0xc] sm:$0xf]
      %v348 = vld [vmem:[%s343 + $0x10] sm:$0xf]
      %v349 = vld [vmem:[%s343 + $0x14] sm:$0xf]
      %v350 = vld [vmem:[%s343 + $0x18] sm:$0xf]
      %v351 = vld [vmem:[%s343 + $0x1c] sm:$0xf]
      %v352 = vld [vmem:[%s343 + $0x20] sm:$0xf]
      %v353 = vld [vmem:[%s343 + $0x24] sm:$0xf]
      %v354 = vld [vmem:[%s343 + $0x28] sm:$0xf]
      %v355 = vld [vmem:[%s343 + $0x2c] sm:$0xf]
      %v356 = vld [vmem:[%s343 + $0x30] sm:$0xf]
      %v357 = vld [vmem:[%s343 + $0x34] sm:$0xf]
      %v358 = vld [vmem:[%s343 + $0x38] sm:$0xf]
      %v359 = vld [vmem:[%s343 + $0x3c] sm:$0xf]
      %v360 = vld [vmem:[%s343 + $0x40] sm:$0xf]
      %v361 = vld [vmem:[%s343 + $0x44] sm:$0xf]
      %v362 = vld [vmem:[%s343 + $0x48] sm:$0xf]
      %v363 = vld [vmem:[%s343 + $0x4c] sm:$0xf]
      %v364 = vld [vmem:[%s343 + $0x50] sm:$0xf]
      %v365 = vld [vmem:[%s343 + $0x54] sm:$0xf]
      %v366 = vld [vmem:[%s343 + $0x58] sm:$0xf]
      %v367 = vld [vmem:[%s343 + $0x5c] sm:$0xf]
      %v368 = vld [vmem:[%s343 + $0x60] sm:$0xf]
      %v369 = vld [vmem:[%s343 + $0x64] sm:$0xf]
      %v370 = vld [vmem:[%s343 + $0x68] sm:$0xf]
      %v371 = vld [vmem:[%s343 + $0x6c] sm:$0xf]
      %v372 = vld [vmem:[%s343 + $0x70] sm:$0xf]
      %v373 = vld [vmem:[%s343 + $0x74] sm:$0xf]
      %v374 = vld [vmem:[%s343 + $0x78] sm:$0xf]
      %v375 = vld [vmem:[%s343 + $0x7c] sm:$0xf]
      %v376 = vld [vmem:[%s343 + $0x80] sm:$0xf]
      %v377 = vld [vmem:[%s343 + $0x84] sm:$0xf]
      %v378 = vld [vmem:[%s343 + $0x88] sm:$0xf]
      %v379 = vld [vmem:[%s343 + $0x8c] sm:$0xf]
      %v380 = vld [vmem:[%s343 + $0x90] sm:$0xf]
      %v381 = vld [vmem:[%s343 + $0x94] sm:$0xf]
      %v382 = vld [vmem:[%s343 + $0x98] sm:$0xf]
      %v383 = vld [vmem:[%s343 + $0x9c] sm:$0xf]
      %v384 = vld [vmem:[%s343 + $0xa0] sm:$0xf]
      %v385 = vld [vmem:[%s343 + $0xa4] sm:$0xf]
      %v386 = vld [vmem:[%s343 + $0xa8] sm:$0xf]
      %v387 = vld [vmem:[%s343 + $0xac] sm:$0xf]
      %v388 = vld [vmem:[%s343 + $0xb0] sm:$0xf]
      %v389 = vld [vmem:[%s343 + $0xb4] sm:$0xf]
      %v390 = vld [vmem:[%s343 + $0xb8] sm:$0xf]
      %v391 = vld [vmem:[%s343 + $0xbc] sm:$0xf]
      %v392 = vpack.c.b16 %v205, %v203
      %v393 = vpack.c.b16 %v289, %v287
      %v394 = vpack.c.b16 %v290, %v288
      %v395 = vpack.c.b16 %v209, %v207
      %v396 = vpack.c.b16 %v341, %v291
      %v397 = vpack.c.b16 %v342, %v292
      %v452 = vunpack.c.l.b16 %v344
      %v453 = vunpack.c.l.b16 %v345
      %v454 = vunpack.c.l.b16 %v346
      %v455 = vunpack.c.l.b16 %v347
      %v456 = vunpack.c.l.b16 %v348
      %v457 = vunpack.c.l.b16 %v349
      %v458 = vunpack.c.l.b16 %v350
      %v459 = vunpack.c.l.b16 %v351
      %v460 = vunpack.c.l.b16 %v352
      %v461 = vunpack.c.l.b16 %v353
      %v462 = vunpack.c.l.b16 %v354
      %v463 = vunpack.c.l.b16 %v355
      %v464 = vunpack.c.l.b16 %v356
      %v465 = vunpack.c.l.b16 %v357
      %v466 = vunpack.c.l.b16 %v358
      %v467 = vunpack.c.l.b16 %v359
      %v468 = vunpack.c.l.b16 %v360
      %v469 = vunpack.c.l.b16 %v361
      %v470 = vunpack.c.l.b16 %v362
      %v471 = vunpack.c.l.b16 %v363
      %v472 = vunpack.c.l.b16 %v364
      %v473 = vunpack.c.l.b16 %v365
      %v474 = vunpack.c.l.b16 %v366
      %v475 = vunpack.c.l.b16 %v367
      %v476 = vunpack.c.l.b16 %v368
      %v477 = vunpack.c.l.b16 %v369
      %v478 = vunpack.c.l.b16 %v370
      %v479 = vunpack.c.l.b16 %v371
      %v480 = vunpack.c.l.b16 %v372
      %v481 = vunpack.c.l.b16 %v373
      %v482 = vunpack.c.l.b16 %v374
      %v483 = vunpack.c.l.b16 %v375
      %v484 = vunpack.c.l.b16 %v376
      %v485 = vunpack.c.l.b16 %v377
      %v486 = vunpack.c.l.b16 %v378
      %v487 = vunpack.c.l.b16 %v379
      %v488 = vunpack.c.l.b16 %v380
      %v489 = vunpack.c.l.b16 %v381
      %v490 = vunpack.c.l.b16 %v382
      %v491 = vunpack.c.l.b16 %v383
      %v492 = vunpack.c.l.b16 %v384
      %v493 = vunpack.c.l.b16 %v385
      %v494 = vunpack.c.l.b16 %v386
      %v495 = vunpack.c.l.b16 %v387
      %v496 = vunpack.c.l.b16 %v388
      %v497 = vunpack.c.l.b16 %v389
      %v498 = vunpack.c.l.b16 %v390
      %v499 = vunpack.c.l.b16 %v391
      %v500 = vpack.c.b16 %v453, %v452
      %v501 = vpack.c.b16 %v455, %v454
      %v502 = vpack.c.b16 %v457, %v456
      %v503 = vpack.c.b16 %v459, %v458
      %v504 = vpack.c.b16 %v461, %v460
      %v505 = vpack.c.b16 %v463, %v462
      %v506 = vpack.c.b16 %v465, %v464
      %v507 = vpack.c.b16 %v467, %v466
      %v508 = vpack.c.b16 %v469, %v468
      %v509 = vpack.c.b16 %v471, %v470
      %v510 = vpack.c.b16 %v473, %v472
      %v511 = vpack.c.b16 %v475, %v474
      %v512 = vpack.c.b16 %v477, %v476
      %v513 = vpack.c.b16 %v479, %v478
      %v514 = vpack.c.b16 %v481, %v480
      %v515 = vpack.c.b16 %v483, %v482
      %v516 = vpack.c.b16 %v485, %v484
      %v517 = vpack.c.b16 %v487, %v486
      %v518 = vpack.c.b16 %v489, %v488
      %v519 = vpack.c.b16 %v491, %v490
      %v520 = vpack.c.b16 %v493, %v492
      %v521 = vpack.c.b16 %v495, %v494
      %v522 = vpack.c.b16 %v497, %v496
      %v523 = vpack.c.b16 %v499, %v498
      %548 = vmatpush.bf16.msra.mxu0 %v507
      %549 = vmatpush.bf16.msra.mxu0 %v506
      %550 = vmatpush.bf16.msra.mxu0 %v505
      %551 = vmatpush.bf16.msra.mxu0 %v504
      %552 = vmatpush.bf16.msra.mxu0 %v503
      %553 = vmatpush.bf16.msra.mxu0 %v502
      %554 = vmatpush.bf16.msra.mxu0 %v501
      %555 = vmatpush.bf16.msra.mxu0 %v500
      %556 = vmatmul.bf16.gmra.mxu0 %v392
      %v557 = vpop.f32.mrf.mxu0
      %v558 = vadd.f32 0.0, %v557
      %v559 = vpop.f32.mrf.mxu0
      %v560 = vadd.f32 0.0, %v559
      %561 = vmatmul.bf16.gmra.mxu0 %v395
      %v562 = vpop.f32.mrf.mxu0
      %v563 = vadd.f32 0.0, %v562
      %v564 = vpop.f32.mrf.mxu0
      %v565 = vadd.f32 0.0, %v564
      %566 = vdwg.mxu0
      %567 = vmatpush.bf16.msra.mxu0 %v515
      %568 = vmatpush.bf16.msra.mxu0 %v514
      %569 = vmatpush.bf16.msra.mxu0 %v513
      %570 = vmatpush.bf16.msra.mxu0 %v512
      %571 = vmatpush.bf16.msra.mxu0 %v511
      %572 = vmatpush.bf16.msra.mxu0 %v510
      %573 = vmatpush.bf16.msra.mxu0 %v509
      %574 = vmatpush.bf16.msra.mxu0 %v508
      %575 = vmatmul.bf16.gmra.mxu0 %v393
      %v576 = vpop.f32.mrf.mxu0
      %v577 = vadd.f32 %v558, %v576
      %v578 = vpop.f32.mrf.mxu0
      %v579 = vadd.f32 %v560, %v578
      %580 = vmatmul.bf16.gmra.mxu0 %v396
      %v581 = vpop.f32.mrf.mxu0
      %v582 = vadd.f32 %v563, %v581
      %v583 = vpop.f32.mrf.mxu0
      %v584 = vadd.f32 %v565, %v583
      %585 = vdwg.mxu0
      %586 = vmatpush.bf16.msra.mxu0 %v523
      %587 = vmatpush.bf16.msra.mxu0 %v522
      %588 = vmatpush.bf16.msra.mxu0 %v521
      %589 = vmatpush.bf16.msra.mxu0 %v520
      %590 = vmatpush.bf16.msra.mxu0 %v519
      %591 = vmatpush.bf16.msra.mxu0 %v518
      %592 = vmatpush.bf16.msra.mxu0 %v517
      %593 = vmatpush.bf16.msra.mxu0 %v516
      %594 = vmatmul.bf16.gmra.mxu0 %v394
      %v595 = vpop.f32.mrf.mxu0
      %v596 = vadd.f32 %v577, %v595
      %v597 = vpop.f32.mrf.mxu0
      %v598 = vadd.f32 %v579, %v597
      %599 = vmatmul.bf16.gmra.mxu0 %v397
      %v600 = vpop.f32.mrf.mxu0
      %v601 = vadd.f32 %v582, %v600
      %v602 = vpop.f32.mrf.mxu0
      %v603 = vadd.f32 %v584, %v602
      %604 = vdwg.mxu0
      %v605 = vpack.c.b16 %v203, %v201
      %v606 = vpack.c.b16 %v287, %v285
      %v607 = vpack.c.b16 %v288, %v286
      %v608 = vpack.c.b16 %v207, %v205
      %v609 = vpack.c.b16 %v291, %v289
      %v610 = vpack.c.b16 %v292, %v290
      %v665 = vunpack.c.l.b16 %v293
      %v666 = vunpack.c.l.b16 %v294
      %v667 = vunpack.c.l.b16 %v295
      %v668 = vunpack.c.l.b16 %v296
      %v669 = vunpack.c.l.b16 %v297
      %v670 = vunpack.c.l.b16 %v298
      %v671 = vunpack.c.l.b16 %v299
      %v672 = vunpack.c.l.b16 %v300
      %v673 = vunpack.c.l.b16 %v301
      %v674 = vunpack.c.l.b16 %v302
      %v675 = vunpack.c.l.b16 %v303
      %v676 = vunpack.c.l.b16 %v304
      %v677 = vunpack.c.l.b16 %v305
      %v678 = vunpack.c.l.b16 %v306
      %v679 = vunpack.c.l.b16 %v307
      %v680 = vunpack.c.l.b16 %v308
      %v681 = vunpack.c.l.b16 %v309
      %v682 = vunpack.c.l.b16 %v310
      %v683 = vunpack.c.l.b16 %v311
      %v684 = vunpack.c.l.b16 %v312
      %v685 = vunpack.c.l.b16 %v313
      %v686 = vunpack.c.l.b16 %v314
      %v687 = vunpack.c.l.b16 %v315
      %v688 = vunpack.c.l.b16 %v316
      %v689 = vunpack.c.l.b16 %v317
      %v690 = vunpack.c.l.b16 %v318
      %v691 = vunpack.c.l.b16 %v319
      %v692 = vunpack.c.l.b16 %v320
      %v693 = vunpack.c.l.b16 %v321
      %v694 = vunpack.c.l.b16 %v322
      %v695 = vunpack.c.l.b16 %v323
      %v696 = vunpack.c.l.b16 %v324
      %v697 = vunpack.c.l.b16 %v325
      %v698 = vunpack.c.l.b16 %v326
      %v699 = vunpack.c.l.b16 %v327
      %v700 = vunpack.c.l.b16 %v328
      %v701 = vunpack.c.l.b16 %v329
      %v702 = vunpack.c.l.b16 %v330
      %v703 = vunpack.c.l.b16 %v331
      %v704 = vunpack.c.l.b16 %v332
      %v705 = vunpack.c.l.b16 %v333
      %v706 = vunpack.c.l.b16 %v334
      %v707 = vunpack.c.l.b16 %v335
      %v708 = vunpack.c.l.b16 %v336
      %v709 = vunpack.c.l.b16 %v337
      %v710 = vunpack.c.l.b16 %v338
      %v711 = vunpack.c.l.b16 %v339
      %v712 = vunpack.c.l.b16 %v340
      %v713 = vpack.c.b16 %v666, %v665
      %v714 = vpack.c.b16 %v668, %v667
      %v715 = vpack.c.b16 %v670, %v669
      %v716 = vpack.c.b16 %v672, %v671
      %v717 = vpack.c.b16 %v674, %v673
      %v718 = vpack.c.b16 %v676, %v675
      %v719 = vpack.c.b16 %v678, %v677
      %v720 = vpack.c.b16 %v680, %v679
      %v721 = vpack.c.b16 %v682, %v681
      %v722 = vpack.c.b16 %v684, %v683
      %v723 = vpack.c.b16 %v686, %v685
      %v724 = vpack.c.b16 %v688, %v687
      %v725 = vpack.c.b16 %v690, %v689
      %v726 = vpack.c.b16 %v692, %v691
      %v727 = vpack.c.b16 %v694, %v693
      %v728 = vpack.c.b16 %v696, %v695
      %v729 = vpack.c.b16 %v698, %v697
      %v730 = vpack.c.b16 %v700, %v699
      %v731 = vpack.c.b16 %v702, %v701
      %v732 = vpack.c.b16 %v704, %v703
      %v733 = vpack.c.b16 %v706, %v705
      %v734 = vpack.c.b16 %v708, %v707
      %v735 = vpack.c.b16 %v710, %v709
      %v736 = vpack.c.b16 %v712, %v711
      %761 = vmatpush.bf16.msra.mxu0 %v720
      %762 = vmatpush.bf16.msra.mxu0 %v719
      %763 = vmatpush.bf16.msra.mxu0 %v718
      %764 = vmatpush.bf16.msra.mxu0 %v717
      %765 = vmatpush.bf16.msra.mxu0 %v716
      %766 = vmatpush.bf16.msra.mxu0 %v715
      %767 = vmatpush.bf16.msra.mxu0 %v714
      %768 = vmatpush.bf16.msra.mxu0 %v713
      %769 = vmatmul.bf16.gmra.mxu0 %v605
      %v770 = vpop.f32.mrf.mxu0
      %v771 = vadd.f32 %v596, %v770
      %v772 = vpop.f32.mrf.mxu0
      %v773 = vadd.f32 %v598, %v772
      %774 = vmatmul.bf16.gmra.mxu0 %v608
      %v775 = vpop.f32.mrf.mxu0
      %v776 = vadd.f32 %v601, %v775
      %v777 = vpop.f32.mrf.mxu0
      %v778 = vadd.f32 %v603, %v777
      %779 = vdwg.mxu0
      %780 = vmatpush.bf16.msra.mxu0 %v728
      %781 = vmatpush.bf16.msra.mxu0 %v727
      %782 = vmatpush.bf16.msra.mxu0 %v726
      %783 = vmatpush.bf16.msra.mxu0 %v725
      %784 = vmatpush.bf16.msra.mxu0 %v724
      %785 = vmatpush.bf16.msra.mxu0 %v723
      %786 = vmatpush.bf16.msra.mxu0 %v722
      %787 = vmatpush.bf16.msra.mxu0 %v721
      %788 = vmatmul.bf16.gmra.mxu0 %v606
      %v789 = vpop.f32.mrf.mxu0
      %v790 = vadd.f32 %v771, %v789
      %v791 = vpop.f32.mrf.mxu0
      %v792 = vadd.f32 %v773, %v791
      %793 = vmatmul.bf16.gmra.mxu0 %v609
      %v794 = vpop.f32.mrf.mxu0
      %v795 = vadd.f32 %v776, %v794
      %v796 = vpop.f32.mrf.mxu0
      %v797 = vadd.f32 %v778, %v796
      %798 = vdwg.mxu0
      %799 = vmatpush.bf16.msra.mxu0 %v736
      %800 = vmatpush.bf16.msra.mxu0 %v735
      %801 = vmatpush.bf16.msra.mxu0 %v734
      %802 = vmatpush.bf16.msra.mxu0 %v733
      %803 = vmatpush.bf16.msra.mxu0 %v732
      %804 = vmatpush.bf16.msra.mxu0 %v731
      %805 = vmatpush.bf16.msra.mxu0 %v730
      %806 = vmatpush.bf16.msra.mxu0 %v729
      %807 = vmatmul.bf16.gmra.mxu0 %v607
      %v808 = vpop.f32.mrf.mxu0
      %v809 = vadd.f32 %v790, %v808
      %v810 = vpop.f32.mrf.mxu0
      %v811 = vadd.f32 %v792, %v810
      %812 = vmatmul.bf16.gmra.mxu0 %v610
      %v813 = vpop.f32.mrf.mxu0
      %v814 = vadd.f32 %v795, %v813
      %v815 = vpop.f32.mrf.mxu0
      %v816 = vadd.f32 %v797, %v815
      %817 = vdwg.mxu0
      %v818 = vunpack.c.l.b16 %v260
      %v819 = vunpack.c.l.b16 %v284
      %s820 = scalar_lea.vmem %s1, 384
      %v821 = vld [vmem:[%s820] sm:$0xf]
      %v822 = vld [vmem:[%s820 + $0x4] sm:$0xf]
      %v823 = vld [vmem:[%s820 + $0x8] sm:$0xf]
      %v824 = vld [vmem:[%s820 + $0xc] sm:$0xf]
      %v825 = vld [vmem:[%s820 + $0x10] sm:$0xf]
      %v826 = vld [vmem:[%s820 + $0x14] sm:$0xf]
      %v827 = vld [vmem:[%s820 + $0x18] sm:$0xf]
      %v828 = vld [vmem:[%s820 + $0x1c] sm:$0xf]
      %v829 = vld [vmem:[%s820 + $0x20] sm:$0xf]
      %v830 = vld [vmem:[%s820 + $0x24] sm:$0xf]
      %v831 = vld [vmem:[%s820 + $0x28] sm:$0xf]
      %v832 = vld [vmem:[%s820 + $0x2c] sm:$0xf]
      %v833 = vld [vmem:[%s820 + $0x30] sm:$0xf]
      %v834 = vld [vmem:[%s820 + $0x34] sm:$0xf]
      %v835 = vld [vmem:[%s820 + $0x38] sm:$0xf]
      %v836 = vld [vmem:[%s820 + $0x3c] sm:$0xf]
      %v837 = vld [vmem:[%s820 + $0x40] sm:$0xf]
      %v838 = vld [vmem:[%s820 + $0x44] sm:$0xf]
      %v839 = vld [vmem:[%s820 + $0x48] sm:$0xf]
      %v840 = vld [vmem:[%s820 + $0x4c] sm:$0xf]
      %v841 = vld [vmem:[%s820 + $0x50] sm:$0xf]
      %v842 = vld [vmem:[%s820 + $0x54] sm:$0xf]
      %v843 = vld [vmem:[%s820 + $0x58] sm:$0xf]
      %v844 = vld [vmem:[%s820 + $0x5c] sm:$0xf]
      %v845 = vld [vmem:[%s820 + $0x60] sm:$0xf]
      %v846 = vld [vmem:[%s820 + $0x64] sm:$0xf]
      %v847 = vld [vmem:[%s820 + $0x68] sm:$0xf]
      %v848 = vld [vmem:[%s820 + $0x6c] sm:$0xf]
      %v849 = vld [vmem:[%s820 + $0x70] sm:$0xf]
      %v850 = vld [vmem:[%s820 + $0x74] sm:$0xf]
      %v851 = vld [vmem:[%s820 + $0x78] sm:$0xf]
      %v852 = vld [vmem:[%s820 + $0x7c] sm:$0xf]
      %v853 = vld [vmem:[%s820 + $0x80] sm:$0xf]
      %v854 = vld [vmem:[%s820 + $0x84] sm:$0xf]
      %v855 = vld [vmem:[%s820 + $0x88] sm:$0xf]
      %v856 = vld [vmem:[%s820 + $0x8c] sm:$0xf]
      %v857 = vld [vmem:[%s820 + $0x90] sm:$0xf]
      %v858 = vld [vmem:[%s820 + $0x94] sm:$0xf]
      %v859 = vld [vmem:[%s820 + $0x98] sm:$0xf]
      %v860 = vld [vmem:[%s820 + $0x9c] sm:$0xf]
      %v861 = vld [vmem:[%s820 + $0xa0] sm:$0xf]
      %v862 = vld [vmem:[%s820 + $0xa4] sm:$0xf]
      %v863 = vld [vmem:[%s820 + $0xa8] sm:$0xf]
      %v864 = vld [vmem:[%s820 + $0xac] sm:$0xf]
      %v865 = vld [vmem:[%s820 + $0xb0] sm:$0xf]
      %v866 = vld [vmem:[%s820 + $0xb4] sm:$0xf]
      %v867 = vld [vmem:[%s820 + $0xb8] sm:$0xf]
      %v868 = vld [vmem:[%s820 + $0xbc] sm:$0xf]
      %v869 = vpack.c.b16 %v211, %v209
      %v870 = vpack.c.b16 %v818, %v341
      %v871 = vpack.c.b16 %v819, %v342
      %v923 = vunpack.c.l.b16 %v821
      %v924 = vunpack.c.l.b16 %v822
      %v925 = vunpack.c.l.b16 %v823
      %v926 = vunpack.c.l.b16 %v824
      %v927 = vunpack.c.l.b16 %v825
      %v928 = vunpack.c.l.b16 %v826
      %v929 = vunpack.c.l.b16 %v827
      %v930 = vunpack.c.l.b16 %v828
      %v931 = vunpack.c.l.b16 %v829
      %v932 = vunpack.c.l.b16 %v830
      %v933 = vunpack.c.l.b16 %v831
      %v934 = vunpack.c.l.b16 %v832
      %v935 = vunpack.c.l.b16 %v833
      %v936 = vunpack.c.l.b16 %v834
      %v937 = vunpack.c.l.b16 %v835
      %v938 = vunpack.c.l.b16 %v836
      %v939 = vunpack.c.l.b16 %v837
      %v940 = vunpack.c.l.b16 %v838
      %v941 = vunpack.c.l.b16 %v839
      %v942 = vunpack.c.l.b16 %v840
      %v943 = vunpack.c.l.b16 %v841
      %v944 = vunpack.c.l.b16 %v842
      %v945 = vunpack.c.l.b16 %v843
      %v946 = vunpack.c.l.b16 %v844
      %v947 = vunpack.c.l.b16 %v845
      %v948 = vunpack.c.l.b16 %v846
      %v949 = vunpack.c.l.b16 %v847
      %v950 = vunpack.c.l.b16 %v848
      %v951 = vunpack.c.l.b16 %v849
      %v952 = vunpack.c.l.b16 %v850
      %v953 = vunpack.c.l.b16 %v851
      %v954 = vunpack.c.l.b16 %v852
      %v955 = vunpack.c.l.b16 %v853
      %v956 = vunpack.c.l.b16 %v854
      %v957 = vunpack.c.l.b16 %v855
      %v958 = vunpack.c.l.b16 %v856
      %v959 = vunpack.c.l.b16 %v857
      %v960 = vunpack.c.l.b16 %v858
      %v961 = vunpack.c.l.b16 %v859
      %v962 = vunpack.c.l.b16 %v860
      %v963 = vunpack.c.l.b16 %v861
      %v964 = vunpack.c.l.b16 %v862
      %v965 = vunpack.c.l.b16 %v863
      %v966 = vunpack.c.l.b16 %v864
      %v967 = vunpack.c.l.b16 %v865
      %v968 = vunpack.c.l.b16 %v866
      %v969 = vunpack.c.l.b16 %v867
      %v970 = vunpack.c.l.b16 %v868
      %v971 = vpack.c.b16 %v924, %v923
      %v972 = vpack.c.b16 %v926, %v925
      %v973 = vpack.c.b16 %v928, %v927
      %v974 = vpack.c.b16 %v930, %v929
      %v975 = vpack.c.b16 %v932, %v931
      %v976 = vpack.c.b16 %v934, %v933
      %v977 = vpack.c.b16 %v936, %v935
      %v978 = vpack.c.b16 %v938, %v937
      %v979 = vpack.c.b16 %v940, %v939
      %v980 = vpack.c.b16 %v942, %v941
      %v981 = vpack.c.b16 %v944, %v943
      %v982 = vpack.c.b16 %v946, %v945
      %v983 = vpack.c.b16 %v948, %v947
      %v984 = vpack.c.b16 %v950, %v949
      %v985 = vpack.c.b16 %v952, %v951
      %v986 = vpack.c.b16 %v954, %v953
      %v987 = vpack.c.b16 %v956, %v955
      %v988 = vpack.c.b16 %v958, %v957
      %v989 = vpack.c.b16 %v960, %v959
      %v990 = vpack.c.b16 %v962, %v961
      %v991 = vpack.c.b16 %v964, %v963
      %v992 = vpack.c.b16 %v966, %v965
      %v993 = vpack.c.b16 %v968, %v967
      %v994 = vpack.c.b16 %v970, %v969
      %1019 = vmatpush.bf16.msra.mxu0 %v978
      %1020 = vmatpush.bf16.msra.mxu0 %v977
      %1021 = vmatpush.bf16.msra.mxu0 %v976
      %1022 = vmatpush.bf16.msra.mxu0 %v975
      %1023 = vmatpush.bf16.msra.mxu0 %v974
      %1024 = vmatpush.bf16.msra.mxu0 %v973
      %1025 = vmatpush.bf16.msra.mxu0 %v972
      %1026 = vmatpush.bf16.msra.mxu0 %v971
      %1027 = vmatmul.bf16.gmra.mxu0 %v608
      %v1028 = vpop.f32.mrf.mxu0
      %v1029 = vadd.f32 0.0, %v1028
      %v1030 = vpop.f32.mrf.mxu0
      %v1031 = vadd.f32 0.0, %v1030
      %1032 = vmatmul.bf16.gmra.mxu0 %v869
      %v1033 = vpop.f32.mrf.mxu0
      %v1034 = vadd.f32 0.0, %v1033
      %v1035 = vpop.f32.mrf.mxu0
      %v1036 = vadd.f32 0.0, %v1035
      %1037 = vdwg.mxu0
      %1038 = vmatpush.bf16.msra.mxu0 %v986
      %1039 = vmatpush.bf16.msra.mxu0 %v985
      %1040 = vmatpush.bf16.msra.mxu0 %v984
      %1041 = vmatpush.bf16.msra.mxu0 %v983
      %1042 = vmatpush.bf16.msra.mxu0 %v982
      %1043 = vmatpush.bf16.msra.mxu0 %v981
      %1044 = vmatpush.bf16.msra.mxu0 %v980
      %1045 = vmatpush.bf16.msra.mxu0 %v979
      %1046 = vmatmul.bf16.gmra.mxu0 %v609
      %v1047 = vpop.f32.mrf.mxu0
      %v1048 = vadd.f32 %v1029, %v1047
      %v1049 = vpop.f32.mrf.mxu0
      %v1050 = vadd.f32 %v1031, %v1049
      %1051 = vmatmul.bf16.gmra.mxu0 %v870
      %v1052 = vpop.f32.mrf.mxu0
      %v1053 = vadd.f32 %v1034, %v1052
      %v1054 = vpop.f32.mrf.mxu0
      %v1055 = vadd.f32 %v1036, %v1054
      %1056 = vdwg.mxu0
      %1057 = vmatpush.bf16.msra.mxu0 %v994
      %1058 = vmatpush.bf16.msra.mxu0 %v993
      %1059 = vmatpush.bf16.msra.mxu0 %v992
      %1060 = vmatpush.bf16.msra.mxu0 %v991
      %1061 = vmatpush.bf16.msra.mxu0 %v990
      %1062 = vmatpush.bf16.msra.mxu0 %v989
      %1063 = vmatpush.bf16.msra.mxu0 %v988
      %1064 = vmatpush.bf16.msra.mxu0 %v987
      %1065 = vmatmul.bf16.gmra.mxu0 %v610
      %v1066 = vpop.f32.mrf.mxu0
      %v1067 = vadd.f32 %v1048, %v1066
      %v1068 = vpop.f32.mrf.mxu0
      %v1069 = vadd.f32 %v1050, %v1068
      %1070 = vmatmul.bf16.gmra.mxu0 %v871
      %v1071 = vpop.f32.mrf.mxu0
      %v1072 = vadd.f32 %v1053, %v1071
      %v1073 = vpop.f32.mrf.mxu0
      %v1074 = vadd.f32 %v1055, %v1073
      %1075 = vdwg.mxu0
      %v1076 = vadd.f32 %v809, %v1067
      %v1077 = vadd.f32 %v811, %v1069
      %v1078 = vadd.f32 %v814, %v1072
      %v1079 = vadd.f32 %v816, %v1074
      %v1080 = vld [vmem:[%s2] sm:$0x1]
      %v1082 = vperm.slane %v1080, 0
      %v1084 = vadd.f32 %v1076, %v1082
      %v1085 = vadd.f32 %v1077, %v1082
      %v1086 = vadd.f32 %v1078, %v1082
      %v1087 = vadd.f32 %v1079, %v1082
      %v1088 = vmax.f32 %v1084, 0.0
      %v1089 = vmax.f32 %v1085, 0.0
      %v1090 = vmax.f32 %v1086, 0.0
      %v1091 = vmax.f32 %v1087, 0.0
      %v1092 = vpack.c.bf16 %v1088, %v1088
      %v1093 = vpack.c.bf16 %v1089, %v1089
      %v1094 = vpack.c.bf16 %v1090, %v1090
      %v1095 = vpack.c.bf16 %v1091, %v1091
      %1096 = vst [vmem:[%s170] sm:$0xf] %v1092
      %1097 = vst [vmem:[%s170 + $0x4] sm:$0xf] %v1093
      %1098 = vst [vmem:[%s170 + $0x8] sm:$0xf] %v1094
      %1099 = vst [vmem:[%s170 + $0xc] sm:$0xf] %v1095
      %p1100 = scmp.lt.s32.totalorder %s14, 1
      %s1101 = scalar_select %p1100, %s14, 1
      %s1102 = smul.addr %s1101, 4
      %s1103 = smul.addr %s1102, 4
      %s1104 = scalar_lea.vmem %s3, %s1103
      // Predicated region
      $region33: #{crnn_forward.10} parent=31 // pred_check
        %p1105 = pneg %p100
      $region34: #{crnn_forward.10} parent=31 // pred_check_branch
        %1107 = sbr.rel (%p1105) target = $region36
      $region35: #{crnn_forward.10} parent=31 // pred_region
        _
      $region36: #{crnn_forward.10} parent=31 // pred_fallthru
        _
    $region32: #{crnn_forward.10} parent=5 // pred_fallthru
      _
    %p1108 = scmp.le.s32.totalorder 2, %s9
    // Predicated region
    $region37: #{crnn_forward.10} parent=5 // pred_check
      %p1109 = pneg %p1108
    $region38: #{crnn_forward.10} parent=5 // pred_check_branch
      %1111 = sbr.rel (%p1109) target = $region40
    $region39: #{crnn_forward.10} parent=5 // pred_region
      %s1112 = ssub.s32 %s9, 2
      // Predicated region
      $region41: #{crnn_forward.10} parent=39 // pred_check
        %p1113 = pneg %p106
      $region42: #{crnn_forward.10} parent=39 // pred_check_branch
        %1115 = sbr.rel (%p1113) target = $region44
      $region43: #{crnn_forward.10} parent=39 // pred_region
        %p1116 = scmp.lt.s32.totalorder %s15, 1
        %s1117 = scalar_select %p1116, %s15, 1
        %s1118 = smul.addr %s1117, 4
        %s1119 = smul.addr %s1118, 4
        %s1120 = scalar_lea.vmem %s3, %s1119
      $region44: #{crnn_forward.10} parent=39 // pred_fallthru
        _
    $region40: #{crnn_forward.10} parent=5 // pred_fallthru
      _
  $region6: #{crnn_forward.10} parent=0 // loop_footer
    %s13 = sadd.s32 1, %s9
  $region7: #{crnn_forward.10} parent=0 // loop_footer_branch
    %8 = sbr.rel target = $region3
  $region8: #{crnn_forward.10} parent=0 // loop_exit
    _

// kernel: crnn_forward.11
$region0: #{crnn_forward.11}
  #allocation0 [shape = 'u32[]', space=smem, size = 0x4, offset = 0x4, fixed_abs, tag = 'smem constant byte address 0x4 - core index']
  #allocation1 [shape = 'u32[72,128]{1,0:T(1,128)}', space=vmem, size = 0x9000, scoped, tag = 'internal scratch']
  %s0 = inlined_call_operand.vmem [shape: bf16[8,256], index: 0, kind: input, shape index: {}]
  %s1 = inlined_call_operand.hbm [shape: bf16[256,2048], index: 1, kind: input, shape index: {}]
  %s2 = inlined_call_operand.vmem [shape: f32[1,2048], index: 2, kind: input, shape index: {}]
  %s3 = inlined_call_operand.vmem [shape: bf16[8,2048], index: 3, kind: output, shape index: {}]
  %s4 = sld [smem:[#allocation0]]
  $region49: #{crnn_forward.11} parent=0
    _
  %s6 = ssub.s32 1, %s4
  %s7 = scalar_select 0, %s6, %s4
  $region1: #{crnn_forward.11} parent=0
    #allocation2 [shape = 'u8[524288]{0}', space=vmem, size = 0x80000, scoped, tag = 'input window, operand 1']
    #allocation3 [shape = 's32[2]{0}', space=sflag, size = 0x8, scoped, tag = 'scoped memory for crnn_forward.11']
    %8 = vsyncpa [#allocation3], 0
    %s9 = scalar_lea.sflag [#allocation3], 1
    %10 = vsyncpa %s9, 0
    loop: start=0, step=1, limit=6
    $region2: #{crnn_forward.11} parent=1 // loop_pre_header
      _
    $region3: #{crnn_forward.11} parent=1 // loop_header
      %s12 = sphi 0, %s16
      %p13 = scmp.ge.s32.totalorder %s12, 6
      %s19 = sphi 0, %s31
      %s20 = sphi 0, %s27
      %s21 = sphi 0, %s19
      %s22 = sphi 0, %s20
      %s23 = sphi 0, %s21
      %s24 = sphi 0, %s22
      %s34 = sphi 0, %s36
      %s37 = sphi 0, %s34
      %s38 = sphi 0, %s37
      %s54 = sphi 0, %s38
      %s60 = sphi 0, %s62
      %s63 = sphi 0, %s60
      %s64 = sphi 0, %s63
      %s80 = sphi 0, %s64
      %s86 = sphi 0, %s88
      %s89 = sphi 0, %s86
      %s90 = sphi 0, %s89
      %s106 = sphi 0, %s90
      %s114 = sphi 0, %s116
      %s117 = sphi 0, %s114
      %s118 = sphi 0, %s117
      %s134 = sphi 0, %s118
    $region4: #{crnn_forward.11} parent=1 // loop_header_branch
      %15 = sbr.rel (%p13) target = $region8
    $region5: #{crnn_forward.11} parent=1 // loop_body
      %s17 = ssub.s32 %s12, 1
      %s18 = ssub.s32 %s12, 2
      %s25 = sadd.s32 1, %s20
      %p26 = scmp.ge.s32.totalorder %s25, 4
      %s27 = scalar_select %p26, 0, %s25
      %s28 = sadd.s32 1, %s19
      %s29 = scalar_select %p26, %s28, %s19
      %p30 = scmp.ge.s32.totalorder %s29, 1
      %s31 = scalar_select %p30, 0, %s29
      %s32 = ssub.s32 %s19, %s31
      %p33 = scmp.eq.s32.totalorder %s32, 0
      %s35 = sadd.s32 %s34, 1
      %s36 = scalar_select %p33, %s34, %s35
      %p39 = pneg %p33
      %p40 = scmp.eq.s32.totalorder %s12, 3
      %p41 = por %p39, %p40
      %p42 = scmp.ne.s32.totalorder %s34, %s37
      %p43 = scmp.eq.s32.totalorder %s12, 0
      %p44 = por %p42, %p43
      %p45 = scmp.ne.s32.totalorder %s34, %s37
      %p46 = scmp.eq.s32.totalorder %s17, 3
      %p47 = por %p45, %p46
      %p48 = scmp.ne.s32.totalorder %s37, %s38
      %p49 = scmp.eq.s32.totalorder %s17, 0
      %p50 = por %p48, %p49
      %p51 = scmp.ne.s32.totalorder %s37, %s38
      %p52 = scmp.eq.s32.totalorder %s18, 3
      %p53 = por %p51, %p52
      %p55 = scmp.ne.s32.totalorder %s38, %s54
      %p56 = scmp.eq.s32.totalorder %s18, 0
      %p57 = por %p55, %p56
      %s58 = ssub.s32 %s20, %s27
      %p59 = scmp.eq.s32.totalorder %s58, 0
      %s61 = sadd.s32 %s60, 1
      %s62 = scalar_select %p59, %s60, %s61
      %p65 = pneg %p59
      %p66 = scmp.eq.s32.totalorder %s12, 3
      %p67 = por %p65, %p66
      %p68 = scmp.ne.s32.totalorder %s60, %s63
      %p69 = scmp.eq.s32.totalorder %s12, 0
      %p70 = por %p68, %p69
      %p71 = scmp.ne.s32.totalorder %s60, %s63
      %p72 = scmp.eq.s32.totalorder %s17, 3
      %p73 = por %p71, %p72
      %p74 = scmp.ne.s32.totalorder %s63, %s64
      %p75 = scmp.eq.s32.totalorder %s17, 0
      %p76 = por %p74, %p75
      %p77 = scmp.ne.s32.totalorder %s63, %s64
      %p78 = scmp.eq.s32.totalorder %s18, 3
      %p79 = por %p77, %p78
      %p81 = scmp.ne.s32.totalorder %s64, %s80
      %p82 = scmp.eq.s32.totalorder %s18, 0
      %p83 = por %p81, %p82
      %s84 = ssub.s32 %s20, %s27
      %p85 = scmp.eq.s32.totalorder %s84, 0
      %s87 = sadd.s32 %s86, 1
      %s88 = scalar_select %p85, %s86, %s87
      %p91 = pneg %p85
      %p92 = scmp.eq.s32.totalorder %s12, 3
      %p93 = por %p91, %p92
      %p94 = scmp.ne.s32.totalorder %s86, %s89
      %p95 = scmp.eq.s32.totalorder %s12, 0
      %p96 = por %p94, %p95
      %p97 = scmp.ne.s32.totalorder %s86, %s89
      %p98 = scmp.eq.s32.totalorder %s17, 3
      %p99 = por %p97, %p98
      %p100 = scmp.ne.s32.totalorder %s89, %s90
      %p101 = scmp.eq.s32.totalorder %s17, 0
      %p102 = por %p100, %p101
      %p103 = scmp.ne.s32.totalorder %s89, %s90
      %p104 = scmp.eq.s32.totalorder %s18, 3
      %p105 = por %p103, %p104
      %p107 = scmp.ne.s32.totalorder %s90, %s106
      %p108 = scmp.eq.s32.totalorder %s18, 0
      %p109 = por %p107, %p108
      %s110 = ssub.s32 %s19, %s31
      %s111 = ssub.s32 %s20, %s27
      %s112 = sor.u32 %s110, %s111
      %p113 = scmp.eq.s32.totalorder %s112, 0
      %s115 = sadd.s32 %s114, 1
      %s116 = scalar_select %p113, %s114, %s115
      %p119 = pneg %p113
      %p120 = scmp.eq.s32.totalorder %s12, 3
      %p121 = por %p119, %p120
      %p122 = scmp.ne.s32.totalorder %s114, %s117
      %p123 = scmp.eq.s32.totalorder %s12, 0
      %p124 = por %p122, %p123
      %p125 = scmp.ne.s32.totalorder %s114, %s117
      %p126 = scmp.eq.s32.totalorder %s17, 3
      %p127 = por %p125, %p126
      %p128 = scmp.ne.s32.totalorder %s117, %s118
      %p129 = scmp.eq.s32.totalorder %s17, 0
      %p130 = por %p128, %p129
      %p131 = scmp.ne.s32.totalorder %s117, %s118
      %p132 = scmp.eq.s32.totalorder %s18, 3
      %p133 = por %p131, %p132
      %p135 = scmp.ne.s32.totalorder %s118, %s134
      %p136 = scmp.eq.s32.totalorder %s18, 0
      %p137 = por %p135, %p136
      %p138 = scmp.le.s32.totalorder 1, %s12
      %p139 = scmp.lt.s32.totalorder %s12, 5
      %p140 = pnand %p138, %p139
      %p141 = pneg %p140
      // Predicated region
      $region9: #{crnn_forward.11} parent=5 // pred_check
        _
      $region10: #{crnn_forward.11} parent=5 // pred_check_branch
        %143 = sbr.rel (%p140) target = $region12
      $region11: #{crnn_forward.11} parent=5 // pred_region
        %s144 = ssub.s32 %s12, 1
        // Predicated region
        $region13: #{crnn_forward.11} parent=11 // pred_check
          %p145 = pneg %p50
        $region14: #{crnn_forward.11} parent=11 // pred_check_branch
          %147 = sbr.rel (%p145) target = $region16
        $region15: #{crnn_forward.11} parent=11 // pred_region
          %p148 = scmp.lt.s32.totalorder %s21, 0
          %s149 = scalar_select %p148, %s21, 0
          %s150 = smul.addr %s149, 2
          %s151 = smul.addr %s150, 4
          %s152 = scalar_lea.vmem %s0, %s151
        $region16: #{crnn_forward.11} parent=11 // pred_fallthru
          _
      $region12: #{crnn_forward.11} parent=5 // pred_fallthru
        _
      %p153 = scmp.lt.s32.totalorder %s12, 4
      // Predicated region
      $region17: #{crnn_forward.11} parent=5 // pred_check
        %p154 = pneg %p153
      $region18: #{crnn_forward.11} parent=5 // pred_check_branch
        %156 = sbr.rel (%p154) target = $region20
      $region19: #{crnn_forward.11} parent=5 // pred_region
        // Predicated region
        $region21: #{crnn_forward.11} parent=19 // pred_check
          %p157 = pneg %p70
        $region22: #{crnn_forward.11} parent=19 // pred_check_branch
          %159 = sbr.rel (%p157) target = $region24
        $region23: #{crnn_forward.11} parent=19 // pred_region
          %s160 = sand.u32 %s60, 1
          %s161 = scalar_lea.sflag [#allocation3], %s160
          %s162 = sand.u32 %s60, 1
          %s163 = smul.addr %s162, 512
          %s164 = scalar_lea.vmem [#allocation2], %s163
          %s165 = smul.u32 4, %s20
          %167 = vsyncadd %s161, 0
          %s168 = smul.addr %s165, 4
          %s169 = scalar_lea.hbm %s1, %s168
          %s170 = sshll.u32 %s169, 4
          %s171 = int_to_ptr.hbm [resolvable:$true] %s170
          %s172 = sshll.u32 %s164, 4
          %s173 = int_to_ptr.vmem [resolvable:$true] %s172
          %178 = dma.hbm_to_vmem [thread:$0]  %s171, 8192, %s173, %s161, 1024, 256, 16
        $region24: #{crnn_forward.11} parent=19 // pred_fallthru
          _
        // Predicated region
        $region25: #{crnn_forward.11} parent=19 // pred_check
          %p179 = pneg %p96
        $region26: #{crnn_forward.11} parent=19 // pred_check_branch
          %181 = sbr.rel (%p179) target = $region28
        $region27: #{crnn_forward.11} parent=19 // pred_region
          %s182 = smul.u32 4, %s20
          %p183 = scmp.lt.s32.totalorder %s182, 15
          %s184 = scalar_select %p183, %s182, 15
          %s185 = scalar_lea.vmem %s2, %s184
          %s186 = smul.u32 4, %s20
        $region28: #{crnn_forward.11} parent=19 // pred_fallthru
          _
      $region20: #{crnn_forward.11} parent=5 // pred_fallthru
        _
      %p187 = scmp.le.s32.totalorder 1, %s12
      %p188 = scmp.lt.s32.totalorder %s12, 5
      %p189 = pnand %p187, %p188
      %p190 = pneg %p189
      // Predicated region
      $region29: #{crnn_forward.11} parent=5 // pred_check
        _
      $region30: #{crnn_forward.11} parent=5 // pred_check_branch
        %192 = sbr.rel (%p189) target = $region32
      $region31: #{crnn_forward.11} parent=5 // pred_region
        %s193 = ssub.s32 %s12, 1
        %s194 = sand.u32 %s63, 1
        %s195 = scalar_lea.sflag [#allocation3], %s194
        %s196 = sand.u32 %s63, 1
        %s197 = smul.addr %s196, 512
        %s198 = scalar_lea.vmem [#allocation2], %s197
        // Predicated region
        $region33: #{crnn_forward.11} parent=31 // pred_check
          %p199 = pneg %p76
        $region34: #{crnn_forward.11} parent=31 // pred_check_branch
          %201 = sbr.rel (%p199) target = $region36
        $region35: #{crnn_forward.11} parent=31 // pred_region
          %203 = dma.done %s195, 8192
        $region36: #{crnn_forward.11} parent=31 // pred_fallthru
          _
        %p204 = scmp.lt.s32.totalorder %s21, 0
        %s205 = scalar_select %p204, %s21, 0
        %s206 = smul.addr %s205, 2
        %s207 = smul.addr %s206, 4
        %s208 = scalar_lea.vmem %s0, %s207
        %p209 = pneg %p50
        %p210 = pneg %p47
        %s211 = sand.u32 %s63, 1
        %s212 = scalar_lea.sflag [#allocation3], %s211
        %s213 = sand.u32 %s63, 1
        %s214 = smul.addr %s213, 512
        %s215 = scalar_lea.vmem [#allocation2], %s214
        %p216 = pneg %p76
        %p217 = pneg %p73
        %s218 = smul.u32 4, %s22
        %p219 = scmp.lt.s32.totalorder %s218, 15
        %s220 = scalar_select %p219, %s218, 15
        %s221 = scalar_lea.vmem %s2, %s220
        %p222 = pneg %p102
        %p223 = pneg %p99
        %p224 = pneg %p130
        %p225 = pneg %p127
        %s226 = smul.u32 4, %s22
        %p227 = scmp.lt.s32.totalorder %s21, 0
        %s228 = scalar_select %p227, %s21, 0
        %p229 = scmp.lt.s32.totalorder %s226, 15
        %s230 = scalar_select %p229, %s226, 15
        %s231 = smul.addr %s228, 16
        %s232 = sadd.s32 %s230, %s231
        %s233 = smul.addr %s232, 4
        %s234 = scalar_lea.vmem %s3, %s233
        %p235 = scmp.lt.s32.totalorder %s21, 0
        %s236 = scalar_select %p235, %s21, 0
        %s237 = smul.addr %s236, 2
        %s238 = smul.addr %s237, 4
        %s239 = scalar_lea.vmem %s0, %s238
        %s240 = smul.u32 4, %s22
        %s241 = smul.u32 4, %s22
        %p242 = scmp.lt.s32.totalorder %s241, 15
        %s243 = scalar_select %p242, %s241, 15
        %s244 = scalar_lea.vmem %s2, %s243
        %s245 = smul.u32 4, %s22
        %s246 = smul.u32 4, %s22
        %p247 = scmp.lt.s32.totalorder %s21, 0
        %s248 = scalar_select %p247, %s21, 0
        %p249 = scmp.lt.s32.totalorder %s246, 15
        %s250 = scalar_select %p249, %s246, 15
        %s251 = smul.addr %s248, 16
        %s252 = sadd.s32 %s250, %s251
        %s253 = smul.addr %s252, 4
        %s254 = scalar_lea.vmem %s3, %s253
        %s255 = smul.u32 4, %s22
        %v256 = vld [vmem:[%s239] sm:$0xff]
        %v257 = vld [vmem:[%s198] sm:$0xff]
        %v258 = vld [vmem:[%s198 + $0x8] sm:$0xff]
        %v259 = vld [vmem:[%s198 + $0x10] sm:$0xff]
        %v260 = vld [vmem:[%s198 + $0x18] sm:$0xff]
        %v261 = vld [vmem:[%s198 + $0x20] sm:$0xff]
        %v262 = vld [vmem:[%s198 + $0x28] sm:$0xff]
        %v263 = vld [vmem:[%s198 + $0x30] sm:$0xff]
        %v264 = vld [vmem:[%s198 + $0x38] sm:$0xff]
        %v265 = vld [vmem:[%s198 + $0x40] sm:$0xff]
        %v266 = vld [vmem:[%s198 + $0x48] sm:$0xff]
        %v267 = vld [vmem:[%s198 + $0x50] sm:$0xff]
        %v268 = vld [vmem:[%s198 + $0x58] sm:$0xff]
        %v269 = vld [vmem:[%s198 + $0x60] sm:$0xff]
        %v270 = vld [vmem:[%s198 + $0x68] sm:$0xff]
        %v271 = vld [vmem:[%s198 + $0x70] sm:$0xff]
        %v272 = vld [vmem:[%s198 + $0x78] sm:$0xff]
        %v273 = vld [vmem:[%s198 + $0x80] sm:$0xff]
        %v274 = vld [vmem:[%s198 + $0x88] sm:$0xff]
        %v275 = vld [vmem:[%s198 + $0x90] sm:$0xff]
        %v276 = vld [vmem:[%s198 + $0x98] sm:$0xff]
        %v277 = vld [vmem:[%s198 + $0xa0] sm:$0xff]
        %v278 = vld [vmem:[%s198 + $0xa8] sm:$0xff]
        %v279 = vld [vmem:[%s198 + $0xb0] sm:$0xff]
        %v280 = vld [vmem:[%s198 + $0xb8] sm:$0xff]
        %v281 = vld [vmem:[%s198 + $0xc0] sm:$0xff]
        %v282 = vld [vmem:[%s198 + $0xc8] sm:$0xff]
        %v283 = vld [vmem:[%s198 + $0xd0] sm:$0xff]
        %v284 = vld [vmem:[%s198 + $0xd8] sm:$0xff]
        %v285 = vld [vmem:[%s198 + $0xe0] sm:$0xff]
        %v286 = vld [vmem:[%s198 + $0xe8] sm:$0xff]
        %v287 = vld [vmem:[%s198 + $0xf0] sm:$0xff]
        %v288 = vld [vmem:[%s198 + $0xf8] sm:$0xff]
        %v289 = vld [vmem:[%s198 + $0x100] sm:$0xff]
        %v290 = vld [vmem:[%s198 + $0x108] sm:$0xff]
        %v291 = vld [vmem:[%s198 + $0x110] sm:$0xff]
        %v292 = vld [vmem:[%s198 + $0x118] sm:$0xff]
        %v293 = vld [vmem:[%s198 + $0x120] sm:$0xff]
        %v294 = vld [vmem:[%s198 + $0x128] sm:$0xff]
        %v295 = vld [vmem:[%s198 + $0x130] sm:$0xff]
        %v296 = vld [vmem:[%s198 + $0x138] sm:$0xff]
        %v297 = vld [vmem:[%s198 + $0x140] sm:$0xff]
        %v298 = vld [vmem:[%s198 + $0x148] sm:$0xff]
        %v299 = vld [vmem:[%s198 + $0x150] sm:$0xff]
        %v300 = vld [vmem:[%s198 + $0x158] sm:$0xff]
        %v301 = vld [vmem:[%s198 + $0x160] sm:$0xff]
        %v302 = vld [vmem:[%s198 + $0x168] sm:$0xff]
        %v303 = vld [vmem:[%s198 + $0x170] sm:$0xff]
        %v304 = vld [vmem:[%s198 + $0x178] sm:$0xff]
        %v305 = vld [vmem:[%s198 + $0x180] sm:$0xff]
        %v306 = vld [vmem:[%s198 + $0x188] sm:$0xff]
        %v307 = vld [vmem:[%s198 + $0x190] sm:$0xff]
        %v308 = vld [vmem:[%s198 + $0x198] sm:$0xff]
        %v309 = vld [vmem:[%s198 + $0x1a0] sm:$0xff]
        %v310 = vld [vmem:[%s198 + $0x1a8] sm:$0xff]
        %v311 = vld [vmem:[%s198 + $0x1b0] sm:$0xff]
        %v312 = vld [vmem:[%s198 + $0x1b8] sm:$0xff]
        %v313 = vld [vmem:[%s198 + $0x1c0] sm:$0xff]
        %v314 = vld [vmem:[%s198 + $0x1c8] sm:$0xff]
        %v315 = vld [vmem:[%s198 + $0x1d0] sm:$0xff]
        %v316 = vld [vmem:[%s198 + $0x1d8] sm:$0xff]
        %v317 = vld [vmem:[%s198 + $0x1e0] sm:$0xff]
        %v318 = vld [vmem:[%s198 + $0x1e8] sm:$0xff]
        %v319 = vld [vmem:[%s198 + $0x1f0] sm:$0xff]
        %v320 = vld [vmem:[%s198 + $0x1f8] sm:$0xff]
        %v321 = vld [vmem:[%s244] sm:$0xf]
        %v323 = vperm.slane %v321, 0
        %v324 = vperm.slane %v321, 1
        %v325 = vperm.slane %v321, 2
        %v326 = vperm.slane %v321, 3
        %v332 = vunpack.c.l.b16 %v256
        %v333 = vunpack.c.h.b16 %v256
        %v334 = vpack.c.b16 %v332, %v332
        %v335 = vpack.c.b16 %v333, %v333
        %v402 = vunpack.c.l.b16 %v257
        %v403 = vunpack.c.h.b16 %v257
        %v404 = vunpack.c.l.b16 %v258
        %v405 = vunpack.c.h.b16 %v258
        %v406 = vunpack.c.l.b16 %v259
        %v407 = vunpack.c.h.b16 %v259
        %v408 = vunpack.c.l.b16 %v260
        %v409 = vunpack.c.h.b16 %v260
        %v410 = vunpack.c.l.b16 %v261
        %v411 = vunpack.c.h.b16 %v261
        %v412 = vunpack.c.l.b16 %v262
        %v413 = vunpack.c.h.b16 %v262
        %v414 = vunpack.c.l.b16 %v263
        %v415 = vunpack.c.h.b16 %v263
        %v416 = vunpack.c.l.b16 %v264
        %v417 = vunpack.c.h.b16 %v264
        %v418 = vunpack.c.l.b16 %v265
        %v419 = vunpack.c.h.b16 %v265
        %v420 = vunpack.c.l.b16 %v266
        %v421 = vunpack.c.h.b16 %v266
        %v422 = vunpack.c.l.b16 %v267
        %v423 = vunpack.c.h.b16 %v267
        %v424 = vunpack.c.l.b16 %v268
        %v425 = vunpack.c.h.b16 %v268
        %v426 = vunpack.c.l.b16 %v269
        %v427 = vunpack.c.h.b16 %v269
        %v428 = vunpack.c.l.b16 %v270
        %v429 = vunpack.c.h.b16 %v270
        %v430 = vunpack.c.l.b16 %v271
        %v431 = vunpack.c.h.b16 %v271
        %v432 = vunpack.c.l.b16 %v272
        %v433 = vunpack.c.h.b16 %v272
        %v434 = vunpack.c.l.b16 %v273
        %v435 = vunpack.c.h.b16 %v273
        %v436 = vunpack.c.l.b16 %v274
        %v437 = vunpack.c.h.b16 %v274
        %v438 = vunpack.c.l.b16 %v275
        %v439 = vunpack.c.h.b16 %v275
        %v440 = vunpack.c.l.b16 %v276
        %v441 = vunpack.c.h.b16 %v276
        %v442 = vunpack.c.l.b16 %v277
        %v443 = vunpack.c.h.b16 %v277
        %v444 = vunpack.c.l.b16 %v278
        %v445 = vunpack.c.h.b16 %v278
        %v446 = vunpack.c.l.b16 %v279
        %v447 = vunpack.c.h.b16 %v279
        %v448 = vunpack.c.l.b16 %v280
        %v449 = vunpack.c.h.b16 %v280
        %v450 = vunpack.c.l.b16 %v281
        %v451 = vunpack.c.h.b16 %v281
        %v452 = vunpack.c.l.b16 %v282
        %v453 = vunpack.c.h.b16 %v282
        %v454 = vunpack.c.l.b16 %v283
        %v455 = vunpack.c.h.b16 %v283
        %v456 = vunpack.c.l.b16 %v284
        %v457 = vunpack.c.h.b16 %v284
        %v458 = vunpack.c.l.b16 %v285
        %v459 = vunpack.c.h.b16 %v285
        %v460 = vunpack.c.l.b16 %v286
        %v461 = vunpack.c.h.b16 %v286
        %v462 = vunpack.c.l.b16 %v287
        %v463 = vunpack.c.h.b16 %v287
        %v464 = vunpack.c.l.b16 %v288
        %v465 = vunpack.c.h.b16 %v288
        %v466 = vunpack.c.l.b16 %v289
        %v467 = vunpack.c.h.b16 %v289
        %v468 = vunpack.c.l.b16 %v290
        %v469 = vunpack.c.h.b16 %v290
        %v470 = vunpack.c.l.b16 %v291
        %v471 = vunpack.c.h.b16 %v291
        %v472 = vunpack.c.l.b16 %v292
        %v473 = vunpack.c.h.b16 %v292
        %v474 = vunpack.c.l.b16 %v293
        %v475 = vunpack.c.h.b16 %v293
        %v476 = vunpack.c.l.b16 %v294
        %v477 = vunpack.c.h.b16 %v294
        %v478 = vunpack.c.l.b16 %v295
        %v479 = vunpack.c.h.b16 %v295
        %v480 = vunpack.c.l.b16 %v296
        %v481 = vunpack.c.h.b16 %v296
        %v482 = vunpack.c.l.b16 %v297
        %v483 = vunpack.c.h.b16 %v297
        %v484 = vunpack.c.l.b16 %v298
        %v485 = vunpack.c.h.b16 %v298
        %v486 = vunpack.c.l.b16 %v299
        %v487 = vunpack.c.h.b16 %v299
        %v488 = vunpack.c.l.b16 %v300
        %v489 = vunpack.c.h.b16 %v300
        %v490 = vunpack.c.l.b16 %v301
        %v491 = vunpack.c.h.b16 %v301
        %v492 = vunpack.c.l.b16 %v302
        %v493 = vunpack.c.h.b16 %v302
        %v494 = vunpack.c.l.b16 %v303
        %v495 = vunpack.c.h.b16 %v303
        %v496 = vunpack.c.l.b16 %v304
        %v497 = vunpack.c.h.b16 %v304
        %v498 = vunpack.c.l.b16 %v305
        %v499 = vunpack.c.h.b16 %v305
        %v500 = vunpack.c.l.b16 %v306
        %v501 = vunpack.c.h.b16 %v306
        %v502 = vunpack.c.l.b16 %v307
        %v503 = vunpack.c.h.b16 %v307
        %v504 = vunpack.c.l.b16 %v308
        %v505 = vunpack.c.h.b16 %v308
        %v506 = vunpack.c.l.b16 %v309
        %v507 = vunpack.c.h.b16 %v309
        %v508 = vunpack.c.l.b16 %v310
        %v509 = vunpack.c.h.b16 %v310
        %v510 = vunpack.c.l.b16 %v311
        %v511 = vunpack.c.h.b16 %v311
        %v512 = vunpack.c.l.b16 %v312
        %v513 = vunpack.c.h.b16 %v312
        %v514 = vunpack.c.l.b16 %v313
        %v515 = vunpack.c.h.b16 %v313
        %v516 = vunpack.c.l.b16 %v314
        %v517 = vunpack.c.h.b16 %v314
        %v518 = vunpack.c.l.b16 %v315
        %v519 = vunpack.c.h.b16 %v315
        %v520 = vunpack.c.l.b16 %v316
        %v521 = vunpack.c.h.b16 %v316
        %v522 = vunpack.c.l.b16 %v317
        %v523 = vunpack.c.h.b16 %v317
        %v524 = vunpack.c.l.b16 %v318
        %v525 = vunpack.c.h.b16 %v318
        %v526 = vunpack.c.l.b16 %v319
        %v527 = vunpack.c.h.b16 %v319
        %v528 = vunpack.c.l.b16 %v320
        %v529 = vunpack.c.h.b16 %v320
        %v530 = vpack.c.b16 %v406, %v402
        %v531 = vpack.c.b16 %v407, %v403
        %v532 = vpack.c.b16 %v408, %v404
        %v533 = vpack.c.b16 %v409, %v405
        %v534 = vpack.c.b16 %v414, %v410
        %v535 = vpack.c.b16 %v415, %v411
        %v536 = vpack.c.b16 %v416, %v412
        %v537 = vpack.c.b16 %v417, %v413
        %v538 = vpack.c.b16 %v422, %v418
        %v539 = vpack.c.b16 %v423, %v419
        %v540 = vpack.c.b16 %v424, %v420
        %v541 = vpack.c.b16 %v425, %v421
        %v542 = vpack.c.b16 %v430, %v426
        %v543 = vpack.c.b16 %v431, %v427
        %v544 = vpack.c.b16 %v432, %v428
        %v545 = vpack.c.b16 %v433, %v429
        %v546 = vpack.c.b16 %v438, %v434
        %v547 = vpack.c.b16 %v439, %v435
        %v548 = vpack.c.b16 %v440, %v436
        %v549 = vpack.c.b16 %v441, %v437
        %v550 = vpack.c.b16 %v446, %v442
        %v551 = vpack.c.b16 %v447, %v443
        %v552 = vpack.c.b16 %v448, %v444
        %v553 = vpack.c.b16 %v449, %v445
        %v554 = vpack.c.b16 %v454, %v450
        %v555 = vpack.c.b16 %v455, %v451
        %v556 = vpack.c.b16 %v456, %v452
        %v557 = vpack.c.b16 %v457, %v453
        %v558 = vpack.c.b16 %v462, %v458
        %v559 = vpack.c.b16 %v463, %v459
        %v560 = vpack.c.b16 %v464, %v460
        %v561 = vpack.c.b16 %v465, %v461
        %v562 = vpack.c.b16 %v470, %v466
        %v563 = vpack.c.b16 %v471, %v467
        %v564 = vpack.c.b16 %v472, %v468
        %v565 = vpack.c.b16 %v473, %v469
        %v566 = vpack.c.b16 %v478, %v474
        %v567 = vpack.c.b16 %v479, %v475
        %v568 = vpack.c.b16 %v480, %v476
        %v569 = vpack.c.b16 %v481, %v477
        %v570 = vpack.c.b16 %v486, %v482
        %v571 = vpack.c.b16 %v487, %v483
        %v572 = vpack.c.b16 %v488, %v484
        %v573 = vpack.c.b16 %v489, %v485
        %v574 = vpack.c.b16 %v494, %v490
        %v575 = vpack.c.b16 %v495, %v491
        %v576 = vpack.c.b16 %v496, %v492
        %v577 = vpack.c.b16 %v497, %v493
        %v578 = vpack.c.b16 %v502, %v498
        %v579 = vpack.c.b16 %v503, %v499
        %v580 = vpack.c.b16 %v504, %v500
        %v581 = vpack.c.b16 %v505, %v501
        %v582 = vpack.c.b16 %v510, %v506
        %v583 = vpack.c.b16 %v511, %v507
        %v584 = vpack.c.b16 %v512, %v508
        %v585 = vpack.c.b16 %v513, %v509
        %v586 = vpack.c.b16 %v518, %v514
        %v587 = vpack.c.b16 %v519, %v515
        %v588 = vpack.c.b16 %v520, %v516
        %v589 = vpack.c.b16 %v521, %v517
        %v590 = vpack.c.b16 %v526, %v522
        %v591 = vpack.c.b16 %v527, %v523
        %v592 = vpack.c.b16 %v528, %v524
        %v593 = vpack.c.b16 %v529, %v525
        %658 = vmatpush.bf16.msra.mxu0 %v558
        %659 = vmatpush.bf16.msra.mxu0 %v554
        %660 = vmatpush.bf16.msra.mxu0 %v550
        %661 = vmatpush.bf16.msra.mxu0 %v546
        %662 = vmatpush.bf16.msra.mxu0 %v542
        %663 = vmatpush.bf16.msra.mxu0 %v538
        %664 = vmatpush.bf16.msra.mxu0 %v534
        %665 = vmatpush.bf16.msra.mxu0 %v530
        %666 = vmatmul.bf16.gmra.mxu0 %v334
        %v667 = vpop.f32.mrf.mxu0
        %v668 = vadd.f32 %v323, %v667
        %v669 = vpop.f32.mrf.mxu0
        %670 = vdwg.mxu0
        %671 = vmatpush.bf16.msra.mxu0 %v590
        %672 = vmatpush.bf16.msra.mxu0 %v586
        %673 = vmatpush.bf16.msra.mxu0 %v582
        %674 = vmatpush.bf16.msra.mxu0 %v578
        %675 = vmatpush.bf16.msra.mxu0 %v574
        %676 = vmatpush.bf16.msra.mxu0 %v570
        %677 = vmatpush.bf16.msra.mxu0 %v566
        %678 = vmatpush.bf16.msra.mxu0 %v562
        %679 = vmatmul.bf16.gmra.mxu0 %v335
        %v680 = vpop.f32.mrf.mxu0
        %v681 = vadd.f32 %v668, %v680
        %v682 = vpop.f32.mrf.mxu0
        %683 = vdwg.mxu0
        %684 = vmatpush.bf16.msra.mxu0 %v559
        %685 = vmatpush.bf16.msra.mxu0 %v555
        %686 = vmatpush.bf16.msra.mxu0 %v551
        %687 = vmatpush.bf16.msra.mxu0 %v547
        %688 = vmatpush.bf16.msra.mxu0 %v543
        %689 = vmatpush.bf16.msra.mxu0 %v539
        %690 = vmatpush.bf16.msra.mxu0 %v535
        %691 = vmatpush.bf16.msra.mxu0 %v531
        %692 = vmatmul.bf16.gmra.mxu0 %v334
        %v693 = vpop.f32.mrf.mxu0
        %v694 = vadd.f32 %v324, %v693
        %v695 = vpop.f32.mrf.mxu0
        %696 = vdwg.mxu0
        %697 = vmatpush.bf16.msra.mxu0 %v591
        %698 = vmatpush.bf16.msra.mxu0 %v587
        %699 = vmatpush.bf16.msra.mxu0 %v583
        %700 = vmatpush.bf16.msra.mxu0 %v579
        %701 = vmatpush.bf16.msra.mxu0 %v575
        %702 = vmatpush.bf16.msra.mxu0 %v571
        %703 = vmatpush.bf16.msra.mxu0 %v567
        %704 = vmatpush.bf16.msra.mxu0 %v563
        %705 = vmatmul.bf16.gmra.mxu0 %v335
        %v706 = vpop.f32.mrf.mxu0
        %v707 = vadd.f32 %v694, %v706
        %v708 = vpop.f32.mrf.mxu0
        %709 = vdwg.mxu0
        %710 = vmatpush.bf16.msra.mxu0 %v560
        %711 = vmatpush.bf16.msra.mxu0 %v556
        %712 = vmatpush.bf16.msra.mxu0 %v552
        %713 = vmatpush.bf16.msra.mxu0 %v548
        %714 = vmatpush.bf16.msra.mxu0 %v544
        %715 = vmatpush.bf16.msra.mxu0 %v540
        %716 = vmatpush.bf16.msra.mxu0 %v536
        %717 = vmatpush.bf16.msra.mxu0 %v532
        %718 = vmatmul.bf16.gmra.mxu0 %v334
        %v719 = vpop.f32.mrf.mxu0
        %v720 = vadd.f32 %v325, %v719
        %v721 = vpop.f32.mrf.mxu0
        %722 = vdwg.mxu0
        %723 = vmatpush.bf16.msra.mxu0 %v592
        %724 = vmatpush.bf16.msra.mxu0 %v588
        %725 = vmatpush.bf16.msra.mxu0 %v584
        %726 = vmatpush.bf16.msra.mxu0 %v580
        %727 = vmatpush.bf16.msra.mxu0 %v576
        %728 = vmatpush.bf16.msra.mxu0 %v572
        %729 = vmatpush.bf16.msra.mxu0 %v568
        %730 = vmatpush.bf16.msra.mxu0 %v564
        %731 = vmatmul.bf16.gmra.mxu0 %v335
        %v732 = vpop.f32.mrf.mxu0
        %v733 = vadd.f32 %v720, %v732
        %v734 = vpop.f32.mrf.mxu0
        %735 = vdwg.mxu0
        %736 = vmatpush.bf16.msra.mxu0 %v561
        %737 = vmatpush.bf16.msra.mxu0 %v557
        %738 = vmatpush.bf16.msra.mxu0 %v553
        %739 = vmatpush.bf16.msra.mxu0 %v549
        %740 = vmatpush.bf16.msra.mxu0 %v545
        %741 = vmatpush.bf16.msra.mxu0 %v541
        %742 = vmatpush.bf16.msra.mxu0 %v537
        %743 = vmatpush.bf16.msra.mxu0 %v533
        %744 = vmatmul.bf16.gmra.mxu0 %v334
        %v745 = vpop.f32.mrf.mxu0
        %v746 = vadd.f32 %v326, %v745
        %v747 = vpop.f32.mrf.mxu0
        %748 = vdwg.mxu0
        %749 = vmatpush.bf16.msra.mxu0 %v593
        %750 = vmatpush.bf16.msra.mxu0 %v589
        %751 = vmatpush.bf16.msra.mxu0 %v585
        %752 = vmatpush.bf16.msra.mxu0 %v581
        %753 = vmatpush.bf16.msra.mxu0 %v577
        %754 = vmatpush.bf16.msra.mxu0 %v573
        %755 = vmatpush.bf16.msra.mxu0 %v569
        %756 = vmatpush.bf16.msra.mxu0 %v565
        %757 = vmatmul.bf16.gmra.mxu0 %v335
        %v758 = vpop.f32.mrf.mxu0
        %v759 = vadd.f32 %v746, %v758
        %v760 = vpop.f32.mrf.mxu0
        %761 = vdwg.mxu0
        %v762 = vpack.c.bf16 %v707, %v681
        %v763 = vpack.c.bf16 %v759, %v733
        %764 = vst [vmem:[%s254] sm:$0xff] %v762
        %765 = vst [vmem:[%s254 + $0x8] sm:$0xff] %v763
        %s766 = smul.u32 4, %s22
        %p767 = scmp.lt.s32.totalorder %s21, 0
        %s768 = scalar_select %p767, %s21, 0
        %p769 = scmp.lt.s32.totalorder %s766, 15
        %s770 = scalar_select %p769, %s766, 15
        %s771 = smul.addr %s768, 16
        %s772 = sadd.s32 %s770, %s771
        %s773 = smul.addr %s772, 4
        %s774 = scalar_lea.vmem %s3, %s773
        // Predicated region
        $region37: #{crnn_forward.11} parent=31 // pred_check
          %p775 = pneg %p127
        $region38: #{crnn_forward.11} parent=31 // pred_check_branch
          %777 = sbr.rel (%p775) target = $region40
        $region39: #{crnn_forward.11} parent=31 // pred_region
          %s778 = smul.u32 4, %s22
        $region40: #{crnn_forward.11} parent=31 // pred_fallthru
          _
      $region32: #{crnn_forward.11} parent=5 // pred_fallthru
        _
      %p779 = scmp.le.s32.totalorder 2, %s12
      // Predicated region
      $region41: #{crnn_forward.11} parent=5 // pred_check
        %p780 = pneg %p779
      $region42: #{crnn_forward.11} parent=5 // pred_check_branch
        %782 = sbr.rel (%p780) target = $region44
      $region43: #{crnn_forward.11} parent=5 // pred_region
        %s783 = ssub.s32 %s12, 2
        // Predicated region
        $region45: #{crnn_forward.11} parent=43 // pred_check
          %p784 = pneg %p133
        $region46: #{crnn_forward.11} parent=43 // pred_check_branch
          %786 = sbr.rel (%p784) target = $region48
        $region47: #{crnn_forward.11} parent=43 // pred_region
          %s787 = smul.u32 4, %s24
          %p788 = scmp.lt.s32.totalorder %s23, 0
          %s789 = scalar_select %p788, %s23, 0
          %p790 = scmp.lt.s32.totalorder %s787, 15
          %s791 = scalar_select %p790, %s787, 15
          %s792 = smul.addr %s789, 16
          %s793 = sadd.s32 %s791, %s792
          %s794 = smul.addr %s793, 4
          %s795 = scalar_lea.vmem %s3, %s794
        $region48: #{crnn_forward.11} parent=43 // pred_fallthru
          _
      $region44: #{crnn_forward.11} parent=5 // pred_fallthru
        _
    $region6: #{crnn_forward.11} parent=1 // loop_footer
      %s16 = sadd.s32 1, %s12
    $region7: #{crnn_forward.11} parent=1 // loop_footer_branch
      %11 = sbr.rel target = $region3
    $region8: #{crnn_forward.11} parent=1 // loop_exit
      _
    %796 = vsyncpa [#allocation3], 1
    %s797 = scalar_lea.sflag [#allocation3], 1
    %798 = vsyncpa %s797, 1

// kernel: crnn_forward.13
$region0: #{crnn_forward.13}
  #allocation0 [shape = 'u32[]', space=smem, size = 0x4, offset = 0x4, fixed_abs, tag = 'smem constant byte address 0x4 - core index']
  #allocation1 [shape = 'u32[72,128]{1,0:T(1,128)}', space=vmem, size = 0x9000, scoped, tag = 'internal scratch']
  %s0 = inlined_call_operand.vmem [shape: bf16[2,8,256], index: 0, kind: input, shape index: {}, may-alias: {0,1}]
  %s1 = inlined_call_operand.vmem [shape: bf16[2,8,256], index: 1, kind: input, shape index: {}, may-alias: {0,1}]
  %s2 = inlined_call_operand.vmem [shape: bf16[256,128], index: 2, kind: input, shape index: {}]
  %s3 = inlined_call_operand.vmem [shape: bf16[256,128], index: 3, kind: input, shape index: {}]
  %s4 = inlined_call_operand.vmem [shape: f32[1,128], index: 4, kind: input, shape index: {}]
  %s5 = inlined_call_operand.hbm [shape: f32[8,128], index: 5, kind: output, shape index: {}]
  %s6 = sld [smem:[#allocation0]]
  $region30: #{crnn_forward.13} parent=0
    _
  %s8 = ssub.s32 1, %s6
  %s9 = scalar_select 0, %s8, %s6
  $region1: #{crnn_forward.13} parent=0
    #allocation2 [shape = 'u8[4096]{0}', space=vmem, size = 0x1000, scoped, tag = 'output window, operand 0, single buffered']
    #allocation3 [shape = 's32[1]{0}', space=sflag, size = 0x4, scoped, tag = 'scoped memory for crnn_forward.13']
    %10 = vsyncpa [#allocation3], 0
    // Predicated region
    $region2: #{crnn_forward.13} parent=1 // pred_check
      _
    $region3: #{crnn_forward.13} parent=1 // pred_check_branch
      %12 = sbr.rel (0) target = $region5
    $region4: #{crnn_forward.13} parent=1 // pred_region
      _
    $region5: #{crnn_forward.13} parent=1 // pred_fallthru
      _
    // Predicated region
    $region6: #{crnn_forward.13} parent=1 // pred_check
      _
    $region7: #{crnn_forward.13} parent=1 // pred_check_branch
      %14 = sbr.rel (0) target = $region9
    $region8: #{crnn_forward.13} parent=1 // pred_region
      %s15 = scalar_lea.vmem %s1, 8
    $region9: #{crnn_forward.13} parent=1 // pred_fallthru
      _
    // Predicated region
    $region10: #{crnn_forward.13} parent=1 // pred_check
      _
    $region11: #{crnn_forward.13} parent=1 // pred_check_branch
      %17 = sbr.rel (0) target = $region13
    $region12: #{crnn_forward.13} parent=1 // pred_region
      _
    $region13: #{crnn_forward.13} parent=1 // pred_fallthru
      _
    // Predicated region
    $region14: #{crnn_forward.13} parent=1 // pred_check
      _
    $region15: #{crnn_forward.13} parent=1 // pred_check_branch
      %19 = sbr.rel (0) target = $region17
    $region16: #{crnn_forward.13} parent=1 // pred_region
      _
    $region17: #{crnn_forward.13} parent=1 // pred_fallthru
      _
    // Predicated region
    $region18: #{crnn_forward.13} parent=1 // pred_check
      _
    $region19: #{crnn_forward.13} parent=1 // pred_check_branch
      %21 = sbr.rel (0) target = $region21
    $region20: #{crnn_forward.13} parent=1 // pred_region
      _
    $region21: #{crnn_forward.13} parent=1 // pred_fallthru
      _
    %s22 = scalar_lea.vmem %s1, 8
    %s23 = scalar_lea.vmem %s1, 8
    %v24 = vld [vmem:[%s0] sm:$0xff]
    %v25 = vld [vmem:[%s2] sm:$0xf]
    %v26 = vld [vmem:[%s2 + $0x4] sm:$0xf]
    %v27 = vld [vmem:[%s2 + $0x8] sm:$0xf]
    %v28 = vld [vmem:[%s2 + $0xc] sm:$0xf]
    %v29 = vld [vmem:[%s2 + $0x10] sm:$0xf]
    %v30 = vld [vmem:[%s2 + $0x14] sm:$0xf]
    %v31 = vld [vmem:[%s2 + $0x18] sm:$0xf]
    %v32 = vld [vmem:[%s2 + $0x1c] sm:$0xf]
    %v33 = vld [vmem:[%s2 + $0x20] sm:$0xf]
    %v34 = vld [vmem:[%s2 + $0x24] sm:$0xf]
    %v35 = vld [vmem:[%s2 + $0x28] sm:$0xf]
    %v36 = vld [vmem:[%s2 + $0x2c] sm:$0xf]
    %v37 = vld [vmem:[%s2 + $0x30] sm:$0xf]
    %v38 = vld [vmem:[%s2 + $0x34] sm:$0xf]
    %v39 = vld [vmem:[%s2 + $0x38] sm:$0xf]
    %v40 = vld [vmem:[%s2 + $0x3c] sm:$0xf]
    %v41 = vld [vmem:[%s2 + $0x40] sm:$0xf]
    %v42 = vld [vmem:[%s2 + $0x44] sm:$0xf]
    %v43 = vld [vmem:[%s2 + $0x48] sm:$0xf]
    %v44 = vld [vmem:[%s2 + $0x4c] sm:$0xf]
    %v45 = vld [vmem:[%s2 + $0x50] sm:$0xf]
    %v46 = vld [vmem:[%s2 + $0x54] sm:$0xf]
    %v47 = vld [vmem:[%s2 + $0x58] sm:$0xf]
    %v48 = vld [vmem:[%s2 + $0x5c] sm:$0xf]
    %v49 = vld [vmem:[%s2 + $0x60] sm:$0xf]
    %v50 = vld [vmem:[%s2 + $0x64] sm:$0xf]
    %v51 = vld [vmem:[%s2 + $0x68] sm:$0xf]
    %v52 = vld [vmem:[%s2 + $0x6c] sm:$0xf]
    %v53 = vld [vmem:[%s2 + $0x70] sm:$0xf]
    %v54 = vld [vmem:[%s2 + $0x74] sm:$0xf]
    %v55 = vld [vmem:[%s2 + $0x78] sm:$0xf]
    %v56 = vld [vmem:[%s2 + $0x7c] sm:$0xf]
    %v57 = vld [vmem:[%s23] sm:$0xff]
    %v58 = vld [vmem:[%s3] sm:$0xf]
    %v59 = vld [vmem:[%s3 + $0x4] sm:$0xf]
    %v60 = vld [vmem:[%s3 + $0x8] sm:$0xf]
    %v61 = vld [vmem:[%s3 + $0xc] sm:$0xf]
    %v62 = vld [vmem:[%s3 + $0x10] sm:$0xf]
    %v63 = vld [vmem:[%s3 + $0x14] sm:$0xf]
    %v64 = vld [vmem:[%s3 + $0x18] sm:$0xf]
    %v65 = vld [vmem:[%s3 + $0x1c] sm:$0xf]
    %v66 = vld [vmem:[%s3 + $0x20] sm:$0xf]
    %v67 = vld [vmem:[%s3 + $0x24] sm:$0xf]
    %v68 = vld [vmem:[%s3 + $0x28] sm:$0xf]
    %v69 = vld [vmem:[%s3 + $0x2c] sm:$0xf]
    %v70 = vld [vmem:[%s3 + $0x30] sm:$0xf]
    %v71 = vld [vmem:[%s3 + $0x34] sm:$0xf]
    %v72 = vld [vmem:[%s3 + $0x38] sm:$0xf]
    %v73 = vld [vmem:[%s3 + $0x3c] sm:$0xf]
    %v74 = vld [vmem:[%s3 + $0x40] sm:$0xf]
    %v75 = vld [vmem:[%s3 + $0x44] sm:$0xf]
    %v76 = vld [vmem:[%s3 + $0x48] sm:$0xf]
    %v77 = vld [vmem:[%s3 + $0x4c] sm:$0xf]
    %v78 = vld [vmem:[%s3 + $0x50] sm:$0xf]
    %v79 = vld [vmem:[%s3 + $0x54] sm:$0xf]
    %v80 = vld [vmem:[%s3 + $0x58] sm:$0xf]
    %v81 = vld [vmem:[%s3 + $0x5c] sm:$0xf]
    %v82 = vld [vmem:[%s3 + $0x60] sm:$0xf]
    %v83 = vld [vmem:[%s3 + $0x64] sm:$0xf]
    %v84 = vld [vmem:[%s3 + $0x68] sm:$0xf]
    %v85 = vld [vmem:[%s3 + $0x6c] sm:$0xf]
    %v86 = vld [vmem:[%s3 + $0x70] sm:$0xf]
    %v87 = vld [vmem:[%s3 + $0x74] sm:$0xf]
    %v88 = vld [vmem:[%s3 + $0x78] sm:$0xf]
    %v89 = vld [vmem:[%s3 + $0x7c] sm:$0xf]
    %v91 = vunpack.c.l.b16 %v57
    %v92 = vunpack.c.h.b16 %v57
    %v93 = vpack.c.b16 %v91, %v91
    %v94 = vpack.c.b16 %v92, %v92
    %v129 = vunpack.c.l.b16 %v58
    %v130 = vunpack.c.l.b16 %v59
    %v131 = vunpack.c.l.b16 %v60
    %v132 = vunpack.c.l.b16 %v61
    %v133 = vunpack.c.l.b16 %v62
    %v134 = vunpack.c.l.b16 %v63
    %v135 = vunpack.c.l.b16 %v64
    %v136 = vunpack.c.l.b16 %v65
    %v137 = vunpack.c.l.b16 %v66
    %v138 = vunpack.c.l.b16 %v67
    %v139 = vunpack.c.l.b16 %v68
    %v140 = vunpack.c.l.b16 %v69
    %v141 = vunpack.c.l.b16 %v70
    %v142 = vunpack.c.l.b16 %v71
    %v143 = vunpack.c.l.b16 %v72
    %v144 = vunpack.c.l.b16 %v73
    %v145 = vunpack.c.l.b16 %v74
    %v146 = vunpack.c.l.b16 %v75
    %v147 = vunpack.c.l.b16 %v76
    %v148 = vunpack.c.l.b16 %v77
    %v149 = vunpack.c.l.b16 %v78
    %v150 = vunpack.c.l.b16 %v79
    %v151 = vunpack.c.l.b16 %v80
    %v152 = vunpack.c.l.b16 %v81
    %v153 = vunpack.c.l.b16 %v82
    %v154 = vunpack.c.l.b16 %v83
    %v155 = vunpack.c.l.b16 %v84
    %v156 = vunpack.c.l.b16 %v85
    %v157 = vunpack.c.l.b16 %v86
    %v158 = vunpack.c.l.b16 %v87
    %v159 = vunpack.c.l.b16 %v88
    %v160 = vunpack.c.l.b16 %v89
    %v161 = vpack.c.b16 %v130, %v129
    %v162 = vpack.c.b16 %v132, %v131
    %v163 = vpack.c.b16 %v134, %v133
    %v164 = vpack.c.b16 %v136, %v135
    %v165 = vpack.c.b16 %v138, %v137
    %v166 = vpack.c.b16 %v140, %v139
    %v167 = vpack.c.b16 %v142, %v141
    %v168 = vpack.c.b16 %v144, %v143
    %v169 = vpack.c.b16 %v146, %v145
    %v170 = vpack.c.b16 %v148, %v147
    %v171 = vpack.c.b16 %v150, %v149
    %v172 = vpack.c.b16 %v152, %v151
    %v173 = vpack.c.b16 %v154, %v153
    %v174 = vpack.c.b16 %v156, %v155
    %v175 = vpack.c.b16 %v158, %v157
    %v176 = vpack.c.b16 %v160, %v159
    %193 = vmatpush.bf16.msra.mxu0 %v168
    %194 = vmatpush.bf16.msra.mxu0 %v167
    %195 = vmatpush.bf16.msra.mxu0 %v166
    %196 = vmatpush.bf16.msra.mxu0 %v165
    %197 = vmatpush.bf16.msra.mxu0 %v164
    %198 = vmatpush.bf16.msra.mxu0 %v163
    %199 = vmatpush.bf16.msra.mxu0 %v162
    %200 = vmatpush.bf16.msra.mxu0 %v161
    %201 = vmatmul.bf16.gmra.mxu0 %v93
    %v202 = vpop.f32.mrf.mxu0
    %v203 = vadd.f32 0.0, %v202
    %v204 = vpop.f32.mrf.mxu0
    %205 = vdwg.mxu0
    %206 = vmatpush.bf16.msra.mxu0 %v176
    %207 = vmatpush.bf16.msra.mxu0 %v175
    %208 = vmatpush.bf16.msra.mxu0 %v174
    %209 = vmatpush.bf16.msra.mxu0 %v173
    %210 = vmatpush.bf16.msra.mxu0 %v172
    %211 = vmatpush.bf16.msra.mxu0 %v171
    %212 = vmatpush.bf16.msra.mxu0 %v170
    %213 = vmatpush.bf16.msra.mxu0 %v169
    %214 = vmatmul.bf16.gmra.mxu0 %v94
    %v215 = vpop.f32.mrf.mxu0
    %v216 = vadd.f32 %v203, %v215
    %v217 = vpop.f32.mrf.mxu0
    %218 = vdwg.mxu0
    %v220 = vunpack.c.l.b16 %v24
    %v221 = vunpack.c.h.b16 %v24
    %v222 = vpack.c.b16 %v220, %v220
    %v223 = vpack.c.b16 %v221, %v221
    %v258 = vunpack.c.l.b16 %v25
    %v259 = vunpack.c.l.b16 %v26
    %v260 = vunpack.c.l.b16 %v27
    %v261 = vunpack.c.l.b16 %v28
    %v262 = vunpack.c.l.b16 %v29
    %v263 = vunpack.c.l.b16 %v30
    %v264 = vunpack.c.l.b16 %v31
    %v265 = vunpack.c.l.b16 %v32
    %v266 = vunpack.c.l.b16 %v33
    %v267 = vunpack.c.l.b16 %v34
    %v268 = vunpack.c.l.b16 %v35
    %v269 = vunpack.c.l.b16 %v36
    %v270 = vunpack.c.l.b16 %v37
    %v271 = vunpack.c.l.b16 %v38
    %v272 = vunpack.c.l.b16 %v39
    %v273 = vunpack.c.l.b16 %v40
    %v274 = vunpack.c.l.b16 %v41
    %v275 = vunpack.c.l.b16 %v42
    %v276 = vunpack.c.l.b16 %v43
    %v277 = vunpack.c.l.b16 %v44
    %v278 = vunpack.c.l.b16 %v45
    %v279 = vunpack.c.l.b16 %v46
    %v280 = vunpack.c.l.b16 %v47
    %v281 = vunpack.c.l.b16 %v48
    %v282 = vunpack.c.l.b16 %v49
    %v283 = vunpack.c.l.b16 %v50
    %v284 = vunpack.c.l.b16 %v51
    %v285 = vunpack.c.l.b16 %v52
    %v286 = vunpack.c.l.b16 %v53
    %v287 = vunpack.c.l.b16 %v54
    %v288 = vunpack.c.l.b16 %v55
    %v289 = vunpack.c.l.b16 %v56
    %v290 = vpack.c.b16 %v259, %v258
    %v291 = vpack.c.b16 %v261, %v260
    %v292 = vpack.c.b16 %v263, %v262
    %v293 = vpack.c.b16 %v265, %v264
    %v294 = vpack.c.b16 %v267, %v266
    %v295 = vpack.c.b16 %v269, %v268
    %v296 = vpack.c.b16 %v271, %v270
    %v297 = vpack.c.b16 %v273, %v272
    %v298 = vpack.c.b16 %v275, %v274
    %v299 = vpack.c.b16 %v277, %v276
    %v300 = vpack.c.b16 %v279, %v278
    %v301 = vpack.c.b16 %v281, %v280
    %v302 = vpack.c.b16 %v283, %v282
    %v303 = vpack.c.b16 %v285, %v284
    %v304 = vpack.c.b16 %v287, %v286
    %v305 = vpack.c.b16 %v289, %v288
    %322 = vmatpush.bf16.msra.mxu0 %v297
    %323 = vmatpush.bf16.msra.mxu0 %v296
    %324 = vmatpush.bf16.msra.mxu0 %v295
    %325 = vmatpush.bf16.msra.mxu0 %v294
    %326 = vmatpush.bf16.msra.mxu0 %v293
    %327 = vmatpush.bf16.msra.mxu0 %v292
    %328 = vmatpush.bf16.msra.mxu0 %v291
    %329 = vmatpush.bf16.msra.mxu0 %v290
    %330 = vmatmul.bf16.gmra.mxu0 %v222
    %v331 = vpop.f32.mrf.mxu0
    %v332 = vadd.f32 %v216, %v331
    %v333 = vpop.f32.mrf.mxu0
    %334 = vdwg.mxu0
    %335 = vmatpush.bf16.msra.mxu0 %v305
    %336 = vmatpush.bf16.msra.mxu0 %v304
    %337 = vmatpush.bf16.msra.mxu0 %v303
    %338 = vmatpush.bf16.msra.mxu0 %v302
    %339 = vmatpush.bf16.msra.mxu0 %v301
    %340 = vmatpush.bf16.msra.mxu0 %v300
    %341 = vmatpush.bf16.msra.mxu0 %v299
    %342 = vmatpush.bf16.msra.mxu0 %v298
    %343 = vmatmul.bf16.gmra.mxu0 %v223
    %v344 = vpop.f32.mrf.mxu0
    %v345 = vadd.f32 %v332, %v344
    %v346 = vpop.f32.mrf.mxu0
    %347 = vdwg.mxu0
    %v348 = vld [vmem:[%s4] sm:$0x1]
    %v350 = vperm.slane %v348, 0
    %v352 = vadd.f32 %v345, %v350
    %353 = vst [vmem:[#allocation2] sm:$0xff] %v352
    // Predicated region
    $region22: #{crnn_forward.13} parent=1 // pred_check
      _
    $region23: #{crnn_forward.13} parent=1 // pred_check_branch
      %355 = sbr.rel (0) target = $region25
    $region24: #{crnn_forward.13} parent=1 // pred_region
      %357 = vsyncadd [#allocation3], 0
      %s359 = sshll.u32 [#allocation2], 4
      %s360 = int_to_ptr.vmem [resolvable:$true] %s359
      %s361 = sshll.u32 %s5, 4
      %s362 = int_to_ptr.hbm [resolvable:$true] %s361
      %364 = dma.vmem_to_hbm [thread:$0]  %s360, 128, %s362, [#allocation3]
    $region25: #{crnn_forward.13} parent=1 // pred_fallthru
      _
    // Predicated region
    $region26: #{crnn_forward.13} parent=1 // pred_check
      _
    $region27: #{crnn_forward.13} parent=1 // pred_check_branch
      %366 = sbr.rel (0) target = $region29
    $region28: #{crnn_forward.13} parent=1 // pred_region
      %368 = dma.done [#allocation3], 128
    $region29: #{crnn_forward.13} parent=1 // pred_fallthru
      _
    %369 = vsyncpa [#allocation3], 1

// kernel: crnn_forward.12
$region0: #{crnn_forward.12}
  #allocation0 [shape = 'u32[]', space=smem, size = 0x4, offset = 0x4, fixed_abs, tag = 'smem constant byte address 0x4 - core index']
  #allocation1 [shape = 'u32[72,128]{1,0:T(1,128)}', space=vmem, size = 0x9000, scoped, tag = 'internal scratch']
  #allocation2 [shape = 'f32[2,256]{1,0:T(2,128)}', space=vmem, size = 0x800, scoped, tag = 'scratch operand']
  #allocation3 [shape = 'f32[2,256]{1,0:T(2,128)}', space=vmem, size = 0x800, scoped, tag = 'scratch operand']
  %s0 = inlined_call_operand.vmem [shape: bf16[4,2,2048], index: 0, kind: input, shape index: {}]
  %s1 = inlined_call_operand.hbm [shape: bf16[2,256,1024], index: 1, kind: input, shape index: {}]
  %s2 = inlined_call_operand.vmem [shape: bf16[2,4,2,256], index: 2, kind: output, shape index: {}]
  %s3 = sld [smem:[#allocation0]]
  $region87: #{crnn_forward.12} parent=0
    _
  %s5 = ssub.s32 1, %s3
  %s6 = scalar_select 0, %s5, %s3
  $region1: #{crnn_forward.12} parent=0
    #allocation4 [shape = 'u8[32768]{0}', space=vmem, size = 0x8000, scoped, tag = 'input window, operand 0']
    #allocation5 [shape = 'u8[1048576]{0}', space=vmem, size = 0x100000, scoped, tag = 'input window, operand 1']
    #allocation6 [shape = 's32[2]{0}', space=sflag, size = 0x8, scoped, tag = 'scoped memory for crnn_forward.12']
    %7 = vsyncpa [#allocation6], 0
    %s8 = scalar_lea.sflag [#allocation6], 1
    %9 = vsyncpa %s8, 0
    loop: start=0, step=1, limit=4
    $region2: #{crnn_forward.12} parent=1 // loop_pre_header
      _
    $region3: #{crnn_forward.12} parent=1 // loop_header
      %s11 = sphi 0, %s15
      %p12 = scmp.ge.s32.totalorder %s11, 4
      %s18 = sphi 0, %s30
      %s19 = sphi 0, %s26
      %s20 = sphi 0, %s18
      %s21 = sphi 0, %s19
      %s22 = sphi 0, %s20
      %s23 = sphi 0, %s21
      %s45 = sphi 0, %s47
      %s48 = sphi 0, %s45
      %s49 = sphi 0, %s48
      %s65 = sphi 0, %s49
      %s71 = sphi 0, %s73
      %s74 = sphi 0, %s71
      %s75 = sphi 0, %s74
      %s91 = sphi 0, %s75
      %s109 = sphi 0, %s111
      %s112 = sphi 0, %s109
      %s113 = sphi 0, %s112
      %s129 = sphi 0, %s113
    $region4: #{crnn_forward.12} parent=1 // loop_header_branch
      %14 = sbr.rel (%p12) target = $region8
    $region5: #{crnn_forward.12} parent=1 // loop_body
      %s16 = ssub.s32 %s11, 1
      %s17 = ssub.s32 %s11, 2
      %s24 = sadd.s32 1, %s19
      %p25 = scmp.ge.s32.totalorder %s24, 1
      %s26 = scalar_select %p25, 0, %s24
      %s27 = sadd.s32 1, %s18
      %s28 = scalar_select %p25, %s27, %s18
      %p29 = scmp.ge.s32.totalorder %s28, 2
      %s30 = scalar_select %p29, 0, %s28
      %s31 = ssub.s32 0, %s19
      %s32 = smul.u32 %s18, %s31
      %s33 = ssub.s32 1, %s18
      %s34 = smul.u32 %s33, %s19
      %s35 = sadd.s32 %s32, %s34
      %s36 = ssub.s32 0, %s26
      %s37 = smul.u32 %s30, %s36
      %s38 = ssub.s32 1, %s30
      %s39 = smul.u32 %s38, %s26
      %s40 = sadd.s32 %s37, %s39
      %s41 = ssub.s32 %s35, %s40
      %s42 = ssub.s32 %s18, %s30
      %s43 = sor.u32 %s41, %s42
      %p44 = scmp.eq.s32.totalorder %s43, 0
      %s46 = sadd.s32 %s45, 1
      %s47 = scalar_select %p44, %s45, %s46
      %p50 = pneg %p44
      %p51 = scmp.eq.s32.totalorder %s11, 1
      %p52 = por %p50, %p51
      %p53 = scmp.ne.s32.totalorder %s45, %s48
      %p54 = scmp.eq.s32.totalorder %s11, 0
      %p55 = por %p53, %p54
      %p56 = scmp.ne.s32.totalorder %s45, %s48
      %p57 = scmp.eq.s32.totalorder %s16, 1
      %p58 = por %p56, %p57
      %p59 = scmp.ne.s32.totalorder %s48, %s49
      %p60 = scmp.eq.s32.totalorder %s16, 0
      %p61 = por %p59, %p60
      %p62 = scmp.ne.s32.totalorder %s48, %s49
      %p63 = scmp.eq.s32.totalorder %s17, 1
      %p64 = por %p62, %p63
      %p66 = scmp.ne.s32.totalorder %s49, %s65
      %p67 = scmp.eq.s32.totalorder %s17, 0
      %p68 = por %p66, %p67
      %s69 = ssub.s32 %s18, %s30
      %p70 = scmp.eq.s32.totalorder %s69, 0
      %s72 = sadd.s32 %s71, 1
      %s73 = scalar_select %p70, %s71, %s72
      %p76 = pneg %p70
      %p77 = scmp.eq.s32.totalorder %s11, 1
      %p78 = por %p76, %p77
      %p79 = scmp.ne.s32.totalorder %s71, %s74
      %p80 = scmp.eq.s32.totalorder %s11, 0
      %p81 = por %p79, %p80
      %p82 = scmp.ne.s32.totalorder %s71, %s74
      %p83 = scmp.eq.s32.totalorder %s16, 1
      %p84 = por %p82, %p83
      %p85 = scmp.ne.s32.totalorder %s74, %s75
      %p86 = scmp.eq.s32.totalorder %s16, 0
      %p87 = por %p85, %p86
      %p88 = scmp.ne.s32.totalorder %s74, %s75
      %p89 = scmp.eq.s32.totalorder %s17, 1
      %p90 = por %p88, %p89
      %p92 = scmp.ne.s32.totalorder %s75, %s91
      %p93 = scmp.eq.s32.totalorder %s17, 0
      %p94 = por %p92, %p93
      %s95 = ssub.s32 0, %s19
      %s96 = smul.u32 %s18, %s95
      %s97 = ssub.s32 1, %s18
      %s98 = smul.u32 %s97, %s19
      %s99 = sadd.s32 %s96, %s98
      %s100 = ssub.s32 0, %s26
      %s101 = smul.u32 %s30, %s100
      %s102 = ssub.s32 1, %s30
      %s103 = smul.u32 %s102, %s26
      %s104 = sadd.s32 %s101, %s103
      %s105 = ssub.s32 %s18, %s30
      %s106 = ssub.s32 %s99, %s104
      %s107 = sor.u32 %s105, %s106
      %p108 = scmp.eq.s32.totalorder %s107, 0
      %s110 = sadd.s32 %s109, 1
      %s111 = scalar_select %p108, %s109, %s110
      %p114 = pneg %p108
      %p115 = scmp.eq.s32.totalorder %s11, 1
      %p116 = por %p114, %p115
      %p117 = scmp.ne.s32.totalorder %s109, %s112
      %p118 = scmp.eq.s32.totalorder %s11, 0
      %p119 = por %p117, %p118
      %p120 = scmp.ne.s32.totalorder %s109, %s112
      %p121 = scmp.eq.s32.totalorder %s16, 1
      %p122 = por %p120, %p121
      %p123 = scmp.ne.s32.totalorder %s112, %s113
      %p124 = scmp.eq.s32.totalorder %s16, 0
      %p125 = por %p123, %p124
      %p126 = scmp.ne.s32.totalorder %s112, %s113
      %p127 = scmp.eq.s32.totalorder %s17, 1
      %p128 = por %p126, %p127
      %p130 = scmp.ne.s32.totalorder %s113, %s129
      %p131 = scmp.eq.s32.totalorder %s17, 0
      %p132 = por %p130, %p131
      %p133 = scmp.le.s32.totalorder 1, %s11
      %p134 = scmp.lt.s32.totalorder %s11, 3
      %p135 = pnand %p133, %p134
      %p136 = pneg %p135
      // Predicated region
      $region9: #{crnn_forward.12} parent=5 // pred_check
        _
      $region10: #{crnn_forward.12} parent=5 // pred_check_branch
        %138 = sbr.rel (%p135) target = $region12
      $region11: #{crnn_forward.12} parent=5 // pred_region
        %s139 = ssub.s32 %s11, 1
      $region12: #{crnn_forward.12} parent=5 // pred_fallthru
        _
      %p140 = scmp.lt.s32.totalorder %s11, 2
      // Predicated region
      $region13: #{crnn_forward.12} parent=5 // pred_check
        %p141 = pneg %p140
      $region14: #{crnn_forward.12} parent=5 // pred_check_branch
        %143 = sbr.rel (%p141) target = $region16
      $region15: #{crnn_forward.12} parent=5 // pred_region
        // Predicated region
        $region17: #{crnn_forward.12} parent=15 // pred_check
          %p144 = pneg %p55
        $region18: #{crnn_forward.12} parent=15 // pred_check_branch
          %146 = sbr.rel (%p144) target = $region20
        $region19: #{crnn_forward.12} parent=15 // pred_region
          %s147 = sand.u32 %s45, 1
          %s148 = sand.u32 %s45, 1
          %s149 = smul.addr %s148, 32
          %s150 = scalar_lea.vmem [#allocation4], %s149
          %s151 = ssub.s32 0, %s19
          %s152 = smul.u32 %s18, %s151
          %s153 = ssub.s32 1, %s18
          %s154 = smul.u32 %s153, %s19
          %s155 = sadd.s32 %s152, %s154
          %s156 = smul.u32 4, %s155
          %s157 = smul.u32 8, %s18
          %s158 = smul.addr %s156, 16
          %s159 = sadd.s32 %s157, %s158
          %s160 = scalar_lea.vmem %s0, %s159
          // Predicated region
          $region21: #{crnn_forward.12} parent=19 // pred_check
            _
          $region22: #{crnn_forward.12} parent=19 // pred_check_branch
            %162 = sbr.rel (0) target = $region24
          $region23: #{crnn_forward.12} parent=19 // pred_region
            // Predicated region
            $region25: #{crnn_forward.12} parent=23 // pred_check
              _
            $region26: #{crnn_forward.12} parent=23 // pred_check_branch
              %164 = sbr.rel (0) target = $region28
            $region27: #{crnn_forward.12} parent=23 // pred_region
              // Predicated region
              $region40: #{crnn_forward.12} parent=27 // pred_check
                _
              $region41: #{crnn_forward.12} parent=27 // pred_check_branch
                %186 = sbr.rel (0) target = $region43
              $region42: #{crnn_forward.12} parent=27 // pred_region
                loop: start=0, step=1, limit=1
                $region44: #{crnn_forward.12} parent=42 // loop_pre_header
                  _
                $region45: #{crnn_forward.12} parent=42 // loop_header
                  %s188 = sphi 0, %s192
                  %p189 = scmp.ge.s32.totalorder %s188, 1
                  %s193 = sphi %s160, %s160
                  %s194 = sphi %s150, %s150
                $region46: #{crnn_forward.12} parent=42 // loop_header_branch
                  %191 = sbr.rel (%p189) target = $region50
                $region47: #{crnn_forward.12} parent=42 // loop_body
                  %v195 = vld [vmem:[%s193] sm:$0xff]
                  %196 = vst [vmem:[%s194] sm:$0xff] %v195
                  %v197 = vld [vmem:[%s193 + $0x10] sm:$0xff]
                  %198 = vst [vmem:[%s194 + $0x8] sm:$0xff] %v197
                  %v199 = vld [vmem:[%s193 + $0x20] sm:$0xff]
                  %200 = vst [vmem:[%s194 + $0x10] sm:$0xff] %v199
                  %v201 = vld [vmem:[%s193 + $0x30] sm:$0xff]
                  %202 = vst [vmem:[%s194 + $0x18] sm:$0xff] %v201
                $region48: #{crnn_forward.12} parent=42 // loop_footer
                  %s192 = sadd.s32 1, %s188
                $region49: #{crnn_forward.12} parent=42 // loop_footer_branch
                  %187 = sbr.rel target = $region45
                $region50: #{crnn_forward.12} parent=42 // loop_exit
                  _
              $region43: #{crnn_forward.12} parent=27 // pred_fallthru
                _
              // Predicated region
              $region51: #{crnn_forward.12} parent=27 // pred_check
                _
              $region52: #{crnn_forward.12} parent=27 // pred_check_branch
                %204 = sbr.rel target = $region54
              $region53: #{crnn_forward.12} parent=27 // pred_region
                _
              $region54: #{crnn_forward.12} parent=27 // pred_fallthru
                _
            $region28: #{crnn_forward.12} parent=23 // pred_fallthru
              _
            // Predicated region
            $region29: #{crnn_forward.12} parent=23 // pred_check
              _
            $region30: #{crnn_forward.12} parent=23 // pred_check_branch
              %166 = sbr.rel target = $region32
            $region31: #{crnn_forward.12} parent=23 // pred_region
              %s168 = ssub.s32 256, 1
              loop: start=0, step=1, limit=1
              $region33: #{crnn_forward.12} parent=31 // loop_pre_header
                _
              $region34: #{crnn_forward.12} parent=31 // loop_header
                %s170 = sphi 0, %s174
                %p171 = scmp.ge.s32.totalorder %s170, 1
                %s175 = sphi %s160, %s160
                %s176 = sphi %s150, %s150
              $region35: #{crnn_forward.12} parent=31 // loop_header_branch
                %173 = sbr.rel (%p171) target = $region39
              $region36: #{crnn_forward.12} parent=31 // loop_body
                %v177 = vld [vmem:[%s175] sm:%s168]
                %178 = vst [vmem:[%s176] sm:%s168] %v177
                %v179 = vld [vmem:[%s175 + $0x10] sm:%s168]
                %180 = vst [vmem:[%s176 + $0x8] sm:%s168] %v179
                %v181 = vld [vmem:[%s175 + $0x20] sm:%s168]
                %182 = vst [vmem:[%s176 + $0x10] sm:%s168] %v181
                %v183 = vld [vmem:[%s175 + $0x30] sm:%s168]
                %184 = vst [vmem:[%s176 + $0x18] sm:%s168] %v183
              $region37: #{crnn_forward.12} parent=31 // loop_footer
                %s174 = sadd.s32 1, %s170
              $region38: #{crnn_forward.12} parent=31 // loop_footer_branch
                %169 = sbr.rel target = $region34
              $region39: #{crnn_forward.12} parent=31 // loop_exit
                _
            $region32: #{crnn_forward.12} parent=23 // pred_fallthru
              _
          $region24: #{crnn_forward.12} parent=19 // pred_fallthru
            _
          %205 = vnop
        $region20: #{crnn_forward.12} parent=15 // pred_fallthru
          _
        // Predicated region
        $region55: #{crnn_forward.12} parent=15 // pred_check
          %p206 = pneg %p81
        $region56: #{crnn_forward.12} parent=15 // pred_check_branch
          %208 = sbr.rel (%p206) target = $region58
        $region57: #{crnn_forward.12} parent=15 // pred_region
          %s209 = sand.u32 %s71, 1
          %s210 = scalar_lea.sflag [#allocation6], %s209
          %s211 = sand.u32 %s71, 1
          %s212 = smul.addr %s211, 1024
          %s213 = scalar_lea.vmem [#allocation5], %s212
          %215 = vsyncadd %s210, 0
          %s216 = smul.addr %s18, 256
          %s217 = smul.addr %s216, 4
          %s218 = scalar_lea.hbm %s1, %s217
          %s219 = sshll.u32 %s218, 4
          %s220 = int_to_ptr.hbm [resolvable:$true] %s219
          %s221 = sshll.u32 %s213, 4
          %s222 = int_to_ptr.vmem [resolvable:$true] %s221
          %227 = dma.hbm_to_vmem [thread:$0]  %s220, 16384, %s222, %s210, 512, 512, 32
        $region58: #{crnn_forward.12} parent=15 // pred_fallthru
          _
      $region16: #{crnn_forward.12} parent=5 // pred_fallthru
        _
      %p228 = scmp.le.s32.totalorder 1, %s11
      %p229 = scmp.lt.s32.totalorder %s11, 3
      %p230 = pnand %p228, %p229
      %p231 = pneg %p230
      // Predicated region
      $region59: #{crnn_forward.12} parent=5 // pred_check
        _
      $region60: #{crnn_forward.12} parent=5 // pred_check_branch
        %233 = sbr.rel (%p230) target = $region62
      $region61: #{crnn_forward.12} parent=5 // pred_region
        %s234 = ssub.s32 %s11, 1
        %s235 = sand.u32 %s48, 1
        %s236 = sand.u32 %s48, 1
        %s237 = smul.addr %s236, 32
        %s238 = scalar_lea.vmem [#allocation4], %s237
        // Predicated region
        $region63: #{crnn_forward.12} parent=61 // pred_check
          %p239 = pneg %p61
        $region64: #{crnn_forward.12} parent=61 // pred_check_branch
          %241 = sbr.rel (%p239) target = $region66
        $region65: #{crnn_forward.12} parent=61 // pred_region
          _
        $region66: #{crnn_forward.12} parent=61 // pred_fallthru
          _
        %s242 = sand.u32 %s74, 1
        %s243 = scalar_lea.sflag [#allocation6], %s242
        %s244 = sand.u32 %s74, 1
        %s245 = smul.addr %s244, 1024
        %s246 = scalar_lea.vmem [#allocation5], %s245
        // Predicated region
        $region67: #{crnn_forward.12} parent=61 // pred_check
          %p247 = pneg %p87
        $region68: #{crnn_forward.12} parent=61 // pred_check_branch
          %249 = sbr.rel (%p247) target = $region70
        $region69: #{crnn_forward.12} parent=61 // pred_region
          %251 = dma.done %s243, 16384
        $region70: #{crnn_forward.12} parent=61 // pred_fallthru
          _
        %s252 = sand.u32 %s48, 1
        %s253 = sand.u32 %s48, 1
        %s254 = smul.addr %s253, 32
        %s255 = scalar_lea.vmem [#allocation4], %s254
        %p256 = pneg %p61
        %p257 = pneg %p58
        %s258 = sand.u32 %s74, 1
        %s259 = scalar_lea.sflag [#allocation6], %s258
        %s260 = sand.u32 %s74, 1
        %s261 = smul.addr %s260, 1024
        %s262 = scalar_lea.vmem [#allocation5], %s261
        %p263 = pneg %p87
        %p264 = pneg %p84
        %p265 = pneg %p125
        %p266 = pneg %p122
        %s267 = ssub.s32 0, %s21
        %s268 = smul.u32 %s20, %s267
        %s269 = ssub.s32 1, %s20
        %s270 = smul.u32 %s269, %s21
        %s271 = sadd.s32 %s268, %s270
        %s272 = smul.u32 4, %s271
        %p273 = scmp.lt.s32.totalorder %s20, 1
        %s274 = scalar_select %p273, %s20, 1
        %p275 = scmp.lt.s32.totalorder %s272, 3
        %s276 = scalar_select %p275, %s272, 3
        %s277 = smul.addr %s276, 2
        %s278 = smul.addr %s274, 8
        %s279 = sadd.s32 %s277, %s278
        %s280 = scalar_lea.vmem %s2, %s279
        %s281 = ssub.s32 0, %s21
        %s282 = smul.u32 %s20, %s281
        %s283 = ssub.s32 1, %s20
        %s284 = smul.u32 %s283, %s21
        %s285 = sadd.s32 %s282, %s284
        %s286 = smul.u32 4, %s285
        %s287 = smul.u32 8, %s20
        %s288 = ssub.s32 0, %s21
        %s289 = smul.u32 %s20, %s288
        %s290 = ssub.s32 1, %s20
        %s291 = smul.u32 %s290, %s21
        %s292 = sadd.s32 %s289, %s291
        %s293 = smul.u32 4, %s292
        %p294 = scmp.lt.s32.totalorder %s20, 1
        %s295 = scalar_select %p294, %s20, 1
        %p296 = scmp.lt.s32.totalorder %s293, 3
        %s297 = scalar_select %p296, %s293, 3
        %s298 = smul.addr %s297, 2
        %s299 = smul.addr %s295, 8
        %s300 = sadd.s32 %s298, %s299
        %s301 = scalar_lea.vmem %s2, %s300
        %s302 = ssub.s32 0, %s21
        %s303 = smul.u32 %s20, %s302
        %s304 = ssub.s32 1, %s20
        %s305 = smul.u32 %s304, %s21
        %s306 = sadd.s32 %s303, %s305
        %s307 = smul.u32 4, %s306
        %p308 = scmp.eq.s32.totalorder %s21, 0
        // Predicated region
        $region71: #{crnn_forward.12} parent=61 // pred_check
          %p309 = pneg %p308
        $region72: #{crnn_forward.12} parent=61 // pred_check_branch
          %311 = sbr.rel (%p309) target = $region74
        $region73: #{crnn_forward.12} parent=61 // pred_region
          %312 = vst [vmem:[#allocation2] sm:$0xf] 0.0
          %313 = vst [vmem:[#allocation3] sm:$0xf] 0.0
        $region74: #{crnn_forward.12} parent=61 // pred_fallthru
          _
        %s314 = smul.u32 %s20, 3
        %s315 = smul.u32 %s314, 8
        %s316 = scalar_lea.vmem %s238, %s315 [#allocation4]
        %v317 = vld [vmem:[%s316] sm:$0xff]
        %v318 = vunpack.c.l.bf16 %v317
        %v319 = vunpack.c.h.bf16 %v317
        %v320 = vld [vmem:[#allocation2] sm:$0xf]
        %322 = vst [vmem:[#allocation1] ss:$4 sm:$0xff] %v320
        %v323 = vld.sshfl [vmem:[#allocation1] sm:$0xff pattern:$0x73625140]
        %v324 = vld.sshfl [vmem:[#allocation1 + $0x8] sm:$0xff pattern:$0x73625140]
        %v327 = vpack.c.bf16 %v323, %v323
        %v328 = vpack.c.bf16 %v324, %v324
        %v329 = vld [vmem:[%s246] sm:$0xff]
        %v330 = vld [vmem:[%s246 + $0x8] sm:$0xff]
        %v331 = vld [vmem:[%s246 + $0x10] sm:$0xff]
        %v332 = vld [vmem:[%s246 + $0x18] sm:$0xff]
        %v333 = vld [vmem:[%s246 + $0x20] sm:$0xff]
        %v334 = vld [vmem:[%s246 + $0x28] sm:$0xff]
        %v335 = vld [vmem:[%s246 + $0x30] sm:$0xff]
        %v336 = vld [vmem:[%s246 + $0x38] sm:$0xff]
        %v337 = vld [vmem:[%s246 + $0x40] sm:$0xff]
        %v338 = vld [vmem:[%s246 + $0x48] sm:$0xff]
        %v339 = vld [vmem:[%s246 + $0x50] sm:$0xff]
        %v340 = vld [vmem:[%s246 + $0x58] sm:$0xff]
        %v341 = vld [vmem:[%s246 + $0x60] sm:$0xff]
        %v342 = vld [vmem:[%s246 + $0x68] sm:$0xff]
        %v343 = vld [vmem:[%s246 + $0x70] sm:$0xff]
        %v344 = vld [vmem:[%s246 + $0x78] sm:$0xff]
        %v345 = vld [vmem:[%s246 + $0x80] sm:$0xff]
        %v346 = vld [vmem:[%s246 + $0x88] sm:$0xff]
        %v347 = vld [vmem:[%s246 + $0x90] sm:$0xff]
        %v348 = vld [vmem:[%s246 + $0x98] sm:$0xff]
        %v349 = vld [vmem:[%s246 + $0xa0] sm:$0xff]
        %v350 = vld [vmem:[%s246 + $0xa8] sm:$0xff]
        %v351 = vld [vmem:[%s246 + $0xb0] sm:$0xff]
        %v352 = vld [vmem:[%s246 + $0xb8] sm:$0xff]
        %v353 = vld [vmem:[%s246 + $0xc0] sm:$0xff]
        %v354 = vld [vmem:[%s246 + $0xc8] sm:$0xff]
        %v355 = vld [vmem:[%s246 + $0xd0] sm:$0xff]
        %v356 = vld [vmem:[%s246 + $0xd8] sm:$0xff]
        %v357 = vld [vmem:[%s246 + $0xe0] sm:$0xff]
        %v358 = vld [vmem:[%s246 + $0xe8] sm:$0xff]
        %v359 = vld [vmem:[%s246 + $0xf0] sm:$0xff]
        %v360 = vld [vmem:[%s246 + $0xf8] sm:$0xff]
        %v361 = vld [vmem:[%s246 + $0x100] sm:$0xff]
        %v362 = vld [vmem:[%s246 + $0x108] sm:$0xff]
        %v363 = vld [vmem:[%s246 + $0x110] sm:$0xff]
        %v364 = vld [vmem:[%s246 + $0x118] sm:$0xff]
        %v365 = vld [vmem:[%s246 + $0x120] sm:$0xff]
        %v366 = vld [vmem:[%s246 + $0x128] sm:$0xff]
        %v367 = vld [vmem:[%s246 + $0x130] sm:$0xff]
        %v368 = vld [vmem:[%s246 + $0x138] sm:$0xff]
        %v369 = vld [vmem:[%s246 + $0x140] sm:$0xff]
        %v370 = vld [vmem:[%s246 + $0x148] sm:$0xff]
        %v371 = vld [vmem:[%s246 + $0x150] sm:$0xff]
        %v372 = vld [vmem:[%s246 + $0x158] sm:$0xff]
        %v373 = vld [vmem:[%s246 + $0x160] sm:$0xff]
        %v374 = vld [vmem:[%s246 + $0x168] sm:$0xff]
        %v375 = vld [vmem:[%s246 + $0x170] sm:$0xff]
        %v376 = vld [vmem:[%s246 + $0x178] sm:$0xff]
        %v377 = vld [vmem:[%s246 + $0x180] sm:$0xff]
        %v378 = vld [vmem:[%s246 + $0x188] sm:$0xff]
        %v379 = vld [vmem:[%s246 + $0x190] sm:$0xff]
        %v380 = vld [vmem:[%s246 + $0x198] sm:$0xff]
        %v381 = vld [vmem:[%s246 + $0x1a0] sm:$0xff]
        %v382 = vld [vmem:[%s246 + $0x1a8] sm:$0xff]
        %v383 = vld [vmem:[%s246 + $0x1b0] sm:$0xff]
        %v384 = vld [vmem:[%s246 + $0x1b8] sm:$0xff]
        %v385 = vld [vmem:[%s246 + $0x1c0] sm:$0xff]
        %v386 = vld [vmem:[%s246 + $0x1c8] sm:$0xff]
        %v387 = vld [vmem:[%s246 + $0x1d0] sm:$0xff]
        %v388 = vld [vmem:[%s246 + $0x1d8] sm:$0xff]
        %v389 = vld [vmem:[%s246 + $0x1e0] sm:$0xff]
        %v390 = vld [vmem:[%s246 + $0x1e8] sm:$0xff]
        %v391 = vld [vmem:[%s246 + $0x1f0] sm:$0xff]
        %v392 = vld [vmem:[%s246 + $0x1f8] sm:$0xff]
        %v393 = vld [vmem:[%s246 + $0x200] sm:$0xff]
        %v394 = vld [vmem:[%s246 + $0x208] sm:$0xff]
        %v395 = vld [vmem:[%s246 + $0x210] sm:$0xff]
        %v396 = vld [vmem:[%s246 + $0x218] sm:$0xff]
        %v397 = vld [vmem:[%s246 + $0x220] sm:$0xff]
        %v398 = vld [vmem:[%s246 + $0x228] sm:$0xff]
        %v399 = vld [vmem:[%s246 + $0x230] sm:$0xff]
        %v400 = vld [vmem:[%s246 + $0x238] sm:$0xff]
        %v401 = vld [vmem:[%s246 + $0x240] sm:$0xff]
        %v402 = vld [vmem:[%s246 + $0x248] sm:$0xff]
        %v403 = vld [vmem:[%s246 + $0x250] sm:$0xff]
        %v404 = vld [vmem:[%s246 + $0x258] sm:$0xff]
        %v405 = vld [vmem:[%s246 + $0x260] sm:$0xff]
        %v406 = vld [vmem:[%s246 + $0x268] sm:$0xff]
        %v407 = vld [vmem:[%s246 + $0x270] sm:$0xff]
        %v408 = vld [vmem:[%s246 + $0x278] sm:$0xff]
        %v409 = vld [vmem:[%s246 + $0x280] sm:$0xff]
        %v410 = vld [vmem:[%s246 + $0x288] sm:$0xff]
        %v411 = vld [vmem:[%s246 + $0x290] sm:$0xff]
        %v412 = vld [vmem:[%s246 + $0x298] sm:$0xff]
        %v413 = vld [vmem:[%s246 + $0x2a0] sm:$0xff]
        %v414 = vld [vmem:[%s246 + $0x2a8] sm:$0xff]
        %v415 = vld [vmem:[%s246 + $0x2b0] sm:$0xff]
        %v416 = vld [vmem:[%s246 + $0x2b8] sm:$0xff]
        %v417 = vld [vmem:[%s246 + $0x2c0] sm:$0xff]
        %v418 = vld [vmem:[%s246 + $0x2c8] sm:$0xff]
        %v419 = vld [vmem:[%s246 + $0x2d0] sm:$0xff]
        %v420 = vld [vmem:[%s246 + $0x2d8] sm:$0xff]
        %v421 = vld [vmem:[%s246 + $0x2e0] sm:$0xff]
        %v422 = vld [vmem:[%s246 + $0x2e8] sm:$0xff]
        %v423 = vld [vmem:[%s246 + $0x2f0] sm:$0xff]
        %v424 = vld [vmem:[%s246 + $0x2f8] sm:$0xff]
        %v425 = vld [vmem:[%s246 + $0x300] sm:$0xff]
        %v426 = vld [vmem:[%s246 + $0x308] sm:$0xff]
        %v427 = vld [vmem:[%s246 + $0x310] sm:$0xff]
        %v428 = vld [vmem:[%s246 + $0x318] sm:$0xff]
        %v429 = vld [vmem:[%s246 + $0x320] sm:$0xff]
        %v430 = vld [vmem:[%s246 + $0x328] sm:$0xff]
        %v431 = vld [vmem:[%s246 + $0x330] sm:$0xff]
        %v432 = vld [vmem:[%s246 + $0x338] sm:$0xff]
        %v433 = vld [vmem:[%s246 + $0x340] sm:$0xff]
        %v434 = vld [vmem:[%s246 + $0x348] sm:$0xff]
        %v435 = vld [vmem:[%s246 + $0x350] sm:$0xff]
        %v436 = vld [vmem:[%s246 + $0x358] sm:$0xff]
        %v437 = vld [vmem:[%s246 + $0x360] sm:$0xff]
        %v438 = vld [vmem:[%s246 + $0x368] sm:$0xff]
        %v439 = vld [vmem:[%s246 + $0x370] sm:$0xff]
        %v440 = vld [vmem:[%s246 + $0x378] sm:$0xff]
        %v441 = vld [vmem:[%s246 + $0x380] sm:$0xff]
        %v442 = vld [vmem:[%s246 + $0x388] sm:$0xff]
        %v443 = vld [vmem:[%s246 + $0x390] sm:$0xff]
        %v444 = vld [vmem:[%s246 + $0x398] sm:$0xff]
        %v445 = vld [vmem:[%s246 + $0x3a0] sm:$0xff]
        %v446 = vld [vmem:[%s246 + $0x3a8] sm:$0xff]
        %v447 = vld [vmem:[%s246 + $0x3b0] sm:$0xff]
        %v448 = vld [vmem:[%s246 + $0x3b8] sm:$0xff]
        %v449 = vld [vmem:[%s246 + $0x3c0] sm:$0xff]
        %v450 = vld [vmem:[%s246 + $0x3c8] sm:$0xff]
        %v451 = vld [vmem:[%s246 + $0x3d0] sm:$0xff]
        %v452 = vld [vmem:[%s246 + $0x3d8] sm:$0xff]
        %v453 = vld [vmem:[%s246 + $0x3e0] sm:$0xff]
        %v454 = vld [vmem:[%s246 + $0x3e8] sm:$0xff]
        %v455 = vld [vmem:[%s246 + $0x3f0] sm:$0xff]
        %v456 = vld [vmem:[%s246 + $0x3f8] sm:$0xff]
        %v585 = vunpack.c.l.b16 %v329
        %v586 = vunpack.c.h.b16 %v329
        %v587 = vunpack.c.l.b16 %v330
        %v588 = vunpack.c.h.b16 %v330
        %v589 = vunpack.c.l.b16 %v331
        %v590 = vunpack.c.h.b16 %v331
        %v591 = vunpack.c.l.b16 %v332
        %v592 = vunpack.c.h.b16 %v332
        %v593 = vunpack.c.l.b16 %v333
        %v594 = vunpack.c.h.b16 %v333
        %v595 = vunpack.c.l.b16 %v334
        %v596 = vunpack.c.h.b16 %v334
        %v597 = vunpack.c.l.b16 %v335
        %v598 = vunpack.c.h.b16 %v335
        %v599 = vunpack.c.l.b16 %v336
        %v600 = vunpack.c.h.b16 %v336
        %v601 = vunpack.c.l.b16 %v337
        %v602 = vunpack.c.h.b16 %v337
        %v603 = vunpack.c.l.b16 %v338
        %v604 = vunpack.c.h.b16 %v338
        %v605 = vunpack.c.l.b16 %v339
        %v606 = vunpack.c.h.b16 %v339
        %v607 = vunpack.c.l.b16 %v340
        %v608 = vunpack.c.h.b16 %v340
        %v609 = vunpack.c.l.b16 %v341
        %v610 = vunpack.c.h.b16 %v341
        %v611 = vunpack.c.l.b16 %v342
        %v612 = vunpack.c.h.b16 %v342
        %v613 = vunpack.c.l.b16 %v343
        %v614 = vunpack.c.h.b16 %v343
        %v615 = vunpack.c.l.b16 %v344
        %v616 = vunpack.c.h.b16 %v344
        %v617 = vunpack.c.l.b16 %v345
        %v618 = vunpack.c.h.b16 %v345
        %v619 = vunpack.c.l.b16 %v346
        %v620 = vunpack.c.h.b16 %v346
        %v621 = vunpack.c.l.b16 %v347
        %v622 = vunpack.c.h.b16 %v347
        %v623 = vunpack.c.l.b16 %v348
        %v624 = vunpack.c.h.b16 %v348
        %v625 = vunpack.c.l.b16 %v349
        %v626 = vunpack.c.h.b16 %v349
        %v627 = vunpack.c.l.b16 %v350
        %v628 = vunpack.c.h.b16 %v350
        %v629 = vunpack.c.l.b16 %v351
        %v630 = vunpack.c.h.b16 %v351
        %v631 = vunpack.c.l.b16 %v352
        %v632 = vunpack.c.h.b16 %v352
        %v633 = vunpack.c.l.b16 %v353
        %v634 = vunpack.c.h.b16 %v353
        %v635 = vunpack.c.l.b16 %v354
        %v636 = vunpack.c.h.b16 %v354
        %v637 = vunpack.c.l.b16 %v355
        %v638 = vunpack.c.h.b16 %v355
        %v639 = vunpack.c.l.b16 %v356
        %v640 = vunpack.c.h.b16 %v356
        %v641 = vunpack.c.l.b16 %v357
        %v642 = vunpack.c.h.b16 %v357
        %v643 = vunpack.c.l.b16 %v358
        %v644 = vunpack.c.h.b16 %v358
        %v645 = vunpack.c.l.b16 %v359
        %v646 = vunpack.c.h.b16 %v359
        %v647 = vunpack.c.l.b16 %v360
        %v648 = vunpack.c.h.b16 %v360
        %v649 = vunpack.c.l.b16 %v361
        %v650 = vunpack.c.h.b16 %v361
        %v651 = vunpack.c.l.b16 %v362
        %v652 = vunpack.c.h.b16 %v362
        %v653 = vunpack.c.l.b16 %v363
        %v654 = vunpack.c.h.b16 %v363
        %v655 = vunpack.c.l.b16 %v364
        %v656 = vunpack.c.h.b16 %v364
        %v657 = vunpack.c.l.b16 %v365
        %v658 = vunpack.c.h.b16 %v365
        %v659 = vunpack.c.l.b16 %v366
        %v660 = vunpack.c.h.b16 %v366
        %v661 = vunpack.c.l.b16 %v367
        %v662 = vunpack.c.h.b16 %v367
        %v663 = vunpack.c.l.b16 %v368
        %v664 = vunpack.c.h.b16 %v368
        %v665 = vunpack.c.l.b16 %v369
        %v666 = vunpack.c.h.b16 %v369
        %v667 = vunpack.c.l.b16 %v370
        %v668 = vunpack.c.h.b16 %v370
        %v669 = vunpack.c.l.b16 %v371
        %v670 = vunpack.c.h.b16 %v371
        %v671 = vunpack.c.l.b16 %v372
        %v672 = vunpack.c.h.b16 %v372
        %v673 = vunpack.c.l.b16 %v373
        %v674 = vunpack.c.h.b16 %v373
        %v675 = vunpack.c.l.b16 %v374
        %v676 = vunpack.c.h.b16 %v374
        %v677 = vunpack.c.l.b16 %v375
        %v678 = vunpack.c.h.b16 %v375
        %v679 = vunpack.c.l.b16 %v376
        %v680 = vunpack.c.h.b16 %v376
        %v681 = vunpack.c.l.b16 %v377
        %v682 = vunpack.c.h.b16 %v377
        %v683 = vunpack.c.l.b16 %v378
        %v684 = vunpack.c.h.b16 %v378
        %v685 = vunpack.c.l.b16 %v379
        %v686 = vunpack.c.h.b16 %v379
        %v687 = vunpack.c.l.b16 %v380
        %v688 = vunpack.c.h.b16 %v380
        %v689 = vunpack.c.l.b16 %v381
        %v690 = vunpack.c.h.b16 %v381
        %v691 = vunpack.c.l.b16 %v382
        %v692 = vunpack.c.h.b16 %v382
        %v693 = vunpack.c.l.b16 %v383
        %v694 = vunpack.c.h.b16 %v383
        %v695 = vunpack.c.l.b16 %v384
        %v696 = vunpack.c.h.b16 %v384
        %v697 = vunpack.c.l.b16 %v385
        %v698 = vunpack.c.h.b16 %v385
        %v699 = vunpack.c.l.b16 %v386
        %v700 = vunpack.c.h.b16 %v386
        %v701 = vunpack.c.l.b16 %v387
        %v702 = vunpack.c.h.b16 %v387
        %v703 = vunpack.c.l.b16 %v388
        %v704 = vunpack.c.h.b16 %v388
        %v705 = vunpack.c.l.b16 %v389
        %v706 = vunpack.c.h.b16 %v389
        %v707 = vunpack.c.l.b16 %v390
        %v708 = vunpack.c.h.b16 %v390
        %v709 = vunpack.c.l.b16 %v391
        %v710 = vunpack.c.h.b16 %v391
        %v711 = vunpack.c.l.b16 %v392
        %v712 = vunpack.c.h.b16 %v392
        %v713 = vunpack.c.l.b16 %v393
        %v714 = vunpack.c.h.b16 %v393
        %v715 = vunpack.c.l.b16 %v394
        %v716 = vunpack.c.h.b16 %v394
        %v717 = vunpack.c.l.b16 %v395
        %v718 = vunpack.c.h.b16 %v395
        %v719 = vunpack.c.l.b16 %v396
        %v720 = vunpack.c.h.b16 %v396
        %v721 = vunpack.c.l.b16 %v397
        %v722 = vunpack.c.h.b16 %v397
        %v723 = vunpack.c.l.b16 %v398
        %v724 = vunpack.c.h.b16 %v398
        %v725 = vunpack.c.l.b16 %v399
        %v726 = vunpack.c.h.b16 %v399
        %v727 = vunpack.c.l.b16 %v400
        %v728 = vunpack.c.h.b16 %v400
        %v729 = vunpack.c.l.b16 %v401
        %v730 = vunpack.c.h.b16 %v401
        %v731 = vunpack.c.l.b16 %v402
        %v732 = vunpack.c.h.b16 %v402
        %v733 = vunpack.c.l.b16 %v403
        %v734 = vunpack.c.h.b16 %v403
        %v735 = vunpack.c.l.b16 %v404
        %v736 = vunpack.c.h.b16 %v404
        %v737 = vunpack.c.l.b16 %v405
        %v738 = vunpack.c.h.b16 %v405
        %v739 = vunpack.c.l.b16 %v406
        %v740 = vunpack.c.h.b16 %v406
        %v741 = vunpack.c.l.b16 %v407
        %v742 = vunpack.c.h.b16 %v407
        %v743 = vunpack.c.l.b16 %v408
        %v744 = vunpack.c.h.b16 %v408
        %v745 = vunpack.c.l.b16 %v409
        %v746 = vunpack.c.h.b16 %v409
        %v747 = vunpack.c.l.b16 %v410
        %v748 = vunpack.c.h.b16 %v410
        %v749 = vunpack.c.l.b16 %v411
        %v750 = vunpack.c.h.b16 %v411
        %v751 = vunpack.c.l.b16 %v412
        %v752 = vunpack.c.h.b16 %v412
        %v753 = vunpack.c.l.b16 %v413
        %v754 = vunpack.c.h.b16 %v413
        %v755 = vunpack.c.l.b16 %v414
        %v756 = vunpack.c.h.b16 %v414
        %v757 = vunpack.c.l.b16 %v415
        %v758 = vunpack.c.h.b16 %v415
        %v759 = vunpack.c.l.b16 %v416
        %v760 = vunpack.c.h.b16 %v416
        %v761 = vunpack.c.l.b16 %v417
        %v762 = vunpack.c.h.b16 %v417
        %v763 = vunpack.c.l.b16 %v418
        %v764 = vunpack.c.h.b16 %v418
        %v765 = vunpack.c.l.b16 %v419
        %v766 = vunpack.c.h.b16 %v419
        %v767 = vunpack.c.l.b16 %v420
        %v768 = vunpack.c.h.b16 %v420
        %v769 = vunpack.c.l.b16 %v421
        %v770 = vunpack.c.h.b16 %v421
        %v771 = vunpack.c.l.b16 %v422
        %v772 = vunpack.c.h.b16 %v422
        %v773 = vunpack.c.l.b16 %v423
        %v774 = vunpack.c.h.b16 %v423
        %v775 = vunpack.c.l.b16 %v424
        %v776 = vunpack.c.h.b16 %v424
        %v777 = vunpack.c.l.b16 %v425
        %v778 = vunpack.c.h.b16 %v425
        %v779 = vunpack.c.l.b16 %v426
        %v780 = vunpack.c.h.b16 %v426
        %v781 = vunpack.c.l.b16 %v427
        %v782 = vunpack.c.h.b16 %v427
        %v783 = vunpack.c.l.b16 %v428
        %v784 = vunpack.c.h.b16 %v428
        %v785 = vunpack.c.l.b16 %v429
        %v786 = vunpack.c.h.b16 %v429
        %v787 = vunpack.c.l.b16 %v430
        %v788 = vunpack.c.h.b16 %v430
        %v789 = vunpack.c.l.b16 %v431
        %v790 = vunpack.c.h.b16 %v431
        %v791 = vunpack.c.l.b16 %v432
        %v792 = vunpack.c.h.b16 %v432
        %v793 = vunpack.c.l.b16 %v433
        %v794 = vunpack.c.h.b16 %v433
        %v795 = vunpack.c.l.b16 %v434
        %v796 = vunpack.c.h.b16 %v434
        %v797 = vunpack.c.l.b16 %v435
        %v798 = vunpack.c.h.b16 %v435
        %v799 = vunpack.c.l.b16 %v436
        %v800 = vunpack.c.h.b16 %v436
        %v801 = vunpack.c.l.b16 %v437
        %v802 = vunpack.c.h.b16 %v437
        %v803 = vunpack.c.l.b16 %v438
        %v804 = vunpack.c.h.b16 %v438
        %v805 = vunpack.c.l.b16 %v439
        %v806 = vunpack.c.h.b16 %v439
        %v807 = vunpack.c.l.b16 %v440
        %v808 = vunpack.c.h.b16 %v440
        %v809 = vunpack.c.l.b16 %v441
        %v810 = vunpack.c.h.b16 %v441
        %v811 = vunpack.c.l.b16 %v442
        %v812 = vunpack.c.h.b16 %v442
        %v813 = vunpack.c.l.b16 %v443
        %v814 = vunpack.c.h.b16 %v443
        %v815 = vunpack.c.l.b16 %v444
        %v816 = vunpack.c.h.b16 %v444
        %v817 = vunpack.c.l.b16 %v445
        %v818 = vunpack.c.h.b16 %v445
        %v819 = vunpack.c.l.b16 %v446
        %v820 = vunpack.c.h.b16 %v446
        %v821 = vunpack.c.l.b16 %v447
        %v822 = vunpack.c.h.b16 %v447
        %v823 = vunpack.c.l.b16 %v448
        %v824 = vunpack.c.h.b16 %v448
        %v825 = vunpack.c.l.b16 %v449
        %v826 = vunpack.c.h.b16 %v449
        %v827 = vunpack.c.l.b16 %v450
        %v828 = vunpack.c.h.b16 %v450
        %v829 = vunpack.c.l.b16 %v451
        %v830 = vunpack.c.h.b16 %v451
        %v831 = vunpack.c.l.b16 %v452
        %v832 = vunpack.c.h.b16 %v452
        %v833 = vunpack.c.l.b16 %v453
        %v834 = vunpack.c.h.b16 %v453
        %v835 = vunpack.c.l.b16 %v454
        %v836 = vunpack.c.h.b16 %v454
        %v837 = vunpack.c.l.b16 %v455
        %v838 = vunpack.c.h.b16 %v455
        %v839 = vunpack.c.l.b16 %v456
        %v840 = vunpack.c.h.b16 %v456
        %v841 = vpack.c.b16 %v593, %v585
        %v842 = vpack.c.b16 %v594, %v586
        %v843 = vpack.c.b16 %v595, %v587
        %v844 = vpack.c.b16 %v596, %v588
        %v845 = vpack.c.b16 %v597, %v589
        %v846 = vpack.c.b16 %v598, %v590
        %v847 = vpack.c.b16 %v599, %v591
        %v848 = vpack.c.b16 %v600, %v592
        %v849 = vpack.c.b16 %v609, %v601
        %v850 = vpack.c.b16 %v610, %v602
        %v851 = vpack.c.b16 %v611, %v603
        %v852 = vpack.c.b16 %v612, %v604
        %v853 = vpack.c.b16 %v613, %v605
        %v854 = vpack.c.b16 %v614, %v606
        %v855 = vpack.c.b16 %v615, %v607
        %v856 = vpack.c.b16 %v616, %v608
        %v857 = vpack.c.b16 %v625, %v617
        %v858 = vpack.c.b16 %v626, %v618
        %v859 = vpack.c.b16 %v627, %v619
        %v860 = vpack.c.b16 %v628, %v620
        %v861 = vpack.c.b16 %v629, %v621
        %v862 = vpack.c.b16 %v630, %v622
        %v863 = vpack.c.b16 %v631, %v623
        %v864 = vpack.c.b16 %v632, %v624
        %v865 = vpack.c.b16 %v641, %v633
        %v866 = vpack.c.b16 %v642, %v634
        %v867 = vpack.c.b16 %v643, %v635
        %v868 = vpack.c.b16 %v644, %v636
        %v869 = vpack.c.b16 %v645, %v637
        %v870 = vpack.c.b16 %v646, %v638
        %v871 = vpack.c.b16 %v647, %v639
        %v872 = vpack.c.b16 %v648, %v640
        %v873 = vpack.c.b16 %v657, %v649
        %v874 = vpack.c.b16 %v658, %v650
        %v875 = vpack.c.b16 %v659, %v651
        %v876 = vpack.c.b16 %v660, %v652
        %v877 = vpack.c.b16 %v661, %v653
        %v878 = vpack.c.b16 %v662, %v654
        %v879 = vpack.c.b16 %v663, %v655
        %v880 = vpack.c.b16 %v664, %v656
        %v881 = vpack.c.b16 %v673, %v665
        %v882 = vpack.c.b16 %v674, %v666
        %v883 = vpack.c.b16 %v675, %v667
        %v884 = vpack.c.b16 %v676, %v668
        %v885 = vpack.c.b16 %v677, %v669
        %v886 = vpack.c.b16 %v678, %v670
        %v887 = vpack.c.b16 %v679, %v671
        %v888 = vpack.c.b16 %v680, %v672
        %v889 = vpack.c.b16 %v689, %v681
        %v890 = vpack.c.b16 %v690, %v682
        %v891 = vpack.c.b16 %v691, %v683
        %v892 = vpack.c.b16 %v692, %v684
        %v893 = vpack.c.b16 %v693, %v685
        %v894 = vpack.c.b16 %v694, %v686
        %v895 = vpack.c.b16 %v695, %v687
        %v896 = vpack.c.b16 %v696, %v688
        %v897 = vpack.c.b16 %v705, %v697
        %v898 = vpack.c.b16 %v706, %v698
        %v899 = vpack.c.b16 %v707, %v699
        %v900 = vpack.c.b16 %v708, %v700
        %v901 = vpack.c.b16 %v709, %v701
        %v902 = vpack.c.b16 %v710, %v702
        %v903 = vpack.c.b16 %v711, %v703
        %v904 = vpack.c.b16 %v712, %v704
        %v905 = vpack.c.b16 %v721, %v713
        %v906 = vpack.c.b16 %v722, %v714
        %v907 = vpack.c.b16 %v723, %v715
        %v908 = vpack.c.b16 %v724, %v716
        %v909 = vpack.c.b16 %v725, %v717
        %v910 = vpack.c.b16 %v726, %v718
        %v911 = vpack.c.b16 %v727, %v719
        %v912 = vpack.c.b16 %v728, %v720
        %v913 = vpack.c.b16 %v737, %v729
        %v914 = vpack.c.b16 %v738, %v730
        %v915 = vpack.c.b16 %v739, %v731
        %v916 = vpack.c.b16 %v740, %v732
        %v917 = vpack.c.b16 %v741, %v733
        %v918 = vpack.c.b16 %v742, %v734
        %v919 = vpack.c.b16 %v743, %v735
        %v920 = vpack.c.b16 %v744, %v736
        %v921 = vpack.c.b16 %v753, %v745
        %v922 = vpack.c.b16 %v754, %v746
        %v923 = vpack.c.b16 %v755, %v747
        %v924 = vpack.c.b16 %v756, %v748
        %v925 = vpack.c.b16 %v757, %v749
        %v926 = vpack.c.b16 %v758, %v750
        %v927 = vpack.c.b16 %v759, %v751
        %v928 = vpack.c.b16 %v760, %v752
        %v929 = vpack.c.b16 %v769, %v761
        %v930 = vpack.c.b16 %v770, %v762
        %v931 = vpack.c.b16 %v771, %v763
        %v932 = vpack.c.b16 %v772, %v764
        %v933 = vpack.c.b16 %v773, %v765
        %v934 = vpack.c.b16 %v774, %v766
        %v935 = vpack.c.b16 %v775, %v767
        %v936 = vpack.c.b16 %v776, %v768
        %v937 = vpack.c.b16 %v785, %v777
        %v938 = vpack.c.b16 %v786, %v778
        %v939 = vpack.c.b16 %v787, %v779
        %v940 = vpack.c.b16 %v788, %v780
        %v941 = vpack.c.b16 %v789, %v781
        %v942 = vpack.c.b16 %v790, %v782
        %v943 = vpack.c.b16 %v791, %v783
        %v944 = vpack.c.b16 %v792, %v784
        %v945 = vpack.c.b16 %v801, %v793
        %v946 = vpack.c.b16 %v802, %v794
        %v947 = vpack.c.b16 %v803, %v795
        %v948 = vpack.c.b16 %v804, %v796
        %v949 = vpack.c.b16 %v805, %v797
        %v950 = vpack.c.b16 %v806, %v798
        %v951 = vpack.c.b16 %v807, %v799
        %v952 = vpack.c.b16 %v808, %v800
        %v953 = vpack.c.b16 %v817, %v809
        %v954 = vpack.c.b16 %v818, %v810
        %v955 = vpack.c.b16 %v819, %v811
        %v956 = vpack.c.b16 %v820, %v812
        %v957 = vpack.c.b16 %v821, %v813
        %v958 = vpack.c.b16 %v822, %v814
        %v959 = vpack.c.b16 %v823, %v815
        %v960 = vpack.c.b16 %v824, %v816
        %v961 = vpack.c.b16 %v833, %v825
        %v962 = vpack.c.b16 %v834, %v826
        %v963 = vpack.c.b16 %v835, %v827
        %v964 = vpack.c.b16 %v836, %v828
        %v965 = vpack.c.b16 %v837, %v829
        %v966 = vpack.c.b16 %v838, %v830
        %v967 = vpack.c.b16 %v839, %v831
        %v968 = vpack.c.b16 %v840, %v832
        %1097 = vmatpush.bf16.msra.mxu0 %v897
        %1098 = vmatpush.bf16.msra.mxu0 %v889
        %1099 = vmatpush.bf16.msra.mxu0 %v881
        %1100 = vmatpush.bf16.msra.mxu0 %v873
        %1101 = vmatpush.bf16.msra.mxu0 %v865
        %1102 = vmatpush.bf16.msra.mxu0 %v857
        %1103 = vmatpush.bf16.msra.mxu0 %v849
        %1104 = vmatpush.bf16.msra.mxu0 %v841
        %1105 = vmatmul.bf16.gmra.mxu0 %v327
        %v1106 = vpop.f32.mrf.mxu0
        %v1107 = vadd.f32 0.0, %v1106
        %v1108 = vpop.f32.mrf.mxu0
        %1109 = vdwg.mxu0
        %1110 = vmatpush.bf16.msra.mxu0 %v961
        %1111 = vmatpush.bf16.msra.mxu0 %v953
        %1112 = vmatpush.bf16.msra.mxu0 %v945
        %1113 = vmatpush.bf16.msra.mxu0 %v937
        %1114 = vmatpush.bf16.msra.mxu0 %v929
        %1115 = vmatpush.bf16.msra.mxu0 %v921
        %1116 = vmatpush.bf16.msra.mxu0 %v913
        %1117 = vmatpush.bf16.msra.mxu0 %v905
        %1118 = vmatmul.bf16.gmra.mxu0 %v328
        %v1119 = vpop.f32.mrf.mxu0
        %v1120 = vadd.f32 %v1107, %v1119
        %v1121 = vpop.f32.mrf.mxu0
        %1122 = vdwg.mxu0
        %1123 = vmatpush.bf16.msra.mxu0 %v898
        %1124 = vmatpush.bf16.msra.mxu0 %v890
        %1125 = vmatpush.bf16.msra.mxu0 %v882
        %1126 = vmatpush.bf16.msra.mxu0 %v874
        %1127 = vmatpush.bf16.msra.mxu0 %v866
        %1128 = vmatpush.bf16.msra.mxu0 %v858
        %1129 = vmatpush.bf16.msra.mxu0 %v850
        %1130 = vmatpush.bf16.msra.mxu0 %v842
        %1131 = vmatmul.bf16.gmra.mxu0 %v327
        %v1132 = vpop.f32.mrf.mxu0
        %v1133 = vadd.f32 0.0, %v1132
        %v1134 = vpop.f32.mrf.mxu0
        %1135 = vdwg.mxu0
        %1136 = vmatpush.bf16.msra.mxu0 %v962
        %1137 = vmatpush.bf16.msra.mxu0 %v954
        %1138 = vmatpush.bf16.msra.mxu0 %v946
        %1139 = vmatpush.bf16.msra.mxu0 %v938
        %1140 = vmatpush.bf16.msra.mxu0 %v930
        %1141 = vmatpush.bf16.msra.mxu0 %v922
        %1142 = vmatpush.bf16.msra.mxu0 %v914
        %1143 = vmatpush.bf16.msra.mxu0 %v906
        %1144 = vmatmul.bf16.gmra.mxu0 %v328
        %v1145 = vpop.f32.mrf.mxu0
        %v1146 = vadd.f32 %v1133, %v1145
        %v1147 = vpop.f32.mrf.mxu0
        %1148 = vdwg.mxu0
        %1149 = vmatpush.bf16.msra.mxu0 %v899
        %1150 = vmatpush.bf16.msra.mxu0 %v891
        %1151 = vmatpush.bf16.msra.mxu0 %v883
        %1152 = vmatpush.bf16.msra.mxu0 %v875
        %1153 = vmatpush.bf16.msra.mxu0 %v867
        %1154 = vmatpush.bf16.msra.mxu0 %v859
        %1155 = vmatpush.bf16.msra.mxu0 %v851
        %1156 = vmatpush.bf16.msra.mxu0 %v843
        %1157 = vmatmul.bf16.gmra.mxu0 %v327
        %v1158 = vpop.f32.mrf.mxu0
        %v1159 = vadd.f32 0.0, %v1158
        %v1160 = vpop.f32.mrf.mxu0
        %1161 = vdwg.mxu0
        %1162 = vmatpush.bf16.msra.mxu0 %v963
        %1163 = vmatpush.bf16.msra.mxu0 %v955
        %1164 = vmatpush.bf16.msra.mxu0 %v947
        %1165 = vmatpush.bf16.msra.mxu0 %v939
        %1166 = vmatpush.bf16.msra.mxu0 %v931
        %1167 = vmatpush.bf16.msra.mxu0 %v923
        %1168 = vmatpush.bf16.msra.mxu0 %v915
        %1169 = vmatpush.bf16.msra.mxu0 %v907
        %1170 = vmatmul.bf16.gmra.mxu0 %v328
        %v1171 = vpop.f32.mrf.mxu0
        %v1172 = vadd.f32 %v1159, %v1171
        %v1173 = vpop.f32.mrf.mxu0
        %1174 = vdwg.mxu0
        %1175 = vmatpush.bf16.msra.mxu0 %v900
        %1176 = vmatpush.bf16.msra.mxu0 %v892
        %1177 = vmatpush.bf16.msra.mxu0 %v884
        %1178 = vmatpush.bf16.msra.mxu0 %v876
        %1179 = vmatpush.bf16.msra.mxu0 %v868
        %1180 = vmatpush.bf16.msra.mxu0 %v860
        %1181 = vmatpush.bf16.msra.mxu0 %v852
        %1182 = vmatpush.bf16.msra.mxu0 %v844
        %1183 = vmatmul.bf16.gmra.mxu0 %v327
        %v1184 = vpop.f32.mrf.mxu0
        %v1185 = vadd.f32 0.0, %v1184
        %v1186 = vpop.f32.mrf.mxu0
        %1187 = vdwg.mxu0
        %1188 = vmatpush.bf16.msra.mxu0 %v964
        %1189 = vmatpush.bf16.msra.mxu0 %v956
        %1190 = vmatpush.bf16.msra.mxu0 %v948
        %1191 = vmatpush.bf16.msra.mxu0 %v940
        %1192 = vmatpush.bf16.msra.mxu0 %v932
        %1193 = vmatpush.bf16.msra.mxu0 %v924
        %1194 = vmatpush.bf16.msra.mxu0 %v916
        %1195 = vmatpush.bf16.msra.mxu0 %v908
        %1196 = vmatmul.bf16.gmra.mxu0 %v328
        %v1197 = vpop.f32.mrf.mxu0
        %v1198 = vadd.f32 %v1185, %v1197
        %v1199 = vpop.f32.mrf.mxu0
        %1200 = vdwg.mxu0
        %1201 = vmatpush.bf16.msra.mxu0 %v901
        %1202 = vmatpush.bf16.msra.mxu0 %v893
        %1203 = vmatpush.bf16.msra.mxu0 %v885
        %1204 = vmatpush.bf16.msra.mxu0 %v877
        %1205 = vmatpush.bf16.msra.mxu0 %v869
        %1206 = vmatpush.bf16.msra.mxu0 %v861
        %1207 = vmatpush.bf16.msra.mxu0 %v853
        %1208 = vmatpush.bf16.msra.mxu0 %v845
        %1209 = vmatmul.bf16.gmra.mxu0 %v327
        %v1210 = vpop.f32.mrf.mxu0
        %v1211 = vadd.f32 0.0, %v1210
        %v1212 = vpop.f32.mrf.mxu0
        %1213 = vdwg.mxu0
        %1214 = vmatpush.bf16.msra.mxu0 %v965
        %1215 = vmatpush.bf16.msra.mxu0 %v957
        %1216 = vmatpush.bf16.msra.mxu0 %v949
        %1217 = vmatpush.bf16.msra.mxu0 %v941
        %1218 = vmatpush.bf16.msra.mxu0 %v933
        %1219 = vmatpush.bf16.msra.mxu0 %v925
        %1220 = vmatpush.bf16.msra.mxu0 %v917
        %1221 = vmatpush.bf16.msra.mxu0 %v909
        %1222 = vmatmul.bf16.gmra.mxu0 %v328
        %v1223 = vpop.f32.mrf.mxu0
        %v1224 = vadd.f32 %v1211, %v1223
        %v1225 = vpop.f32.mrf.mxu0
        %1226 = vdwg.mxu0
        %1227 = vmatpush.bf16.msra.mxu0 %v902
        %1228 = vmatpush.bf16.msra.mxu0 %v894
        %1229 = vmatpush.bf16.msra.mxu0 %v886
        %1230 = vmatpush.bf16.msra.mxu0 %v878
        %1231 = vmatpush.bf16.msra.mxu0 %v870
        %1232 = vmatpush.bf16.msra.mxu0 %v862
        %1233 = vmatpush.bf16.msra.mxu0 %v854
        %1234 = vmatpush.bf16.msra.mxu0 %v846
        %1235 = vmatmul.bf16.gmra.mxu0 %v327
        %v1236 = vpop.f32.mrf.mxu0
        %v1237 = vadd.f32 0.0, %v1236
        %v1238 = vpop.f32.mrf.mxu0
        %1239 = vdwg.mxu0
        %1240 = vmatpush.bf16.msra.mxu0 %v966
        %1241 = vmatpush.bf16.msra.mxu0 %v958
        %1242 = vmatpush.bf16.msra.mxu0 %v950
        %1243 = vmatpush.bf16.msra.mxu0 %v942
        %1244 = vmatpush.bf16.msra.mxu0 %v934
        %1245 = vmatpush.bf16.msra.mxu0 %v926
        %1246 = vmatpush.bf16.msra.mxu0 %v918
        %1247 = vmatpush.bf16.msra.mxu0 %v910
        %1248 = vmatmul.bf16.gmra.mxu0 %v328
        %v1249 = vpop.f32.mrf.mxu0
        %v1250 = vadd.f32 %v1237, %v1249
        %v1251 = vpop.f32.mrf.mxu0
        %1252 = vdwg.mxu0
        %1253 = vmatpush.bf16.msra.mxu0 %v903
        %1254 = vmatpush.bf16.msra.mxu0 %v895
        %1255 = vmatpush.bf16.msra.mxu0 %v887
        %1256 = vmatpush.bf16.msra.mxu0 %v879
        %1257 = vmatpush.bf16.msra.mxu0 %v871
        %1258 = vmatpush.bf16.msra.mxu0 %v863
        %1259 = vmatpush.bf16.msra.mxu0 %v855
        %1260 = vmatpush.bf16.msra.mxu0 %v847
        %1261 = vmatmul.bf16.gmra.mxu0 %v327
        %v1262 = vpop.f32.mrf.mxu0
        %v1263 = vadd.f32 0.0, %v1262
        %v1264 = vpop.f32.mrf.mxu0
        %1265 = vdwg.mxu0
        %1266 = vmatpush.bf16.msra.mxu0 %v967
        %1267 = vmatpush.bf16.msra.mxu0 %v959
        %1268 = vmatpush.bf16.msra.mxu0 %v951
        %1269 = vmatpush.bf16.msra.mxu0 %v943
        %1270 = vmatpush.bf16.msra.mxu0 %v935
        %1271 = vmatpush.bf16.msra.mxu0 %v927
        %1272 = vmatpush.bf16.msra.mxu0 %v919
        %1273 = vmatpush.bf16.msra.mxu0 %v911
        %1274 = vmatmul.bf16.gmra.mxu0 %v328
        %v1275 = vpop.f32.mrf.mxu0
        %v1276 = vadd.f32 %v1263, %v1275
        %v1277 = vpop.f32.mrf.mxu0
        %1278 = vdwg.mxu0
        %1279 = vmatpush.bf16.msra.mxu0 %v904
        %1280 = vmatpush.bf16.msra.mxu0 %v896
        %1281 = vmatpush.bf16.msra.mxu0 %v888
        %1282 = vmatpush.bf16.msra.mxu0 %v880
        %1283 = vmatpush.bf16.msra.mxu0 %v872
        %1284 = vmatpush.bf16.msra.mxu0 %v864
        %1285 = vmatpush.bf16.msra.mxu0 %v856
        %1286 = vmatpush.bf16.msra.mxu0 %v848
        %1287 = vmatmul.bf16.gmra.mxu0 %v327
        %v1288 = vpop.f32.mrf.mxu0
        %v1289 = vadd.f32 0.0, %v1288
        %v1290 = vpop.f32.mrf.mxu0
        %1291 = vdwg.mxu0
        %1292 = vmatpush.bf16.msra.mxu0 %v968
        %1293 = vmatpush.bf16.msra.mxu0 %v960
        %1294 = vmatpush.bf16.msra.mxu0 %v952
        %1295 = vmatpush.bf16.msra.mxu0 %v944
        %1296 = vmatpush.bf16.msra.mxu0 %v936
        %1297 = vmatpush.bf16.msra.mxu0 %v928
        %1298 = vmatpush.bf16.msra.mxu0 %v920
        %1299 = vmatpush.bf16.msra.mxu0 %v912
        %1300 = vmatmul.bf16.gmra.mxu0 %v328
        %v1301 = vpop.f32.mrf.mxu0
        %v1302 = vadd.f32 %v1289, %v1301
        %v1303 = vpop.f32.mrf.mxu0
        %1304 = vdwg.mxu0
        %v1313 = vrot.slane %v1146, 6
        %v1314 = vrot.slane %v1172, 4
        %v1315 = vrot.slane %v1198, 2
        %v1316 = vrot.slane %v1250, 6
        %v1317 = vrot.slane %v1276, 4
        %v1318 = vrot.slane %v1302, 2
        %vm1319 = vcmask 1041408
        %v1320 = vsel %vm1319, %v1120, %v1313
        %vm1321 = vcmask 1045508
        %v1322 = vsel %vm1321, %v1314, %v1315
        %vm1323 = vcmask 1043456
        %v1324 = vsel %vm1323, %v1320, %v1322
        %v1325 = vsel %vm1319, %v1224, %v1316
        %v1326 = vsel %vm1321, %v1317, %v1318
        %v1327 = vsel %vm1323, %v1325, %v1326
        %v1330 = vadd.f32 %v318, %v1324
        %v1331 = vadd.f32 %v319, %v1327
        %v1332 = vmul.f32 %v1330, 0.5
        %v1333 = vtanh.pop %v1332
        %v1334 = vmul.f32 %v1333, 0.5
        %v1335 = vadd.f32 %v1334, 0.5
        %v1337 = vrot.slane %v1330, 4
        %v1339 = vmul.f32 %v1337, 0.5
        %v1340 = vtanh.pop %v1339
        %v1341 = vmul.f32 %v1340, 0.5
        %v1342 = vadd.f32 %v1341, 0.5
        %v1343 = vtanh.pop %v1331
        %v1345 = vrot.slane %v1331, 4
        %v1347 = vmul.f32 %v1345, 0.5
        %v1348 = vtanh.pop %v1347
        %v1349 = vmul.f32 %v1348, 0.5
        %v1350 = vadd.f32 %v1349, 0.5
        %v1351 = vld [vmem:[#allocation3] sm:$0xf]
        %v1352 = vmul.f32 %v1342, %v1351
        %v1353 = vmul.f32 %v1335, %v1343
        %v1354 = vadd.f32 %v1352, %v1353
        %v1355 = vtanh.pop %v1354
        %v1356 = vmul.f32 %v1350, %v1355
        %1357 = vst [vmem:[#allocation2] sm:$0xf] %v1356
        %1358 = vst [vmem:[#allocation3] sm:$0xf] %v1354
        %1360 = vst [vmem:[#allocation1] ss:$4 sm:$0xff] %v1356
        %v1361 = vld.sshfl [vmem:[#allocation1] sm:$0xff pattern:$0x73625140]
        %v1362 = vld.sshfl [vmem:[#allocation1 + $0x8] sm:$0xff pattern:$0x73625140]
        %v1365 = vpack.c.bf16 %v1362, %v1361
        %v1367 = vrot.slane %v1365, 3
        %vm1368 = vcmask 1040384
        %v1371 = vsel %vm1368, %v1365, %v1367
        %s1373 = smul.u32 %s314, 2
        %s1374 = scalar_lea.vmem %s301, %s1373
        %1375 = vst [vmem:[%s1374] sm:$0x3] %v1371
        %s1376 = ssub.s32 1, %s20
        %s1377 = smul.u32 %s20, 2
        %s1378 = sadd.s32 %s1376, %s1377
        %s1379 = smul.u32 %s1378, 8
        %s1380 = scalar_lea.vmem %s238, %s1379 [#allocation4]
        %v1381 = vld [vmem:[%s1380] sm:$0xff]
        %v1382 = vunpack.c.l.bf16 %v1381
        %v1383 = vunpack.c.h.bf16 %v1381
        %v1384 = vld [vmem:[#allocation2] sm:$0xf]
        %1386 = vst [vmem:[#allocation1] ss:$4 sm:$0xff] %v1384
        %v1387 = vld.sshfl [vmem:[#allocation1] sm:$0xff pattern:$0x73625140]
        %v1388 = vld.sshfl [vmem:[#allocation1 + $0x8] sm:$0xff pattern:$0x73625140]
        %v1391 = vpack.c.bf16 %v1387, %v1387
        %v1392 = vpack.c.bf16 %v1388, %v1388
        %v1393 = vld [vmem:[%s246] sm:$0xff]
        %v1394 = vld [vmem:[%s246 + $0x8] sm:$0xff]
        %v1395 = vld [vmem:[%s246 + $0x10] sm:$0xff]
        %v1396 = vld [vmem:[%s246 + $0x18] sm:$0xff]
        %v1397 = vld [vmem:[%s246 + $0x20] sm:$0xff]
        %v1398 = vld [vmem:[%s246 + $0x28] sm:$0xff]
        %v1399 = vld [vmem:[%s246 + $0x30] sm:$0xff]
        %v1400 = vld [vmem:[%s246 + $0x38] sm:$0xff]
        %v1401 = vld [vmem:[%s246 + $0x40] sm:$0xff]
        %v1402 = vld [vmem:[%s246 + $0x48] sm:$0xff]
        %v1403 = vld [vmem:[%s246 + $0x50] sm:$0xff]
        %v1404 = vld [vmem:[%s246 + $0x58] sm:$0xff]
        %v1405 = vld [vmem:[%s246 + $0x60] sm:$0xff]
        %v1406 = vld [vmem:[%s246 + $0x68] sm:$0xff]
        %v1407 = vld [vmem:[%s246 + $0x70] sm:$0xff]
        %v1408 = vld [vmem:[%s246 + $0x78] sm:$0xff]
        %v1409 = vld [vmem:[%s246 + $0x80] sm:$0xff]
        %v1410 = vld [vmem:[%s246 + $0x88] sm:$0xff]
        %v1411 = vld [vmem:[%s246 + $0x90] sm:$0xff]
        %v1412 = vld [vmem:[%s246 + $0x98] sm:$0xff]
        %v1413 = vld [vmem:[%s246 + $0xa0] sm:$0xff]
        %v1414 = vld [vmem:[%s246 + $0xa8] sm:$0xff]
        %v1415 = vld [vmem:[%s246 + $0xb0] sm:$0xff]
        %v1416 = vld [vmem:[%s246 + $0xb8] sm:$0xff]
        %v1417 = vld [vmem:[%s246 + $0xc0] sm:$0xff]
        %v1418 = vld [vmem:[%s246 + $0xc8] sm:$0xff]
        %v1419 = vld [vmem:[%s246 + $0xd0] sm:$0xff]
        %v1420 = vld [vmem:[%s246 + $0xd8] sm:$0xff]
        %v1421 = vld [vmem:[%s246 + $0xe0] sm:$0xff]
        %v1422 = vld [vmem:[%s246 + $0xe8] sm:$0xff]
        %v1423 = vld [vmem:[%s246 + $0xf0] sm:$0xff]
        %v1424 = vld [vmem:[%s246 + $0xf8] sm:$0xff]
        %v1425 = vld [vmem:[%s246 + $0x100] sm:$0xff]
        %v1426 = vld [vmem:[%s246 + $0x108] sm:$0xff]
        %v1427 = vld [vmem:[%s246 + $0x110] sm:$0xff]
        %v1428 = vld [vmem:[%s246 + $0x118] sm:$0xff]
        %v1429 = vld [vmem:[%s246 + $0x120] sm:$0xff]
        %v1430 = vld [vmem:[%s246 + $0x128] sm:$0xff]
        %v1431 = vld [vmem:[%s246 + $0x130] sm:$0xff]
        %v1432 = vld [vmem:[%s246 + $0x138] sm:$0xff]
        %v1433 = vld [vmem:[%s246 + $0x140] sm:$0xff]
        %v1434 = vld [vmem:[%s246 + $0x148] sm:$0xff]
        %v1435 = vld [vmem:[%s246 + $0x150] sm:$0xff]
        %v1436 = vld [vmem:[%s246 + $0x158] sm:$0xff]
        %v1437 = vld [vmem:[%s246 + $0x160] sm:$0xff]
        %v1438 = vld [vmem:[%s246 + $0x168] sm:$0xff]
        %v1439 = vld [vmem:[%s246 + $0x170] sm:$0xff]
        %v1440 = vld [vmem:[%s246 + $0x178] sm:$0xff]
        %v1441 = vld [vmem:[%s246 + $0x180] sm:$0xff]
        %v1442 = vld [vmem:[%s246 + $0x188] sm:$0xff]
        %v1443 = vld [vmem:[%s246 + $0x190] sm:$0xff]
        %v1444 = vld [vmem:[%s246 + $0x198] sm:$0xff]
        %v1445 = vld [vmem:[%s246 + $0x1a0] sm:$0xff]
        %v1446 = vld [vmem:[%s246 + $0x1a8] sm:$0xff]
        %v1447 = vld [vmem:[%s246 + $0x1b0] sm:$0xff]
        %v1448 = vld [vmem:[%s246 + $0x1b8] sm:$0xff]
        %v1449 = vld [vmem:[%s246 + $0x1c0] sm:$0xff]
        %v1450 = vld [vmem:[%s246 + $0x1c8] sm:$0xff]
        %v1451 = vld [vmem:[%s246 + $0x1d0] sm:$0xff]
        %v1452 = vld [vmem:[%s246 + $0x1d8] sm:$0xff]
        %v1453 = vld [vmem:[%s246 + $0x1e0] sm:$0xff]
        %v1454 = vld [vmem:[%s246 + $0x1e8] sm:$0xff]
        %v1455 = vld [vmem:[%s246 + $0x1f0] sm:$0xff]
        %v1456 = vld [vmem:[%s246 + $0x1f8] sm:$0xff]
        %v1457 = vld [vmem:[%s246 + $0x200] sm:$0xff]
        %v1458 = vld [vmem:[%s246 + $0x208] sm:$0xff]
        %v1459 = vld [vmem:[%s246 + $0x210] sm:$0xff]
        %v1460 = vld [vmem:[%s246 + $0x218] sm:$0xff]
        %v1461 = vld [vmem:[%s246 + $0x220] sm:$0xff]
        %v1462 = vld [vmem:[%s246 + $0x228] sm:$0xff]
        %v1463 = vld [vmem:[%s246 + $0x230] sm:$0xff]
        %v1464 = vld [vmem:[%s246 + $0x238] sm:$0xff]
        %v1465 = vld [vmem:[%s246 + $0x240] sm:$0xff]
        %v1466 = vld [vmem:[%s246 + $0x248] sm:$0xff]
        %v1467 = vld [vmem:[%s246 + $0x250] sm:$0xff]
        %v1468 = vld [vmem:[%s246 + $0x258] sm:$0xff]
        %v1469 = vld [vmem:[%s246 + $0x260] sm:$0xff]
        %v1470 = vld [vmem:[%s246 + $0x268] sm:$0xff]
        %v1471 = vld [vmem:[%s246 + $0x270] sm:$0xff]
        %v1472 = vld [vmem:[%s246 + $0x278] sm:$0xff]
        %v1473 = vld [vmem:[%s246 + $0x280] sm:$0xff]
        %v1474 = vld [vmem:[%s246 + $0x288] sm:$0xff]
        %v1475 = vld [vmem:[%s246 + $0x290] sm:$0xff]
        %v1476 = vld [vmem:[%s246 + $0x298] sm:$0xff]
        %v1477 = vld [vmem:[%s246 + $0x2a0] sm:$0xff]
        %v1478 = vld [vmem:[%s246 + $0x2a8] sm:$0xff]
        %v1479 = vld [vmem:[%s246 + $0x2b0] sm:$0xff]
        %v1480 = vld [vmem:[%s246 + $0x2b8] sm:$0xff]
        %v1481 = vld [vmem:[%s246 + $0x2c0] sm:$0xff]
        %v1482 = vld [vmem:[%s246 + $0x2c8] sm:$0xff]
        %v1483 = vld [vmem:[%s246 + $0x2d0] sm:$0xff]
        %v1484 = vld [vmem:[%s246 + $0x2d8] sm:$0xff]
        %v1485 = vld [vmem:[%s246 + $0x2e0] sm:$0xff]
        %v1486 = vld [vmem:[%s246 + $0x2e8] sm:$0xff]
        %v1487 = vld [vmem:[%s246 + $0x2f0] sm:$0xff]
        %v1488 = vld [vmem:[%s246 + $0x2f8] sm:$0xff]
        %v1489 = vld [vmem:[%s246 + $0x300] sm:$0xff]
        %v1490 = vld [vmem:[%s246 + $0x308] sm:$0xff]
        %v1491 = vld [vmem:[%s246 + $0x310] sm:$0xff]
        %v1492 = vld [vmem:[%s246 + $0x318] sm:$0xff]
        %v1493 = vld [vmem:[%s246 + $0x320] sm:$0xff]
        %v1494 = vld [vmem:[%s246 + $0x328] sm:$0xff]
        %v1495 = vld [vmem:[%s246 + $0x330] sm:$0xff]
        %v1496 = vld [vmem:[%s246 + $0x338] sm:$0xff]
        %v1497 = vld [vmem:[%s246 + $0x340] sm:$0xff]
        %v1498 = vld [vmem:[%s246 + $0x348] sm:$0xff]
        %v1499 = vld [vmem:[%s246 + $0x350] sm:$0xff]
        %v1500 = vld [vmem:[%s246 + $0x358] sm:$0xff]
        %v1501 = vld [vmem:[%s246 + $0x360] sm:$0xff]
        %v1502 = vld [vmem:[%s246 + $0x368] sm:$0xff]
        %v1503 = vld [vmem:[%s246 + $0x370] sm:$0xff]
        %v1504 = vld [vmem:[%s246 + $0x378] sm:$0xff]
        %v1505 = vld [vmem:[%s246 + $0x380] sm:$0xff]
        %v1506 = vld [vmem:[%s246 + $0x388] sm:$0xff]
        %v1507 = vld [vmem:[%s246 + $0x390] sm:$0xff]
        %v1508 = vld [vmem:[%s246 + $0x398] sm:$0xff]
        %v1509 = vld [vmem:[%s246 + $0x3a0] sm:$0xff]
        %v1510 = vld [vmem:[%s246 + $0x3a8] sm:$0xff]
        %v1511 = vld [vmem:[%s246 + $0x3b0] sm:$0xff]
        %v1512 = vld [vmem:[%s246 + $0x3b8] sm:$0xff]
        %v1513 = vld [vmem:[%s246 + $0x3c0] sm:$0xff]
        %v1514 = vld [vmem:[%s246 + $0x3c8] sm:$0xff]
        %v1515 = vld [vmem:[%s246 + $0x3d0] sm:$0xff]
        %v1516 = vld [vmem:[%s246 + $0x3d8] sm:$0xff]
        %v1517 = vld [vmem:[%s246 + $0x3e0] sm:$0xff]
        %v1518 = vld [vmem:[%s246 + $0x3e8] sm:$0xff]
        %v1519 = vld [vmem:[%s246 + $0x3f0] sm:$0xff]
        %v1520 = vld [vmem:[%s246 + $0x3f8] sm:$0xff]
        %v1649 = vunpack.c.l.b16 %v1393
        %v1650 = vunpack.c.h.b16 %v1393
        %v1651 = vunpack.c.l.b16 %v1394
        %v1652 = vunpack.c.h.b16 %v1394
        %v1653 = vunpack.c.l.b16 %v1395
        %v1654 = vunpack.c.h.b16 %v1395
        %v1655 = vunpack.c.l.b16 %v1396
        %v1656 = vunpack.c.h.b16 %v1396
        %v1657 = vunpack.c.l.b16 %v1397
        %v1658 = vunpack.c.h.b16 %v1397
        %v1659 = vunpack.c.l.b16 %v1398
        %v1660 = vunpack.c.h.b16 %v1398
        %v1661 = vunpack.c.l.b16 %v1399
        %v1662 = vunpack.c.h.b16 %v1399
        %v1663 = vunpack.c.l.b16 %v1400
        %v1664 = vunpack.c.h.b16 %v1400
        %v1665 = vunpack.c.l.b16 %v1401
        %v1666 = vunpack.c.h.b16 %v1401
        %v1667 = vunpack.c.l.b16 %v1402
        %v1668 = vunpack.c.h.b16 %v1402
        %v1669 = vunpack.c.l.b16 %v1403
        %v1670 = vunpack.c.h.b16 %v1403
        %v1671 = vunpack.c.l.b16 %v1404
        %v1672 = vunpack.c.h.b16 %v1404
        %v1673 = vunpack.c.l.b16 %v1405
        %v1674 = vunpack.c.h.b16 %v1405
        %v1675 = vunpack.c.l.b16 %v1406
        %v1676 = vunpack.c.h.b16 %v1406
        %v1677 = vunpack.c.l.b16 %v1407
        %v1678 = vunpack.c.h.b16 %v1407
        %v1679 = vunpack.c.l.b16 %v1408
        %v1680 = vunpack.c.h.b16 %v1408
        %v1681 = vunpack.c.l.b16 %v1409
        %v1682 = vunpack.c.h.b16 %v1409
        %v1683 = vunpack.c.l.b16 %v1410
        %v1684 = vunpack.c.h.b16 %v1410
        %v1685 = vunpack.c.l.b16 %v1411
        %v1686 = vunpack.c.h.b16 %v1411
        %v1687 = vunpack.c.l.b16 %v1412
        %v1688 = vunpack.c.h.b16 %v1412
        %v1689 = vunpack.c.l.b16 %v1413
        %v1690 = vunpack.c.h.b16 %v1413
        %v1691 = vunpack.c.l.b16 %v1414
        %v1692 = vunpack.c.h.b16 %v1414
        %v1693 = vunpack.c.l.b16 %v1415
        %v1694 = vunpack.c.h.b16 %v1415
        %v1695 = vunpack.c.l.b16 %v1416
        %v1696 = vunpack.c.h.b16 %v1416
        %v1697 = vunpack.c.l.b16 %v1417
        %v1698 = vunpack.c.h.b16 %v1417
        %v1699 = vunpack.c.l.b16 %v1418
        %v1700 = vunpack.c.h.b16 %v1418
        %v1701 = vunpack.c.l.b16 %v1419
        %v1702 = vunpack.c.h.b16 %v1419
        %v1703 = vunpack.c.l.b16 %v1420
        %v1704 = vunpack.c.h.b16 %v1420
        %v1705 = vunpack.c.l.b16 %v1421
        %v1706 = vunpack.c.h.b16 %v1421
        %v1707 = vunpack.c.l.b16 %v1422
        %v1708 = vunpack.c.h.b16 %v1422
        %v1709 = vunpack.c.l.b16 %v1423
        %v1710 = vunpack.c.h.b16 %v1423
        %v1711 = vunpack.c.l.b16 %v1424
        %v1712 = vunpack.c.h.b16 %v1424
        %v1713 = vunpack.c.l.b16 %v1425
        %v1714 = vunpack.c.h.b16 %v1425
        %v1715 = vunpack.c.l.b16 %v1426
        %v1716 = vunpack.c.h.b16 %v1426
        %v1717 = vunpack.c.l.b16 %v1427
        %v1718 = vunpack.c.h.b16 %v1427
        %v1719 = vunpack.c.l.b16 %v1428
        %v1720 = vunpack.c.h.b16 %v1428
        %v1721 = vunpack.c.l.b16 %v1429
        %v1722 = vunpack.c.h.b16 %v1429
        %v1723 = vunpack.c.l.b16 %v1430
        %v1724 = vunpack.c.h.b16 %v1430
        %v1725 = vunpack.c.l.b16 %v1431
        %v1726 = vunpack.c.h.b16 %v1431
        %v1727 = vunpack.c.l.b16 %v1432
        %v1728 = vunpack.c.h.b16 %v1432
        %v1729 = vunpack.c.l.b16 %v1433
        %v1730 = vunpack.c.h.b16 %v1433
        %v1731 = vunpack.c.l.b16 %v1434
        %v1732 = vunpack.c.h.b16 %v1434
        %v1733 = vunpack.c.l.b16 %v1435
        %v1734 = vunpack.c.h.b16 %v1435
        %v1735 = vunpack.c.l.b16 %v1436
        %v1736 = vunpack.c.h.b16 %v1436
        %v1737 = vunpack.c.l.b16 %v1437
        %v1738 = vunpack.c.h.b16 %v1437
        %v1739 = vunpack.c.l.b16 %v1438
        %v1740 = vunpack.c.h.b16 %v1438
        %v1741 = vunpack.c.l.b16 %v1439
        %v1742 = vunpack.c.h.b16 %v1439
        %v1743 = vunpack.c.l.b16 %v1440
        %v1744 = vunpack.c.h.b16 %v1440
        %v1745 = vunpack.c.l.b16 %v1441
        %v1746 = vunpack.c.h.b16 %v1441
        %v1747 = vunpack.c.l.b16 %v1442
        %v1748 = vunpack.c.h.b16 %v1442
        %v1749 = vunpack.c.l.b16 %v1443
        %v1750 = vunpack.c.h.b16 %v1443
        %v1751 = vunpack.c.l.b16 %v1444
        %v1752 = vunpack.c.h.b16 %v1444
        %v1753 = vunpack.c.l.b16 %v1445
        %v1754 = vunpack.c.h.b16 %v1445
        %v1755 = vunpack.c.l.b16 %v1446
        %v1756 = vunpack.c.h.b16 %v1446
        %v1757 = vunpack.c.l.b16 %v1447
        %v1758 = vunpack.c.h.b16 %v1447
        %v1759 = vunpack.c.l.b16 %v1448
        %v1760 = vunpack.c.h.b16 %v1448
        %v1761 = vunpack.c.l.b16 %v1449
        %v1762 = vunpack.c.h.b16 %v1449
        %v1763 = vunpack.c.l.b16 %v1450
        %v1764 = vunpack.c.h.b16 %v1450
        %v1765 = vunpack.c.l.b16 %v1451
        %v1766 = vunpack.c.h.b16 %v1451
        %v1767 = vunpack.c.l.b16 %v1452
        %v1768 = vunpack.c.h.b16 %v1452
        %v1769 = vunpack.c.l.b16 %v1453
        %v1770 = vunpack.c.h.b16 %v1453
        %v1771 = vunpack.c.l.b16 %v1454
        %v1772 = vunpack.c.h.b16 %v1454
        %v1773 = vunpack.c.l.b16 %v1455
        %v1774 = vunpack.c.h.b16 %v1455
        %v1775 = vunpack.c.l.b16 %v1456
        %v1776 = vunpack.c.h.b16 %v1456
        %v1777 = vunpack.c.l.b16 %v1457
        %v1778 = vunpack.c.h.b16 %v1457
        %v1779 = vunpack.c.l.b16 %v1458
        %v1780 = vunpack.c.h.b16 %v1458
        %v1781 = vunpack.c.l.b16 %v1459
        %v1782 = vunpack.c.h.b16 %v1459
        %v1783 = vunpack.c.l.b16 %v1460
        %v1784 = vunpack.c.h.b16 %v1460
        %v1785 = vunpack.c.l.b16 %v1461
        %v1786 = vunpack.c.h.b16 %v1461
        %v1787 = vunpack.c.l.b16 %v1462
        %v1788 = vunpack.c.h.b16 %v1462
        %v1789 = vunpack.c.l.b16 %v1463
        %v1790 = vunpack.c.h.b16 %v1463
        %v1791 = vunpack.c.l.b16 %v1464
        %v1792 = vunpack.c.h.b16 %v1464
        %v1793 = vunpack.c.l.b16 %v1465
        %v1794 = vunpack.c.h.b16 %v1465
        %v1795 = vunpack.c.l.b16 %v1466
        %v1796 = vunpack.c.h.b16 %v1466
        %v1797 = vunpack.c.l.b16 %v1467
        %v1798 = vunpack.c.h.b16 %v1467
        %v1799 = vunpack.c.l.b16 %v1468
        %v1800 = vunpack.c.h.b16 %v1468
        %v1801 = vunpack.c.l.b16 %v1469
        %v1802 = vunpack.c.h.b16 %v1469
        %v1803 = vunpack.c.l.b16 %v1470
        %v1804 = vunpack.c.h.b16 %v1470
        %v1805 = vunpack.c.l.b16 %v1471
        %v1806 = vunpack.c.h.b16 %v1471
        %v1807 = vunpack.c.l.b16 %v1472
        %v1808 = vunpack.c.h.b16 %v1472
        %v1809 = vunpack.c.l.b16 %v1473
        %v1810 = vunpack.c.h.b16 %v1473
        %v1811 = vunpack.c.l.b16 %v1474
        %v1812 = vunpack.c.h.b16 %v1474
        %v1813 = vunpack.c.l.b16 %v1475
        %v1814 = vunpack.c.h.b16 %v1475
        %v1815 = vunpack.c.l.b16 %v1476
        %v1816 = vunpack.c.h.b16 %v1476
        %v1817 = vunpack.c.l.b16 %v1477
        %v1818 = vunpack.c.h.b16 %v1477
        %v1819 = vunpack.c.l.b16 %v1478
        %v1820 = vunpack.c.h.b16 %v1478
        %v1821 = vunpack.c.l.b16 %v1479
        %v1822 = vunpack.c.h.b16 %v1479
        %v1823 = vunpack.c.l.b16 %v1480
        %v1824 = vunpack.c.h.b16 %v1480
        %v1825 = vunpack.c.l.b16 %v1481
        %v1826 = vunpack.c.h.b16 %v1481
        %v1827 = vunpack.c.l.b16 %v1482
        %v1828 = vunpack.c.h.b16 %v1482
        %v1829 = vunpack.c.l.b16 %v1483
        %v1830 = vunpack.c.h.b16 %v1483
        %v1831 = vunpack.c.l.b16 %v1484
        %v1832 = vunpack.c.h.b16 %v1484
        %v1833 = vunpack.c.l.b16 %v1485
        %v1834 = vunpack.c.h.b16 %v1485
        %v1835 = vunpack.c.l.b16 %v1486
        %v1836 = vunpack.c.h.b16 %v1486
        %v1837 = vunpack.c.l.b16 %v1487
        %v1838 = vunpack.c.h.b16 %v1487
        %v1839 = vunpack.c.l.b16 %v1488
        %v1840 = vunpack.c.h.b16 %v1488
        %v1841 = vunpack.c.l.b16 %v1489
        %v1842 = vunpack.c.h.b16 %v1489
        %v1843 = vunpack.c.l.b16 %v1490
        %v1844 = vunpack.c.h.b16 %v1490
        %v1845 = vunpack.c.l.b16 %v1491
        %v1846 = vunpack.c.h.b16 %v1491
        %v1847 = vunpack.c.l.b16 %v1492
        %v1848 = vunpack.c.h.b16 %v1492
        %v1849 = vunpack.c.l.b16 %v1493
        %v1850 = vunpack.c.h.b16 %v1493
        %v1851 = vunpack.c.l.b16 %v1494
        %v1852 = vunpack.c.h.b16 %v1494
        %v1853 = vunpack.c.l.b16 %v1495
        %v1854 = vunpack.c.h.b16 %v1495
        %v1855 = vunpack.c.l.b16 %v1496
        %v1856 = vunpack.c.h.b16 %v1496
        %v1857 = vunpack.c.l.b16 %v1497
        %v1858 = vunpack.c.h.b16 %v1497
        %v1859 = vunpack.c.l.b16 %v1498
        %v1860 = vunpack.c.h.b16 %v1498
        %v1861 = vunpack.c.l.b16 %v1499
        %v1862 = vunpack.c.h.b16 %v1499
        %v1863 = vunpack.c.l.b16 %v1500
        %v1864 = vunpack.c.h.b16 %v1500
        %v1865 = vunpack.c.l.b16 %v1501
        %v1866 = vunpack.c.h.b16 %v1501
        %v1867 = vunpack.c.l.b16 %v1502
        %v1868 = vunpack.c.h.b16 %v1502
        %v1869 = vunpack.c.l.b16 %v1503
        %v1870 = vunpack.c.h.b16 %v1503
        %v1871 = vunpack.c.l.b16 %v1504
        %v1872 = vunpack.c.h.b16 %v1504
        %v1873 = vunpack.c.l.b16 %v1505
        %v1874 = vunpack.c.h.b16 %v1505
        %v1875 = vunpack.c.l.b16 %v1506
        %v1876 = vunpack.c.h.b16 %v1506
        %v1877 = vunpack.c.l.b16 %v1507
        %v1878 = vunpack.c.h.b16 %v1507
        %v1879 = vunpack.c.l.b16 %v1508
        %v1880 = vunpack.c.h.b16 %v1508
        %v1881 = vunpack.c.l.b16 %v1509
        %v1882 = vunpack.c.h.b16 %v1509
        %v1883 = vunpack.c.l.b16 %v1510
        %v1884 = vunpack.c.h.b16 %v1510
        %v1885 = vunpack.c.l.b16 %v1511
        %v1886 = vunpack.c.h.b16 %v1511
        %v1887 = vunpack.c.l.b16 %v1512
        %v1888 = vunpack.c.h.b16 %v1512
        %v1889 = vunpack.c.l.b16 %v1513
        %v1890 = vunpack.c.h.b16 %v1513
        %v1891 = vunpack.c.l.b16 %v1514
        %v1892 = vunpack.c.h.b16 %v1514
        %v1893 = vunpack.c.l.b16 %v1515
        %v1894 = vunpack.c.h.b16 %v1515
        %v1895 = vunpack.c.l.b16 %v1516
        %v1896 = vunpack.c.h.b16 %v1516
        %v1897 = vunpack.c.l.b16 %v1517
        %v1898 = vunpack.c.h.b16 %v1517
        %v1899 = vunpack.c.l.b16 %v1518
        %v1900 = vunpack.c.h.b16 %v1518
        %v1901 = vunpack.c.l.b16 %v1519
        %v1902 = vunpack.c.h.b16 %v1519
        %v1903 = vunpack.c.l.b16 %v1520
        %v1904 = vunpack.c.h.b16 %v1520
        %v1905 = vpack.c.b16 %v1657, %v1649
        %v1906 = vpack.c.b16 %v1658, %v1650
        %v1907 = vpack.c.b16 %v1659, %v1651
        %v1908 = vpack.c.b16 %v1660, %v1652
        %v1909 = vpack.c.b16 %v1661, %v1653
        %v1910 = vpack.c.b16 %v1662, %v1654
        %v1911 = vpack.c.b16 %v1663, %v1655
        %v1912 = vpack.c.b16 %v1664, %v1656
        %v1913 = vpack.c.b16 %v1673, %v1665
        %v1914 = vpack.c.b16 %v1674, %v1666
        %v1915 = vpack.c.b16 %v1675, %v1667
        %v1916 = vpack.c.b16 %v1676, %v1668
        %v1917 = vpack.c.b16 %v1677, %v1669
        %v1918 = vpack.c.b16 %v1678, %v1670
        %v1919 = vpack.c.b16 %v1679, %v1671
        %v1920 = vpack.c.b16 %v1680, %v1672
        %v1921 = vpack.c.b16 %v1689, %v1681
        %v1922 = vpack.c.b16 %v1690, %v1682
        %v1923 = vpack.c.b16 %v1691, %v1683
        %v1924 = vpack.c.b16 %v1692, %v1684
        %v1925 = vpack.c.b16 %v1693, %v1685
        %v1926 = vpack.c.b16 %v1694, %v1686
        %v1927 = vpack.c.b16 %v1695, %v1687
        %v1928 = vpack.c.b16 %v1696, %v1688
        %v1929 = vpack.c.b16 %v1705, %v1697
        %v1930 = vpack.c.b16 %v1706, %v1698
        %v1931 = vpack.c.b16 %v1707, %v1699
        %v1932 = vpack.c.b16 %v1708, %v1700
        %v1933 = vpack.c.b16 %v1709, %v1701
        %v1934 = vpack.c.b16 %v1710, %v1702
        %v1935 = vpack.c.b16 %v1711, %v1703
        %v1936 = vpack.c.b16 %v1712, %v1704
        %v1937 = vpack.c.b16 %v1721, %v1713
        %v1938 = vpack.c.b16 %v1722, %v1714
        %v1939 = vpack.c.b16 %v1723, %v1715
        %v1940 = vpack.c.b16 %v1724, %v1716
        %v1941 = vpack.c.b16 %v1725, %v1717
        %v1942 = vpack.c.b16 %v1726, %v1718
        %v1943 = vpack.c.b16 %v1727, %v1719
        %v1944 = vpack.c.b16 %v1728, %v1720
        %v1945 = vpack.c.b16 %v1737, %v1729
        %v1946 = vpack.c.b16 %v1738, %v1730
        %v1947 = vpack.c.b16 %v1739, %v1731
        %v1948 = vpack.c.b16 %v1740, %v1732
        %v1949 = vpack.c.b16 %v1741, %v1733
        %v1950 = vpack.c.b16 %v1742, %v1734
        %v1951 = vpack.c.b16 %v1743, %v1735
        %v1952 = vpack.c.b16 %v1744, %v1736
        %v1953 = vpack.c.b16 %v1753, %v1745
        %v1954 = vpack.c.b16 %v1754, %v1746
        %v1955 = vpack.c.b16 %v1755, %v1747
        %v1956 = vpack.c.b16 %v1756, %v1748
        %v1957 = vpack.c.b16 %v1757, %v1749
        %v1958 = vpack.c.b16 %v1758, %v1750
        %v1959 = vpack.c.b16 %v1759, %v1751
        %v1960 = vpack.c.b16 %v1760, %v1752
        %v1961 = vpack.c.b16 %v1769, %v1761
        %v1962 = vpack.c.b16 %v1770, %v1762
        %v1963 = vpack.c.b16 %v1771, %v1763
        %v1964 = vpack.c.b16 %v1772, %v1764
        %v1965 = vpack.c.b16 %v1773, %v1765
        %v1966 = vpack.c.b16 %v1774, %v1766
        %v1967 = vpack.c.b16 %v1775, %v1767
        %v1968 = vpack.c.b16 %v1776, %v1768
        %v1969 = vpack.c.b16 %v1785, %v1777
        %v1970 = vpack.c.b16 %v1786, %v1778
        %v1971 = vpack.c.b16 %v1787, %v1779
        %v1972 = vpack.c.b16 %v1788, %v1780
        %v1973 = vpack.c.b16 %v1789, %v1781
        %v1974 = vpack.c.b16 %v1790, %v1782
        %v1975 = vpack.c.b16 %v1791, %v1783
        %v1976 = vpack.c.b16 %v1792, %v1784
        %v1977 = vpack.c.b16 %v1801, %v1793
        %v1978 = vpack.c.b16 %v1802, %v1794
        %v1979 = vpack.c.b16 %v1803, %v1795
        %v1980 = vpack.c.b16 %v1804, %v1796
        %v1981 = vpack.c.b16 %v1805, %v1797
        %v1982 = vpack.c.b16 %v1806, %v1798
        %v1983 = vpack.c.b16 %v1807, %v1799
        %v1984 = vpack.c.b16 %v1808, %v1800
        %v1985 = vpack.c.b16 %v1817, %v1809
        %v1986 = vpack.c.b16 %v1818, %v1810
        %v1987 = vpack.c.b16 %v1819, %v1811
        %v1988 = vpack.c.b16 %v1820, %v1812
        %v1989 = vpack.c.b16 %v1821, %v1813
        %v1990 = vpack.c.b16 %v1822, %v1814
        %v1991 = vpack.c.b16 %v1823, %v1815
        %v1992 = vpack.c.b16 %v1824, %v1816
        %v1993 = vpack.c.b16 %v1833, %v1825
        %v1994 = vpack.c.b16 %v1834, %v1826
        %v1995 = vpack.c.b16 %v1835, %v1827
        %v1996 = vpack.c.b16 %v1836, %v1828
        %v1997 = vpack.c.b16 %v1837, %v1829
        %v1998 = vpack.c.b16 %v1838, %v1830
        %v1999 = vpack.c.b16 %v1839, %v1831
        %v2000 = vpack.c.b16 %v1840, %v1832
        %v2001 = vpack.c.b16 %v1849, %v1841
        %v2002 = vpack.c.b16 %v1850, %v1842
        %v2003 = vpack.c.b16 %v1851, %v1843
        %v2004 = vpack.c.b16 %v1852, %v1844
        %v2005 = vpack.c.b16 %v1853, %v1845
        %v2006 = vpack.c.b16 %v1854, %v1846
        %v2007 = vpack.c.b16 %v1855, %v1847
        %v2008 = vpack.c.b16 %v1856, %v1848
        %v2009 = vpack.c.b16 %v1865, %v1857
        %v2010 = vpack.c.b16 %v1866, %v1858
        %v2011 = vpack.c.b16 %v1867, %v1859
        %v2012 = vpack.c.b16 %v1868, %v1860
        %v2013 = vpack.c.b16 %v1869, %v1861
        %v2014 = vpack.c.b16 %v1870, %v1862
        %v2015 = vpack.c.b16 %v1871, %v1863
        %v2016 = vpack.c.b16 %v1872, %v1864
        %v2017 = vpack.c.b16 %v1881, %v1873
        %v2018 = vpack.c.b16 %v1882, %v1874
        %v2019 = vpack.c.b16 %v1883, %v1875
        %v2020 = vpack.c.b16 %v1884, %v1876
        %v2021 = vpack.c.b16 %v1885, %v1877
        %v2022 = vpack.c.b16 %v1886, %v1878
        %v2023 = vpack.c.b16 %v1887, %v1879
        %v2024 = vpack.c.b16 %v1888, %v1880
        %v2025 = vpack.c.b16 %v1897, %v1889
        %v2026 = vpack.c.b16 %v1898, %v1890
        %v2027 = vpack.c.b16 %v1899, %v1891
        %v2028 = vpack.c.b16 %v1900, %v1892
        %v2029 = vpack.c.b16 %v1901, %v1893
        %v2030 = vpack.c.b16 %v1902, %v1894
        %v2031 = vpack.c.b16 %v1903, %v1895
        %v2032 = vpack.c.b16 %v1904, %v1896
        %2161 = vmatpush.bf16.msra.mxu0 %v1961
        %2162 = vmatpush.bf16.msra.mxu0 %v1953
        %2163 = vmatpush.bf16.msra.mxu0 %v1945
        %2164 = vmatpush.bf16.msra.mxu0 %v1937
        %2165 = vmatpush.bf16.msra.mxu0 %v1929
        %2166 = vmatpush.bf16.msra.mxu0 %v1921
        %2167 = vmatpush.bf16.msra.mxu0 %v1913
        %2168 = vmatpush.bf16.msra.mxu0 %v1905
        %2169 = vmatmul.bf16.gmra.mxu0 %v1391
        %v2170 = vpop.f32.mrf.mxu0
        %v2171 = vadd.f32 0.0, %v2170
        %v2172 = vpop.f32.mrf.mxu0
        %2173 = vdwg.mxu0
        %2174 = vmatpush.bf16.msra.mxu0 %v2025
        %2175 = vmatpush.bf16.msra.mxu0 %v2017
        %2176 = vmatpush.bf16.msra.mxu0 %v2009
        %2177 = vmatpush.bf16.msra.mxu0 %v2001
        %2178 = vmatpush.bf16.msra.mxu0 %v1993
        %2179 = vmatpush.bf16.msra.mxu0 %v1985
        %2180 = vmatpush.bf16.msra.mxu0 %v1977
        %2181 = vmatpush.bf16.msra.mxu0 %v1969
        %2182 = vmatmul.bf16.gmra.mxu0 %v1392
        %v2183 = vpop.f32.mrf.mxu0
        %v2184 = vadd.f32 %v2171, %v2183
        %v2185 = vpop.f32.mrf.mxu0
        %2186 = vdwg.mxu0
        %2187 = vmatpush.bf16.msra.mxu0 %v1962
        %2188 = vmatpush.bf16.msra.mxu0 %v1954
        %2189 = vmatpush.bf16.msra.mxu0 %v1946
        %2190 = vmatpush.bf16.msra.mxu0 %v1938
        %2191 = vmatpush.bf16.msra.mxu0 %v1930
        %2192 = vmatpush.bf16.msra.mxu0 %v1922
        %2193 = vmatpush.bf16.msra.mxu0 %v1914
        %2194 = vmatpush.bf16.msra.mxu0 %v1906
        %2195 = vmatmul.bf16.gmra.mxu0 %v1391
        %v2196 = vpop.f32.mrf.mxu0
        %v2197 = vadd.f32 0.0, %v2196
        %v2198 = vpop.f32.mrf.mxu0
        %2199 = vdwg.mxu0
        %2200 = vmatpush.bf16.msra.mxu0 %v2026
        %2201 = vmatpush.bf16.msra.mxu0 %v2018
        %2202 = vmatpush.bf16.msra.mxu0 %v2010
        %2203 = vmatpush.bf16.msra.mxu0 %v2002
        %2204 = vmatpush.bf16.msra.mxu0 %v1994
        %2205 = vmatpush.bf16.msra.mxu0 %v1986
        %2206 = vmatpush.bf16.msra.mxu0 %v1978
        %2207 = vmatpush.bf16.msra.mxu0 %v1970
        %2208 = vmatmul.bf16.gmra.mxu0 %v1392
        %v2209 = vpop.f32.mrf.mxu0
        %v2210 = vadd.f32 %v2197, %v2209
        %v2211 = vpop.f32.mrf.mxu0
        %2212 = vdwg.mxu0
        %2213 = vmatpush.bf16.msra.mxu0 %v1963
        %2214 = vmatpush.bf16.msra.mxu0 %v1955
        %2215 = vmatpush.bf16.msra.mxu0 %v1947
        %2216 = vmatpush.bf16.msra.mxu0 %v1939
        %2217 = vmatpush.bf16.msra.mxu0 %v1931
        %2218 = vmatpush.bf16.msra.mxu0 %v1923
        %2219 = vmatpush.bf16.msra.mxu0 %v1915
        %2220 = vmatpush.bf16.msra.mxu0 %v1907
        %2221 = vmatmul.bf16.gmra.mxu0 %v1391
        %v2222 = vpop.f32.mrf.mxu0
        %v2223 = vadd.f32 0.0, %v2222
        %v2224 = vpop.f32.mrf.mxu0
        %2225 = vdwg.mxu0
        %2226 = vmatpush.bf16.msra.mxu0 %v2027
        %2227 = vmatpush.bf16.msra.mxu0 %v2019
        %2228 = vmatpush.bf16.msra.mxu0 %v2011
        %2229 = vmatpush.bf16.msra.mxu0 %v2003
        %2230 = vmatpush.bf16.msra.mxu0 %v1995
        %2231 = vmatpush.bf16.msra.mxu0 %v1987
        %2232 = vmatpush.bf16.msra.mxu0 %v1979
        %2233 = vmatpush.bf16.msra.mxu0 %v1971
        %2234 = vmatmul.bf16.gmra.mxu0 %v1392
        %v2235 = vpop.f32.mrf.mxu0
        %v2236 = vadd.f32 %v2223, %v2235
        %v2237 = vpop.f32.mrf.mxu0
        %2238 = vdwg.mxu0
        %2239 = vmatpush.bf16.msra.mxu0 %v1964
        %2240 = vmatpush.bf16.msra.mxu0 %v1956
        %2241 = vmatpush.bf16.msra.mxu0 %v1948
        %2242 = vmatpush.bf16.msra.mxu0 %v1940
        %2243 = vmatpush.bf16.msra.mxu0 %v1932
        %2244 = vmatpush.bf16.msra.mxu0 %v1924
        %2245 = vmatpush.bf16.msra.mxu0 %v1916
        %2246 = vmatpush.bf16.msra.mxu0 %v1908
        %2247 = vmatmul.bf16.gmra.mxu0 %v1391
        %v2248 = vpop.f32.mrf.mxu0
        %v2249 = vadd.f32 0.0, %v2248
        %v2250 = vpop.f32.mrf.mxu0
        %2251 = vdwg.mxu0
        %2252 = vmatpush.bf16.msra.mxu0 %v2028
        %2253 = vmatpush.bf16.msra.mxu0 %v2020
        %2254 = vmatpush.bf16.msra.mxu0 %v2012
        %2255 = vmatpush.bf16.msra.mxu0 %v2004
        %2256 = vmatpush.bf16.msra.mxu0 %v1996
        %2257 = vmatpush.bf16.msra.mxu0 %v1988
        %2258 = vmatpush.bf16.msra.mxu0 %v1980
        %2259 = vmatpush.bf16.msra.mxu0 %v1972
        %2260 = vmatmul.bf16.gmra.mxu0 %v1392
        %v2261 = vpop.f32.mrf.mxu0
        %v2262 = vadd.f32 %v2249, %v2261
        %v2263 = vpop.f32.mrf.mxu0
        %2264 = vdwg.mxu0
        %2265 = vmatpush.bf16.msra.mxu0 %v1965
        %2266 = vmatpush.bf16.msra.mxu0 %v1957
        %2267 = vmatpush.bf16.msra.mxu0 %v1949
        %2268 = vmatpush.bf16.msra.mxu0 %v1941
        %2269 = vmatpush.bf16.msra.mxu0 %v1933
        %2270 = vmatpush.bf16.msra.mxu0 %v1925
        %2271 = vmatpush.bf16.msra.mxu0 %v1917
        %2272 = vmatpush.bf16.msra.mxu0 %v1909
        %2273 = vmatmul.bf16.gmra.mxu0 %v1391
        %v2274 = vpop.f32.mrf.mxu0
        %v2275 = vadd.f32 0.0, %v2274
        %v2276 = vpop.f32.mrf.mxu0
        %2277 = vdwg.mxu0
        %2278 = vmatpush.bf16.msra.mxu0 %v2029
        %2279 = vmatpush.bf16.msra.mxu0 %v2021
        %2280 = vmatpush.bf16.msra.mxu0 %v2013
        %2281 = vmatpush.bf16.msra.mxu0 %v2005
        %2282 = vmatpush.bf16.msra.mxu0 %v1997
        %2283 = vmatpush.bf16.msra.mxu0 %v1989
        %2284 = vmatpush.bf16.msra.mxu0 %v1981
        %2285 = vmatpush.bf16.msra.mxu0 %v1973
        %2286 = vmatmul.bf16.gmra.mxu0 %v1392
        %v2287 = vpop.f32.mrf.mxu0
        %v2288 = vadd.f32 %v2275, %v2287
        %v2289 = vpop.f32.mrf.mxu0
        %2290 = vdwg.mxu0
        %2291 = vmatpush.bf16.msra.mxu0 %v1966
        %2292 = vmatpush.bf16.msra.mxu0 %v1958
        %2293 = vmatpush.bf16.msra.mxu0 %v1950
        %2294 = vmatpush.bf16.msra.mxu0 %v1942
        %2295 = vmatpush.bf16.msra.mxu0 %v1934
        %2296 = vmatpush.bf16.msra.mxu0 %v1926
        %2297 = vmatpush.bf16.msra.mxu0 %v1918
        %2298 = vmatpush.bf16.msra.mxu0 %v1910
        %2299 = vmatmul.bf16.gmra.mxu0 %v1391
        %v2300 = vpop.f32.mrf.mxu0
        %v2301 = vadd.f32 0.0, %v2300
        %v2302 = vpop.f32.mrf.mxu0
        %2303 = vdwg.mxu0
        %2304 = vmatpush.bf16.msra.mxu0 %v2030
        %2305 = vmatpush.bf16.msra.mxu0 %v2022
        %2306 = vmatpush.bf16.msra.mxu0 %v2014
        %2307 = vmatpush.bf16.msra.mxu0 %v2006
        %2308 = vmatpush.bf16.msra.mxu0 %v1998
        %2309 = vmatpush.bf16.msra.mxu0 %v1990
        %2310 = vmatpush.bf16.msra.mxu0 %v1982
        %2311 = vmatpush.bf16.msra.mxu0 %v1974
        %2312 = vmatmul.bf16.gmra.mxu0 %v1392
        %v2313 = vpop.f32.mrf.mxu0
        %v2314 = vadd.f32 %v2301, %v2313
        %v2315 = vpop.f32.mrf.mxu0
        %2316 = vdwg.mxu0
        %2317 = vmatpush.bf16.msra.mxu0 %v1967
        %2318 = vmatpush.bf16.msra.mxu0 %v1959
        %2319 = vmatpush.bf16.msra.mxu0 %v1951
        %2320 = vmatpush.bf16.msra.mxu0 %v1943
        %2321 = vmatpush.bf16.msra.mxu0 %v1935
        %2322 = vmatpush.bf16.msra.mxu0 %v1927
        %2323 = vmatpush.bf16.msra.mxu0 %v1919
        %2324 = vmatpush.bf16.msra.mxu0 %v1911
        %2325 = vmatmul.bf16.gmra.mxu0 %v1391
        %v2326 = vpop.f32.mrf.mxu0
        %v2327 = vadd.f32 0.0, %v2326
        %v2328 = vpop.f32.mrf.mxu0
        %2329 = vdwg.mxu0
        %2330 = vmatpush.bf16.msra.mxu0 %v2031
        %2331 = vmatpush.bf16.msra.mxu0 %v2023
        %2332 = vmatpush.bf16.msra.mxu0 %v2015
        %2333 = vmatpush.bf16.msra.mxu0 %v2007
        %2334 = vmatpush.bf16.msra.mxu0 %v1999
        %2335 = vmatpush.bf16.msra.mxu0 %v1991
        %2336 = vmatpush.bf16.msra.mxu0 %v1983
        %2337 = vmatpush.bf16.msra.mxu0 %v1975
        %2338 = vmatmul.bf16.gmra.mxu0 %v1392
        %v2339 = vpop.f32.mrf.mxu0
        %v2340 = vadd.f32 %v2327, %v2339
        %v2341 = vpop.f32.mrf.mxu0
        %2342 = vdwg.mxu0
        %2343 = vmatpush.bf16.msra.mxu0 %v1968
        %2344 = vmatpush.bf16.msra.mxu0 %v1960
        %2345 = vmatpush.bf16.msra.mxu0 %v1952
        %2346 = vmatpush.bf16.msra.mxu0 %v1944
        %2347 = vmatpush.bf16.msra.mxu0 %v1936
        %2348 = vmatpush.bf16.msra.mxu0 %v1928
        %2349 = vmatpush.bf16.msra.mxu0 %v1920
        %2350 = vmatpush.bf16.msra.mxu0 %v1912
        %2351 = vmatmul.bf16.gmra.mxu0 %v1391
        %v2352 = vpop.f32.mrf.mxu0
        %v2353 = vadd.f32 0.0, %v2352
        %v2354 = vpop.f32.mrf.mxu0
        %2355 = vdwg.mxu0
        %2356 = vmatpush.bf16.msra.mxu0 %v2032
        %2357 = vmatpush.bf16.msra.mxu0 %v2024
        %2358 = vmatpush.bf16.msra.mxu0 %v2016
        %2359 = vmatpush.bf16.msra.mxu0 %v2008
        %2360 = vmatpush.bf16.msra.mxu0 %v2000
        %2361 = vmatpush.bf16.msra.mxu0 %v1992
        %2362 = vmatpush.bf16.msra.mxu0 %v1984
        %2363 = vmatpush.bf16.msra.mxu0 %v1976
        %2364 = vmatmul.bf16.gmra.mxu0 %v1392
        %v2365 = vpop.f32.mrf.mxu0
        %v2366 = vadd.f32 %v2353, %v2365
        %v2367 = vpop.f32.mrf.mxu0
        %2368 = vdwg.mxu0
        %v2377 = vrot.slane %v2210, 6
        %v2378 = vrot.slane %v2236, 4
        %v2379 = vrot.slane %v2262, 2
        %v2380 = vrot.slane %v2314, 6
        %v2381 = vrot.slane %v2340, 4
        %v2382 = vrot.slane %v2366, 2
        %v2383 = vsel %vm1319, %v2184, %v2377
        %v2384 = vsel %vm1321, %v2378, %v2379
        %v2385 = vsel %vm1323, %v2383, %v2384
        %v2386 = vsel %vm1319, %v2288, %v2380
        %v2387 = vsel %vm1321, %v2381, %v2382
        %v2388 = vsel %vm1323, %v2386, %v2387
        %v2391 = vadd.f32 %v1382, %v2385
        %v2392 = vadd.f32 %v1383, %v2388
        %v2393 = vmul.f32 %v2391, 0.5
        %v2394 = vtanh.pop %v2393
        %v2395 = vmul.f32 %v2394, 0.5
        %v2396 = vadd.f32 %v2395, 0.5
        %v2398 = vrot.slane %v2391, 4
        %v2400 = vmul.f32 %v2398, 0.5
        %v2401 = vtanh.pop %v2400
        %v2402 = vmul.f32 %v2401, 0.5
        %v2403 = vadd.f32 %v2402, 0.5
        %v2404 = vtanh.pop %v2392
        %v2406 = vrot.slane %v2392, 4
        %v2408 = vmul.f32 %v2406, 0.5
        %v2409 = vtanh.pop %v2408
        %v2410 = vmul.f32 %v2409, 0.5
        %v2411 = vadd.f32 %v2410, 0.5
        %v2412 = vld [vmem:[#allocation3] sm:$0xf]
        %v2413 = vmul.f32 %v2403, %v2412
        %v2414 = vmul.f32 %v2396, %v2404
        %v2415 = vadd.f32 %v2413, %v2414
        %v2416 = vtanh.pop %v2415
        %v2417 = vmul.f32 %v2411, %v2416
        %2418 = vst [vmem:[#allocation2] sm:$0xf] %v2417
        %2419 = vst [vmem:[#allocation3] sm:$0xf] %v2415
        %2421 = vst [vmem:[#allocation1] ss:$4 sm:$0xff] %v2417
        %v2422 = vld.sshfl [vmem:[#allocation1] sm:$0xff pattern:$0x73625140]
        %v2423 = vld.sshfl [vmem:[#allocation1 + $0x8] sm:$0xff pattern:$0x73625140]
        %v2426 = vpack.c.bf16 %v2423, %v2422
        %v2428 = vrot.slane %v2426, 3
        %v2431 = vsel %vm1368, %v2426, %v2428
        %s2433 = smul.u32 %s1378, 2
        %s2434 = scalar_lea.vmem %s301, %s2433
        %2435 = vst [vmem:[%s2434] sm:$0x3] %v2431
        %s2436 = smul.u32 %s1376, 2
        %s2437 = sadd.s32 %s2436, %s20
        %s2438 = smul.u32 %s2437, 8
        %s2439 = scalar_lea.vmem %s238, %s2438 [#allocation4]
        %v2440 = vld [vmem:[%s2439] sm:$0xff]
        %v2441 = vunpack.c.l.bf16 %v2440
        %v2442 = vunpack.c.h.bf16 %v2440
        %v2443 = vld [vmem:[#allocation2] sm:$0xf]
        %2445 = vst [vmem:[#allocation1] ss:$4 sm:$0xff] %v2443
        %v2446 = vld.sshfl [vmem:[#allocation1] sm:$0xff pattern:$0x73625140]
        %v2447 = vld.sshfl [vmem:[#allocation1 + $0x8] sm:$0xff pattern:$0x73625140]
        %v2450 = vpack.c.bf16 %v2446, %v2446
        %v2451 = vpack.c.bf16 %v2447, %v2447
        %v2452 = vld [vmem:[%s246] sm:$0xff]
        %v2453 = vld [vmem:[%s246 + $0x8] sm:$0xff]
        %v2454 = vld [vmem:[%s246 + $0x10] sm:$0xff]
        %v2455 = vld [vmem:[%s246 + $0x18] sm:$0xff]
        %v2456 = vld [vmem:[%s246 + $0x20] sm:$0xff]
        %v2457 = vld [vmem:[%s246 + $0x28] sm:$0xff]
        %v2458 = vld [vmem:[%s246 + $0x30] sm:$0xff]
        %v2459 = vld [vmem:[%s246 + $0x38] sm:$0xff]
        %v2460 = vld [vmem:[%s246 + $0x40] sm:$0xff]
        %v2461 = vld [vmem:[%s246 + $0x48] sm:$0xff]
        %v2462 = vld [vmem:[%s246 + $0x50] sm:$0xff]
        %v2463 = vld [vmem:[%s246 + $0x58] sm:$0xff]
        %v2464 = vld [vmem:[%s246 + $0x60] sm:$0xff]
        %v2465 = vld [vmem:[%s246 + $0x68] sm:$0xff]
        %v2466 = vld [vmem:[%s246 + $0x70] sm:$0xff]
        %v2467 = vld [vmem:[%s246 + $0x78] sm:$0xff]
        %v2468 = vld [vmem:[%s246 + $0x80] sm:$0xff]
        %v2469 = vld [vmem:[%s246 + $0x88] sm:$0xff]
        %v2470 = vld [vmem:[%s246 + $0x90] sm:$0xff]
        %v2471 = vld [vmem:[%s246 + $0x98] sm:$0xff]
        %v2472 = vld [vmem:[%s246 + $0xa0] sm:$0xff]
        %v2473 = vld [vmem:[%s246 + $0xa8] sm:$0xff]
        %v2474 = vld [vmem:[%s246 + $0xb0] sm:$0xff]
        %v2475 = vld [vmem:[%s246 + $0xb8] sm:$0xff]
        %v2476 = vld [vmem:[%s246 + $0xc0] sm:$0xff]
        %v2477 = vld [vmem:[%s246 + $0xc8] sm:$0xff]
        %v2478 = vld [vmem:[%s246 + $0xd0] sm:$0xff]
        %v2479 = vld [vmem:[%s246 + $0xd8] sm:$0xff]
        %v2480 = vld [vmem:[%s246 + $0xe0] sm:$0xff]
        %v2481 = vld [vmem:[%s246 + $0xe8] sm:$0xff]
        %v2482 = vld [vmem:[%s246 + $0xf0] sm:$0xff]
        %v2483 = vld [vmem:[%s246 + $0xf8] sm:$0xff]
        %v2484 = vld [vmem:[%s246 + $0x100] sm:$0xff]
        %v2485 = vld [vmem:[%s246 + $0x108] sm:$0xff]
        %v2486 = vld [vmem:[%s246 + $0x110] sm:$0xff]
        %v2487 = vld [vmem:[%s246 + $0x118] sm:$0xff]
        %v2488 = vld [vmem:[%s246 + $0x120] sm:$0xff]
        %v2489 = vld [vmem:[%s246 + $0x128] sm:$0xff]
        %v2490 = vld [vmem:[%s246 + $0x130] sm:$0xff]
        %v2491 = vld [vmem:[%s246 + $0x138] sm:$0xff]
        %v2492 = vld [vmem:[%s246 + $0x140] sm:$0xff]
        %v2493 = vld [vmem:[%s246 + $0x148] sm:$0xff]
        %v2494 = vld [vmem:[%s246 + $0x150] sm:$0xff]
        %v2495 = vld [vmem:[%s246 + $0x158] sm:$0xff]
        %v2496 = vld [vmem:[%s246 + $0x160] sm:$0xff]
        %v2497 = vld [vmem:[%s246 + $0x168] sm:$0xff]
        %v2498 = vld [vmem:[%s246 + $0x170] sm:$0xff]
        %v2499 = vld [vmem:[%s246 + $0x178] sm:$0xff]
        %v2500 = vld [vmem:[%s246 + $0x180] sm:$0xff]
        %v2501 = vld [vmem:[%s246 + $0x188] sm:$0xff]
        %v2502 = vld [vmem:[%s246 + $0x190] sm:$0xff]
        %v2503 = vld [vmem:[%s246 + $0x198] sm:$0xff]
        %v2504 = vld [vmem:[%s246 + $0x1a0] sm:$0xff]
        %v2505 = vld [vmem:[%s246 + $0x1a8] sm:$0xff]
        %v2506 = vld [vmem:[%s246 + $0x1b0] sm:$0xff]
        %v2507 = vld [vmem:[%s246 + $0x1b8] sm:$0xff]
        %v2508 = vld [vmem:[%s246 + $0x1c0] sm:$0xff]
        %v2509 = vld [vmem:[%s246 + $0x1c8] sm:$0xff]
        %v2510 = vld [vmem:[%s246 + $0x1d0] sm:$0xff]
        %v2511 = vld [vmem:[%s246 + $0x1d8] sm:$0xff]
        %v2512 = vld [vmem:[%s246 + $0x1e0] sm:$0xff]
        %v2513 = vld [vmem:[%s246 + $0x1e8] sm:$0xff]
        %v2514 = vld [vmem:[%s246 + $0x1f0] sm:$0xff]
        %v2515 = vld [vmem:[%s246 + $0x1f8] sm:$0xff]
        %v2516 = vld [vmem:[%s246 + $0x200] sm:$0xff]
        %v2517 = vld [vmem:[%s246 + $0x208] sm:$0xff]
        %v2518 = vld [vmem:[%s246 + $0x210] sm:$0xff]
        %v2519 = vld [vmem:[%s246 + $0x218] sm:$0xff]
        %v2520 = vld [vmem:[%s246 + $0x220] sm:$0xff]
        %v2521 = vld [vmem:[%s246 + $0x228] sm:$0xff]
        %v2522 = vld [vmem:[%s246 + $0x230] sm:$0xff]
        %v2523 = vld [vmem:[%s246 + $0x238] sm:$0xff]
        %v2524 = vld [vmem:[%s246 + $0x240] sm:$0xff]
        %v2525 = vld [vmem:[%s246 + $0x248] sm:$0xff]
        %v2526 = vld [vmem:[%s246 + $0x250] sm:$0xff]
        %v2527 = vld [vmem:[%s246 + $0x258] sm:$0xff]
        %v2528 = vld [vmem:[%s246 + $0x260] sm:$0xff]
        %v2529 = vld [vmem:[%s246 + $0x268] sm:$0xff]
        %v2530 = vld [vmem:[%s246 + $0x270] sm:$0xff]
        %v2531 = vld [vmem:[%s246 + $0x278] sm:$0xff]
        %v2532 = vld [vmem:[%s246 + $0x280] sm:$0xff]
        %v2533 = vld [vmem:[%s246 + $0x288] sm:$0xff]
        %v2534 = vld [vmem:[%s246 + $0x290] sm:$0xff]
        %v2535 = vld [vmem:[%s246 + $0x298] sm:$0xff]
        %v2536 = vld [vmem:[%s246 + $0x2a0] sm:$0xff]
        %v2537 = vld [vmem:[%s246 + $0x2a8] sm:$0xff]
        %v2538 = vld [vmem:[%s246 + $0x2b0] sm:$0xff]
        %v2539 = vld [vmem:[%s246 + $0x2b8] sm:$0xff]
        %v2540 = vld [vmem:[%s246 + $0x2c0] sm:$0xff]
        %v2541 = vld [vmem:[%s246 + $0x2c8] sm:$0xff]
        %v2542 = vld [vmem:[%s246 + $0x2d0] sm:$0xff]
        %v2543 = vld [vmem:[%s246 + $0x2d8] sm:$0xff]
        %v2544 = vld [vmem:[%s246 + $0x2e0] sm:$0xff]
        %v2545 = vld [vmem:[%s246 + $0x2e8] sm:$0xff]
        %v2546 = vld [vmem:[%s246 + $0x2f0] sm:$0xff]
        %v2547 = vld [vmem:[%s246 + $0x2f8] sm:$0xff]
        %v2548 = vld [vmem:[%s246 + $0x300] sm:$0xff]
        %v2549 = vld [vmem:[%s246 + $0x308] sm:$0xff]
        %v2550 = vld [vmem:[%s246 + $0x310] sm:$0xff]
        %v2551 = vld [vmem:[%s246 + $0x318] sm:$0xff]
        %v2552 = vld [vmem:[%s246 + $0x320] sm:$0xff]
        %v2553 = vld [vmem:[%s246 + $0x328] sm:$0xff]
        %v2554 = vld [vmem:[%s246 + $0x330] sm:$0xff]
        %v2555 = vld [vmem:[%s246 + $0x338] sm:$0xff]
        %v2556 = vld [vmem:[%s246 + $0x340] sm:$0xff]
        %v2557 = vld [vmem:[%s246 + $0x348] sm:$0xff]
        %v2558 = vld [vmem:[%s246 + $0x350] sm:$0xff]
        %v2559 = vld [vmem:[%s246 + $0x358] sm:$0xff]
        %v2560 = vld [vmem:[%s246 + $0x360] sm:$0xff]
        %v2561 = vld [vmem:[%s246 + $0x368] sm:$0xff]
        %v2562 = vld [vmem:[%s246 + $0x370] sm:$0xff]
        %v2563 = vld [vmem:[%s246 + $0x378] sm:$0xff]
        %v2564 = vld [vmem:[%s246 + $0x380] sm:$0xff]
        %v2565 = vld [vmem:[%s246 + $0x388] sm:$0xff]
        %v2566 = vld [vmem:[%s246 + $0x390] sm:$0xff]
        %v2567 = vld [vmem:[%s246 + $0x398] sm:$0xff]
        %v2568 = vld [vmem:[%s246 + $0x3a0] sm:$0xff]
        %v2569 = vld [vmem:[%s246 + $0x3a8] sm:$0xff]
        %v2570 = vld [vmem:[%s246 + $0x3b0] sm:$0xff]
        %v2571 = vld [vmem:[%s246 + $0x3b8] sm:$0xff]
        %v2572 = vld [vmem:[%s246 + $0x3c0] sm:$0xff]
        %v2573 = vld [vmem:[%s246 + $0x3c8] sm:$0xff]
        %v2574 = vld [vmem:[%s246 + $0x3d0] sm:$0xff]
        %v2575 = vld [vmem:[%s246 + $0x3d8] sm:$0xff]
        %v2576 = vld [vmem:[%s246 + $0x3e0] sm:$0xff]
        %v2577 = vld [vmem:[%s246 + $0x3e8] sm:$0xff]
        %v2578 = vld [vmem:[%s246 + $0x3f0] sm:$0xff]
        %v2579 = vld [vmem:[%s246 + $0x3f8] sm:$0xff]
        %v2708 = vunpack.c.l.b16 %v2452
        %v2709 = vunpack.c.h.b16 %v2452
        %v2710 = vunpack.c.l.b16 %v2453
        %v2711 = vunpack.c.h.b16 %v2453
        %v2712 = vunpack.c.l.b16 %v2454
        %v2713 = vunpack.c.h.b16 %v2454
        %v2714 = vunpack.c.l.b16 %v2455
        %v2715 = vunpack.c.h.b16 %v2455
        %v2716 = vunpack.c.l.b16 %v2456
        %v2717 = vunpack.c.h.b16 %v2456
        %v2718 = vunpack.c.l.b16 %v2457
        %v2719 = vunpack.c.h.b16 %v2457
        %v2720 = vunpack.c.l.b16 %v2458
        %v2721 = vunpack.c.h.b16 %v2458
        %v2722 = vunpack.c.l.b16 %v2459
        %v2723 = vunpack.c.h.b16 %v2459
        %v2724 = vunpack.c.l.b16 %v2460
        %v2725 = vunpack.c.h.b16 %v2460
        %v2726 = vunpack.c.l.b16 %v2461
        %v2727 = vunpack.c.h.b16 %v2461
        %v2728 = vunpack.c.l.b16 %v2462
        %v2729 = vunpack.c.h.b16 %v2462
        %v2730 = vunpack.c.l.b16 %v2463
        %v2731 = vunpack.c.h.b16 %v2463
        %v2732 = vunpack.c.l.b16 %v2464
        %v2733 = vunpack.c.h.b16 %v2464
        %v2734 = vunpack.c.l.b16 %v2465
        %v2735 = vunpack.c.h.b16 %v2465
        %v2736 = vunpack.c.l.b16 %v2466
        %v2737 = vunpack.c.h.b16 %v2466
        %v2738 = vunpack.c.l.b16 %v2467
        %v2739 = vunpack.c.h.b16 %v2467
        %v2740 = vunpack.c.l.b16 %v2468
        %v2741 = vunpack.c.h.b16 %v2468
        %v2742 = vunpack.c.l.b16 %v2469
        %v2743 = vunpack.c.h.b16 %v2469
        %v2744 = vunpack.c.l.b16 %v2470
        %v2745 = vunpack.c.h.b16 %v2470
        %v2746 = vunpack.c.l.b16 %v2471
        %v2747 = vunpack.c.h.b16 %v2471
        %v2748 = vunpack.c.l.b16 %v2472
        %v2749 = vunpack.c.h.b16 %v2472
        %v2750 = vunpack.c.l.b16 %v2473
        %v2751 = vunpack.c.h.b16 %v2473
        %v2752 = vunpack.c.l.b16 %v2474
        %v2753 = vunpack.c.h.b16 %v2474
        %v2754 = vunpack.c.l.b16 %v2475
        %v2755 = vunpack.c.h.b16 %v2475
        %v2756 = vunpack.c.l.b16 %v2476
        %v2757 = vunpack.c.h.b16 %v2476
        %v2758 = vunpack.c.l.b16 %v2477
        %v2759 = vunpack.c.h.b16 %v2477
        %v2760 = vunpack.c.l.b16 %v2478
        %v2761 = vunpack.c.h.b16 %v2478
        %v2762 = vunpack.c.l.b16 %v2479
        %v2763 = vunpack.c.h.b16 %v2479
        %v2764 = vunpack.c.l.b16 %v2480
        %v2765 = vunpack.c.h.b16 %v2480
        %v2766 = vunpack.c.l.b16 %v2481
        %v2767 = vunpack.c.h.b16 %v2481
        %v2768 = vunpack.c.l.b16 %v2482
        %v2769 = vunpack.c.h.b16 %v2482
        %v2770 = vunpack.c.l.b16 %v2483
        %v2771 = vunpack.c.h.b16 %v2483
        %v2772 = vunpack.c.l.b16 %v2484
        %v2773 = vunpack.c.h.b16 %v2484
        %v2774 = vunpack.c.l.b16 %v2485
        %v2775 = vunpack.c.h.b16 %v2485
        %v2776 = vunpack.c.l.b16 %v2486
        %v2777 = vunpack.c.h.b16 %v2486
        %v2778 = vunpack.c.l.b16 %v2487
        %v2779 = vunpack.c.h.b16 %v2487
        %v2780 = vunpack.c.l.b16 %v2488
        %v2781 = vunpack.c.h.b16 %v2488
        %v2782 = vunpack.c.l.b16 %v2489
        %v2783 = vunpack.c.h.b16 %v2489
        %v2784 = vunpack.c.l.b16 %v2490
        %v2785 = vunpack.c.h.b16 %v2490
        %v2786 = vunpack.c.l.b16 %v2491
        %v2787 = vunpack.c.h.b16 %v2491
        %v2788 = vunpack.c.l.b16 %v2492
        %v2789 = vunpack.c.h.b16 %v2492
        %v2790 = vunpack.c.l.b16 %v2493
        %v2791 = vunpack.c.h.b16 %v2493
        %v2792 = vunpack.c.l.b16 %v2494
        %v2793 = vunpack.c.h.b16 %v2494
        %v2794 = vunpack.c.l.b16 %v2495
        %v2795 = vunpack.c.h.b16 %v2495
        %v2796 = vunpack.c.l.b16 %v2496
        %v2797 = vunpack.c.h.b16 %v2496
        %v2798 = vunpack.c.l.b16 %v2497
        %v2799 = vunpack.c.h.b16 %v2497
        %v2800 = vunpack.c.l.b16 %v2498
        %v2801 = vunpack.c.h.b16 %v2498
        %v2802 = vunpack.c.l.b16 %v2499
        %v2803 = vunpack.c.h.b16 %v2499
        %v2804 = vunpack.c.l.b16 %v2500
        %v2805 = vunpack.c.h.b16 %v2500
        %v2806 = vunpack.c.l.b16 %v2501
        %v2807 = vunpack.c.h.b16 %v2501
        %v2808 = vunpack.c.l.b16 %v2502
        %v2809 = vunpack.c.h.b16 %v2502
        %v2810 = vunpack.c.l.b16 %v2503
        %v2811 = vunpack.c.h.b16 %v2503
        %v2812 = vunpack.c.l.b16 %v2504
        %v2813 = vunpack.c.h.b16 %v2504
        %v2814 = vunpack.c.l.b16 %v2505
        %v2815 = vunpack.c.h.b16 %v2505
        %v2816 = vunpack.c.l.b16 %v2506
        %v2817 = vunpack.c.h.b16 %v2506
        %v2818 = vunpack.c.l.b16 %v2507
        %v2819 = vunpack.c.h.b16 %v2507
        %v2820 = vunpack.c.l.b16 %v2508
        %v2821 = vunpack.c.h.b16 %v2508
        %v2822 = vunpack.c.l.b16 %v2509
        %v2823 = vunpack.c.h.b16 %v2509
        %v2824 = vunpack.c.l.b16 %v2510
        %v2825 = vunpack.c.h.b16 %v2510
        %v2826 = vunpack.c.l.b16 %v2511
        %v2827 = vunpack.c.h.b16 %v2511
        %v2828 = vunpack.c.l.b16 %v2512
        %v2829 = vunpack.c.h.b16 %v2512
        %v2830 = vunpack.c.l.b16 %v2513
        %v2831 = vunpack.c.h.b16 %v2513
        %v2832 = vunpack.c.l.b16 %v2514
        %v2833 = vunpack.c.h.b16 %v2514
        %v2834 = vunpack.c.l.b16 %v2515
        %v2835 = vunpack.c.h.b16 %v2515
        %v2836 = vunpack.c.l.b16 %v2516
        %v2837 = vunpack.c.h.b16 %v2516
        %v2838 = vunpack.c.l.b16 %v2517
        %v2839 = vunpack.c.h.b16 %v2517
        %v2840 = vunpack.c.l.b16 %v2518
        %v2841 = vunpack.c.h.b16 %v2518
        %v2842 = vunpack.c.l.b16 %v2519
        %v2843 = vunpack.c.h.b16 %v2519
        %v2844 = vunpack.c.l.b16 %v2520
        %v2845 = vunpack.c.h.b16 %v2520
        %v2846 = vunpack.c.l.b16 %v2521
        %v2847 = vunpack.c.h.b16 %v2521
        %v2848 = vunpack.c.l.b16 %v2522
        %v2849 = vunpack.c.h.b16 %v2522
        %v2850 = vunpack.c.l.b16 %v2523
        %v2851 = vunpack.c.h.b16 %v2523
        %v2852 = vunpack.c.l.b16 %v2524
        %v2853 = vunpack.c.h.b16 %v2524
        %v2854 = vunpack.c.l.b16 %v2525
        %v2855 = vunpack.c.h.b16 %v2525
        %v2856 = vunpack.c.l.b16 %v2526
        %v2857 = vunpack.c.h.b16 %v2526
        %v2858 = vunpack.c.l.b16 %v2527
        %v2859 = vunpack.c.h.b16 %v2527
        %v2860 = vunpack.c.l.b16 %v2528
        %v2861 = vunpack.c.h.b16 %v2528
        %v2862 = vunpack.c.l.b16 %v2529
        %v2863 = vunpack.c.h.b16 %v2529
        %v2864 = vunpack.c.l.b16 %v2530
        %v2865 = vunpack.c.h.b16 %v2530
        %v2866 = vunpack.c.l.b16 %v2531
        %v2867 = vunpack.c.h.b16 %v2531
        %v2868 = vunpack.c.l.b16 %v2532
        %v2869 = vunpack.c.h.b16 %v2532
        %v2870 = vunpack.c.l.b16 %v2533
        %v2871 = vunpack.c.h.b16 %v2533
        %v2872 = vunpack.c.l.b16 %v2534
        %v2873 = vunpack.c.h.b16 %v2534
        %v2874 = vunpack.c.l.b16 %v2535
        %v2875 = vunpack.c.h.b16 %v2535
        %v2876 = vunpack.c.l.b16 %v2536
        %v2877 = vunpack.c.h.b16 %v2536
        %v2878 = vunpack.c.l.b16 %v2537
        %v2879 = vunpack.c.h.b16 %v2537
        %v2880 = vunpack.c.l.b16 %v2538
        %v2881 = vunpack.c.h.b16 %v2538
        %v2882 = vunpack.c.l.b16 %v2539
        %v2883 = vunpack.c.h.b16 %v2539
        %v2884 = vunpack.c.l.b16 %v2540
        %v2885 = vunpack.c.h.b16 %v2540
        %v2886 = vunpack.c.l.b16 %v2541
        %v2887 = vunpack.c.h.b16 %v2541
        %v2888 = vunpack.c.l.b16 %v2542
        %v2889 = vunpack.c.h.b16 %v2542
        %v2890 = vunpack.c.l.b16 %v2543
        %v2891 = vunpack.c.h.b16 %v2543
        %v2892 = vunpack.c.l.b16 %v2544
        %v2893 = vunpack.c.h.b16 %v2544
        %v2894 = vunpack.c.l.b16 %v2545
        %v2895 = vunpack.c.h.b16 %v2545
        %v2896 = vunpack.c.l.b16 %v2546
        %v2897 = vunpack.c.h.b16 %v2546
        %v2898 = vunpack.c.l.b16 %v2547
        %v2899 = vunpack.c.h.b16 %v2547
        %v2900 = vunpack.c.l.b16 %v2548
        %v2901 = vunpack.c.h.b16 %v2548
        %v2902 = vunpack.c.l.b16 %v2549
        %v2903 = vunpack.c.h.b16 %v2549
        %v2904 = vunpack.c.l.b16 %v2550
        %v2905 = vunpack.c.h.b16 %v2550
        %v2906 = vunpack.c.l.b16 %v2551
        %v2907 = vunpack.c.h.b16 %v2551
        %v2908 = vunpack.c.l.b16 %v2552
        %v2909 = vunpack.c.h.b16 %v2552
        %v2910 = vunpack.c.l.b16 %v2553
        %v2911 = vunpack.c.h.b16 %v2553
        %v2912 = vunpack.c.l.b16 %v2554
        %v2913 = vunpack.c.h.b16 %v2554
        %v2914 = vunpack.c.l.b16 %v2555
        %v2915 = vunpack.c.h.b16 %v2555
        %v2916 = vunpack.c.l.b16 %v2556
        %v2917 = vunpack.c.h.b16 %v2556
        %v2918 = vunpack.c.l.b16 %v2557
        %v2919 = vunpack.c.h.b16 %v2557
        %v2920 = vunpack.c.l.b16 %v2558
        %v2921 = vunpack.c.h.b16 %v2558
        %v2922 = vunpack.c.l.b16 %v2559
        %v2923 = vunpack.c.h.b16 %v2559
        %v2924 = vunpack.c.l.b16 %v2560
        %v2925 = vunpack.c.h.b16 %v2560
        %v2926 = vunpack.c.l.b16 %v2561
        %v2927 = vunpack.c.h.b16 %v2561
        %v2928 = vunpack.c.l.b16 %v2562
        %v2929 = vunpack.c.h.b16 %v2562
        %v2930 = vunpack.c.l.b16 %v2563
        %v2931 = vunpack.c.h.b16 %v2563
        %v2932 = vunpack.c.l.b16 %v2564
        %v2933 = vunpack.c.h.b16 %v2564
        %v2934 = vunpack.c.l.b16 %v2565
        %v2935 = vunpack.c.h.b16 %v2565
        %v2936 = vunpack.c.l.b16 %v2566
        %v2937 = vunpack.c.h.b16 %v2566
        %v2938 = vunpack.c.l.b16 %v2567
        %v2939 = vunpack.c.h.b16 %v2567
        %v2940 = vunpack.c.l.b16 %v2568
        %v2941 = vunpack.c.h.b16 %v2568
        %v2942 = vunpack.c.l.b16 %v2569
        %v2943 = vunpack.c.h.b16 %v2569
        %v2944 = vunpack.c.l.b16 %v2570
        %v2945 = vunpack.c.h.b16 %v2570
        %v2946 = vunpack.c.l.b16 %v2571
        %v2947 = vunpack.c.h.b16 %v2571
        %v2948 = vunpack.c.l.b16 %v2572
        %v2949 = vunpack.c.h.b16 %v2572
        %v2950 = vunpack.c.l.b16 %v2573
        %v2951 = vunpack.c.h.b16 %v2573
        %v2952 = vunpack.c.l.b16 %v2574
        %v2953 = vunpack.c.h.b16 %v2574
        %v2954 = vunpack.c.l.b16 %v2575
        %v2955 = vunpack.c.h.b16 %v2575
        %v2956 = vunpack.c.l.b16 %v2576
        %v2957 = vunpack.c.h.b16 %v2576
        %v2958 = vunpack.c.l.b16 %v2577
        %v2959 = vunpack.c.h.b16 %v2577
        %v2960 = vunpack.c.l.b16 %v2578
        %v2961 = vunpack.c.h.b16 %v2578
        %v2962 = vunpack.c.l.b16 %v2579
        %v2963 = vunpack.c.h.b16 %v2579
        %v2964 = vpack.c.b16 %v2716, %v2708
        %v2965 = vpack.c.b16 %v2717, %v2709
        %v2966 = vpack.c.b16 %v2718, %v2710
        %v2967 = vpack.c.b16 %v2719, %v2711
        %v2968 = vpack.c.b16 %v2720, %v2712
        %v2969 = vpack.c.b16 %v2721, %v2713
        %v2970 = vpack.c.b16 %v2722, %v2714
        %v2971 = vpack.c.b16 %v2723, %v2715
        %v2972 = vpack.c.b16 %v2732, %v2724
        %v2973 = vpack.c.b16 %v2733, %v2725
        %v2974 = vpack.c.b16 %v2734, %v2726
        %v2975 = vpack.c.b16 %v2735, %v2727
        %v2976 = vpack.c.b16 %v2736, %v2728
        %v2977 = vpack.c.b16 %v2737, %v2729
        %v2978 = vpack.c.b16 %v2738, %v2730
        %v2979 = vpack.c.b16 %v2739, %v2731
        %v2980 = vpack.c.b16 %v2748, %v2740
        %v2981 = vpack.c.b16 %v2749, %v2741
        %v2982 = vpack.c.b16 %v2750, %v2742
        %v2983 = vpack.c.b16 %v2751, %v2743
        %v2984 = vpack.c.b16 %v2752, %v2744
        %v2985 = vpack.c.b16 %v2753, %v2745
        %v2986 = vpack.c.b16 %v2754, %v2746
        %v2987 = vpack.c.b16 %v2755, %v2747
        %v2988 = vpack.c.b16 %v2764, %v2756
        %v2989 = vpack.c.b16 %v2765, %v2757
        %v2990 = vpack.c.b16 %v2766, %v2758
        %v2991 = vpack.c.b16 %v2767, %v2759
        %v2992 = vpack.c.b16 %v2768, %v2760
        %v2993 = vpack.c.b16 %v2769, %v2761
        %v2994 = vpack.c.b16 %v2770, %v2762
        %v2995 = vpack.c.b16 %v2771, %v2763
        %v2996 = vpack.c.b16 %v2780, %v2772
        %v2997 = vpack.c.b16 %v2781, %v2773
        %v2998 = vpack.c.b16 %v2782, %v2774
        %v2999 = vpack.c.b16 %v2783, %v2775
        %v3000 = vpack.c.b16 %v2784, %v2776
        %v3001 = vpack.c.b16 %v2785, %v2777
        %v3002 = vpack.c.b16 %v2786, %v2778
        %v3003 = vpack.c.b16 %v2787, %v2779
        %v3004 = vpack.c.b16 %v2796, %v2788
        %v3005 = vpack.c.b16 %v2797, %v2789
        %v3006 = vpack.c.b16 %v2798, %v2790
        %v3007 = vpack.c.b16 %v2799, %v2791
        %v3008 = vpack.c.b16 %v2800, %v2792
        %v3009 = vpack.c.b16 %v2801, %v2793
        %v3010 = vpack.c.b16 %v2802, %v2794
        %v3011 = vpack.c.b16 %v2803, %v2795
        %v3012 = vpack.c.b16 %v2812, %v2804
        %v3013 = vpack.c.b16 %v2813, %v2805
        %v3014 = vpack.c.b16 %v2814, %v2806
        %v3015 = vpack.c.b16 %v2815, %v2807
        %v3016 = vpack.c.b16 %v2816, %v2808
        %v3017 = vpack.c.b16 %v2817, %v2809
        %v3018 = vpack.c.b16 %v2818, %v2810
        %v3019 = vpack.c.b16 %v2819, %v2811
        %v3020 = vpack.c.b16 %v2828, %v2820
        %v3021 = vpack.c.b16 %v2829, %v2821
        %v3022 = vpack.c.b16 %v2830, %v2822
        %v3023 = vpack.c.b16 %v2831, %v2823
        %v3024 = vpack.c.b16 %v2832, %v2824
        %v3025 = vpack.c.b16 %v2833, %v2825
        %v3026 = vpack.c.b16 %v2834, %v2826
        %v3027 = vpack.c.b16 %v2835, %v2827
        %v3028 = vpack.c.b16 %v2844, %v2836
        %v3029 = vpack.c.b16 %v2845, %v2837
        %v3030 = vpack.c.b16 %v2846, %v2838
        %v3031 = vpack.c.b16 %v2847, %v2839
        %v3032 = vpack.c.b16 %v2848, %v2840
        %v3033 = vpack.c.b16 %v2849, %v2841
        %v3034 = vpack.c.b16 %v2850, %v2842
        %v3035 = vpack.c.b16 %v2851, %v2843
        %v3036 = vpack.c.b16 %v2860, %v2852
        %v3037 = vpack.c.b16 %v2861, %v2853
        %v3038 = vpack.c.b16 %v2862, %v2854
        %v3039 = vpack.c.b16 %v2863, %v2855
        %v3040 = vpack.c.b16 %v2864, %v2856
        %v3041 = vpack.c.b16 %v2865, %v2857
        %v3042 = vpack.c.b16 %v2866, %v2858
        %v3043 = vpack.c.b16 %v2867, %v2859
        %v3044 = vpack.c.b16 %v2876, %v2868
        %v3045 = vpack.c.b16 %v2877, %v2869
        %v3046 = vpack.c.b16 %v2878, %v2870
        %v3047 = vpack.c.b16 %v2879, %v2871
        %v3048 = vpack.c.b16 %v2880, %v2872
        %v3049 = vpack.c.b16 %v2881, %v2873
        %v3050 = vpack.c.b16 %v2882, %v2874
        %v3051 = vpack.c.b16 %v2883, %v2875
        %v3052 = vpack.c.b16 %v2892, %v2884
        %v3053 = vpack.c.b16 %v2893, %v2885
        %v3054 = vpack.c.b16 %v2894, %v2886
        %v3055 = vpack.c.b16 %v2895, %v2887
        %v3056 = vpack.c.b16 %v2896, %v2888
        %v3057 = vpack.c.b16 %v2897, %v2889
        %v3058 = vpack.c.b16 %v2898, %v2890
        %v3059 = vpack.c.b16 %v2899, %v2891
        %v3060 = vpack.c.b16 %v2908, %v2900
        %v3061 = vpack.c.b16 %v2909, %v2901
        %v3062 = vpack.c.b16 %v2910, %v2902
        %v3063 = vpack.c.b16 %v2911, %v2903
        %v3064 = vpack.c.b16 %v2912, %v2904
        %v3065 = vpack.c.b16 %v2913, %v2905
        %v3066 = vpack.c.b16 %v2914, %v2906
        %v3067 = vpack.c.b16 %v2915, %v2907
        %v3068 = vpack.c.b16 %v2924, %v2916
        %v3069 = vpack.c.b16 %v2925, %v2917
        %v3070 = vpack.c.b16 %v2926, %v2918
        %v3071 = vpack.c.b16 %v2927, %v2919
        %v3072 = vpack.c.b16 %v2928, %v2920
        %v3073 = vpack.c.b16 %v2929, %v2921
        %v3074 = vpack.c.b16 %v2930, %v2922
        %v3075 = vpack.c.b16 %v2931, %v2923
        %v3076 = vpack.c.b16 %v2940, %v2932
        %v3077 = vpack.c.b16 %v2941, %v2933
        %v3078 = vpack.c.b16 %v2942, %v2934
        %v3079 = vpack.c.b16 %v2943, %v2935
        %v3080 = vpack.c.b16 %v2944, %v2936
        %v3081 = vpack.c.b16 %v2945, %v2937
        %v3082 = vpack.c.b16 %v2946, %v2938
        %v3083 = vpack.c.b16 %v2947, %v2939
        %v3084 = vpack.c.b16 %v2956, %v2948
        %v3085 = vpack.c.b16 %v2957, %v2949
        %v3086 = vpack.c.b16 %v2958, %v2950
        %v3087 = vpack.c.b16 %v2959, %v2951
        %v3088 = vpack.c.b16 %v2960, %v2952
        %v3089 = vpack.c.b16 %v2961, %v2953
        %v3090 = vpack.c.b16 %v2962, %v2954
        %v3091 = vpack.c.b16 %v2963, %v2955
        %3220 = vmatpush.bf16.msra.mxu0 %v3020
        %3221 = vmatpush.bf16.msra.mxu0 %v3012
        %3222 = vmatpush.bf16.msra.mxu0 %v3004
        %3223 = vmatpush.bf16.msra.mxu0 %v2996
        %3224 = vmatpush.bf16.msra.mxu0 %v2988
        %3225 = vmatpush.bf16.msra.mxu0 %v2980
        %3226 = vmatpush.bf16.msra.mxu0 %v2972
        %3227 = vmatpush.bf16.msra.mxu0 %v2964
        %3228 = vmatmul.bf16.gmra.mxu0 %v2450
        %v3229 = vpop.f32.mrf.mxu0
        %v3230 = vadd.f32 0.0, %v3229
        %v3231 = vpop.f32.mrf.mxu0
        %3232 = vdwg.mxu0
        %3233 = vmatpush.bf16.msra.mxu0 %v3084
        %3234 = vmatpush.bf16.msra.mxu0 %v3076
        %3235 = vmatpush.bf16.msra.mxu0 %v3068
        %3236 = vmatpush.bf16.msra.mxu0 %v3060
        %3237 = vmatpush.bf16.msra.mxu0 %v3052
        %3238 = vmatpush.bf16.msra.mxu0 %v3044
        %3239 = vmatpush.bf16.msra.mxu0 %v3036
        %3240 = vmatpush.bf16.msra.mxu0 %v3028
        %3241 = vmatmul.bf16.gmra.mxu0 %v2451
        %v3242 = vpop.f32.mrf.mxu0
        %v3243 = vadd.f32 %v3230, %v3242
        %v3244 = vpop.f32.mrf.mxu0
        %3245 = vdwg.mxu0
        %3246 = vmatpush.bf16.msra.mxu0 %v3021
        %3247 = vmatpush.bf16.msra.mxu0 %v3013
        %3248 = vmatpush.bf16.msra.mxu0 %v3005
        %3249 = vmatpush.bf16.msra.mxu0 %v2997
        %3250 = vmatpush.bf16.msra.mxu0 %v2989
        %3251 = vmatpush.bf16.msra.mxu0 %v2981
        %3252 = vmatpush.bf16.msra.mxu0 %v2973
        %3253 = vmatpush.bf16.msra.mxu0 %v2965
        %3254 = vmatmul.bf16.gmra.mxu0 %v2450
        %v3255 = vpop.f32.mrf.mxu0
        %v3256 = vadd.f32 0.0, %v3255
        %v3257 = vpop.f32.mrf.mxu0
        %3258 = vdwg.mxu0
        %3259 = vmatpush.bf16.msra.mxu0 %v3085
        %3260 = vmatpush.bf16.msra.mxu0 %v3077
        %3261 = vmatpush.bf16.msra.mxu0 %v3069
        %3262 = vmatpush.bf16.msra.mxu0 %v3061
        %3263 = vmatpush.bf16.msra.mxu0 %v3053
        %3264 = vmatpush.bf16.msra.mxu0 %v3045
        %3265 = vmatpush.bf16.msra.mxu0 %v3037
        %3266 = vmatpush.bf16.msra.mxu0 %v3029
        %3267 = vmatmul.bf16.gmra.mxu0 %v2451
        %v3268 = vpop.f32.mrf.mxu0
        %v3269 = vadd.f32 %v3256, %v3268
        %v3270 = vpop.f32.mrf.mxu0
        %3271 = vdwg.mxu0
        %3272 = vmatpush.bf16.msra.mxu0 %v3022
        %3273 = vmatpush.bf16.msra.mxu0 %v3014
        %3274 = vmatpush.bf16.msra.mxu0 %v3006
        %3275 = vmatpush.bf16.msra.mxu0 %v2998
        %3276 = vmatpush.bf16.msra.mxu0 %v2990
        %3277 = vmatpush.bf16.msra.mxu0 %v2982
        %3278 = vmatpush.bf16.msra.mxu0 %v2974
        %3279 = vmatpush.bf16.msra.mxu0 %v2966
        %3280 = vmatmul.bf16.gmra.mxu0 %v2450
        %v3281 = vpop.f32.mrf.mxu0
        %v3282 = vadd.f32 0.0, %v3281
        %v3283 = vpop.f32.mrf.mxu0
        %3284 = vdwg.mxu0
        %3285 = vmatpush.bf16.msra.mxu0 %v3086
        %3286 = vmatpush.bf16.msra.mxu0 %v3078
        %3287 = vmatpush.bf16.msra.mxu0 %v3070
        %3288 = vmatpush.bf16.msra.mxu0 %v3062
        %3289 = vmatpush.bf16.msra.mxu0 %v3054
        %3290 = vmatpush.bf16.msra.mxu0 %v3046
        %3291 = vmatpush.bf16.msra.mxu0 %v3038
        %3292 = vmatpush.bf16.msra.mxu0 %v3030
        %3293 = vmatmul.bf16.gmra.mxu0 %v2451
        %v3294 = vpop.f32.mrf.mxu0
        %v3295 = vadd.f32 %v3282, %v3294
        %v3296 = vpop.f32.mrf.mxu0
        %3297 = vdwg.mxu0
        %3298 = vmatpush.bf16.msra.mxu0 %v3023
        %3299 = vmatpush.bf16.msra.mxu0 %v3015
        %3300 = vmatpush.bf16.msra.mxu0 %v3007
        %3301 = vmatpush.bf16.msra.mxu0 %v2999
        %3302 = vmatpush.bf16.msra.mxu0 %v2991
        %3303 = vmatpush.bf16.msra.mxu0 %v2983
        %3304 = vmatpush.bf16.msra.mxu0 %v2975
        %3305 = vmatpush.bf16.msra.mxu0 %v2967
        %3306 = vmatmul.bf16.gmra.mxu0 %v2450
        %v3307 = vpop.f32.mrf.mxu0
        %v3308 = vadd.f32 0.0, %v3307
        %v3309 = vpop.f32.mrf.mxu0
        %3310 = vdwg.mxu0
        %3311 = vmatpush.bf16.msra.mxu0 %v3087
        %3312 = vmatpush.bf16.msra.mxu0 %v3079
        %3313 = vmatpush.bf16.msra.mxu0 %v3071
        %3314 = vmatpush.bf16.msra.mxu0 %v3063
        %3315 = vmatpush.bf16.msra.mxu0 %v3055
        %3316 = vmatpush.bf16.msra.mxu0 %v3047
        %3317 = vmatpush.bf16.msra.mxu0 %v3039
        %3318 = vmatpush.bf16.msra.mxu0 %v3031
        %3319 = vmatmul.bf16.gmra.mxu0 %v2451
        %v3320 = vpop.f32.mrf.mxu0
        %v3321 = vadd.f32 %v3308, %v3320
        %v3322 = vpop.f32.mrf.mxu0
        %3323 = vdwg.mxu0
        %3324 = vmatpush.bf16.msra.mxu0 %v3024
        %3325 = vmatpush.bf16.msra.mxu0 %v3016
        %3326 = vmatpush.bf16.msra.mxu0 %v3008
        %3327 = vmatpush.bf16.msra.mxu0 %v3000
        %3328 = vmatpush.bf16.msra.mxu0 %v2992
        %3329 = vmatpush.bf16.msra.mxu0 %v2984
        %3330 = vmatpush.bf16.msra.mxu0 %v2976
        %3331 = vmatpush.bf16.msra.mxu0 %v2968
        %3332 = vmatmul.bf16.gmra.mxu0 %v2450
        %v3333 = vpop.f32.mrf.mxu0
        %v3334 = vadd.f32 0.0, %v3333
        %v3335 = vpop.f32.mrf.mxu0
        %3336 = vdwg.mxu0
        %3337 = vmatpush.bf16.msra.mxu0 %v3088
        %3338 = vmatpush.bf16.msra.mxu0 %v3080
        %3339 = vmatpush.bf16.msra.mxu0 %v3072
        %3340 = vmatpush.bf16.msra.mxu0 %v3064
        %3341 = vmatpush.bf16.msra.mxu0 %v3056
        %3342 = vmatpush.bf16.msra.mxu0 %v3048
        %3343 = vmatpush.bf16.msra.mxu0 %v3040
        %3344 = vmatpush.bf16.msra.mxu0 %v3032
        %3345 = vmatmul.bf16.gmra.mxu0 %v2451
        %v3346 = vpop.f32.mrf.mxu0
        %v3347 = vadd.f32 %v3334, %v3346
        %v3348 = vpop.f32.mrf.mxu0
        %3349 = vdwg.mxu0
        %3350 = vmatpush.bf16.msra.mxu0 %v3025
        %3351 = vmatpush.bf16.msra.mxu0 %v3017
        %3352 = vmatpush.bf16.msra.mxu0 %v3009
        %3353 = vmatpush.bf16.msra.mxu0 %v3001
        %3354 = vmatpush.bf16.msra.mxu0 %v2993
        %3355 = vmatpush.bf16.msra.mxu0 %v2985
        %3356 = vmatpush.bf16.msra.mxu0 %v2977
        %3357 = vmatpush.bf16.msra.mxu0 %v2969
        %3358 = vmatmul.bf16.gmra.mxu0 %v2450
        %v3359 = vpop.f32.mrf.mxu0
        %v3360 = vadd.f32 0.0, %v3359
        %v3361 = vpop.f32.mrf.mxu0
        %3362 = vdwg.mxu0
        %3363 = vmatpush.bf16.msra.mxu0 %v3089
        %3364 = vmatpush.bf16.msra.mxu0 %v3081
        %3365 = vmatpush.bf16.msra.mxu0 %v3073
        %3366 = vmatpush.bf16.msra.mxu0 %v3065
        %3367 = vmatpush.bf16.msra.mxu0 %v3057
        %3368 = vmatpush.bf16.msra.mxu0 %v3049
        %3369 = vmatpush.bf16.msra.mxu0 %v3041
        %3370 = vmatpush.bf16.msra.mxu0 %v3033
        %3371 = vmatmul.bf16.gmra.mxu0 %v2451
        %v3372 = vpop.f32.mrf.mxu0
        %v3373 = vadd.f32 %v3360, %v3372
        %v3374 = vpop.f32.mrf.mxu0
        %3375 = vdwg.mxu0
        %3376 = vmatpush.bf16.msra.mxu0 %v3026
        %3377 = vmatpush.bf16.msra.mxu0 %v3018
        %3378 = vmatpush.bf16.msra.mxu0 %v3010
        %3379 = vmatpush.bf16.msra.mxu0 %v3002
        %3380 = vmatpush.bf16.msra.mxu0 %v2994
        %3381 = vmatpush.bf16.msra.mxu0 %v2986
        %3382 = vmatpush.bf16.msra.mxu0 %v2978
        %3383 = vmatpush.bf16.msra.mxu0 %v2970
        %3384 = vmatmul.bf16.gmra.mxu0 %v2450
        %v3385 = vpop.f32.mrf.mxu0
        %v3386 = vadd.f32 0.0, %v3385
        %v3387 = vpop.f32.mrf.mxu0
        %3388 = vdwg.mxu0
        %3389 = vmatpush.bf16.msra.mxu0 %v3090
        %3390 = vmatpush.bf16.msra.mxu0 %v3082
        %3391 = vmatpush.bf16.msra.mxu0 %v3074
        %3392 = vmatpush.bf16.msra.mxu0 %v3066
        %3393 = vmatpush.bf16.msra.mxu0 %v3058
        %3394 = vmatpush.bf16.msra.mxu0 %v3050
        %3395 = vmatpush.bf16.msra.mxu0 %v3042
        %3396 = vmatpush.bf16.msra.mxu0 %v3034
        %3397 = vmatmul.bf16.gmra.mxu0 %v2451
        %v3398 = vpop.f32.mrf.mxu0
        %v3399 = vadd.f32 %v3386, %v3398
        %v3400 = vpop.f32.mrf.mxu0
        %3401 = vdwg.mxu0
        %3402 = vmatpush.bf16.msra.mxu0 %v3027
        %3403 = vmatpush.bf16.msra.mxu0 %v3019
        %3404 = vmatpush.bf16.msra.mxu0 %v3011
        %3405 = vmatpush.bf16.msra.mxu0 %v3003
        %3406 = vmatpush.bf16.msra.mxu0 %v2995
        %3407 = vmatpush.bf16.msra.mxu0 %v2987
        %3408 = vmatpush.bf16.msra.mxu0 %v2979
        %3409 = vmatpush.bf16.msra.mxu0 %v2971
        %3410 = vmatmul.bf16.gmra.mxu0 %v2450
        %v3411 = vpop.f32.mrf.mxu0
        %v3412 = vadd.f32 0.0, %v3411
        %v3413 = vpop.f32.mrf.mxu0
        %3414 = vdwg.mxu0
        %3415 = vmatpush.bf16.msra.mxu0 %v3091
        %3416 = vmatpush.bf16.msra.mxu0 %v3083
        %3417 = vmatpush.bf16.msra.mxu0 %v3075
        %3418 = vmatpush.bf16.msra.mxu0 %v3067
        %3419 = vmatpush.bf16.msra.mxu0 %v3059
        %3420 = vmatpush.bf16.msra.mxu0 %v3051
        %3421 = vmatpush.bf16.msra.mxu0 %v3043
        %3422 = vmatpush.bf16.msra.mxu0 %v3035
        %3423 = vmatmul.bf16.gmra.mxu0 %v2451
        %v3424 = vpop.f32.mrf.mxu0
        %v3425 = vadd.f32 %v3412, %v3424
        %v3426 = vpop.f32.mrf.mxu0
        %3427 = vdwg.mxu0
        %v3436 = vrot.slane %v3269, 6
        %v3437 = vrot.slane %v3295, 4
        %v3438 = vrot.slane %v3321, 2
        %v3439 = vrot.slane %v3373, 6
        %v3440 = vrot.slane %v3399, 4
        %v3441 = vrot.slane %v3425, 2
        %v3442 = vsel %vm1319, %v3243, %v3436
        %v3443 = vsel %vm1321, %v3437, %v3438
        %v3444 = vsel %vm1323, %v3442, %v3443
        %v3445 = vsel %vm1319, %v3347, %v3439
        %v3446 = vsel %vm1321, %v3440, %v3441
        %v3447 = vsel %vm1323, %v3445, %v3446
        %v3450 = vadd.f32 %v2441, %v3444
        %v3451 = vadd.f32 %v2442, %v3447
        %v3452 = vmul.f32 %v3450, 0.5
        %v3453 = vtanh.pop %v3452
        %v3454 = vmul.f32 %v3453, 0.5
        %v3455 = vadd.f32 %v3454, 0.5
        %v3457 = vrot.slane %v3450, 4
        %v3459 = vmul.f32 %v3457, 0.5
        %v3460 = vtanh.pop %v3459
        %v3461 = vmul.f32 %v3460, 0.5
        %v3462 = vadd.f32 %v3461, 0.5
        %v3463 = vtanh.pop %v3451
        %v3465 = vrot.slane %v3451, 4
        %v3467 = vmul.f32 %v3465, 0.5
        %v3468 = vtanh.pop %v3467
        %v3469 = vmul.f32 %v3468, 0.5
        %v3470 = vadd.f32 %v3469, 0.5
        %v3471 = vld [vmem:[#allocation3] sm:$0xf]
        %v3472 = vmul.f32 %v3462, %v3471
        %v3473 = vmul.f32 %v3455, %v3463
        %v3474 = vadd.f32 %v3472, %v3473
        %v3475 = vtanh.pop %v3474
        %v3476 = vmul.f32 %v3470, %v3475
        %3477 = vst [vmem:[#allocation2] sm:$0xf] %v3476
        %3478 = vst [vmem:[#allocation3] sm:$0xf] %v3474
        %3480 = vst [vmem:[#allocation1] ss:$4 sm:$0xff] %v3476
        %v3481 = vld.sshfl [vmem:[#allocation1] sm:$0xff pattern:$0x73625140]
        %v3482 = vld.sshfl [vmem:[#allocation1 + $0x8] sm:$0xff pattern:$0x73625140]
        %v3485 = vpack.c.bf16 %v3482, %v3481
        %v3487 = vrot.slane %v3485, 3
        %v3490 = vsel %vm1368, %v3485, %v3487
        %s3492 = smul.u32 %s2437, 2
        %s3493 = scalar_lea.vmem %s301, %s3492
        %3494 = vst [vmem:[%s3493] sm:$0x3] %v3490
        %s3495 = smul.u32 %s1376, 3
        %s3496 = smul.u32 %s3495, 8
        %s3497 = scalar_lea.vmem %s238, %s3496 [#allocation4]
        %v3498 = vld [vmem:[%s3497] sm:$0xff]
        %v3499 = vunpack.c.l.bf16 %v3498
        %v3500 = vunpack.c.h.bf16 %v3498
        %v3501 = vld [vmem:[#allocation2] sm:$0xf]
        %3503 = vst [vmem:[#allocation1] ss:$4 sm:$0xff] %v3501
        %v3504 = vld.sshfl [vmem:[#allocation1] sm:$0xff pattern:$0x73625140]
        %v3505 = vld.sshfl [vmem:[#allocation1 + $0x8] sm:$0xff pattern:$0x73625140]
        %v3508 = vpack.c.bf16 %v3504, %v3504
        %v3509 = vpack.c.bf16 %v3505, %v3505
        %v3510 = vld [vmem:[%s246] sm:$0xff]
        %v3511 = vld [vmem:[%s246 + $0x8] sm:$0xff]
        %v3512 = vld [vmem:[%s246 + $0x10] sm:$0xff]
        %v3513 = vld [vmem:[%s246 + $0x18] sm:$0xff]
        %v3514 = vld [vmem:[%s246 + $0x20] sm:$0xff]
        %v3515 = vld [vmem:[%s246 + $0x28] sm:$0xff]
        %v3516 = vld [vmem:[%s246 + $0x30] sm:$0xff]
        %v3517 = vld [vmem:[%s246 + $0x38] sm:$0xff]
        %v3518 = vld [vmem:[%s246 + $0x40] sm:$0xff]
        %v3519 = vld [vmem:[%s246 + $0x48] sm:$0xff]
        %v3520 = vld [vmem:[%s246 + $0x50] sm:$0xff]
        %v3521 = vld [vmem:[%s246 + $0x58] sm:$0xff]
        %v3522 = vld [vmem:[%s246 + $0x60] sm:$0xff]
        %v3523 = vld [vmem:[%s246 + $0x68] sm:$0xff]
        %v3524 = vld [vmem:[%s246 + $0x70] sm:$0xff]
        %v3525 = vld [vmem:[%s246 + $0x78] sm:$0xff]
        %v3526 = vld [vmem:[%s246 + $0x80] sm:$0xff]
        %v3527 = vld [vmem:[%s246 + $0x88] sm:$0xff]
        %v3528 = vld [vmem:[%s246 + $0x90] sm:$0xff]
        %v3529 = vld [vmem:[%s246 + $0x98] sm:$0xff]
        %v3530 = vld [vmem:[%s246 + $0xa0] sm:$0xff]
        %v3531 = vld [vmem:[%s246 + $0xa8] sm:$0xff]
        %v3532 = vld [vmem:[%s246 + $0xb0] sm:$0xff]
        %v3533 = vld [vmem:[%s246 + $0xb8] sm:$0xff]
        %v3534 = vld [vmem:[%s246 + $0xc0] sm:$0xff]
        %v3535 = vld [vmem:[%s246 + $0xc8] sm:$0xff]
        %v3536 = vld [vmem:[%s246 + $0xd0] sm:$0xff]
        %v3537 = vld [vmem:[%s246 + $0xd8] sm:$0xff]
        %v3538 = vld [vmem:[%s246 + $0xe0] sm:$0xff]
        %v3539 = vld [vmem:[%s246 + $0xe8] sm:$0xff]
        %v3540 = vld [vmem:[%s246 + $0xf0] sm:$0xff]
        %v3541 = vld [vmem:[%s246 + $0xf8] sm:$0xff]
        %v3542 = vld [vmem:[%s246 + $0x100] sm:$0xff]
        %v3543 = vld [vmem:[%s246 + $0x108] sm:$0xff]
        %v3544 = vld [vmem:[%s246 + $0x110] sm:$0xff]
        %v3545 = vld [vmem:[%s246 + $0x118] sm:$0xff]
        %v3546 = vld [vmem:[%s246 + $0x120] sm:$0xff]
        %v3547 = vld [vmem:[%s246 + $0x128] sm:$0xff]
        %v3548 = vld [vmem:[%s246 + $0x130] sm:$0xff]
        %v3549 = vld [vmem:[%s246 + $0x138] sm:$0xff]
        %v3550 = vld [vmem:[%s246 + $0x140] sm:$0xff]
        %v3551 = vld [vmem:[%s246 + $0x148] sm:$0xff]
        %v3552 = vld [vmem:[%s246 + $0x150] sm:$0xff]
        %v3553 = vld [vmem:[%s246 + $0x158] sm:$0xff]
        %v3554 = vld [vmem:[%s246 + $0x160] sm:$0xff]
        %v3555 = vld [vmem:[%s246 + $0x168] sm:$0xff]
        %v3556 = vld [vmem:[%s246 + $0x170] sm:$0xff]
        %v3557 = vld [vmem:[%s246 + $0x178] sm:$0xff]
        %v3558 = vld [vmem:[%s246 + $0x180] sm:$0xff]
        %v3559 = vld [vmem:[%s246 + $0x188] sm:$0xff]
        %v3560 = vld [vmem:[%s246 + $0x190] sm:$0xff]
        %v3561 = vld [vmem:[%s246 + $0x198] sm:$0xff]
        %v3562 = vld [vmem:[%s246 + $0x1a0] sm:$0xff]
        %v3563 = vld [vmem:[%s246 + $0x1a8] sm:$0xff]
        %v3564 = vld [vmem:[%s246 + $0x1b0] sm:$0xff]
        %v3565 = vld [vmem:[%s246 + $0x1b8] sm:$0xff]
        %v3566 = vld [vmem:[%s246 + $0x1c0] sm:$0xff]
        %v3567 = vld [vmem:[%s246 + $0x1c8] sm:$0xff]
        %v3568 = vld [vmem:[%s246 + $0x1d0] sm:$0xff]
        %v3569 = vld [vmem:[%s246 + $0x1d8] sm:$0xff]
        %v3570 = vld [vmem:[%s246 + $0x1e0] sm:$0xff]
        %v3571 = vld [vmem:[%s246 + $0x1e8] sm:$0xff]
        %v3572 = vld [vmem:[%s246 + $0x1f0] sm:$0xff]
        %v3573 = vld [vmem:[%s246 + $0x1f8] sm:$0xff]
        %v3574 = vld [vmem:[%s246 + $0x200] sm:$0xff]
        %v3575 = vld [vmem:[%s246 + $0x208] sm:$0xff]
        %v3576 = vld [vmem:[%s246 + $0x210] sm:$0xff]
        %v3577 = vld [vmem:[%s246 + $0x218] sm:$0xff]
        %v3578 = vld [vmem:[%s246 + $0x220] sm:$0xff]
        %v3579 = vld [vmem:[%s246 + $0x228] sm:$0xff]
        %v3580 = vld [vmem:[%s246 + $0x230] sm:$0xff]
        %v3581 = vld [vmem:[%s246 + $0x238] sm:$0xff]
        %v3582 = vld [vmem:[%s246 + $0x240] sm:$0xff]
        %v3583 = vld [vmem:[%s246 + $0x248] sm:$0xff]
        %v3584 = vld [vmem:[%s246 + $0x250] sm:$0xff]
        %v3585 = vld [vmem:[%s246 + $0x258] sm:$0xff]
        %v3586 = vld [vmem:[%s246 + $0x260] sm:$0xff]
        %v3587 = vld [vmem:[%s246 + $0x268] sm:$0xff]
        %v3588 = vld [vmem:[%s246 + $0x270] sm:$0xff]
        %v3589 = vld [vmem:[%s246 + $0x278] sm:$0xff]
        %v3590 = vld [vmem:[%s246 + $0x280] sm:$0xff]
        %v3591 = vld [vmem:[%s246 + $0x288] sm:$0xff]
        %v3592 = vld [vmem:[%s246 + $0x290] sm:$0xff]
        %v3593 = vld [vmem:[%s246 + $0x298] sm:$0xff]
        %v3594 = vld [vmem:[%s246 + $0x2a0] sm:$0xff]
        %v3595 = vld [vmem:[%s246 + $0x2a8] sm:$0xff]
        %v3596 = vld [vmem:[%s246 + $0x2b0] sm:$0xff]
        %v3597 = vld [vmem:[%s246 + $0x2b8] sm:$0xff]
        %v3598 = vld [vmem:[%s246 + $0x2c0] sm:$0xff]
        %v3599 = vld [vmem:[%s246 + $0x2c8] sm:$0xff]
        %v3600 = vld [vmem:[%s246 + $0x2d0] sm:$0xff]
        %v3601 = vld [vmem:[%s246 + $0x2d8] sm:$0xff]
        %v3602 = vld [vmem:[%s246 + $0x2e0] sm:$0xff]
        %v3603 = vld [vmem:[%s246 + $0x2e8] sm:$0xff]
        %v3604 = vld [vmem:[%s246 + $0x2f0] sm:$0xff]
        %v3605 = vld [vmem:[%s246 + $0x2f8] sm:$0xff]
        %v3606 = vld [vmem:[%s246 + $0x300] sm:$0xff]
        %v3607 = vld [vmem:[%s246 + $0x308] sm:$0xff]
        %v3608 = vld [vmem:[%s246 + $0x310] sm:$0xff]
        %v3609 = vld [vmem:[%s246 + $0x318] sm:$0xff]
        %v3610 = vld [vmem:[%s246 + $0x320] sm:$0xff]
        %v3611 = vld [vmem:[%s246 + $0x328] sm:$0xff]
        %v3612 = vld [vmem:[%s246 + $0x330] sm:$0xff]
        %v3613 = vld [vmem:[%s246 + $0x338] sm:$0xff]
        %v3614 = vld [vmem:[%s246 + $0x340] sm:$0xff]
        %v3615 = vld [vmem:[%s246 + $0x348] sm:$0xff]
        %v3616 = vld [vmem:[%s246 + $0x350] sm:$0xff]
        %v3617 = vld [vmem:[%s246 + $0x358] sm:$0xff]
        %v3618 = vld [vmem:[%s246 + $0x360] sm:$0xff]
        %v3619 = vld [vmem:[%s246 + $0x368] sm:$0xff]
        %v3620 = vld [vmem:[%s246 + $0x370] sm:$0xff]
        %v3621 = vld [vmem:[%s246 + $0x378] sm:$0xff]
        %v3622 = vld [vmem:[%s246 + $0x380] sm:$0xff]
        %v3623 = vld [vmem:[%s246 + $0x388] sm:$0xff]
        %v3624 = vld [vmem:[%s246 + $0x390] sm:$0xff]
        %v3625 = vld [vmem:[%s246 + $0x398] sm:$0xff]
        %v3626 = vld [vmem:[%s246 + $0x3a0] sm:$0xff]
        %v3627 = vld [vmem:[%s246 + $0x3a8] sm:$0xff]
        %v3628 = vld [vmem:[%s246 + $0x3b0] sm:$0xff]
        %v3629 = vld [vmem:[%s246 + $0x3b8] sm:$0xff]
        %v3630 = vld [vmem:[%s246 + $0x3c0] sm:$0xff]
        %v3631 = vld [vmem:[%s246 + $0x3c8] sm:$0xff]
        %v3632 = vld [vmem:[%s246 + $0x3d0] sm:$0xff]
        %v3633 = vld [vmem:[%s246 + $0x3d8] sm:$0xff]
        %v3634 = vld [vmem:[%s246 + $0x3e0] sm:$0xff]
        %v3635 = vld [vmem:[%s246 + $0x3e8] sm:$0xff]
        %v3636 = vld [vmem:[%s246 + $0x3f0] sm:$0xff]
        %v3637 = vld [vmem:[%s246 + $0x3f8] sm:$0xff]
        %v3766 = vunpack.c.l.b16 %v3510
        %v3767 = vunpack.c.h.b16 %v3510
        %v3768 = vunpack.c.l.b16 %v3511
        %v3769 = vunpack.c.h.b16 %v3511
        %v3770 = vunpack.c.l.b16 %v3512
        %v3771 = vunpack.c.h.b16 %v3512
        %v3772 = vunpack.c.l.b16 %v3513
        %v3773 = vunpack.c.h.b16 %v3513
        %v3774 = vunpack.c.l.b16 %v3514
        %v3775 = vunpack.c.h.b16 %v3514
        %v3776 = vunpack.c.l.b16 %v3515
        %v3777 = vunpack.c.h.b16 %v3515
        %v3778 = vunpack.c.l.b16 %v3516
        %v3779 = vunpack.c.h.b16 %v3516
        %v3780 = vunpack.c.l.b16 %v3517
        %v3781 = vunpack.c.h.b16 %v3517
        %v3782 = vunpack.c.l.b16 %v3518
        %v3783 = vunpack.c.h.b16 %v3518
        %v3784 = vunpack.c.l.b16 %v3519
        %v3785 = vunpack.c.h.b16 %v3519
        %v3786 = vunpack.c.l.b16 %v3520
        %v3787 = vunpack.c.h.b16 %v3520
        %v3788 = vunpack.c.l.b16 %v3521
        %v3789 = vunpack.c.h.b16 %v3521
        %v3790 = vunpack.c.l.b16 %v3522
        %v3791 = vunpack.c.h.b16 %v3522
        %v3792 = vunpack.c.l.b16 %v3523
        %v3793 = vunpack.c.h.b16 %v3523
        %v3794 = vunpack.c.l.b16 %v3524
        %v3795 = vunpack.c.h.b16 %v3524
        %v3796 = vunpack.c.l.b16 %v3525
        %v3797 = vunpack.c.h.b16 %v3525
        %v3798 = vunpack.c.l.b16 %v3526
        %v3799 = vunpack.c.h.b16 %v3526
        %v3800 = vunpack.c.l.b16 %v3527
        %v3801 = vunpack.c.h.b16 %v3527
        %v3802 = vunpack.c.l.b16 %v3528
        %v3803 = vunpack.c.h.b16 %v3528
        %v3804 = vunpack.c.l.b16 %v3529
        %v3805 = vunpack.c.h.b16 %v3529
        %v3806 = vunpack.c.l.b16 %v3530
        %v3807 = vunpack.c.h.b16 %v3530
        %v3808 = vunpack.c.l.b16 %v3531
        %v3809 = vunpack.c.h.b16 %v3531
        %v3810 = vunpack.c.l.b16 %v3532
        %v3811 = vunpack.c.h.b16 %v3532
        %v3812 = vunpack.c.l.b16 %v3533
        %v3813 = vunpack.c.h.b16 %v3533
        %v3814 = vunpack.c.l.b16 %v3534
        %v3815 = vunpack.c.h.b16 %v3534
        %v3816 = vunpack.c.l.b16 %v3535
        %v3817 = vunpack.c.h.b16 %v3535
        %v3818 = vunpack.c.l.b16 %v3536
        %v3819 = vunpack.c.h.b16 %v3536
        %v3820 = vunpack.c.l.b16 %v3537
        %v3821 = vunpack.c.h.b16 %v3537
        %v3822 = vunpack.c.l.b16 %v3538
        %v3823 = vunpack.c.h.b16 %v3538
        %v3824 = vunpack.c.l.b16 %v3539
        %v3825 = vunpack.c.h.b16 %v3539
        %v3826 = vunpack.c.l.b16 %v3540
        %v3827 = vunpack.c.h.b16 %v3540
        %v3828 = vunpack.c.l.b16 %v3541
        %v3829 = vunpack.c.h.b16 %v3541
        %v3830 = vunpack.c.l.b16 %v3542
        %v3831 = vunpack.c.h.b16 %v3542
        %v3832 = vunpack.c.l.b16 %v3543
        %v3833 = vunpack.c.h.b16 %v3543
        %v3834 = vunpack.c.l.b16 %v3544
        %v3835 = vunpack.c.h.b16 %v3544
        %v3836 = vunpack.c.l.b16 %v3545
        %v3837 = vunpack.c.h.b16 %v3545
        %v3838 = vunpack.c.l.b16 %v3546
        %v3839 = vunpack.c.h.b16 %v3546
        %v3840 = vunpack.c.l.b16 %v3547
        %v3841 = vunpack.c.h.b16 %v3547
        %v3842 = vunpack.c.l.b16 %v3548
        %v3843 = vunpack.c.h.b16 %v3548
        %v3844 = vunpack.c.l.b16 %v3549
        %v3845 = vunpack.c.h.b16 %v3549
        %v3846 = vunpack.c.l.b16 %v3550
        %v3847 = vunpack.c.h.b16 %v3550
        %v3848 = vunpack.c.l.b16 %v3551
        %v3849 = vunpack.c.h.b16 %v3551
        %v3850 = vunpack.c.l.b16 %v3552
        %v3851 = vunpack.c.h.b16 %v3552
        %v3852 = vunpack.c.l.b16 %v3553
        %v3853 = vunpack.c.h.b16 %v3553
        %v3854 = vunpack.c.l.b16 %v3554
        %v3855 = vunpack.c.h.b16 %v3554
        %v3856 = vunpack.c.l.b16 %v3555
        %v3857 = vunpack.c.h.b16 %v3555
        %v3858 = vunpack.c.l.b16 %v3556
        %v3859 = vunpack.c.h.b16 %v3556
        %v3860 = vunpack.c.l.b16 %v3557
        %v3861 = vunpack.c.h.b16 %v3557
        %v3862 = vunpack.c.l.b16 %v3558
        %v3863 = vunpack.c.h.b16 %v3558
        %v3864 = vunpack.c.l.b16 %v3559
        %v3865 = vunpack.c.h.b16 %v3559
        %v3866 = vunpack.c.l.b16 %v3560
        %v3867 = vunpack.c.h.b16 %v3560
        %v3868 = vunpack.c.l.b16 %v3561
        %v3869 = vunpack.c.h.b16 %v3561
        %v3870 = vunpack.c.l.b16 %v3562
        %v3871 = vunpack.c.h.b16 %v3562
        %v3872 = vunpack.c.l.b16 %v3563
        %v3873 = vunpack.c.h.b16 %v3563
        %v3874 = vunpack.c.l.b16 %v3564
        %v3875 = vunpack.c.h.b16 %v3564
        %v3876 = vunpack.c.l.b16 %v3565
        %v3877 = vunpack.c.h.b16 %v3565
        %v3878 = vunpack.c.l.b16 %v3566
        %v3879 = vunpack.c.h.b16 %v3566
        %v3880 = vunpack.c.l.b16 %v3567
        %v3881 = vunpack.c.h.b16 %v3567
        %v3882 = vunpack.c.l.b16 %v3568
        %v3883 = vunpack.c.h.b16 %v3568
        %v3884 = vunpack.c.l.b16 %v3569
        %v3885 = vunpack.c.h.b16 %v3569
        %v3886 = vunpack.c.l.b16 %v3570
        %v3887 = vunpack.c.h.b16 %v3570
        %v3888 = vunpack.c.l.b16 %v3571
        %v3889 = vunpack.c.h.b16 %v3571
        %v3890 = vunpack.c.l.b16 %v3572
        %v3891 = vunpack.c.h.b16 %v3572
        %v3892 = vunpack.c.l.b16 %v3573
        %v3893 = vunpack.c.h.b16 %v3573
        %v3894 = vunpack.c.l.b16 %v3574
        %v3895 = vunpack.c.h.b16 %v3574
        %v3896 = vunpack.c.l.b16 %v3575
        %v3897 = vunpack.c.h.b16 %v3575
        %v3898 = vunpack.c.l.b16 %v3576
        %v3899 = vunpack.c.h.b16 %v3576
        %v3900 = vunpack.c.l.b16 %v3577
        %v3901 = vunpack.c.h.b16 %v3577
        %v3902 = vunpack.c.l.b16 %v3578
        %v3903 = vunpack.c.h.b16 %v3578
        %v3904 = vunpack.c.l.b16 %v3579
        %v3905 = vunpack.c.h.b16 %v3579
        %v3906 = vunpack.c.l.b16 %v3580
        %v3907 = vunpack.c.h.b16 %v3580
        %v3908 = vunpack.c.l.b16 %v3581
        %v3909 = vunpack.c.h.b16 %v3581
        %v3910 = vunpack.c.l.b16 %v3582
        %v3911 = vunpack.c.h.b16 %v3582
        %v3912 = vunpack.c.l.b16 %v3583
        %v3913 = vunpack.c.h.b16 %v3583
        %v3914 = vunpack.c.l.b16 %v3584
        %v3915 = vunpack.c.h.b16 %v3584
        %v3916 = vunpack.c.l.b16 %v3585
        %v3917 = vunpack.c.h.b16 %v3585
        %v3918 = vunpack.c.l.b16 %v3586
        %v3919 = vunpack.c.h.b16 %v3586
        %v3920 = vunpack.c.l.b16 %v3587
        %v3921 = vunpack.c.h.b16 %v3587
        %v3922 = vunpack.c.l.b16 %v3588
        %v3923 = vunpack.c.h.b16 %v3588
        %v3924 = vunpack.c.l.b16 %v3589
        %v3925 = vunpack.c.h.b16 %v3589
        %v3926 = vunpack.c.l.b16 %v3590
        %v3927 = vunpack.c.h.b16 %v3590
        %v3928 = vunpack.c.l.b16 %v3591
        %v3929 = vunpack.c.h.b16 %v3591
        %v3930 = vunpack.c.l.b16 %v3592
        %v3931 = vunpack.c.h.b16 %v3592
        %v3932 = vunpack.c.l.b16 %v3593
        %v3933 = vunpack.c.h.b16 %v3593
        %v3934 = vunpack.c.l.b16 %v3594
        %v3935 = vunpack.c.h.b16 %v3594
        %v3936 = vunpack.c.l.b16 %v3595
        %v3937 = vunpack.c.h.b16 %v3595
        %v3938 = vunpack.c.l.b16 %v3596
        %v3939 = vunpack.c.h.b16 %v3596
        %v3940 = vunpack.c.l.b16 %v3597
        %v3941 = vunpack.c.h.b16 %v3597
        %v3942 = vunpack.c.l.b16 %v3598
        %v3943 = vunpack.c.h.b16 %v3598
        %v3944 = vunpack.c.l.b16 %v3599
        %v3945 = vunpack.c.h.b16 %v3599
        %v3946 = vunpack.c.l.b16 %v3600
        %v3947 = vunpack.c.h.b16 %v3600
        %v3948 = vunpack.c.l.b16 %v3601
        %v3949 = vunpack.c.h.b16 %v3601
        %v3950 = vunpack.c.l.b16 %v3602
        %v3951 = vunpack.c.h.b16 %v3602
        %v3952 = vunpack.c.l.b16 %v3603
        %v3953 = vunpack.c.h.b16 %v3603
        %v3954 = vunpack.c.l.b16 %v3604
        %v3955 = vunpack.c.h.b16 %v3604
        %v3956 = vunpack.c.l.b16 %v3605
        %v3957 = vunpack.c.h.b16 %v3605
        %v3958 = vunpack.c.l.b16 %v3606
        %v3959 = vunpack.c.h.b16 %v3606
        %v3960 = vunpack.c.l.b16 %v3607
        %v3961 = vunpack.c.h.b16 %v3607
        %v3962 = vunpack.c.l.b16 %v3608
        %v3963 = vunpack.c.h.b16 %v3608
        %v3964 = vunpack.c.l.b16 %v3609
        %v3965 = vunpack.c.h.b16 %v3609
        %v3966 = vunpack.c.l.b16 %v3610
        %v3967 = vunpack.c.h.b16 %v3610
        %v3968 = vunpack.c.l.b16 %v3611
        %v3969 = vunpack.c.h.b16 %v3611
        %v3970 = vunpack.c.l.b16 %v3612
        %v3971 = vunpack.c.h.b16 %v3612
        %v3972 = vunpack.c.l.b16 %v3613
        %v3973 = vunpack.c.h.b16 %v3613
        %v3974 = vunpack.c.l.b16 %v3614
        %v3975 = vunpack.c.h.b16 %v3614
        %v3976 = vunpack.c.l.b16 %v3615
        %v3977 = vunpack.c.h.b16 %v3615
        %v3978 = vunpack.c.l.b16 %v3616
        %v3979 = vunpack.c.h.b16 %v3616
        %v3980 = vunpack.c.l.b16 %v3617
        %v3981 = vunpack.c.h.b16 %v3617
        %v3982 = vunpack.c.l.b16 %v3618
        %v3983 = vunpack.c.h.b16 %v3618
        %v3984 = vunpack.c.l.b16 %v3619
        %v3985 = vunpack.c.h.b16 %v3619
        %v3986 = vunpack.c.l.b16 %v3620
        %v3987 = vunpack.c.h.b16 %v3620
        %v3988 = vunpack.c.l.b16 %v3621
        %v3989 = vunpack.c.h.b16 %v3621
        %v3990 = vunpack.c.l.b16 %v3622
        %v3991 = vunpack.c.h.b16 %v3622
        %v3992 = vunpack.c.l.b16 %v3623
        %v3993 = vunpack.c.h.b16 %v3623
        %v3994 = vunpack.c.l.b16 %v3624
        %v3995 = vunpack.c.h.b16 %v3624
        %v3996 = vunpack.c.l.b16 %v3625
        %v3997 = vunpack.c.h.b16 %v3625
        %v3998 = vunpack.c.l.b16 %v3626
        %v3999 = vunpack.c.h.b16 %v3626
        %v4000 = vunpack.c.l.b16 %v3627
        %v4001 = vunpack.c.h.b16 %v3627
        %v4002 = vunpack.c.l.b16 %v3628
        %v4003 = vunpack.c.h.b16 %v3628
        %v4004 = vunpack.c.l.b16 %v3629
        %v4005 = vunpack.c.h.b16 %v3629
        %v4006 = vunpack.c.l.b16 %v3630
        %v4007 = vunpack.c.h.b16 %v3630
        %v4008 = vunpack.c.l.b16 %v3631
        %v4009 = vunpack.c.h.b16 %v3631
        %v4010 = vunpack.c.l.b16 %v3632
        %v4011 = vunpack.c.h.b16 %v3632
        %v4012 = vunpack.c.l.b16 %v3633
        %v4013 = vunpack.c.h.b16 %v3633
        %v4014 = vunpack.c.l.b16 %v3634
        %v4015 = vunpack.c.h.b16 %v3634
        %v4016 = vunpack.c.l.b16 %v3635
        %v4017 = vunpack.c.h.b16 %v3635
        %v4018 = vunpack.c.l.b16 %v3636
        %v4019 = vunpack.c.h.b16 %v3636
        %v4020 = vunpack.c.l.b16 %v3637
        %v4021 = vunpack.c.h.b16 %v3637
        %v4022 = vpack.c.b16 %v3774, %v3766
        %v4023 = vpack.c.b16 %v3775, %v3767
        %v4024 = vpack.c.b16 %v3776, %v3768
        %v4025 = vpack.c.b16 %v3777, %v3769
        %v4026 = vpack.c.b16 %v3778, %v3770
        %v4027 = vpack.c.b16 %v3779, %v3771
        %v4028 = vpack.c.b16 %v3780, %v3772
        %v4029 = vpack.c.b16 %v3781, %v3773
        %v4030 = vpack.c.b16 %v3790, %v3782
        %v4031 = vpack.c.b16 %v3791, %v3783
        %v4032 = vpack.c.b16 %v3792, %v3784
        %v4033 = vpack.c.b16 %v3793, %v3785
        %v4034 = vpack.c.b16 %v3794, %v3786
        %v4035 = vpack.c.b16 %v3795, %v3787
        %v4036 = vpack.c.b16 %v3796, %v3788
        %v4037 = vpack.c.b16 %v3797, %v3789
        %v4038 = vpack.c.b16 %v3806, %v3798
        %v4039 = vpack.c.b16 %v3807, %v3799
        %v4040 = vpack.c.b16 %v3808, %v3800
        %v4041 = vpack.c.b16 %v3809, %v3801
        %v4042 = vpack.c.b16 %v3810, %v3802
        %v4043 = vpack.c.b16 %v3811, %v3803
        %v4044 = vpack.c.b16 %v3812, %v3804
        %v4045 = vpack.c.b16 %v3813, %v3805
        %v4046 = vpack.c.b16 %v3822, %v3814
        %v4047 = vpack.c.b16 %v3823, %v3815
        %v4048 = vpack.c.b16 %v3824, %v3816
        %v4049 = vpack.c.b16 %v3825, %v3817
        %v4050 = vpack.c.b16 %v3826, %v3818
        %v4051 = vpack.c.b16 %v3827, %v3819
        %v4052 = vpack.c.b16 %v3828, %v3820
        %v4053 = vpack.c.b16 %v3829, %v3821
        %v4054 = vpack.c.b16 %v3838, %v3830
        %v4055 = vpack.c.b16 %v3839, %v3831
        %v4056 = vpack.c.b16 %v3840, %v3832
        %v4057 = vpack.c.b16 %v3841, %v3833
        %v4058 = vpack.c.b16 %v3842, %v3834
        %v4059 = vpack.c.b16 %v3843, %v3835
        %v4060 = vpack.c.b16 %v3844, %v3836
        %v4061 = vpack.c.b16 %v3845, %v3837
        %v4062 = vpack.c.b16 %v3854, %v3846
        %v4063 = vpack.c.b16 %v3855, %v3847
        %v4064 = vpack.c.b16 %v3856, %v3848
        %v4065 = vpack.c.b16 %v3857, %v3849
        %v4066 = vpack.c.b16 %v3858, %v3850
        %v4067 = vpack.c.b16 %v3859, %v3851
        %v4068 = vpack.c.b16 %v3860, %v3852
        %v4069 = vpack.c.b16 %v3861, %v3853
        %v4070 = vpack.c.b16 %v3870, %v3862
        %v4071 = vpack.c.b16 %v3871, %v3863
        %v4072 = vpack.c.b16 %v3872, %v3864
        %v4073 = vpack.c.b16 %v3873, %v3865
        %v4074 = vpack.c.b16 %v3874, %v3866
        %v4075 = vpack.c.b16 %v3875, %v3867
        %v4076 = vpack.c.b16 %v3876, %v3868
        %v4077 = vpack.c.b16 %v3877, %v3869
        %v4078 = vpack.c.b16 %v3886, %v3878
        %v4079 = vpack.c.b16 %v3887, %v3879
        %v4080 = vpack.c.b16 %v3888, %v3880
        %v4081 = vpack.c.b16 %v3889, %v3881
        %v4082 = vpack.c.b16 %v3890, %v3882
        %v4083 = vpack.c.b16 %v3891, %v3883
        %v4084 = vpack.c.b16 %v3892, %v3884
        %v4085 = vpack.c.b16 %v3893, %v3885
        %v4086 = vpack.c.b16 %v3902, %v3894
        %v4087 = vpack.c.b16 %v3903, %v3895
        %v4088 = vpack.c.b16 %v3904, %v3896
        %v4089 = vpack.c.b16 %v3905, %v3897
        %v4090 = vpack.c.b16 %v3906, %v3898
        %v4091 = vpack.c.b16 %v3907, %v3899
        %v4092 = vpack.c.b16 %v3908, %v3900
        %v4093 = vpack.c.b16 %v3909, %v3901
        %v4094 = vpack.c.b16 %v3918, %v3910
        %v4095 = vpack.c.b16 %v3919, %v3911
        %v4096 = vpack.c.b16 %v3920, %v3912
        %v4097 = vpack.c.b16 %v3921, %v3913
        %v4098 = vpack.c.b16 %v3922, %v3914
        %v4099 = vpack.c.b16 %v3923, %v3915
        %v4100 = vpack.c.b16 %v3924, %v3916
        %v4101 = vpack.c.b16 %v3925, %v3917
        %v4102 = vpack.c.b16 %v3934, %v3926
        %v4103 = vpack.c.b16 %v3935, %v3927
        %v4104 = vpack.c.b16 %v3936, %v3928
        %v4105 = vpack.c.b16 %v3937, %v3929
        %v4106 = vpack.c.b16 %v3938, %v3930
        %v4107 = vpack.c.b16 %v3939, %v3931
        %v4108 = vpack.c.b16 %v3940, %v3932
        %v4109 = vpack.c.b16 %v3941, %v3933
        %v4110 = vpack.c.b16 %v3950, %v3942
        %v4111 = vpack.c.b16 %v3951, %v3943
        %v4112 = vpack.c.b16 %v3952, %v3944
        %v4113 = vpack.c.b16 %v3953, %v3945
        %v4114 = vpack.c.b16 %v3954, %v3946
        %v4115 = vpack.c.b16 %v3955, %v3947
        %v4116 = vpack.c.b16 %v3956, %v3948
        %v4117 = vpack.c.b16 %v3957, %v3949
        %v4118 = vpack.c.b16 %v3966, %v3958
        %v4119 = vpack.c.b16 %v3967, %v3959
        %v4120 = vpack.c.b16 %v3968, %v3960
        %v4121 = vpack.c.b16 %v3969, %v3961
        %v4122 = vpack.c.b16 %v3970, %v3962
        %v4123 = vpack.c.b16 %v3971, %v3963
        %v4124 = vpack.c.b16 %v3972, %v3964
        %v4125 = vpack.c.b16 %v3973, %v3965
        %v4126 = vpack.c.b16 %v3982, %v3974
        %v4127 = vpack.c.b16 %v3983, %v3975
        %v4128 = vpack.c.b16 %v3984, %v3976
        %v4129 = vpack.c.b16 %v3985, %v3977
        %v4130 = vpack.c.b16 %v3986, %v3978
        %v4131 = vpack.c.b16 %v3987, %v3979
        %v4132 = vpack.c.b16 %v3988, %v3980
        %v4133 = vpack.c.b16 %v3989, %v3981
        %v4134 = vpack.c.b16 %v3998, %v3990
        %v4135 = vpack.c.b16 %v3999, %v3991
        %v4136 = vpack.c.b16 %v4000, %v3992
        %v4137 = vpack.c.b16 %v4001, %v3993
        %v4138 = vpack.c.b16 %v4002, %v3994
        %v4139 = vpack.c.b16 %v4003, %v3995
        %v4140 = vpack.c.b16 %v4004, %v3996
        %v4141 = vpack.c.b16 %v4005, %v3997
        %v4142 = vpack.c.b16 %v4014, %v4006
        %v4143 = vpack.c.b16 %v4015, %v4007
        %v4144 = vpack.c.b16 %v4016, %v4008
        %v4145 = vpack.c.b16 %v4017, %v4009
        %v4146 = vpack.c.b16 %v4018, %v4010
        %v4147 = vpack.c.b16 %v4019, %v4011
        %v4148 = vpack.c.b16 %v4020, %v4012
        %v4149 = vpack.c.b16 %v4021, %v4013
        %4278 = vmatpush.bf16.msra.mxu0 %v4078
        %4279 = vmatpush.bf16.msra.mxu0 %v4070
        %4280 = vmatpush.bf16.msra.mxu0 %v4062
        %4281 = vmatpush.bf16.msra.mxu0 %v4054
        %4282 = vmatpush.bf16.msra.mxu0 %v4046
        %4283 = vmatpush.bf16.msra.mxu0 %v4038
        %4284 = vmatpush.bf16.msra.mxu0 %v4030
        %4285 = vmatpush.bf16.msra.mxu0 %v4022
        %4286 = vmatmul.bf16.gmra.mxu0 %v3508
        %v4287 = vpop.f32.mrf.mxu0
        %v4288 = vadd.f32 0.0, %v4287
        %v4289 = vpop.f32.mrf.mxu0
        %4290 = vdwg.mxu0
        %4291 = vmatpush.bf16.msra.mxu0 %v4142
        %4292 = vmatpush.bf16.msra.mxu0 %v4134
        %4293 = vmatpush.bf16.msra.mxu0 %v4126
        %4294 = vmatpush.bf16.msra.mxu0 %v4118
        %4295 = vmatpush.bf16.msra.mxu0 %v4110
        %4296 = vmatpush.bf16.msra.mxu0 %v4102
        %4297 = vmatpush.bf16.msra.mxu0 %v4094
        %4298 = vmatpush.bf16.msra.mxu0 %v4086
        %4299 = vmatmul.bf16.gmra.mxu0 %v3509
        %v4300 = vpop.f32.mrf.mxu0
        %v4301 = vadd.f32 %v4288, %v4300
        %v4302 = vpop.f32.mrf.mxu0
        %4303 = vdwg.mxu0
        %4304 = vmatpush.bf16.msra.mxu0 %v4079
        %4305 = vmatpush.bf16.msra.mxu0 %v4071
        %4306 = vmatpush.bf16.msra.mxu0 %v4063
        %4307 = vmatpush.bf16.msra.mxu0 %v4055
        %4308 = vmatpush.bf16.msra.mxu0 %v4047
        %4309 = vmatpush.bf16.msra.mxu0 %v4039
        %4310 = vmatpush.bf16.msra.mxu0 %v4031
        %4311 = vmatpush.bf16.msra.mxu0 %v4023
        %4312 = vmatmul.bf16.gmra.mxu0 %v3508
        %v4313 = vpop.f32.mrf.mxu0
        %v4314 = vadd.f32 0.0, %v4313
        %v4315 = vpop.f32.mrf.mxu0
        %4316 = vdwg.mxu0
        %4317 = vmatpush.bf16.msra.mxu0 %v4143
        %4318 = vmatpush.bf16.msra.mxu0 %v4135
        %4319 = vmatpush.bf16.msra.mxu0 %v4127
        %4320 = vmatpush.bf16.msra.mxu0 %v4119
        %4321 = vmatpush.bf16.msra.mxu0 %v4111
        %4322 = vmatpush.bf16.msra.mxu0 %v4103
        %4323 = vmatpush.bf16.msra.mxu0 %v4095
        %4324 = vmatpush.bf16.msra.mxu0 %v4087
        %4325 = vmatmul.bf16.gmra.mxu0 %v3509
        %v4326 = vpop.f32.mrf.mxu0
        %v4327 = vadd.f32 %v4314, %v4326
        %v4328 = vpop.f32.mrf.mxu0
        %4329 = vdwg.mxu0
        %4330 = vmatpush.bf16.msra.mxu0 %v4080
        %4331 = vmatpush.bf16.msra.mxu0 %v4072
        %4332 = vmatpush.bf16.msra.mxu0 %v4064
        %4333 = vmatpush.bf16.msra.mxu0 %v4056
        %4334 = vmatpush.bf16.msra.mxu0 %v4048
        %4335 = vmatpush.bf16.msra.mxu0 %v4040
        %4336 = vmatpush.bf16.msra.mxu0 %v4032
        %4337 = vmatpush.bf16.msra.mxu0 %v4024
        %4338 = vmatmul.bf16.gmra.mxu0 %v3508
        %v4339 = vpop.f32.mrf.mxu0
        %v4340 = vadd.f32 0.0, %v4339
        %v4341 = vpop.f32.mrf.mxu0
        %4342 = vdwg.mxu0
        %4343 = vmatpush.bf16.msra.mxu0 %v4144
        %4344 = vmatpush.bf16.msra.mxu0 %v4136
        %4345 = vmatpush.bf16.msra.mxu0 %v4128
        %4346 = vmatpush.bf16.msra.mxu0 %v4120
        %4347 = vmatpush.bf16.msra.mxu0 %v4112
        %4348 = vmatpush.bf16.msra.mxu0 %v4104
        %4349 = vmatpush.bf16.msra.mxu0 %v4096
        %4350 = vmatpush.bf16.msra.mxu0 %v4088
        %4351 = vmatmul.bf16.gmra.mxu0 %v3509
        %v4352 = vpop.f32.mrf.mxu0
        %v4353 = vadd.f32 %v4340, %v4352
        %v4354 = vpop.f32.mrf.mxu0
        %4355 = vdwg.mxu0
        %4356 = vmatpush.bf16.msra.mxu0 %v4081
        %4357 = vmatpush.bf16.msra.mxu0 %v4073
        %4358 = vmatpush.bf16.msra.mxu0 %v4065
        %4359 = vmatpush.bf16.msra.mxu0 %v4057
        %4360 = vmatpush.bf16.msra.mxu0 %v4049
        %4361 = vmatpush.bf16.msra.mxu0 %v4041
        %4362 = vmatpush.bf16.msra.mxu0 %v4033
        %4363 = vmatpush.bf16.msra.mxu0 %v4025
        %4364 = vmatmul.bf16.gmra.mxu0 %v3508
        %v4365 = vpop.f32.mrf.mxu0
        %v4366 = vadd.f32 0.0, %v4365
        %v4367 = vpop.f32.mrf.mxu0
        %4368 = vdwg.mxu0
        %4369 = vmatpush.bf16.msra.mxu0 %v4145
        %4370 = vmatpush.bf16.msra.mxu0 %v4137
        %4371 = vmatpush.bf16.msra.mxu0 %v4129
        %4372 = vmatpush.bf16.msra.mxu0 %v4121
        %4373 = vmatpush.bf16.msra.mxu0 %v4113
        %4374 = vmatpush.bf16.msra.mxu0 %v4105
        %4375 = vmatpush.bf16.msra.mxu0 %v4097
        %4376 = vmatpush.bf16.msra.mxu0 %v4089
        %4377 = vmatmul.bf16.gmra.mxu0 %v3509
        %v4378 = vpop.f32.mrf.mxu0
        %v4379 = vadd.f32 %v4366, %v4378
        %v4380 = vpop.f32.mrf.mxu0
        %4381 = vdwg.mxu0
        %4382 = vmatpush.bf16.msra.mxu0 %v4082
        %4383 = vmatpush.bf16.msra.mxu0 %v4074
        %4384 = vmatpush.bf16.msra.mxu0 %v4066
        %4385 = vmatpush.bf16.msra.mxu0 %v4058
        %4386 = vmatpush.bf16.msra.mxu0 %v4050
        %4387 = vmatpush.bf16.msra.mxu0 %v4042
        %4388 = vmatpush.bf16.msra.mxu0 %v4034
        %4389 = vmatpush.bf16.msra.mxu0 %v4026
        %4390 = vmatmul.bf16.gmra.mxu0 %v3508
        %v4391 = vpop.f32.mrf.mxu0
        %v4392 = vadd.f32 0.0, %v4391
        %v4393 = vpop.f32.mrf.mxu0
        %4394 = vdwg.mxu0
        %4395 = vmatpush.bf16.msra.mxu0 %v4146
        %4396 = vmatpush.bf16.msra.mxu0 %v4138
        %4397 = vmatpush.bf16.msra.mxu0 %v4130
        %4398 = vmatpush.bf16.msra.mxu0 %v4122
        %4399 = vmatpush.bf16.msra.mxu0 %v4114
        %4400 = vmatpush.bf16.msra.mxu0 %v4106
        %4401 = vmatpush.bf16.msra.mxu0 %v4098
        %4402 = vmatpush.bf16.msra.mxu0 %v4090
        %4403 = vmatmul.bf16.gmra.mxu0 %v3509
        %v4404 = vpop.f32.mrf.mxu0
        %v4405 = vadd.f32 %v4392, %v4404
        %v4406 = vpop.f32.mrf.mxu0
        %4407 = vdwg.mxu0
        %4408 = vmatpush.bf16.msra.mxu0 %v4083
        %4409 = vmatpush.bf16.msra.mxu0 %v4075
        %4410 = vmatpush.bf16.msra.mxu0 %v4067
        %4411 = vmatpush.bf16.msra.mxu0 %v4059
        %4412 = vmatpush.bf16.msra.mxu0 %v4051
        %4413 = vmatpush.bf16.msra.mxu0 %v4043
        %4414 = vmatpush.bf16.msra.mxu0 %v4035
        %4415 = vmatpush.bf16.msra.mxu0 %v4027
        %4416 = vmatmul.bf16.gmra.mxu0 %v3508
        %v4417 = vpop.f32.mrf.mxu0
        %v4418 = vadd.f32 0.0, %v4417
        %v4419 = vpop.f32.mrf.mxu0
        %4420 = vdwg.mxu0
        %4421 = vmatpush.bf16.msra.mxu0 %v4147
        %4422 = vmatpush.bf16.msra.mxu0 %v4139
        %4423 = vmatpush.bf16.msra.mxu0 %v4131
        %4424 = vmatpush.bf16.msra.mxu0 %v4123
        %4425 = vmatpush.bf16.msra.mxu0 %v4115
        %4426 = vmatpush.bf16.msra.mxu0 %v4107
        %4427 = vmatpush.bf16.msra.mxu0 %v4099
        %4428 = vmatpush.bf16.msra.mxu0 %v4091
        %4429 = vmatmul.bf16.gmra.mxu0 %v3509
        %v4430 = vpop.f32.mrf.mxu0
        %v4431 = vadd.f32 %v4418, %v4430
        %v4432 = vpop.f32.mrf.mxu0
        %4433 = vdwg.mxu0
        %4434 = vmatpush.bf16.msra.mxu0 %v4084
        %4435 = vmatpush.bf16.msra.mxu0 %v4076
        %4436 = vmatpush.bf16.msra.mxu0 %v4068
        %4437 = vmatpush.bf16.msra.mxu0 %v4060
        %4438 = vmatpush.bf16.msra.mxu0 %v4052
        %4439 = vmatpush.bf16.msra.mxu0 %v4044
        %4440 = vmatpush.bf16.msra.mxu0 %v4036
        %4441 = vmatpush.bf16.msra.mxu0 %v4028
        %4442 = vmatmul.bf16.gmra.mxu0 %v3508
        %v4443 = vpop.f32.mrf.mxu0
        %v4444 = vadd.f32 0.0, %v4443
        %v4445 = vpop.f32.mrf.mxu0
        %4446 = vdwg.mxu0
        %4447 = vmatpush.bf16.msra.mxu0 %v4148
        %4448 = vmatpush.bf16.msra.mxu0 %v4140
        %4449 = vmatpush.bf16.msra.mxu0 %v4132
        %4450 = vmatpush.bf16.msra.mxu0 %v4124
        %4451 = vmatpush.bf16.msra.mxu0 %v4116
        %4452 = vmatpush.bf16.msra.mxu0 %v4108
        %4453 = vmatpush.bf16.msra.mxu0 %v4100
        %4454 = vmatpush.bf16.msra.mxu0 %v4092
        %4455 = vmatmul.bf16.gmra.mxu0 %v3509
        %v4456 = vpop.f32.mrf.mxu0
        %v4457 = vadd.f32 %v4444, %v4456
        %v4458 = vpop.f32.mrf.mxu0
        %4459 = vdwg.mxu0
        %4460 = vmatpush.bf16.msra.mxu0 %v4085
        %4461 = vmatpush.bf16.msra.mxu0 %v4077
        %4462 = vmatpush.bf16.msra.mxu0 %v4069
        %4463 = vmatpush.bf16.msra.mxu0 %v4061
        %4464 = vmatpush.bf16.msra.mxu0 %v4053
        %4465 = vmatpush.bf16.msra.mxu0 %v4045
        %4466 = vmatpush.bf16.msra.mxu0 %v4037
        %4467 = vmatpush.bf16.msra.mxu0 %v4029
        %4468 = vmatmul.bf16.gmra.mxu0 %v3508
        %v4469 = vpop.f32.mrf.mxu0
        %v4470 = vadd.f32 0.0, %v4469
        %v4471 = vpop.f32.mrf.mxu0
        %4472 = vdwg.mxu0
        %4473 = vmatpush.bf16.msra.mxu0 %v4149
        %4474 = vmatpush.bf16.msra.mxu0 %v4141
        %4475 = vmatpush.bf16.msra.mxu0 %v4133
        %4476 = vmatpush.bf16.msra.mxu0 %v4125
        %4477 = vmatpush.bf16.msra.mxu0 %v4117
        %4478 = vmatpush.bf16.msra.mxu0 %v4109
        %4479 = vmatpush.bf16.msra.mxu0 %v4101
        %4480 = vmatpush.bf16.msra.mxu0 %v4093
        %4481 = vmatmul.bf16.gmra.mxu0 %v3509
        %v4482 = vpop.f32.mrf.mxu0
        %v4483 = vadd.f32 %v4470, %v4482
        %v4484 = vpop.f32.mrf.mxu0
        %4485 = vdwg.mxu0
        %v4494 = vrot.slane %v4327, 6
        %v4495 = vrot.slane %v4353, 4
        %v4496 = vrot.slane %v4379, 2
        %v4497 = vrot.slane %v4431, 6
        %v4498 = vrot.slane %v4457, 4
        %v4499 = vrot.slane %v4483, 2
        %v4500 = vsel %vm1319, %v4301, %v4494
        %v4501 = vsel %vm1321, %v4495, %v4496
        %v4502 = vsel %vm1323, %v4500, %v4501
        %v4503 = vsel %vm1319, %v4405, %v4497
        %v4504 = vsel %vm1321, %v4498, %v4499
        %v4505 = vsel %vm1323, %v4503, %v4504
        %v4508 = vadd.f32 %v3499, %v4502
        %v4509 = vadd.f32 %v3500, %v4505
        %v4510 = vmul.f32 %v4508, 0.5
        %v4511 = vtanh.pop %v4510
        %v4512 = vmul.f32 %v4511, 0.5
        %v4513 = vadd.f32 %v4512, 0.5
        %v4515 = vrot.slane %v4508, 4
        %v4517 = vmul.f32 %v4515, 0.5
        %v4518 = vtanh.pop %v4517
        %v4519 = vmul.f32 %v4518, 0.5
        %v4520 = vadd.f32 %v4519, 0.5
        %v4521 = vtanh.pop %v4509
        %v4523 = vrot.slane %v4509, 4
        %v4525 = vmul.f32 %v4523, 0.5
        %v4526 = vtanh.pop %v4525
        %v4527 = vmul.f32 %v4526, 0.5
        %v4528 = vadd.f32 %v4527, 0.5
        %v4529 = vld [vmem:[#allocation3] sm:$0xf]
        %v4530 = vmul.f32 %v4520, %v4529
        %v4531 = vmul.f32 %v4513, %v4521
        %v4532 = vadd.f32 %v4530, %v4531
        %v4533 = vtanh.pop %v4532
        %v4534 = vmul.f32 %v4528, %v4533
        %4535 = vst [vmem:[#allocation2] sm:$0xf] %v4534
        %4536 = vst [vmem:[#allocation3] sm:$0xf] %v4532
        %4538 = vst [vmem:[#allocation1] ss:$4 sm:$0xff] %v4534
        %v4539 = vld.sshfl [vmem:[#allocation1] sm:$0xff pattern:$0x73625140]
        %v4540 = vld.sshfl [vmem:[#allocation1 + $0x8] sm:$0xff pattern:$0x73625140]
        %v4543 = vpack.c.bf16 %v4540, %v4539
        %v4545 = vrot.slane %v4543, 3
        %v4548 = vsel %vm1368, %v4543, %v4545
        %s4550 = smul.u32 %s3495, 2
        %s4551 = scalar_lea.vmem %s301, %s4550
        %4552 = vst [vmem:[%s4551] sm:$0x3] %v4548
        %s4553 = ssub.s32 0, %s21
        %s4554 = smul.u32 %s20, %s4553
        %s4555 = ssub.s32 1, %s20
        %s4556 = smul.u32 %s4555, %s21
        %s4557 = sadd.s32 %s4554, %s4556
        %s4558 = smul.u32 4, %s4557
        %p4559 = scmp.lt.s32.totalorder %s20, 1
        %s4560 = scalar_select %p4559, %s20, 1
        %p4561 = scmp.lt.s32.totalorder %s4558, 3
        %s4562 = scalar_select %p4561, %s4558, 3
        %s4563 = smul.addr %s4562, 2
        %s4564 = smul.addr %s4560, 8
        %s4565 = sadd.s32 %s4563, %s4564
        %s4566 = scalar_lea.vmem %s2, %s4565
        // Predicated region
        $region75: #{crnn_forward.12} parent=61 // pred_check
          %p4567 = pneg %p122
        $region76: #{crnn_forward.12} parent=61 // pred_check_branch
          %4569 = sbr.rel (%p4567) target = $region78
        $region77: #{crnn_forward.12} parent=61 // pred_region
          %s4570 = ssub.s32 0, %s21
          %s4571 = smul.u32 %s20, %s4570
          %s4572 = ssub.s32 1, %s20
          %s4573 = smul.u32 %s4572, %s21
          %s4574 = sadd.s32 %s4571, %s4573
          %s4575 = smul.u32 4, %s4574
        $region78: #{crnn_forward.12} parent=61 // pred_fallthru
          _
      $region62: #{crnn_forward.12} parent=5 // pred_fallthru
        _
      %p4576 = scmp.le.s32.totalorder 2, %s11
      // Predicated region
      $region79: #{crnn_forward.12} parent=5 // pred_check
        %p4577 = pneg %p4576
      $region80: #{crnn_forward.12} parent=5 // pred_check_branch
        %4579 = sbr.rel (%p4577) target = $region82
      $region81: #{crnn_forward.12} parent=5 // pred_region
        %s4580 = ssub.s32 %s11, 2
        // Predicated region
        $region83: #{crnn_forward.12} parent=81 // pred_check
          %p4581 = pneg %p128
        $region84: #{crnn_forward.12} parent=81 // pred_check_branch
          %4583 = sbr.rel (%p4581) target = $region86
        $region85: #{crnn_forward.12} parent=81 // pred_region
          %s4584 = ssub.s32 0, %s23
          %s4585 = smul.u32 %s22, %s4584
          %s4586 = ssub.s32 1, %s22
          %s4587 = smul.u32 %s4586, %s23
          %s4588 = sadd.s32 %s4585, %s4587
          %s4589 = smul.u32 4, %s4588
          %p4590 = scmp.lt.s32.totalorder %s22, 1
          %s4591 = scalar_select %p4590, %s22, 1
          %p4592 = scmp.lt.s32.totalorder %s4589, 3
          %s4593 = scalar_select %p4592, %s4589, 3
          %s4594 = smul.addr %s4593, 2
          %s4595 = smul.addr %s4591, 8
          %s4596 = sadd.s32 %s4594, %s4595
          %s4597 = scalar_lea.vmem %s2, %s4596
        $region86: #{crnn_forward.12} parent=81 // pred_fallthru
          _
      $region82: #{crnn_forward.12} parent=5 // pred_fallthru
        _
    $region6: #{crnn_forward.12} parent=1 // loop_footer
      %s15 = sadd.s32 1, %s11
    $region7: #{crnn_forward.12} parent=1 // loop_footer_branch
      %10 = sbr.rel target = $region3
    $region8: #{crnn_forward.12} parent=1 // loop_exit
      _
    %4598 = vsyncpa [#allocation6], 1
    %s4599 = scalar_lea.sflag [#allocation6], 1
    %4600 = vsyncpa %s4599, 1

</llo_original>
